<compile_context>
chip_gen: v7x
topology: tpu7x:2x2x1
jax: 0.10.0
libtpu: 0.0.40
codegen_flags: <defaults>
</compile_context>

<pallas_src>
import functools

import jax
import jax.numpy as jnp
from jax.experimental import pallas as pl
from jax.experimental.pallas import tpu as pltpu


def _ggru_kernel(h0_ref, xt_ref, xm_ref,
                 wxt_ref, wxm_ref, bxt_ref, bxm_ref,
                 whzr_ref, whh_ref, wfus_ref, fb_ref,
                 out_ref, hfin_ref,
                 h_ref, gxt_sc, gxm_sc,
                 *, i_last, n_tchunks):
    tc = pl.program_id(1)                       # time-chunk index (sequential carry)
    tb, bb, nhp = out_ref.shape
    ni = xt_ref.shape[-1]
    cdt = whzr_ref.dtype                        # MXU dtype (bf16/f32); gate math stays f32

    @pl.when(tc == 0)
    def _init():
        # New batch chunk: (re)initialize the carried hidden state.
        h_ref[...] = h0_ref[...]

    # ---- per-chunk input projections: one big-M MXU matmul per stream ----------
    def proj(x_ref, wx_ref, bx_ref, gx_sc):
        x = x_ref[...].reshape(tb * bb, ni).astype(cdt)
        gx = jnp.dot(x, wx_ref[...], preferred_element_type=jnp.float32)
        gx = gx + bx_ref[...]                   # (1, 3*nhp) broadcast, once per chunk
        gx_sc[...] = gx.reshape(tb, bb, 3 * nhp)

    proj(xt_ref, wxt_ref, bxt_ref, gxt_sc)
    proj(xm_ref, wxm_ref, bxm_ref, gxm_sc)

    whzr = whzr_ref[...]                        # (nhp, 4*nhp)  [z_t | r_t | z_m | r_m]
    whh_t = whh_ref[0]                          # (nhp, nhp)
    whh_m = whh_ref[1]                          # (nhp, nhp)
    wfus_t = wfus_ref[0]                        # (nhp, nhp)
    wfus_m = wfus_ref[1]                        # (nhp, nhp)
    fb_b = jnp.broadcast_to(fb_ref[...], (bb, nhp))   # hoisted: once per grid step

    H = h_ref[...]                              # (bb, nhp) f32 carried hidden state
    # Fully unrolled time loop (tb is small & static) => all ref indices static,
    # per-step loads/stores are contiguous (bb, nhp)/(bb, 3*nhp) slabs.
    for i in range(tb):
        gxt = gxt_sc[i]                         # (bb, 3*nhp) [z | r | h]
        gxm = gxm_sc[i]
        Hc = H.astype(cdt)
        gh = jnp.dot(Hc, whzr, preferred_element_type=jnp.float32)   # (bb, 4*nhp)
        Z_t = jax.nn.sigmoid(gxt[:, :nhp] + gh[:, :nhp])
        R_t = jax.nn.sigmoid(gxt[:, nhp:2 * nhp] + gh[:, nhp:2 * nhp])
        Z_m = jax.nn.sigmoid(gxm[:, :nhp] + gh[:, 2 * nhp:3 * nhp])
        R_m = jax.nn.sigmoid(gxm[:, nhp:2 * nhp] + gh[:, 3 * nhp:])
        Ht_tilde = jnp.tanh(
            gxt[:, 2 * nhp:]
            + jnp.dot((R_t * H).astype(cdt), whh_t,
                      preferred_element_type=jnp.float32))
        Hm_tilde = jnp.tanh(
            gxm[:, 2 * nhp:]
            + jnp.dot((R_m * H).astype(cdt), whh_m,
                      preferred_element_type=jnp.float32))
        H_t = Z_t * H + (1.0 - Z_t) * Ht_tilde
        H_m = Z_m * H + (1.0 - Z_m) * Hm_tilde
        z = jax.nn.sigmoid(
            jnp.dot(H_t.astype(cdt), wfus_t, preferred_element_type=jnp.float32)
            + jnp.dot(H_m.astype(cdt), wfus_m, preferred_element_type=jnp.float32)
            + fb_b)
        H = z * H_t + (1.0 - z) * H_m

        out_ref[i] = H                          # contiguous (bb, nhp) store (time-major)

        if i == i_last:                         # statically-known unrolled step
            @pl.when(tc == n_tchunks - 1)
            def _write_final():
                hfin_ref[...] = H

    # NOTE: if padded tail time steps exist (T % tb != 0) they run after i_last
    # in the last chunk, so h_ref is a post-padding state; hfin (captured above)
    # is the correct final H.
    h_ref[...] = H


def _round_up(x, m):
    return (x + m - 1) // m * m


def ggru_forward(tt_inputs, mark_inputs, params, H=None, *,
                 weights_dtype=jnp.bfloat16, time_block=16, batch_block=None):
    """tt_inputs, mark_inputs: (B, T, num_inputs).
       Returns (outputs (B, T, num_hiddens), final H (B, num_hiddens))."""
    f32 = jnp.float32
    B, T, ni = tt_inputs.shape
    nh = params["b_z_t"].shape[0]
    nhp = _round_up(nh, 128)                    # lane-dense hidden size

    # ---- time blocking: prefer a divisor of T (no padded tail steps) -----------
    tb_target = max(1, min(int(time_block), T))
    tb = None
    for cand in range(tb_target, max(tb_target // 2, 1) - 1, -1):
        if T % cand == 0:
            tb = cand
            break
    if tb is None:
        tb = tb_target                          # accept a short padded tail
    Tp = _round_up(T, tb)
    n_tchunks = Tp // tb
    i_last = (T - 1) % tb

    # ---- batch blocking: derive from VMEM budget (v7x-safe), 8-aligned ---------
    Bp = _round_up(B, 8)
    if batch_block is None:
        # per-batch-row bytes: x tiles (2 streams, 2 bufs) + h0/hfin/h + out tile
        # + the two (tb, 3*nhp) f32 gx scratch rows.
        per_row = 4 * (4 * tb * ni + 5 * nhp + 8 * tb * nhp)
        budget = 40 << 20                       # stays within v7x 64 MiB VMEM; raise
        bb = max(8, min(Bp, 512, (budget // per_row) // 8 * 8))  # batch_block on v5e/v6e
    else:
        bb = max(8, _round_up(min(int(batch_block), Bp), 8))
    Bp = _round_up(Bp, bb)
    n_bchunks = Bp // bb

    # ---- weights: zero-padded to nhp, fused, cast for the MXU ------------------
    wdt = weights_dtype

    def padw(w, rows, cols):
        return jnp.pad(w.astype(f32),
                       ((0, rows - w.shape[0]), (0, cols - w.shape[1])))

    def padb(b):
        return jnp.pad(b.astype(f32), (0, nhp - nh))

    def wx_of(branch):                          # (ni, 3*nhp) [z | r | h], gate-block aligned
        return jnp.concatenate([padw(params[f"W_x{g}_{branch}"], ni, nhp)
                                for g in ("z", "r", "h")], axis=1).astype(wdt)

    def bx_of(branch):                          # (1, 3*nhp)
        return jnp.concatenate([padb(params[f"b_{g}_{branch}"])
                                for g in ("z", "r", "h")])[None, :]

    wx_t, wx_m = wx_of("t"), wx_of("m")
    bx_t, bx_m = bx_of("t"), bx_of("m")
    whzr = jnp.concatenate([padw(params["W_hz_t"], nhp, nhp),
                            padw(params["W_hr_t"], nhp, nhp),
                            padw(params["W_hz_m"], nhp, nhp),
                            padw(params["W_hr_m"], nhp, nhp)],
                           axis=1).astype(wdt)                            # (nhp, 4*nhp)
    whh = jnp.stack([padw(params["W_hh_t"], nhp, nhp),
                     padw(params["W_hh_m"], nhp, nhp)]).astype(wdt)       # (2, nhp, nhp)
    wfus = jnp.stack([padw(params["fus_W_t"], nhp, nhp),
                      padw(params["fus_W_m"], nhp, nhp)]).astype(wdt)     # (2, nhp, nhp)
    fb = padb(params["fus_bias"])[None, :]                                # (1, nhp) f32

    # ---- inputs: time-major (contiguous per-step slabs in the kernel) ----------
    def prep_x(X):
        Xt = jnp.transpose(X.astype(f32), (1, 0, 2))        # (T, B, ni); ni is tiny
        return jnp.pad(Xt, ((0, Tp - T), (0, Bp - B), (0, 0)))

    x_t = prep_x(tt_inputs)
    x_m = prep_x(mark_inputs)

    if H is None:
        h0 = jnp.zeros((Bp, nhp), f32)
    else:
        h0 = jnp.pad(H.astype(f32), ((0, Bp - B), (0, nhp - nh)))

    # ---- specs ------------------------------------------------------------------
    grid = (n_bchunks, n_tchunks)
    x_spec = pl.BlockSpec((tb, bb, ni), lambda b, t: (t, b, 0))
    h0_spec = pl.BlockSpec((bb, nhp), lambda b, t: (b, 0))
    # Constant-index weight specs: DMA'd once in the prologue, kept resident.
    wxt_spec = pl.BlockSpec((ni, 3 * nhp), lambda b, t: (0, 0))
    bx_spec = pl.BlockSpec((1, 3 * nhp), lambda b, t: (0, 0))
    whzr_spec = pl.BlockSpec((nhp, 4 * nhp), lambda b, t: (0, 0))
    whh_spec = pl.BlockSpec((2, nhp, nhp), lambda b, t: (0, 0, 0))
    wfus_spec = pl.BlockSpec((2, nhp, nhp), lambda b, t: (0, 0, 0))
    fb_spec = pl.BlockSpec((1, nhp), lambda b, t: (0, 0))
    out_spec = pl.BlockSpec((tb, bb, nhp), lambda b, t: (t, b, 0))
    hfin_spec = pl.BlockSpec((bb, nhp), lambda b, t: (b, 0))

    # ---- VMEM limit from the actual footprint (clamped) -------------------------
    wbytes = jnp.dtype(wdt).itemsize
    weight_bytes = 2 * wbytes * (2 * ni * 3 * nhp + nhp * 4 * nhp
                                 + 2 * nhp * nhp + 2 * nhp * nhp) \
        + 2 * 4 * (2 * 3 * nhp + nhp)
    tile_bytes = (2 * 2 * tb * bb * ni * 4      # x_t / x_m (double-buffered)
                  + 2 * bb * nhp * 4            # h0
                  + 2 * tb * bb * nhp * 4       # out
                  + 2 * bb * nhp * 4)           # hfin
    scratch_bytes = bb * nhp * 4 + 2 * tb * bb * 3 * nhp * 4
    vmem_limit = int(min(max(1.3 * (weight_bytes + tile_bytes + scratch_bytes)
                             + (8 << 20), 32 << 20), 96 << 20))

    kernel = functools.partial(_ggru_kernel, i_last=i_last, n_tchunks=n_tchunks)

    out, h_fin = pl.pallas_call(
        kernel,
        out_shape=(jax.ShapeDtypeStruct((Tp, Bp, nhp), f32),
                   jax.ShapeDtypeStruct((Bp, nhp), f32)),
        grid_spec=pltpu.PrefetchScalarGridSpec(
            num_scalar_prefetch=0,
            grid=grid,
            in_specs=[h0_spec, x_spec, x_spec,
                      wxt_spec, wxt_spec, bx_spec, bx_spec,
                      whzr_spec, whh_spec, wfus_spec, fb_spec],
            out_specs=(out_spec, hfin_spec),
            scratch_shapes=[
                pltpu.VMEM((bb, nhp), f32),               # carried hidden state
                pltpu.VMEM((tb, bb, 3 * nhp), f32),       # gx_t for this chunk
                pltpu.VMEM((tb, bb, 3 * nhp), f32),       # gx_m for this chunk
            ]),
        compiler_params=pltpu.CompilerParams(
            dimension_semantics=("parallel", "arbitrary"),   # batch ||, time serial
            vmem_limit_bytes=vmem_limit),
    )(h0, x_t, x_m, wx_t, wx_m, bx_t, bx_m, whzr, whh, wfus, fb)

    outputs = jnp.transpose(out[:T, :B, :nh], (1, 0, 2))     # (B, T, nh)
    H_final = h_fin[:B, :nh]
    # TODO(synk): dropout (p=0.0 in this config) is an identity at inference; not modeled.
    return outputs, H_final


def init_params(key, num_inputs, num_hiddens, sigma=0.01):
    keys = jax.random.split(key, 16)
    k = iter(keys)
    p = {}
    for branch in ("t", "m"):
        for gate in ("z", "r", "h"):
            p[f"W_x{gate}_{branch}"] = sigma * jax.random.normal(
                next(k), (num_inputs, num_hiddens), jnp.float32)
            p[f"W_h{gate}_{branch}"] = sigma * jax.random.normal(
                next(k), (num_hiddens, num_hiddens), jnp.float32)
            p[f"b_{gate}_{branch}"] = jnp.zeros((num_hiddens,), jnp.float32)
    p["fus_W_t"] = jax.random.uniform(next(k), (num_hiddens, num_hiddens),
                                      jnp.float32, -0.1, 0.1)
    p["fus_W_m"] = jax.random.uniform(next(k), (num_hiddens, num_hiddens),
                                      jnp.float32, -0.1, 0.1)
    p["fus_bias"] = jax.random.uniform(next(k), (num_hiddens,),
                                       jnp.float32, -0.1, 0.1)
    return p


def ggru_reference(tt_inputs, mark_inputs, params):
    """Pure-JAX reference mirroring the PyTorch forward, for validation."""
    B, T, _ = tt_inputs.shape
    nh = params["b_z_t"].shape[0]
    H = jnp.zeros((B, nh), jnp.float32)

    def step(H, xs):
        X_t, X_m = xs
        Z_t = jax.nn.sigmoid(X_t @ params["W_xz_t"] + H @ params["W_hz_t"] + params["b_z_t"])
        R_t = jax.nn.sigmoid(X_t @ params["W_xr_t"] + H @ params["W_hr_t"] + params["b_r_t"])
        Ht_ = jnp.tanh(X_t @ params["W_xh_t"] + (R_t * H) @ params["W_hh_t"] + params["b_h_t"])
        H_t = Z_t * H + (1 - Z_t) * Ht_
        Z_m = jax.nn.sigmoid(X_m @ params["W_xz_m"] + H @ params["W_hz_m"] + params["b_z_m"])
        R_m = jax.nn.sigmoid(X_m @ params["W_xr_m"] + H @ params["W_hr_m"] + params["b_r_m"])
        Hm_ = jnp.tanh(X_m @ params["W_xh_m"] + (R_m * H) @ params["W_hh_m"] + params["b_h_m"])
        H_m = Z_m * H + (1 - Z_m) * Hm_
        z = jax.nn.sigmoid(H_t @ params["fus_W_t"] + H_m @ params["fus_W_m"] + params["fus_bias"])
        H_new = z * H_t + (1 - z) * H_m
        return H_new, H_new

    xs = (jnp.transpose(tt_inputs, (1, 0, 2)), jnp.transpose(mark_inputs, (1, 0, 2)))
    H_final, outs = jax.lax.scan(step, H, xs)
    return jnp.transpose(outs, (1, 0, 2)), H_final


if __name__ == "__main__":
    B, T, NUM_INPUTS, NUM_HIDDENS = 2, 16, 4, 32

    key = jax.random.PRNGKey(0)
    k_par, k_tt, k_mk = jax.random.split(key, 3)
    params = init_params(k_par, NUM_INPUTS, NUM_HIDDENS)
    tt_inputs = jax.random.normal(k_tt, (B, T, NUM_INPUTS), jnp.float32)
    mark_inputs = jax.random.normal(k_mk, (B, T, NUM_INPUTS), jnp.float32)

    ref_out, ref_H = ggru_reference(tt_inputs, mark_inputs, params)

    # f32-weight path, two time chunks: exercises the cross-chunk H carry.
    fwd_f32 = jax.jit(functools.partial(ggru_forward,
                                        weights_dtype=jnp.float32,
                                        time_block=8))
    out32, h32 = fwd_f32(tt_inputs, mark_inputs, params)
    jax.block_until_ready((out32, h32))
    assert out32.shape == (B, T, NUM_HIDDENS)
    assert h32.shape == (B, NUM_HIDDENS)
    assert jnp.allclose(out32, ref_out, atol=1e-4), "f32 output mismatch"
    assert jnp.allclose(h32, ref_H, atol=1e-4), "f32 final-H mismatch"

    # Default fast path: bf16 weights on the MXU, f32 accumulation & gate math.
    fwd_bf16 = jax.jit(functools.partial(ggru_forward, time_block=16))
    out16, h16 = fwd_bf16(tt_inputs, mark_inputs, params)
    jax.block_until_ready((out16, h16))
    assert jnp.allclose(out16, ref_out, atol=1e-2), "bf16 output mismatch"
    assert jnp.allclose(h16, ref_H, atol=1e-2), "bf16 final-H mismatch"

    print("KERNEL_OK")
</pallas_src>

<mosaic_0001>
module attributes {stable_mosaic.version = 11 : i64} {
  func.func @_ggru_kernel(%arg0: i32, %arg1: i32, %arg2: memref<8x128xf32, #tpu.memory_space<vmem>>, %arg3: memref<8x8x4xf32, #tpu.memory_space<vmem>>, %arg4: memref<8x8x4xf32, #tpu.memory_space<vmem>>, %arg5: memref<4x384xf32, #tpu.memory_space<vmem>>, %arg6: memref<4x384xf32, #tpu.memory_space<vmem>>, %arg7: memref<1x384xf32, #tpu.memory_space<vmem>>, %arg8: memref<1x384xf32, #tpu.memory_space<vmem>>, %arg9: memref<128x512xf32, #tpu.memory_space<vmem>>, %arg10: memref<2x128x128xf32, #tpu.memory_space<vmem>>, %arg11: memref<2x128x128xf32, #tpu.memory_space<vmem>>, %arg12: memref<1x128xf32, #tpu.memory_space<vmem>>, %arg13: memref<8x8x128xf32, #tpu.memory_space<vmem>>, %arg14: memref<8x128xf32, #tpu.memory_space<vmem>>, %arg15: memref<8x128xf32, #tpu.memory_space<vmem>>, %arg16: memref<8x8x384xf32, #tpu.memory_space<vmem>>, %arg17: memref<8x8x384xf32, #tpu.memory_space<vmem>>) attributes {dimension_semantics = [#tpu.dimension_semantics<parallel>, #tpu.dimension_semantics<arbitrary>], iteration_bounds = array<i64: 1, 2>, scalar_prefetch = 0 : i64, scratch_operands = 3 : i64, tpu.core_type = #tpu.core_type<tc>, window_params = [{transform_indices = @transform_0, window_bounds = array<i64: 8, 128>}, {transform_indices = @transform_1, window_bounds = array<i64: 8, 8, 4>}, {transform_indices = @transform_2, window_bounds = array<i64: 8, 8, 4>}, {pipeline_mode = #tpu.pipeline_mode<synchronous>, transform_indices = @transform_3, window_bounds = array<i64: 4, 384>}, {pipeline_mode = #tpu.pipeline_mode<synchronous>, transform_indices = @transform_4, window_bounds = array<i64: 4, 384>}, {pipeline_mode = #tpu.pipeline_mode<synchronous>, transform_indices = @transform_5, window_bounds = array<i64: 1, 384>}, {pipeline_mode = #tpu.pipeline_mode<synchronous>, transform_indices = @transform_6, window_bounds = array<i64: 1, 384>}, {pipeline_mode = #tpu.pipeline_mode<synchronous>, transform_indices = @transform_7, window_bounds = array<i64: 128, 512>}, {pipeline_mode = #tpu.pipeline_mode<synchronous>, transform_indices = @transform_8, window_bounds = array<i64: 2, 128, 128>}, {pipeline_mode = #tpu.pipeline_mode<synchronous>, transform_indices = @transform_9, window_bounds = array<i64: 2, 128, 128>}, {pipeline_mode = #tpu.pipeline_mode<synchronous>, transform_indices = @transform_10, window_bounds = array<i64: 1, 128>}, {transform_indices = @transform_11, window_bounds = array<i64: 8, 8, 128>}, {transform_indices = @transform_12, window_bounds = array<i64: 8, 128>}]} {
    %c0_i32 = arith.constant 0 : i32
    %0 = arith.cmpi eq, %arg1, %c0_i32 : i32
    %1 = arith.extui %0 : i1 to i32
    %c0_i32_0 = arith.constant 0 : i32
    %2 = arith.cmpi ne, %1, %c0_i32_0 : i32
    scf.if %2 {
      %c0_211 = arith.constant 0 : index
      %c0_212 = arith.constant 0 : index
      %630 = vector.load %arg2[%c0_211, %c0_212] : memref<8x128xf32, #tpu.memory_space<vmem>>, vector<8x128xf32>
      %c0_213 = arith.constant 0 : index
      %c0_214 = arith.constant 0 : index
      %631 = vector.load %arg15[%c0_213, %c0_214] : memref<8x128xf32, #tpu.memory_space<vmem>>, vector<8x128xf32>
      tpu.vector_store %arg15[%c0_213, %c0_214], %630 {strides = array<i32>} : memref<8x128xf32, #tpu.memory_space<vmem>>, vector<8x128xf32>,
    } else {
    }
    %c0 = arith.constant 0 : index
    %c0_1 = arith.constant 0 : index
    %c0_2 = arith.constant 0 : index
    %3 = vector.load %arg3[%c0, %c0_1, %c0_2] : memref<8x8x4xf32, #tpu.memory_space<vmem>>, vector<8x8x4xf32>
    %4 = vector.shape_cast %3 : vector<8x8x4xf32> to vector<64x4xf32>
    %c0_3 = arith.constant 0 : index
    %c0_4 = arith.constant 0 : index
    %5 = vector.load %arg5[%c0_3, %c0_4] : memref<4x384xf32, #tpu.memory_space<vmem>>, vector<4x384xf32>
    %cst = arith.constant dense<0.000000e+00> : vector<64x384xf32>
    %6 = tpu.matmul %4, %5, %cst {dimension_numbers = #tpu.dot_dimension_numbers<[1], [0], [0], [1], [0, 0, 1, 1], [], []>} : vector<64x4xf32>, vector<4x384xf32>, vector<64x384xf32> -> vector<64x384xf32>
    %c0_5 = arith.constant 0 : index
    %c0_6 = arith.constant 0 : index
    %7 = vector.load %arg7[%c0_5, %c0_6] : memref<1x384xf32, #tpu.memory_space<vmem>>, vector<1x384xf32>
    %8 = vector.broadcast %7 : vector<1x384xf32> to vector<64x384xf32>
    %9 = arith.addf %6, %8 : vector<64x384xf32>
    %10 = vector.shape_cast %9 : vector<64x384xf32> to vector<8x8x384xf32>
    %c0_7 = arith.constant 0 : index
    %c0_8 = arith.constant 0 : index
    %c0_9 = arith.constant 0 : index
    %11 = vector.load %arg16[%c0_7, %c0_8, %c0_9] : memref<8x8x384xf32, #tpu.memory_space<vmem>>, vector<8x8x384xf32>
    tpu.vector_store %arg16[%c0_7, %c0_8, %c0_9], %10 {strides = array<i32>} : memref<8x8x384xf32, #tpu.memory_space<vmem>>, vector<8x8x384xf32>,
    %c0_10 = arith.constant 0 : index
    %c0_11 = arith.constant 0 : index
    %c0_12 = arith.constant 0 : index
    %12 = vector.load %arg4[%c0_10, %c0_11, %c0_12] : memref<8x8x4xf32, #tpu.memory_space<vmem>>, vector<8x8x4xf32>
    %13 = vector.shape_cast %12 : vector<8x8x4xf32> to vector<64x4xf32>
    %c0_13 = arith.constant 0 : index
    %c0_14 = arith.constant 0 : index
    %14 = vector.load %arg6[%c0_13, %c0_14] : memref<4x384xf32, #tpu.memory_space<vmem>>, vector<4x384xf32>
    %cst_15 = arith.constant dense<0.000000e+00> : vector<64x384xf32>
    %15 = tpu.matmul %13, %14, %cst_15 {dimension_numbers = #tpu.dot_dimension_numbers<[1], [0], [0], [1], [0, 0, 1, 1], [], []>} : vector<64x4xf32>, vector<4x384xf32>, vector<64x384xf32> -> vector<64x384xf32>
    %c0_16 = arith.constant 0 : index
    %c0_17 = arith.constant 0 : index
    %16 = vector.load %arg8[%c0_16, %c0_17] : memref<1x384xf32, #tpu.memory_space<vmem>>, vector<1x384xf32>
    %17 = vector.broadcast %16 : vector<1x384xf32> to vector<64x384xf32>
    %18 = arith.addf %15, %17 : vector<64x384xf32>
    %19 = vector.shape_cast %18 : vector<64x384xf32> to vector<8x8x384xf32>
    %c0_18 = arith.constant 0 : index
    %c0_19 = arith.constant 0 : index
    %c0_20 = arith.constant 0 : index
    %20 = vector.load %arg17[%c0_18, %c0_19, %c0_20] : memref<8x8x384xf32, #tpu.memory_space<vmem>>, vector<8x8x384xf32>
    tpu.vector_store %arg17[%c0_18, %c0_19, %c0_20], %19 {strides = array<i32>} : memref<8x8x384xf32, #tpu.memory_space<vmem>>, vector<8x8x384xf32>,
    %c0_21 = arith.constant 0 : index
    %c0_22 = arith.constant 0 : index
    %21 = vector.load %arg9[%c0_21, %c0_22] : memref<128x512xf32, #tpu.memory_space<vmem>>, vector<128x512xf32>
    %c0_23 = arith.constant 0 : index
    %c0_24 = arith.constant 0 : index
    %c0_25 = arith.constant 0 : index
    %22 = vector.load %arg10[%c0_23, %c0_24, %c0_25] : memref<2x128x128xf32, #tpu.memory_space<vmem>>, vector<1x128x128xf32>
    %23 = vector.shape_cast %22 : vector<1x128x128xf32> to vector<128x128xf32>
    %c1 = arith.constant 1 : index
    %c0_26 = arith.constant 0 : index
    %c0_27 = arith.constant 0 : index
    %24 = vector.load %arg10[%c1, %c0_26, %c0_27] : memref<2x128x128xf32, #tpu.memory_space<vmem>>, vector<1x128x128xf32>
    %25 = vector.shape_cast %24 : vector<1x128x128xf32> to vector<128x128xf32>
    %c0_28 = arith.constant 0 : index
    %c0_29 = arith.constant 0 : index
    %c0_30 = arith.constant 0 : index
    %26 = vector.load %arg11[%c0_28, %c0_29, %c0_30] : memref<2x128x128xf32, #tpu.memory_space<vmem>>, vector<1x128x128xf32>
    %27 = vector.shape_cast %26 : vector<1x128x128xf32> to vector<128x128xf32>
    %c1_31 = arith.constant 1 : index
    %c0_32 = arith.constant 0 : index
    %c0_33 = arith.constant 0 : index
    %28 = vector.load %arg11[%c1_31, %c0_32, %c0_33] : memref<2x128x128xf32, #tpu.memory_space<vmem>>, vector<1x128x128xf32>
    %29 = vector.shape_cast %28 : vector<1x128x128xf32> to vector<128x128xf32>
    %c0_34 = arith.constant 0 : index
    %c0_35 = arith.constant 0 : index
    %30 = vector.load %arg12[%c0_34, %c0_35] : memref<1x128xf32, #tpu.memory_space<vmem>>, vector<1x128xf32>
    %31 = vector.shape_cast %30 : vector<1x128xf32> to vector<1x128xf32>
    %32 = vector.broadcast %31 : vector<1x128xf32> to vector<8x128xf32>
    %c0_36 = arith.constant 0 : index
    %c0_37 = arith.constant 0 : index
    %33 = vector.load %arg15[%c0_36, %c0_37] : memref<8x128xf32, #tpu.memory_space<vmem>>, vector<8x128xf32>
    %c0_38 = arith.constant 0 : index
    %c0_39 = arith.constant 0 : index
    %c0_40 = arith.constant 0 : index
    %34 = vector.load %arg16[%c0_38, %c0_39, %c0_40] : memref<8x8x384xf32, #tpu.memory_space<vmem>>, vector<1x8x384xf32>
    %35 = vector.shape_cast %34 : vector<1x8x384xf32> to vector<8x384xf32>
    %c0_41 = arith.constant 0 : index
    %c0_42 = arith.constant 0 : index
    %c0_43 = arith.constant 0 : index
    %36 = vector.load %arg17[%c0_41, %c0_42, %c0_43] : memref<8x8x384xf32, #tpu.memory_space<vmem>>, vector<1x8x384xf32>
    %37 = vector.shape_cast %36 : vector<1x8x384xf32> to vector<8x384xf32>
    %cst_44 = arith.constant dense<0.000000e+00> : vector<8x512xf32>
    %38 = tpu.matmul %33, %21, %cst_44 {dimension_numbers = #tpu.dot_dimension_numbers<[1], [0], [0], [1], [0, 0, 1, 1], [], []>} : vector<8x128xf32>, vector<128x512xf32>, vector<8x512xf32> -> vector<8x512xf32>
    %39 = vector.extract_strided_slice %35 {offsets = [0, 0], sizes = [8, 128], strides = [1, 1]} : vector<8x384xf32> to vector<8x128xf32>
    %40 = vector.extract_strided_slice %38 {offsets = [0, 0], sizes = [8, 128], strides = [1, 1]} : vector<8x512xf32> to vector<8x128xf32>
    %41 = arith.addf %39, %40 : vector<8x128xf32>
    %42 = arith.negf %41 : vector<8x128xf32>
    %43 = math.exp %42 : vector<8x128xf32>
    %cst_45 = arith.constant 1.000000e+00 : f32
    %44 = vector.broadcast %cst_45 : f32 to vector<8x128xf32>
    %45 = arith.addf %44, %43 : vector<8x128xf32>
    %46 = arith.divf %44, %45 : vector<8x128xf32>
    %47 = vector.extract_strided_slice %35 {offsets = [0, 128], sizes = [8, 128], strides = [1, 1]} : vector<8x384xf32> to vector<8x128xf32>
    %48 = vector.extract_strided_slice %38 {offsets = [0, 128], sizes = [8, 128], strides = [1, 1]} : vector<8x512xf32> to vector<8x128xf32>
    %49 = arith.addf %47, %48 : vector<8x128xf32>
    %50 = arith.negf %49 : vector<8x128xf32>
    %51 = math.exp %50 : vector<8x128xf32>
    %cst_46 = arith.constant 1.000000e+00 : f32
    %52 = vector.broadcast %cst_46 : f32 to vector<8x128xf32>
    %53 = arith.addf %52, %51 : vector<8x128xf32>
    %54 = arith.divf %52, %53 : vector<8x128xf32>
    %55 = vector.extract_strided_slice %37 {offsets = [0, 0], sizes = [8, 128], strides = [1, 1]} : vector<8x384xf32> to vector<8x128xf32>
    %56 = vector.extract_strided_slice %38 {offsets = [0, 256], sizes = [8, 128], strides = [1, 1]} : vector<8x512xf32> to vector<8x128xf32>
    %57 = arith.addf %55, %56 : vector<8x128xf32>
    %58 = arith.negf %57 : vector<8x128xf32>
    %59 = math.exp %58 : vector<8x128xf32>
    %cst_47 = arith.constant 1.000000e+00 : f32
    %60 = vector.broadcast %cst_47 : f32 to vector<8x128xf32>
    %61 = arith.addf %60, %59 : vector<8x128xf32>
    %62 = arith.divf %60, %61 : vector<8x128xf32>
    %63 = vector.extract_strided_slice %37 {offsets = [0, 128], sizes = [8, 128], strides = [1, 1]} : vector<8x384xf32> to vector<8x128xf32>
    %64 = vector.extract_strided_slice %38 {offsets = [0, 384], sizes = [8, 128], strides = [1, 1]} : vector<8x512xf32> to vector<8x128xf32>
    %65 = arith.addf %63, %64 : vector<8x128xf32>
    %66 = arith.negf %65 : vector<8x128xf32>
    %67 = math.exp %66 : vector<8x128xf32>
    %cst_48 = arith.constant 1.000000e+00 : f32
    %68 = vector.broadcast %cst_48 : f32 to vector<8x128xf32>
    %69 = arith.addf %68, %67 : vector<8x128xf32>
    %70 = arith.divf %68, %69 : vector<8x128xf32>
    %71 = vector.extract_strided_slice %35 {offsets = [0, 256], sizes = [8, 128], strides = [1, 1]} : vector<8x384xf32> to vector<8x128xf32>
    %72 = arith.mulf %54, %33 : vector<8x128xf32>
    %cst_49 = arith.constant dense<0.000000e+00> : vector<8x128xf32>
    %73 = tpu.matmul %72, %23, %cst_49 {dimension_numbers = #tpu.dot_dimension_numbers<[1], [0], [0], [1], [0, 0, 1, 1], [], []>} : vector<8x128xf32>, vector<128x128xf32>, vector<8x128xf32> -> vector<8x128xf32>
    %74 = arith.addf %71, %73 : vector<8x128xf32>
    %75 = math.tanh %74 : vector<8x128xf32>
    %76 = vector.extract_strided_slice %37 {offsets = [0, 256], sizes = [8, 128], strides = [1, 1]} : vector<8x384xf32> to vector<8x128xf32>
    %77 = arith.mulf %70, %33 : vector<8x128xf32>
    %cst_50 = arith.constant dense<0.000000e+00> : vector<8x128xf32>
    %78 = tpu.matmul %77, %25, %cst_50 {dimension_numbers = #tpu.dot_dimension_numbers<[1], [0], [0], [1], [0, 0, 1, 1], [], []>} : vector<8x128xf32>, vector<128x128xf32>, vector<8x128xf32> -> vector<8x128xf32>
    %79 = arith.addf %76, %78 : vector<8x128xf32>
    %80 = math.tanh %79 : vector<8x128xf32>
    %81 = arith.mulf %46, %33 : vector<8x128xf32>
    %cst_51 = arith.constant 1.000000e+00 : f32
    %82 = vector.broadcast %cst_51 : f32 to vector<8x128xf32>
    %83 = arith.subf %82, %46 : vector<8x128xf32>
    %84 = arith.mulf %83, %75 : vector<8x128xf32>
    %85 = arith.addf %81, %84 : vector<8x128xf32>
    %86 = arith.mulf %62, %33 : vector<8x128xf32>
    %cst_52 = arith.constant 1.000000e+00 : f32
    %87 = vector.broadcast %cst_52 : f32 to vector<8x128xf32>
    %88 = arith.subf %87, %62 : vector<8x128xf32>
    %89 = arith.mulf %88, %80 : vector<8x128xf32>
    %90 = arith.addf %86, %89 : vector<8x128xf32>
    %cst_53 = arith.constant dense<0.000000e+00> : vector<8x128xf32>
    %91 = tpu.matmul %85, %27, %cst_53 {dimension_numbers = #tpu.dot_dimension_numbers<[1], [0], [0], [1], [0, 0, 1, 1], [], []>} : vector<8x128xf32>, vector<128x128xf32>, vector<8x128xf32> -> vector<8x128xf32>
    %cst_54 = arith.constant dense<0.000000e+00> : vector<8x128xf32>
    %92 = tpu.matmul %90, %29, %cst_54 {dimension_numbers = #tpu.dot_dimension_numbers<[1], [0], [0], [1], [0, 0, 1, 1], [], []>} : vector<8x128xf32>, vector<128x128xf32>, vector<8x128xf32> -> vector<8x128xf32>
    %93 = arith.addf %91, %92 : vector<8x128xf32>
    %94 = arith.addf %93, %32 : vector<8x128xf32>
    %95 = arith.negf %94 : vector<8x128xf32>
    %96 = math.exp %95 : vector<8x128xf32>
    %cst_55 = arith.constant 1.000000e+00 : f32
    %97 = vector.broadcast %cst_55 : f32 to vector<8x128xf32>
    %98 = arith.addf %97, %96 : vector<8x128xf32>
    %99 = arith.divf %97, %98 : vector<8x128xf32>
    %100 = arith.mulf %99, %85 : vector<8x128xf32>
    %cst_56 = arith.constant 1.000000e+00 : f32
    %101 = vector.broadcast %cst_56 : f32 to vector<8x128xf32>
    %102 = arith.subf %101, %99 : vector<8x128xf32>
    %103 = arith.mulf %102, %90 : vector<8x128xf32>
    %104 = arith.addf %100, %103 : vector<8x128xf32>
    %c0_57 = arith.constant 0 : index
    %c0_58 = arith.constant 0 : index
    %c0_59 = arith.constant 0 : index
    %105 = vector.load %arg13[%c0_57, %c0_58, %c0_59] : memref<8x8x128xf32, #tpu.memory_space<vmem>>, vector<1x8x128xf32>
    %106 = vector.shape_cast %105 : vector<1x8x128xf32> to vector<8x128xf32>
    %107 = vector.shape_cast %104 : vector<8x128xf32> to vector<1x8x128xf32>
    tpu.vector_store %arg13[%c0_57, %c0_58, %c0_59], %107 {strides = array<i32>} : memref<8x8x128xf32, #tpu.memory_space<vmem>>, vector<1x8x128xf32>,
    %c1_60 = arith.constant 1 : index
    %c0_61 = arith.constant 0 : index
    %c0_62 = arith.constant 0 : index
    %108 = vector.load %arg16[%c1_60, %c0_61, %c0_62] : memref<8x8x384xf32, #tpu.memory_space<vmem>>, vector<1x8x384xf32>
    %109 = vector.shape_cast %108 : vector<1x8x384xf32> to vector<8x384xf32>
    %c1_63 = arith.constant 1 : index
    %c0_64 = arith.constant 0 : index
    %c0_65 = arith.constant 0 : index
    %110 = vector.load %arg17[%c1_63, %c0_64, %c0_65] : memref<8x8x384xf32, #tpu.memory_space<vmem>>, vector<1x8x384xf32>
    %111 = vector.shape_cast %110 : vector<1x8x384xf32> to vector<8x384xf32>
    %cst_66 = arith.constant dense<0.000000e+00> : vector<8x512xf32>
    %112 = tpu.matmul %104, %21, %cst_66 {dimension_numbers = #tpu.dot_dimension_numbers<[1], [0], [0], [1], [0, 0, 1, 1], [], []>} : vector<8x128xf32>, vector<128x512xf32>, vector<8x512xf32> -> vector<8x512xf32>
    %113 = vector.extract_strided_slice %109 {offsets = [0, 0], sizes = [8, 128], strides = [1, 1]} : vector<8x384xf32> to vector<8x128xf32>
    %114 = vector.extract_strided_slice %112 {offsets = [0, 0], sizes = [8, 128], strides = [1, 1]} : vector<8x512xf32> to vector<8x128xf32>
    %115 = arith.addf %113, %114 : vector<8x128xf32>
    %116 = arith.negf %115 : vector<8x128xf32>
    %117 = math.exp %116 : vector<8x128xf32>
    %cst_67 = arith.constant 1.000000e+00 : f32
    %118 = vector.broadcast %cst_67 : f32 to vector<8x128xf32>
    %119 = arith.addf %118, %117 : vector<8x128xf32>
    %120 = arith.divf %118, %119 : vector<8x128xf32>
    %121 = vector.extract_strided_slice %109 {offsets = [0, 128], sizes = [8, 128], strides = [1, 1]} : vector<8x384xf32> to vector<8x128xf32>
    %122 = vector.extract_strided_slice %112 {offsets = [0, 128], sizes = [8, 128], strides = [1, 1]} : vector<8x512xf32> to vector<8x128xf32>
    %123 = arith.addf %121, %122 : vector<8x128xf32>
    %124 = arith.negf %123 : vector<8x128xf32>
    %125 = math.exp %124 : vector<8x128xf32>
    %cst_68 = arith.constant 1.000000e+00 : f32
    %126 = vector.broadcast %cst_68 : f32 to vector<8x128xf32>
    %127 = arith.addf %126, %125 : vector<8x128xf32>
    %128 = arith.divf %126, %127 : vector<8x128xf32>
    %129 = vector.extract_strided_slice %111 {offsets = [0, 0], sizes = [8, 128], strides = [1, 1]} : vector<8x384xf32> to vector<8x128xf32>
    %130 = vector.extract_strided_slice %112 {offsets = [0, 256], sizes = [8, 128], strides = [1, 1]} : vector<8x512xf32> to vector<8x128xf32>
    %131 = arith.addf %129, %130 : vector<8x128xf32>
    %132 = arith.negf %131 : vector<8x128xf32>
    %133 = math.exp %132 : vector<8x128xf32>
    %cst_69 = arith.constant 1.000000e+00 : f32
    %134 = vector.broadcast %cst_69 : f32 to vector<8x128xf32>
    %135 = arith.addf %134, %133 : vector<8x128xf32>
    %136 = arith.divf %134, %135 : vector<8x128xf32>
    %137 = vector.extract_strided_slice %111 {offsets = [0, 128], sizes = [8, 128], strides = [1, 1]} : vector<8x384xf32> to vector<8x128xf32>
    %138 = vector.extract_strided_slice %112 {offsets = [0, 384], sizes = [8, 128], strides = [1, 1]} : vector<8x512xf32> to vector<8x128xf32>
    %139 = arith.addf %137, %138 : vector<8x128xf32>
    %140 = arith.negf %139 : vector<8x128xf32>
    %141 = math.exp %140 : vector<8x128xf32>
    %cst_70 = arith.constant 1.000000e+00 : f32
    %142 = vector.broadcast %cst_70 : f32 to vector<8x128xf32>
    %143 = arith.addf %142, %141 : vector<8x128xf32>
    %144 = arith.divf %142, %143 : vector<8x128xf32>
    %145 = vector.extract_strided_slice %109 {offsets = [0, 256], sizes = [8, 128], strides = [1, 1]} : vector<8x384xf32> to vector<8x128xf32>
    %146 = arith.mulf %128, %104 : vector<8x128xf32>
    %cst_71 = arith.constant dense<0.000000e+00> : vector<8x128xf32>
    %147 = tpu.matmul %146, %23, %cst_71 {dimension_numbers = #tpu.dot_dimension_numbers<[1], [0], [0], [1], [0, 0, 1, 1], [], []>} : vector<8x128xf32>, vector<128x128xf32>, vector<8x128xf32> -> vector<8x128xf32>
    %148 = arith.addf %145, %147 : vector<8x128xf32>
    %149 = math.tanh %148 : vector<8x128xf32>
    %150 = vector.extract_strided_slice %111 {offsets = [0, 256], sizes = [8, 128], strides = [1, 1]} : vector<8x384xf32> to vector<8x128xf32>
    %151 = arith.mulf %144, %104 : vector<8x128xf32>
    %cst_72 = arith.constant dense<0.000000e+00> : vector<8x128xf32>
    %152 = tpu.matmul %151, %25, %cst_72 {dimension_numbers = #tpu.dot_dimension_numbers<[1], [0], [0], [1], [0, 0, 1, 1], [], []>} : vector<8x128xf32>, vector<128x128xf32>, vector<8x128xf32> -> vector<8x128xf32>
    %153 = arith.addf %150, %152 : vector<8x128xf32>
    %154 = math.tanh %153 : vector<8x128xf32>
    %155 = arith.mulf %120, %104 : vector<8x128xf32>
    %cst_73 = arith.constant 1.000000e+00 : f32
    %156 = vector.broadcast %cst_73 : f32 to vector<8x128xf32>
    %157 = arith.subf %156, %120 : vector<8x128xf32>
    %158 = arith.mulf %157, %149 : vector<8x128xf32>
    %159 = arith.addf %155, %158 : vector<8x128xf32>
    %160 = arith.mulf %136, %104 : vector<8x128xf32>
    %cst_74 = arith.constant 1.000000e+00 : f32
    %161 = vector.broadcast %cst_74 : f32 to vector<8x128xf32>
    %162 = arith.subf %161, %136 : vector<8x128xf32>
    %163 = arith.mulf %162, %154 : vector<8x128xf32>
    %164 = arith.addf %160, %163 : vector<8x128xf32>
    %cst_75 = arith.constant dense<0.000000e+00> : vector<8x128xf32>
    %165 = tpu.matmul %159, %27, %cst_75 {dimension_numbers = #tpu.dot_dimension_numbers<[1], [0], [0], [1], [0, 0, 1, 1], [], []>} : vector<8x128xf32>, vector<128x128xf32>, vector<8x128xf32> -> vector<8x128xf32>
    %cst_76 = arith.constant dense<0.000000e+00> : vector<8x128xf32>
    %166 = tpu.matmul %164, %29, %cst_76 {dimension_numbers = #tpu.dot_dimension_numbers<[1], [0], [0], [1], [0, 0, 1, 1], [], []>} : vector<8x128xf32>, vector<128x128xf32>, vector<8x128xf32> -> vector<8x128xf32>
    %167 = arith.addf %165, %166 : vector<8x128xf32>
    %168 = arith.addf %167, %32 : vector<8x128xf32>
    %169 = arith.negf %168 : vector<8x128xf32>
    %170 = math.exp %169 : vector<8x128xf32>
    %cst_77 = arith.constant 1.000000e+00 : f32
    %171 = vector.broadcast %cst_77 : f32 to vector<8x128xf32>
    %172 = arith.addf %171, %170 : vector<8x128xf32>
    %173 = arith.divf %171, %172 : vector<8x128xf32>
    %174 = arith.mulf %173, %159 : vector<8x128xf32>
    %cst_78 = arith.constant 1.000000e+00 : f32
    %175 = vector.broadcast %cst_78 : f32 to vector<8x128xf32>
    %176 = arith.subf %175, %173 : vector<8x128xf32>
    %177 = arith.mulf %176, %164 : vector<8x128xf32>
    %178 = arith.addf %174, %177 : vector<8x128xf32>
    %c1_79 = arith.constant 1 : index
    %c0_80 = arith.constant 0 : index
    %c0_81 = arith.constant 0 : index
    %179 = vector.load %arg13[%c1_79, %c0_80, %c0_81] : memref<8x8x128xf32, #tpu.memory_space<vmem>>, vector<1x8x128xf32>
    %180 = vector.shape_cast %179 : vector<1x8x128xf32> to vector<8x128xf32>
    %181 = vector.shape_cast %178 : vector<8x128xf32> to vector<1x8x128xf32>
    tpu.vector_store %arg13[%c1_79, %c0_80, %c0_81], %181 {strides = array<i32>} : memref<8x8x128xf32, #tpu.memory_space<vmem>>, vector<1x8x128xf32>,
    %c2 = arith.constant 2 : index
    %c0_82 = arith.constant 0 : index
    %c0_83 = arith.constant 0 : index
    %182 = vector.load %arg16[%c2, %c0_82, %c0_83] : memref<8x8x384xf32, #tpu.memory_space<vmem>>, vector<1x8x384xf32>
    %183 = vector.shape_cast %182 : vector<1x8x384xf32> to vector<8x384xf32>
    %c2_84 = arith.constant 2 : index
    %c0_85 = arith.constant 0 : index
    %c0_86 = arith.constant 0 : index
    %184 = vector.load %arg17[%c2_84, %c0_85, %c0_86] : memref<8x8x384xf32, #tpu.memory_space<vmem>>, vector<1x8x384xf32>
    %185 = vector.shape_cast %184 : vector<1x8x384xf32> to vector<8x384xf32>
    %cst_87 = arith.constant dense<0.000000e+00> : vector<8x512xf32>
    %186 = tpu.matmul %178, %21, %cst_87 {dimension_numbers = #tpu.dot_dimension_numbers<[1], [0], [0], [1], [0, 0, 1, 1], [], []>} : vector<8x128xf32>, vector<128x512xf32>, vector<8x512xf32> -> vector<8x512xf32>
    %187 = vector.extract_strided_slice %183 {offsets = [0, 0], sizes = [8, 128], strides = [1, 1]} : vector<8x384xf32> to vector<8x128xf32>
    %188 = vector.extract_strided_slice %186 {offsets = [0, 0], sizes = [8, 128], strides = [1, 1]} : vector<8x512xf32> to vector<8x128xf32>
    %189 = arith.addf %187, %188 : vector<8x128xf32>
    %190 = arith.negf %189 : vector<8x128xf32>
    %191 = math.exp %190 : vector<8x128xf32>
    %cst_88 = arith.constant 1.000000e+00 : f32
    %192 = vector.broadcast %cst_88 : f32 to vector<8x128xf32>
    %193 = arith.addf %192, %191 : vector<8x128xf32>
    %194 = arith.divf %192, %193 : vector<8x128xf32>
    %195 = vector.extract_strided_slice %183 {offsets = [0, 128], sizes = [8, 128], strides = [1, 1]} : vector<8x384xf32> to vector<8x128xf32>
    %196 = vector.extract_strided_slice %186 {offsets = [0, 128], sizes = [8, 128], strides = [1, 1]} : vector<8x512xf32> to vector<8x128xf32>
    %197 = arith.addf %195, %196 : vector<8x128xf32>
    %198 = arith.negf %197 : vector<8x128xf32>
    %199 = math.exp %198 : vector<8x128xf32>
    %cst_89 = arith.constant 1.000000e+00 : f32
    %200 = vector.broadcast %cst_89 : f32 to vector<8x128xf32>
    %201 = arith.addf %200, %199 : vector<8x128xf32>
    %202 = arith.divf %200, %201 : vector<8x128xf32>
    %203 = vector.extract_strided_slice %185 {offsets = [0, 0], sizes = [8, 128], strides = [1, 1]} : vector<8x384xf32> to vector<8x128xf32>
    %204 = vector.extract_strided_slice %186 {offsets = [0, 256], sizes = [8, 128], strides = [1, 1]} : vector<8x512xf32> to vector<8x128xf32>
    %205 = arith.addf %203, %204 : vector<8x128xf32>
    %206 = arith.negf %205 : vector<8x128xf32>
    %207 = math.exp %206 : vector<8x128xf32>
    %cst_90 = arith.constant 1.000000e+00 : f32
    %208 = vector.broadcast %cst_90 : f32 to vector<8x128xf32>
    %209 = arith.addf %208, %207 : vector<8x128xf32>
    %210 = arith.divf %208, %209 : vector<8x128xf32>
    %211 = vector.extract_strided_slice %185 {offsets = [0, 128], sizes = [8, 128], strides = [1, 1]} : vector<8x384xf32> to vector<8x128xf32>
    %212 = vector.extract_strided_slice %186 {offsets = [0, 384], sizes = [8, 128], strides = [1, 1]} : vector<8x512xf32> to vector<8x128xf32>
    %213 = arith.addf %211, %212 : vector<8x128xf32>
    %214 = arith.negf %213 : vector<8x128xf32>
    %215 = math.exp %214 : vector<8x128xf32>
    %cst_91 = arith.constant 1.000000e+00 : f32
    %216 = vector.broadcast %cst_91 : f32 to vector<8x128xf32>
    %217 = arith.addf %216, %215 : vector<8x128xf32>
    %218 = arith.divf %216, %217 : vector<8x128xf32>
    %219 = vector.extract_strided_slice %183 {offsets = [0, 256], sizes = [8, 128], strides = [1, 1]} : vector<8x384xf32> to vector<8x128xf32>
    %220 = arith.mulf %202, %178 : vector<8x128xf32>
    %cst_92 = arith.constant dense<0.000000e+00> : vector<8x128xf32>
    %221 = tpu.matmul %220, %23, %cst_92 {dimension_numbers = #tpu.dot_dimension_numbers<[1], [0], [0], [1], [0, 0, 1, 1], [], []>} : vector<8x128xf32>, vector<128x128xf32>, vector<8x128xf32> -> vector<8x128xf32>
    %222 = arith.addf %219, %221 : vector<8x128xf32>
    %223 = math.tanh %222 : vector<8x128xf32>
    %224 = vector.extract_strided_slice %185 {offsets = [0, 256], sizes = [8, 128], strides = [1, 1]} : vector<8x384xf32> to vector<8x128xf32>
    %225 = arith.mulf %218, %178 : vector<8x128xf32>
    %cst_93 = arith.constant dense<0.000000e+00> : vector<8x128xf32>
    %226 = tpu.matmul %225, %25, %cst_93 {dimension_numbers = #tpu.dot_dimension_numbers<[1], [0], [0], [1], [0, 0, 1, 1], [], []>} : vector<8x128xf32>, vector<128x128xf32>, vector<8x128xf32> -> vector<8x128xf32>
    %227 = arith.addf %224, %226 : vector<8x128xf32>
    %228 = math.tanh %227 : vector<8x128xf32>
    %229 = arith.mulf %194, %178 : vector<8x128xf32>
    %cst_94 = arith.constant 1.000000e+00 : f32
    %230 = vector.broadcast %cst_94 : f32 to vector<8x128xf32>
    %231 = arith.subf %230, %194 : vector<8x128xf32>
    %232 = arith.mulf %231, %223 : vector<8x128xf32>
    %233 = arith.addf %229, %232 : vector<8x128xf32>
    %234 = arith.mulf %210, %178 : vector<8x128xf32>
    %cst_95 = arith.constant 1.000000e+00 : f32
    %235 = vector.broadcast %cst_95 : f32 to vector<8x128xf32>
    %236 = arith.subf %235, %210 : vector<8x128xf32>
    %237 = arith.mulf %236, %228 : vector<8x128xf32>
    %238 = arith.addf %234, %237 : vector<8x128xf32>
    %cst_96 = arith.constant dense<0.000000e+00> : vector<8x128xf32>
    %239 = tpu.matmul %233, %27, %cst_96 {dimension_numbers = #tpu.dot_dimension_numbers<[1], [0], [0], [1], [0, 0, 1, 1], [], []>} : vector<8x128xf32>, vector<128x128xf32>, vector<8x128xf32> -> vector<8x128xf32>
    %cst_97 = arith.constant dense<0.000000e+00> : vector<8x128xf32>
    %240 = tpu.matmul %238, %29, %cst_97 {dimension_numbers = #tpu.dot_dimension_numbers<[1], [0], [0], [1], [0, 0, 1, 1], [], []>} : vector<8x128xf32>, vector<128x128xf32>, vector<8x128xf32> -> vector<8x128xf32>
    %241 = arith.addf %239, %240 : vector<8x128xf32>
    %242 = arith.addf %241, %32 : vector<8x128xf32>
    %243 = arith.negf %242 : vector<8x128xf32>
    %244 = math.exp %243 : vector<8x128xf32>
    %cst_98 = arith.constant 1.000000e+00 : f32
    %245 = vector.broadcast %cst_98 : f32 to vector<8x128xf32>
    %246 = arith.addf %245, %244 : vector<8x128xf32>
    %247 = arith.divf %245, %246 : vector<8x128xf32>
    %248 = arith.mulf %247, %233 : vector<8x128xf32>
    %cst_99 = arith.constant 1.000000e+00 : f32
    %249 = vector.broadcast %cst_99 : f32 to vector<8x128xf32>
    %250 = arith.subf %249, %247 : vector<8x128xf32>
    %251 = arith.mulf %250, %238 : vector<8x128xf32>
    %252 = arith.addf %248, %251 : vector<8x128xf32>
    %c2_100 = arith.constant 2 : index
    %c0_101 = arith.constant 0 : index
    %c0_102 = arith.constant 0 : index
    %253 = vector.load %arg13[%c2_100, %c0_101, %c0_102] : memref<8x8x128xf32, #tpu.memory_space<vmem>>, vector<1x8x128xf32>
    %254 = vector.shape_cast %253 : vector<1x8x128xf32> to vector<8x128xf32>
    %255 = vector.shape_cast %252 : vector<8x128xf32> to vector<1x8x128xf32>
    tpu.vector_store %arg13[%c2_100, %c0_101, %c0_102], %255 {strides = array<i32>} : memref<8x8x128xf32, #tpu.memory_space<vmem>>, vector<1x8x128xf32>,
    %c3 = arith.constant 3 : index
    %c0_103 = arith.constant 0 : index
    %c0_104 = arith.constant 0 : index
    %256 = vector.load %arg16[%c3, %c0_103, %c0_104] : memref<8x8x384xf32, #tpu.memory_space<vmem>>, vector<1x8x384xf32>
    %257 = vector.shape_cast %256 : vector<1x8x384xf32> to vector<8x384xf32>
    %c3_105 = arith.constant 3 : index
    %c0_106 = arith.constant 0 : index
    %c0_107 = arith.constant 0 : index
    %258 = vector.load %arg17[%c3_105, %c0_106, %c0_107] : memref<8x8x384xf32, #tpu.memory_space<vmem>>, vector<1x8x384xf32>
    %259 = vector.shape_cast %258 : vector<1x8x384xf32> to vector<8x384xf32>
    %cst_108 = arith.constant dense<0.000000e+00> : vector<8x512xf32>
    %260 = tpu.matmul %252, %21, %cst_108 {dimension_numbers = #tpu.dot_dimension_numbers<[1], [0], [0], [1], [0, 0, 1, 1], [], []>} : vector<8x128xf32>, vector<128x512xf32>, vector<8x512xf32> -> vector<8x512xf32>
    %261 = vector.extract_strided_slice %257 {offsets = [0, 0], sizes = [8, 128], strides = [1, 1]} : vector<8x384xf32> to vector<8x128xf32>
    %262 = vector.extract_strided_slice %260 {offsets = [0, 0], sizes = [8, 128], strides = [1, 1]} : vector<8x512xf32> to vector<8x128xf32>
    %263 = arith.addf %261, %262 : vector<8x128xf32>
    %264 = arith.negf %263 : vector<8x128xf32>
    %265 = math.exp %264 : vector<8x128xf32>
    %cst_109 = arith.constant 1.000000e+00 : f32
    %266 = vector.broadcast %cst_109 : f32 to vector<8x128xf32>
    %267 = arith.addf %266, %265 : vector<8x128xf32>
    %268 = arith.divf %266, %267 : vector<8x128xf32>
    %269 = vector.extract_strided_slice %257 {offsets = [0, 128], sizes = [8, 128], strides = [1, 1]} : vector<8x384xf32> to vector<8x128xf32>
    %270 = vector.extract_strided_slice %260 {offsets = [0, 128], sizes = [8, 128], strides = [1, 1]} : vector<8x512xf32> to vector<8x128xf32>
    %271 = arith.addf %269, %270 : vector<8x128xf32>
    %272 = arith.negf %271 : vector<8x128xf32>
    %273 = math.exp %272 : vector<8x128xf32>
    %cst_110 = arith.constant 1.000000e+00 : f32
    %274 = vector.broadcast %cst_110 : f32 to vector<8x128xf32>
    %275 = arith.addf %274, %273 : vector<8x128xf32>
    %276 = arith.divf %274, %275 : vector<8x128xf32>
    %277 = vector.extract_strided_slice %259 {offsets = [0, 0], sizes = [8, 128], strides = [1, 1]} : vector<8x384xf32> to vector<8x128xf32>
    %278 = vector.extract_strided_slice %260 {offsets = [0, 256], sizes = [8, 128], strides = [1, 1]} : vector<8x512xf32> to vector<8x128xf32>
    %279 = arith.addf %277, %278 : vector<8x128xf32>
    %280 = arith.negf %279 : vector<8x128xf32>
    %281 = math.exp %280 : vector<8x128xf32>
    %cst_111 = arith.constant 1.000000e+00 : f32
    %282 = vector.broadcast %cst_111 : f32 to vector<8x128xf32>
    %283 = arith.addf %282, %281 : vector<8x128xf32>
    %284 = arith.divf %282, %283 : vector<8x128xf32>
    %285 = vector.extract_strided_slice %259 {offsets = [0, 128], sizes = [8, 128], strides = [1, 1]} : vector<8x384xf32> to vector<8x128xf32>
    %286 = vector.extract_strided_slice %260 {offsets = [0, 384], sizes = [8, 128], strides = [1, 1]} : vector<8x512xf32> to vector<8x128xf32>
    %287 = arith.addf %285, %286 : vector<8x128xf32>
    %288 = arith.negf %287 : vector<8x128xf32>
    %289 = math.exp %288 : vector<8x128xf32>
    %cst_112 = arith.constant 1.000000e+00 : f32
    %290 = vector.broadcast %cst_112 : f32 to vector<8x128xf32>
    %291 = arith.addf %290, %289 : vector<8x128xf32>
    %292 = arith.divf %290, %291 : vector<8x128xf32>
    %293 = vector.extract_strided_slice %257 {offsets = [0, 256], sizes = [8, 128], strides = [1, 1]} : vector<8x384xf32> to vector<8x128xf32>
    %294 = arith.mulf %276, %252 : vector<8x128xf32>
    %cst_113 = arith.constant dense<0.000000e+00> : vector<8x128xf32>
    %295 = tpu.matmul %294, %23, %cst_113 {dimension_numbers = #tpu.dot_dimension_numbers<[1], [0], [0], [1], [0, 0, 1, 1], [], []>} : vector<8x128xf32>, vector<128x128xf32>, vector<8x128xf32> -> vector<8x128xf32>
    %296 = arith.addf %293, %295 : vector<8x128xf32>
    %297 = math.tanh %296 : vector<8x128xf32>
    %298 = vector.extract_strided_slice %259 {offsets = [0, 256], sizes = [8, 128], strides = [1, 1]} : vector<8x384xf32> to vector<8x128xf32>
    %299 = arith.mulf %292, %252 : vector<8x128xf32>
    %cst_114 = arith.constant dense<0.000000e+00> : vector<8x128xf32>
    %300 = tpu.matmul %299, %25, %cst_114 {dimension_numbers = #tpu.dot_dimension_numbers<[1], [0], [0], [1], [0, 0, 1, 1], [], []>} : vector<8x128xf32>, vector<128x128xf32>, vector<8x128xf32> -> vector<8x128xf32>
    %301 = arith.addf %298, %300 : vector<8x128xf32>
    %302 = math.tanh %301 : vector<8x128xf32>
    %303 = arith.mulf %268, %252 : vector<8x128xf32>
    %cst_115 = arith.constant 1.000000e+00 : f32
    %304 = vector.broadcast %cst_115 : f32 to vector<8x128xf32>
    %305 = arith.subf %304, %268 : vector<8x128xf32>
    %306 = arith.mulf %305, %297 : vector<8x128xf32>
    %307 = arith.addf %303, %306 : vector<8x128xf32>
    %308 = arith.mulf %284, %252 : vector<8x128xf32>
    %cst_116 = arith.constant 1.000000e+00 : f32
    %309 = vector.broadcast %cst_116 : f32 to vector<8x128xf32>
    %310 = arith.subf %309, %284 : vector<8x128xf32>
    %311 = arith.mulf %310, %302 : vector<8x128xf32>
    %312 = arith.addf %308, %311 : vector<8x128xf32>
    %cst_117 = arith.constant dense<0.000000e+00> : vector<8x128xf32>
    %313 = tpu.matmul %307, %27, %cst_117 {dimension_numbers = #tpu.dot_dimension_numbers<[1], [0], [0], [1], [0, 0, 1, 1], [], []>} : vector<8x128xf32>, vector<128x128xf32>, vector<8x128xf32> -> vector<8x128xf32>
    %cst_118 = arith.constant dense<0.000000e+00> : vector<8x128xf32>
    %314 = tpu.matmul %312, %29, %cst_118 {dimension_numbers = #tpu.dot_dimension_numbers<[1], [0], [0], [1], [0, 0, 1, 1], [], []>} : vector<8x128xf32>, vector<128x128xf32>, vector<8x128xf32> -> vector<8x128xf32>
    %315 = arith.addf %313, %314 : vector<8x128xf32>
    %316 = arith.addf %315, %32 : vector<8x128xf32>
    %317 = arith.negf %316 : vector<8x128xf32>
    %318 = math.exp %317 : vector<8x128xf32>
    %cst_119 = arith.constant 1.000000e+00 : f32
    %319 = vector.broadcast %cst_119 : f32 to vector<8x128xf32>
    %320 = arith.addf %319, %318 : vector<8x128xf32>
    %321 = arith.divf %319, %320 : vector<8x128xf32>
    %322 = arith.mulf %321, %307 : vector<8x128xf32>
    %cst_120 = arith.constant 1.000000e+00 : f32
    %323 = vector.broadcast %cst_120 : f32 to vector<8x128xf32>
    %324 = arith.subf %323, %321 : vector<8x128xf32>
    %325 = arith.mulf %324, %312 : vector<8x128xf32>
    %326 = arith.addf %322, %325 : vector<8x128xf32>
    %c3_121 = arith.constant 3 : index
    %c0_122 = arith.constant 0 : index
    %c0_123 = arith.constant 0 : index
    %327 = vector.load %arg13[%c3_121, %c0_122, %c0_123] : memref<8x8x128xf32, #tpu.memory_space<vmem>>, vector<1x8x128xf32>
    %328 = vector.shape_cast %327 : vector<1x8x128xf32> to vector<8x128xf32>
    %329 = vector.shape_cast %326 : vector<8x128xf32> to vector<1x8x128xf32>
    tpu.vector_store %arg13[%c3_121, %c0_122, %c0_123], %329 {strides = array<i32>} : memref<8x8x128xf32, #tpu.memory_space<vmem>>, vector<1x8x128xf32>,
    %c4 = arith.constant 4 : index
    %c0_124 = arith.constant 0 : index
    %c0_125 = arith.constant 0 : index
    %330 = vector.load %arg16[%c4, %c0_124, %c0_125] : memref<8x8x384xf32, #tpu.memory_space<vmem>>, vector<1x8x384xf32>
    %331 = vector.shape_cast %330 : vector<1x8x384xf32> to vector<8x384xf32>
    %c4_126 = arith.constant 4 : index
    %c0_127 = arith.constant 0 : index
    %c0_128 = arith.constant 0 : index
    %332 = vector.load %arg17[%c4_126, %c0_127, %c0_128] : memref<8x8x384xf32, #tpu.memory_space<vmem>>, vector<1x8x384xf32>
    %333 = vector.shape_cast %332 : vector<1x8x384xf32> to vector<8x384xf32>
    %cst_129 = arith.constant dense<0.000000e+00> : vector<8x512xf32>
    %334 = tpu.matmul %326, %21, %cst_129 {dimension_numbers = #tpu.dot_dimension_numbers<[1], [0], [0], [1], [0, 0, 1, 1], [], []>} : vector<8x128xf32>, vector<128x512xf32>, vector<8x512xf32> -> vector<8x512xf32>
    %335 = vector.extract_strided_slice %331 {offsets = [0, 0], sizes = [8, 128], strides = [1, 1]} : vector<8x384xf32> to vector<8x128xf32>
    %336 = vector.extract_strided_slice %334 {offsets = [0, 0], sizes = [8, 128], strides = [1, 1]} : vector<8x512xf32> to vector<8x128xf32>
    %337 = arith.addf %335, %336 : vector<8x128xf32>
    %338 = arith.negf %337 : vector<8x128xf32>
    %339 = math.exp %338 : vector<8x128xf32>
    %cst_130 = arith.constant 1.000000e+00 : f32
    %340 = vector.broadcast %cst_130 : f32 to vector<8x128xf32>
    %341 = arith.addf %340, %339 : vector<8x128xf32>
    %342 = arith.divf %340, %341 : vector<8x128xf32>
    %343 = vector.extract_strided_slice %331 {offsets = [0, 128], sizes = [8, 128], strides = [1, 1]} : vector<8x384xf32> to vector<8x128xf32>
    %344 = vector.extract_strided_slice %334 {offsets = [0, 128], sizes = [8, 128], strides = [1, 1]} : vector<8x512xf32> to vector<8x128xf32>
    %345 = arith.addf %343, %344 : vector<8x128xf32>
    %346 = arith.negf %345 : vector<8x128xf32>
    %347 = math.exp %346 : vector<8x128xf32>
    %cst_131 = arith.constant 1.000000e+00 : f32
    %348 = vector.broadcast %cst_131 : f32 to vector<8x128xf32>
    %349 = arith.addf %348, %347 : vector<8x128xf32>
    %350 = arith.divf %348, %349 : vector<8x128xf32>
    %351 = vector.extract_strided_slice %333 {offsets = [0, 0], sizes = [8, 128], strides = [1, 1]} : vector<8x384xf32> to vector<8x128xf32>
    %352 = vector.extract_strided_slice %334 {offsets = [0, 256], sizes = [8, 128], strides = [1, 1]} : vector<8x512xf32> to vector<8x128xf32>
    %353 = arith.addf %351, %352 : vector<8x128xf32>
    %354 = arith.negf %353 : vector<8x128xf32>
    %355 = math.exp %354 : vector<8x128xf32>
    %cst_132 = arith.constant 1.000000e+00 : f32
    %356 = vector.broadcast %cst_132 : f32 to vector<8x128xf32>
    %357 = arith.addf %356, %355 : vector<8x128xf32>
    %358 = arith.divf %356, %357 : vector<8x128xf32>
    %359 = vector.extract_strided_slice %333 {offsets = [0, 128], sizes = [8, 128], strides = [1, 1]} : vector<8x384xf32> to vector<8x128xf32>
    %360 = vector.extract_strided_slice %334 {offsets = [0, 384], sizes = [8, 128], strides = [1, 1]} : vector<8x512xf32> to vector<8x128xf32>
    %361 = arith.addf %359, %360 : vector<8x128xf32>
    %362 = arith.negf %361 : vector<8x128xf32>
    %363 = math.exp %362 : vector<8x128xf32>
    %cst_133 = arith.constant 1.000000e+00 : f32
    %364 = vector.broadcast %cst_133 : f32 to vector<8x128xf32>
    %365 = arith.addf %364, %363 : vector<8x128xf32>
    %366 = arith.divf %364, %365 : vector<8x128xf32>
    %367 = vector.extract_strided_slice %331 {offsets = [0, 256], sizes = [8, 128], strides = [1, 1]} : vector<8x384xf32> to vector<8x128xf32>
    %368 = arith.mulf %350, %326 : vector<8x128xf32>
    %cst_134 = arith.constant dense<0.000000e+00> : vector<8x128xf32>
    %369 = tpu.matmul %368, %23, %cst_134 {dimension_numbers = #tpu.dot_dimension_numbers<[1], [0], [0], [1], [0, 0, 1, 1], [], []>} : vector<8x128xf32>, vector<128x128xf32>, vector<8x128xf32> -> vector<8x128xf32>
    %370 = arith.addf %367, %369 : vector<8x128xf32>
    %371 = math.tanh %370 : vector<8x128xf32>
    %372 = vector.extract_strided_slice %333 {offsets = [0, 256], sizes = [8, 128], strides = [1, 1]} : vector<8x384xf32> to vector<8x128xf32>
    %373 = arith.mulf %366, %326 : vector<8x128xf32>
    %cst_135 = arith.constant dense<0.000000e+00> : vector<8x128xf32>
    %374 = tpu.matmul %373, %25, %cst_135 {dimension_numbers = #tpu.dot_dimension_numbers<[1], [0], [0], [1], [0, 0, 1, 1], [], []>} : vector<8x128xf32>, vector<128x128xf32>, vector<8x128xf32> -> vector<8x128xf32>
    %375 = arith.addf %372, %374 : vector<8x128xf32>
    %376 = math.tanh %375 : vector<8x128xf32>
    %377 = arith.mulf %342, %326 : vector<8x128xf32>
    %cst_136 = arith.constant 1.000000e+00 : f32
    %378 = vector.broadcast %cst_136 : f32 to vector<8x128xf32>
    %379 = arith.subf %378, %342 : vector<8x128xf32>
    %380 = arith.mulf %379, %371 : vector<8x128xf32>
    %381 = arith.addf %377, %380 : vector<8x128xf32>
    %382 = arith.mulf %358, %326 : vector<8x128xf32>
    %cst_137 = arith.constant 1.000000e+00 : f32
    %383 = vector.broadcast %cst_137 : f32 to vector<8x128xf32>
    %384 = arith.subf %383, %358 : vector<8x128xf32>
    %385 = arith.mulf %384, %376 : vector<8x128xf32>
    %386 = arith.addf %382, %385 : vector<8x128xf32>
    %cst_138 = arith.constant dense<0.000000e+00> : vector<8x128xf32>
    %387 = tpu.matmul %381, %27, %cst_138 {dimension_numbers = #tpu.dot_dimension_numbers<[1], [0], [0], [1], [0, 0, 1, 1], [], []>} : vector<8x128xf32>, vector<128x128xf32>, vector<8x128xf32> -> vector<8x128xf32>
    %cst_139 = arith.constant dense<0.000000e+00> : vector<8x128xf32>
    %388 = tpu.matmul %386, %29, %cst_139 {dimension_numbers = #tpu.dot_dimension_numbers<[1], [0], [0], [1], [0, 0, 1, 1], [], []>} : vector<8x128xf32>, vector<128x128xf32>, vector<8x128xf32> -> vector<8x128xf32>
    %389 = arith.addf %387, %388 : vector<8x128xf32>
    %390 = arith.addf %389, %32 : vector<8x128xf32>
    %391 = arith.negf %390 : vector<8x128xf32>
    %392 = math.exp %391 : vector<8x128xf32>
    %cst_140 = arith.constant 1.000000e+00 : f32
    %393 = vector.broadcast %cst_140 : f32 to vector<8x128xf32>
    %394 = arith.addf %393, %392 : vector<8x128xf32>
    %395 = arith.divf %393, %394 : vector<8x128xf32>
    %396 = arith.mulf %395, %381 : vector<8x128xf32>
    %cst_141 = arith.constant 1.000000e+00 : f32
    %397 = vector.broadcast %cst_141 : f32 to vector<8x128xf32>
    %398 = arith.subf %397, %395 : vector<8x128xf32>
    %399 = arith.mulf %398, %386 : vector<8x128xf32>
    %400 = arith.addf %396, %399 : vector<8x128xf32>
    %c4_142 = arith.constant 4 : index
    %c0_143 = arith.constant 0 : index
    %c0_144 = arith.constant 0 : index
    %401 = vector.load %arg13[%c4_142, %c0_143, %c0_144] : memref<8x8x128xf32, #tpu.memory_space<vmem>>, vector<1x8x128xf32>
    %402 = vector.shape_cast %401 : vector<1x8x128xf32> to vector<8x128xf32>
    %403 = vector.shape_cast %400 : vector<8x128xf32> to vector<1x8x128xf32>
    tpu.vector_store %arg13[%c4_142, %c0_143, %c0_144], %403 {strides = array<i32>} : memref<8x8x128xf32, #tpu.memory_space<vmem>>, vector<1x8x128xf32>,
    %c5 = arith.constant 5 : index
    %c0_145 = arith.constant 0 : index
    %c0_146 = arith.constant 0 : index
    %404 = vector.load %arg16[%c5, %c0_145, %c0_146] : memref<8x8x384xf32, #tpu.memory_space<vmem>>, vector<1x8x384xf32>
    %405 = vector.shape_cast %404 : vector<1x8x384xf32> to vector<8x384xf32>
    %c5_147 = arith.constant 5 : index
    %c0_148 = arith.constant 0 : index
    %c0_149 = arith.constant 0 : index
    %406 = vector.load %arg17[%c5_147, %c0_148, %c0_149] : memref<8x8x384xf32, #tpu.memory_space<vmem>>, vector<1x8x384xf32>
    %407 = vector.shape_cast %406 : vector<1x8x384xf32> to vector<8x384xf32>
    %cst_150 = arith.constant dense<0.000000e+00> : vector<8x512xf32>
    %408 = tpu.matmul %400, %21, %cst_150 {dimension_numbers = #tpu.dot_dimension_numbers<[1], [0], [0], [1], [0, 0, 1, 1], [], []>} : vector<8x128xf32>, vector<128x512xf32>, vector<8x512xf32> -> vector<8x512xf32>
    %409 = vector.extract_strided_slice %405 {offsets = [0, 0], sizes = [8, 128], strides = [1, 1]} : vector<8x384xf32> to vector<8x128xf32>
    %410 = vector.extract_strided_slice %408 {offsets = [0, 0], sizes = [8, 128], strides = [1, 1]} : vector<8x512xf32> to vector<8x128xf32>
    %411 = arith.addf %409, %410 : vector<8x128xf32>
    %412 = arith.negf %411 : vector<8x128xf32>
    %413 = math.exp %412 : vector<8x128xf32>
    %cst_151 = arith.constant 1.000000e+00 : f32
    %414 = vector.broadcast %cst_151 : f32 to vector<8x128xf32>
    %415 = arith.addf %414, %413 : vector<8x128xf32>
    %416 = arith.divf %414, %415 : vector<8x128xf32>
    %417 = vector.extract_strided_slice %405 {offsets = [0, 128], sizes = [8, 128], strides = [1, 1]} : vector<8x384xf32> to vector<8x128xf32>
    %418 = vector.extract_strided_slice %408 {offsets = [0, 128], sizes = [8, 128], strides = [1, 1]} : vector<8x512xf32> to vector<8x128xf32>
    %419 = arith.addf %417, %418 : vector<8x128xf32>
    %420 = arith.negf %419 : vector<8x128xf32>
    %421 = math.exp %420 : vector<8x128xf32>
    %cst_152 = arith.constant 1.000000e+00 : f32
    %422 = vector.broadcast %cst_152 : f32 to vector<8x128xf32>
    %423 = arith.addf %422, %421 : vector<8x128xf32>
    %424 = arith.divf %422, %423 : vector<8x128xf32>
    %425 = vector.extract_strided_slice %407 {offsets = [0, 0], sizes = [8, 128], strides = [1, 1]} : vector<8x384xf32> to vector<8x128xf32>
    %426 = vector.extract_strided_slice %408 {offsets = [0, 256], sizes = [8, 128], strides = [1, 1]} : vector<8x512xf32> to vector<8x128xf32>
    %427 = arith.addf %425, %426 : vector<8x128xf32>
    %428 = arith.negf %427 : vector<8x128xf32>
    %429 = math.exp %428 : vector<8x128xf32>
    %cst_153 = arith.constant 1.000000e+00 : f32
    %430 = vector.broadcast %cst_153 : f32 to vector<8x128xf32>
    %431 = arith.addf %430, %429 : vector<8x128xf32>
    %432 = arith.divf %430, %431 : vector<8x128xf32>
    %433 = vector.extract_strided_slice %407 {offsets = [0, 128], sizes = [8, 128], strides = [1, 1]} : vector<8x384xf32> to vector<8x128xf32>
    %434 = vector.extract_strided_slice %408 {offsets = [0, 384], sizes = [8, 128], strides = [1, 1]} : vector<8x512xf32> to vector<8x128xf32>
    %435 = arith.addf %433, %434 : vector<8x128xf32>
    %436 = arith.negf %435 : vector<8x128xf32>
    %437 = math.exp %436 : vector<8x128xf32>
    %cst_154 = arith.constant 1.000000e+00 : f32
    %438 = vector.broadcast %cst_154 : f32 to vector<8x128xf32>
    %439 = arith.addf %438, %437 : vector<8x128xf32>
    %440 = arith.divf %438, %439 : vector<8x128xf32>
    %441 = vector.extract_strided_slice %405 {offsets = [0, 256], sizes = [8, 128], strides = [1, 1]} : vector<8x384xf32> to vector<8x128xf32>
    %442 = arith.mulf %424, %400 : vector<8x128xf32>
    %cst_155 = arith.constant dense<0.000000e+00> : vector<8x128xf32>
    %443 = tpu.matmul %442, %23, %cst_155 {dimension_numbers = #tpu.dot_dimension_numbers<[1], [0], [0], [1], [0, 0, 1, 1], [], []>} : vector<8x128xf32>, vector<128x128xf32>, vector<8x128xf32> -> vector<8x128xf32>
    %444 = arith.addf %441, %443 : vector<8x128xf32>
    %445 = math.tanh %444 : vector<8x128xf32>
    %446 = vector.extract_strided_slice %407 {offsets = [0, 256], sizes = [8, 128], strides = [1, 1]} : vector<8x384xf32> to vector<8x128xf32>
    %447 = arith.mulf %440, %400 : vector<8x128xf32>
    %cst_156 = arith.constant dense<0.000000e+00> : vector<8x128xf32>
    %448 = tpu.matmul %447, %25, %cst_156 {dimension_numbers = #tpu.dot_dimension_numbers<[1], [0], [0], [1], [0, 0, 1, 1], [], []>} : vector<8x128xf32>, vector<128x128xf32>, vector<8x128xf32> -> vector<8x128xf32>
    %449 = arith.addf %446, %448 : vector<8x128xf32>
    %450 = math.tanh %449 : vector<8x128xf32>
    %451 = arith.mulf %416, %400 : vector<8x128xf32>
    %cst_157 = arith.constant 1.000000e+00 : f32
    %452 = vector.broadcast %cst_157 : f32 to vector<8x128xf32>
    %453 = arith.subf %452, %416 : vector<8x128xf32>
    %454 = arith.mulf %453, %445 : vector<8x128xf32>
    %455 = arith.addf %451, %454 : vector<8x128xf32>
    %456 = arith.mulf %432, %400 : vector<8x128xf32>
    %cst_158 = arith.constant 1.000000e+00 : f32
    %457 = vector.broadcast %cst_158 : f32 to vector<8x128xf32>
    %458 = arith.subf %457, %432 : vector<8x128xf32>
    %459 = arith.mulf %458, %450 : vector<8x128xf32>
    %460 = arith.addf %456, %459 : vector<8x128xf32>
    %cst_159 = arith.constant dense<0.000000e+00> : vector<8x128xf32>
    %461 = tpu.matmul %455, %27, %cst_159 {dimension_numbers = #tpu.dot_dimension_numbers<[1], [0], [0], [1], [0, 0, 1, 1], [], []>} : vector<8x128xf32>, vector<128x128xf32>, vector<8x128xf32> -> vector<8x128xf32>
    %cst_160 = arith.constant dense<0.000000e+00> : vector<8x128xf32>
    %462 = tpu.matmul %460, %29, %cst_160 {dimension_numbers = #tpu.dot_dimension_numbers<[1], [0], [0], [1], [0, 0, 1, 1], [], []>} : vector<8x128xf32>, vector<128x128xf32>, vector<8x128xf32> -> vector<8x128xf32>
    %463 = arith.addf %461, %462 : vector<8x128xf32>
    %464 = arith.addf %463, %32 : vector<8x128xf32>
    %465 = arith.negf %464 : vector<8x128xf32>
    %466 = math.exp %465 : vector<8x128xf32>
    %cst_161 = arith.constant 1.000000e+00 : f32
    %467 = vector.broadcast %cst_161 : f32 to vector<8x128xf32>
    %468 = arith.addf %467, %466 : vector<8x128xf32>
    %469 = arith.divf %467, %468 : vector<8x128xf32>
    %470 = arith.mulf %469, %455 : vector<8x128xf32>
    %cst_162 = arith.constant 1.000000e+00 : f32
    %471 = vector.broadcast %cst_162 : f32 to vector<8x128xf32>
    %472 = arith.subf %471, %469 : vector<8x128xf32>
    %473 = arith.mulf %472, %460 : vector<8x128xf32>
    %474 = arith.addf %470, %473 : vector<8x128xf32>
    %c5_163 = arith.constant 5 : index
    %c0_164 = arith.constant 0 : index
    %c0_165 = arith.constant 0 : index
    %475 = vector.load %arg13[%c5_163, %c0_164, %c0_165] : memref<8x8x128xf32, #tpu.memory_space<vmem>>, vector<1x8x128xf32>
    %476 = vector.shape_cast %475 : vector<1x8x128xf32> to vector<8x128xf32>
    %477 = vector.shape_cast %474 : vector<8x128xf32> to vector<1x8x128xf32>
    tpu.vector_store %arg13[%c5_163, %c0_164, %c0_165], %477 {strides = array<i32>} : memref<8x8x128xf32, #tpu.memory_space<vmem>>, vector<1x8x128xf32>,
    %c6 = arith.constant 6 : index
    %c0_166 = arith.constant 0 : index
    %c0_167 = arith.constant 0 : index
    %478 = vector.load %arg16[%c6, %c0_166, %c0_167] : memref<8x8x384xf32, #tpu.memory_space<vmem>>, vector<1x8x384xf32>
    %479 = vector.shape_cast %478 : vector<1x8x384xf32> to vector<8x384xf32>
    %c6_168 = arith.constant 6 : index
    %c0_169 = arith.constant 0 : index
    %c0_170 = arith.constant 0 : index
    %480 = vector.load %arg17[%c6_168, %c0_169, %c0_170] : memref<8x8x384xf32, #tpu.memory_space<vmem>>, vector<1x8x384xf32>
    %481 = vector.shape_cast %480 : vector<1x8x384xf32> to vector<8x384xf32>
    %cst_171 = arith.constant dense<0.000000e+00> : vector<8x512xf32>
    %482 = tpu.matmul %474, %21, %cst_171 {dimension_numbers = #tpu.dot_dimension_numbers<[1], [0], [0], [1], [0, 0, 1, 1], [], []>} : vector<8x128xf32>, vector<128x512xf32>, vector<8x512xf32> -> vector<8x512xf32>
    %483 = vector.extract_strided_slice %479 {offsets = [0, 0], sizes = [8, 128], strides = [1, 1]} : vector<8x384xf32> to vector<8x128xf32>
    %484 = vector.extract_strided_slice %482 {offsets = [0, 0], sizes = [8, 128], strides = [1, 1]} : vector<8x512xf32> to vector<8x128xf32>
    %485 = arith.addf %483, %484 : vector<8x128xf32>
    %486 = arith.negf %485 : vector<8x128xf32>
    %487 = math.exp %486 : vector<8x128xf32>
    %cst_172 = arith.constant 1.000000e+00 : f32
    %488 = vector.broadcast %cst_172 : f32 to vector<8x128xf32>
    %489 = arith.addf %488, %487 : vector<8x128xf32>
    %490 = arith.divf %488, %489 : vector<8x128xf32>
    %491 = vector.extract_strided_slice %479 {offsets = [0, 128], sizes = [8, 128], strides = [1, 1]} : vector<8x384xf32> to vector<8x128xf32>
    %492 = vector.extract_strided_slice %482 {offsets = [0, 128], sizes = [8, 128], strides = [1, 1]} : vector<8x512xf32> to vector<8x128xf32>
    %493 = arith.addf %491, %492 : vector<8x128xf32>
    %494 = arith.negf %493 : vector<8x128xf32>
    %495 = math.exp %494 : vector<8x128xf32>
    %cst_173 = arith.constant 1.000000e+00 : f32
    %496 = vector.broadcast %cst_173 : f32 to vector<8x128xf32>
    %497 = arith.addf %496, %495 : vector<8x128xf32>
    %498 = arith.divf %496, %497 : vector<8x128xf32>
    %499 = vector.extract_strided_slice %481 {offsets = [0, 0], sizes = [8, 128], strides = [1, 1]} : vector<8x384xf32> to vector<8x128xf32>
    %500 = vector.extract_strided_slice %482 {offsets = [0, 256], sizes = [8, 128], strides = [1, 1]} : vector<8x512xf32> to vector<8x128xf32>
    %501 = arith.addf %499, %500 : vector<8x128xf32>
    %502 = arith.negf %501 : vector<8x128xf32>
    %503 = math.exp %502 : vector<8x128xf32>
    %cst_174 = arith.constant 1.000000e+00 : f32
    %504 = vector.broadcast %cst_174 : f32 to vector<8x128xf32>
    %505 = arith.addf %504, %503 : vector<8x128xf32>
    %506 = arith.divf %504, %505 : vector<8x128xf32>
    %507 = vector.extract_strided_slice %481 {offsets = [0, 128], sizes = [8, 128], strides = [1, 1]} : vector<8x384xf32> to vector<8x128xf32>
    %508 = vector.extract_strided_slice %482 {offsets = [0, 384], sizes = [8, 128], strides = [1, 1]} : vector<8x512xf32> to vector<8x128xf32>
    %509 = arith.addf %507, %508 : vector<8x128xf32>
    %510 = arith.negf %509 : vector<8x128xf32>
    %511 = math.exp %510 : vector<8x128xf32>
    %cst_175 = arith.constant 1.000000e+00 : f32
    %512 = vector.broadcast %cst_175 : f32 to vector<8x128xf32>
    %513 = arith.addf %512, %511 : vector<8x128xf32>
    %514 = arith.divf %512, %513 : vector<8x128xf32>
    %515 = vector.extract_strided_slice %479 {offsets = [0, 256], sizes = [8, 128], strides = [1, 1]} : vector<8x384xf32> to vector<8x128xf32>
    %516 = arith.mulf %498, %474 : vector<8x128xf32>
    %cst_176 = arith.constant dense<0.000000e+00> : vector<8x128xf32>
    %517 = tpu.matmul %516, %23, %cst_176 {dimension_numbers = #tpu.dot_dimension_numbers<[1], [0], [0], [1], [0, 0, 1, 1], [], []>} : vector<8x128xf32>, vector<128x128xf32>, vector<8x128xf32> -> vector<8x128xf32>
    %518 = arith.addf %515, %517 : vector<8x128xf32>
    %519 = math.tanh %518 : vector<8x128xf32>
    %520 = vector.extract_strided_slice %481 {offsets = [0, 256], sizes = [8, 128], strides = [1, 1]} : vector<8x384xf32> to vector<8x128xf32>
    %521 = arith.mulf %514, %474 : vector<8x128xf32>
    %cst_177 = arith.constant dense<0.000000e+00> : vector<8x128xf32>
    %522 = tpu.matmul %521, %25, %cst_177 {dimension_numbers = #tpu.dot_dimension_numbers<[1], [0], [0], [1], [0, 0, 1, 1], [], []>} : vector<8x128xf32>, vector<128x128xf32>, vector<8x128xf32> -> vector<8x128xf32>
    %523 = arith.addf %520, %522 : vector<8x128xf32>
    %524 = math.tanh %523 : vector<8x128xf32>
    %525 = arith.mulf %490, %474 : vector<8x128xf32>
    %cst_178 = arith.constant 1.000000e+00 : f32
    %526 = vector.broadcast %cst_178 : f32 to vector<8x128xf32>
    %527 = arith.subf %526, %490 : vector<8x128xf32>
    %528 = arith.mulf %527, %519 : vector<8x128xf32>
    %529 = arith.addf %525, %528 : vector<8x128xf32>
    %530 = arith.mulf %506, %474 : vector<8x128xf32>
    %cst_179 = arith.constant 1.000000e+00 : f32
    %531 = vector.broadcast %cst_179 : f32 to vector<8x128xf32>
    %532 = arith.subf %531, %506 : vector<8x128xf32>
    %533 = arith.mulf %532, %524 : vector<8x128xf32>
    %534 = arith.addf %530, %533 : vector<8x128xf32>
    %cst_180 = arith.constant dense<0.000000e+00> : vector<8x128xf32>
    %535 = tpu.matmul %529, %27, %cst_180 {dimension_numbers = #tpu.dot_dimension_numbers<[1], [0], [0], [1], [0, 0, 1, 1], [], []>} : vector<8x128xf32>, vector<128x128xf32>, vector<8x128xf32> -> vector<8x128xf32>
    %cst_181 = arith.constant dense<0.000000e+00> : vector<8x128xf32>
    %536 = tpu.matmul %534, %29, %cst_181 {dimension_numbers = #tpu.dot_dimension_numbers<[1], [0], [0], [1], [0, 0, 1, 1], [], []>} : vector<8x128xf32>, vector<128x128xf32>, vector<8x128xf32> -> vector<8x128xf32>
    %537 = arith.addf %535, %536 : vector<8x128xf32>
    %538 = arith.addf %537, %32 : vector<8x128xf32>
    %539 = arith.negf %538 : vector<8x128xf32>
    %540 = math.exp %539 : vector<8x128xf32>
    %cst_182 = arith.constant 1.000000e+00 : f32
    %541 = vector.broadcast %cst_182 : f32 to vector<8x128xf32>
    %542 = arith.addf %541, %540 : vector<8x128xf32>
    %543 = arith.divf %541, %542 : vector<8x128xf32>
    %544 = arith.mulf %543, %529 : vector<8x128xf32>
    %cst_183 = arith.constant 1.000000e+00 : f32
    %545 = vector.broadcast %cst_183 : f32 to vector<8x128xf32>
    %546 = arith.subf %545, %543 : vector<8x128xf32>
    %547 = arith.mulf %546, %534 : vector<8x128xf32>
    %548 = arith.addf %544, %547 : vector<8x128xf32>
    %c6_184 = arith.constant 6 : index
    %c0_185 = arith.constant 0 : index
    %c0_186 = arith.constant 0 : index
    %549 = vector.load %arg13[%c6_184, %c0_185, %c0_186] : memref<8x8x128xf32, #tpu.memory_space<vmem>>, vector<1x8x128xf32>
    %550 = vector.shape_cast %549 : vector<1x8x128xf32> to vector<8x128xf32>
    %551 = vector.shape_cast %548 : vector<8x128xf32> to vector<1x8x128xf32>
    tpu.vector_store %arg13[%c6_184, %c0_185, %c0_186], %551 {strides = array<i32>} : memref<8x8x128xf32, #tpu.memory_space<vmem>>, vector<1x8x128xf32>,
    %c7 = arith.constant 7 : index
    %c0_187 = arith.constant 0 : index
    %c0_188 = arith.constant 0 : index
    %552 = vector.load %arg16[%c7, %c0_187, %c0_188] : memref<8x8x384xf32, #tpu.memory_space<vmem>>, vector<1x8x384xf32>
    %553 = vector.shape_cast %552 : vector<1x8x384xf32> to vector<8x384xf32>
    %c7_189 = arith.constant 7 : index
    %c0_190 = arith.constant 0 : index
    %c0_191 = arith.constant 0 : index
    %554 = vector.load %arg17[%c7_189, %c0_190, %c0_191] : memref<8x8x384xf32, #tpu.memory_space<vmem>>, vector<1x8x384xf32>
    %555 = vector.shape_cast %554 : vector<1x8x384xf32> to vector<8x384xf32>
    %cst_192 = arith.constant dense<0.000000e+00> : vector<8x512xf32>
    %556 = tpu.matmul %548, %21, %cst_192 {dimension_numbers = #tpu.dot_dimension_numbers<[1], [0], [0], [1], [0, 0, 1, 1], [], []>} : vector<8x128xf32>, vector<128x512xf32>, vector<8x512xf32> -> vector<8x512xf32>
    %557 = vector.extract_strided_slice %553 {offsets = [0, 0], sizes = [8, 128], strides = [1, 1]} : vector<8x384xf32> to vector<8x128xf32>
    %558 = vector.extract_strided_slice %556 {offsets = [0, 0], sizes = [8, 128], strides = [1, 1]} : vector<8x512xf32> to vector<8x128xf32>
    %559 = arith.addf %557, %558 : vector<8x128xf32>
    %560 = arith.negf %559 : vector<8x128xf32>
    %561 = math.exp %560 : vector<8x128xf32>
    %cst_193 = arith.constant 1.000000e+00 : f32
    %562 = vector.broadcast %cst_193 : f32 to vector<8x128xf32>
    %563 = arith.addf %562, %561 : vector<8x128xf32>
    %564 = arith.divf %562, %563 : vector<8x128xf32>
    %565 = vector.extract_strided_slice %553 {offsets = [0, 128], sizes = [8, 128], strides = [1, 1]} : vector<8x384xf32> to vector<8x128xf32>
    %566 = vector.extract_strided_slice %556 {offsets = [0, 128], sizes = [8, 128], strides = [1, 1]} : vector<8x512xf32> to vector<8x128xf32>
    %567 = arith.addf %565, %566 : vector<8x128xf32>
    %568 = arith.negf %567 : vector<8x128xf32>
    %569 = math.exp %568 : vector<8x128xf32>
    %cst_194 = arith.constant 1.000000e+00 : f32
    %570 = vector.broadcast %cst_194 : f32 to vector<8x128xf32>
    %571 = arith.addf %570, %569 : vector<8x128xf32>
    %572 = arith.divf %570, %571 : vector<8x128xf32>
    %573 = vector.extract_strided_slice %555 {offsets = [0, 0], sizes = [8, 128], strides = [1, 1]} : vector<8x384xf32> to vector<8x128xf32>
    %574 = vector.extract_strided_slice %556 {offsets = [0, 256], sizes = [8, 128], strides = [1, 1]} : vector<8x512xf32> to vector<8x128xf32>
    %575 = arith.addf %573, %574 : vector<8x128xf32>
    %576 = arith.negf %575 : vector<8x128xf32>
    %577 = math.exp %576 : vector<8x128xf32>
    %cst_195 = arith.constant 1.000000e+00 : f32
    %578 = vector.broadcast %cst_195 : f32 to vector<8x128xf32>
    %579 = arith.addf %578, %577 : vector<8x128xf32>
    %580 = arith.divf %578, %579 : vector<8x128xf32>
    %581 = vector.extract_strided_slice %555 {offsets = [0, 128], sizes = [8, 128], strides = [1, 1]} : vector<8x384xf32> to vector<8x128xf32>
    %582 = vector.extract_strided_slice %556 {offsets = [0, 384], sizes = [8, 128], strides = [1, 1]} : vector<8x512xf32> to vector<8x128xf32>
    %583 = arith.addf %581, %582 : vector<8x128xf32>
    %584 = arith.negf %583 : vector<8x128xf32>
    %585 = math.exp %584 : vector<8x128xf32>
    %cst_196 = arith.constant 1.000000e+00 : f32
    %586 = vector.broadcast %cst_196 : f32 to vector<8x128xf32>
    %587 = arith.addf %586, %585 : vector<8x128xf32>
    %588 = arith.divf %586, %587 : vector<8x128xf32>
    %589 = vector.extract_strided_slice %553 {offsets = [0, 256], sizes = [8, 128], strides = [1, 1]} : vector<8x384xf32> to vector<8x128xf32>
    %590 = arith.mulf %572, %548 : vector<8x128xf32>
    %cst_197 = arith.constant dense<0.000000e+00> : vector<8x128xf32>
    %591 = tpu.matmul %590, %23, %cst_197 {dimension_numbers = #tpu.dot_dimension_numbers<[1], [0], [0], [1], [0, 0, 1, 1], [], []>} : vector<8x128xf32>, vector<128x128xf32>, vector<8x128xf32> -> vector<8x128xf32>
    %592 = arith.addf %589, %591 : vector<8x128xf32>
    %593 = math.tanh %592 : vector<8x128xf32>
    %594 = vector.extract_strided_slice %555 {offsets = [0, 256], sizes = [8, 128], strides = [1, 1]} : vector<8x384xf32> to vector<8x128xf32>
    %595 = arith.mulf %588, %548 : vector<8x128xf32>
    %cst_198 = arith.constant dense<0.000000e+00> : vector<8x128xf32>
    %596 = tpu.matmul %595, %25, %cst_198 {dimension_numbers = #tpu.dot_dimension_numbers<[1], [0], [0], [1], [0, 0, 1, 1], [], []>} : vector<8x128xf32>, vector<128x128xf32>, vector<8x128xf32> -> vector<8x128xf32>
    %597 = arith.addf %594, %596 : vector<8x128xf32>
    %598 = math.tanh %597 : vector<8x128xf32>
    %599 = arith.mulf %564, %548 : vector<8x128xf32>
    %cst_199 = arith.constant 1.000000e+00 : f32
    %600 = vector.broadcast %cst_199 : f32 to vector<8x128xf32>
    %601 = arith.subf %600, %564 : vector<8x128xf32>
    %602 = arith.mulf %601, %593 : vector<8x128xf32>
    %603 = arith.addf %599, %602 : vector<8x128xf32>
    %604 = arith.mulf %580, %548 : vector<8x128xf32>
    %cst_200 = arith.constant 1.000000e+00 : f32
    %605 = vector.broadcast %cst_200 : f32 to vector<8x128xf32>
    %606 = arith.subf %605, %580 : vector<8x128xf32>
    %607 = arith.mulf %606, %598 : vector<8x128xf32>
    %608 = arith.addf %604, %607 : vector<8x128xf32>
    %cst_201 = arith.constant dense<0.000000e+00> : vector<8x128xf32>
    %609 = tpu.matmul %603, %27, %cst_201 {dimension_numbers = #tpu.dot_dimension_numbers<[1], [0], [0], [1], [0, 0, 1, 1], [], []>} : vector<8x128xf32>, vector<128x128xf32>, vector<8x128xf32> -> vector<8x128xf32>
    %cst_202 = arith.constant dense<0.000000e+00> : vector<8x128xf32>
    %610 = tpu.matmul %608, %29, %cst_202 {dimension_numbers = #tpu.dot_dimension_numbers<[1], [0], [0], [1], [0, 0, 1, 1], [], []>} : vector<8x128xf32>, vector<128x128xf32>, vector<8x128xf32> -> vector<8x128xf32>
    %611 = arith.addf %609, %610 : vector<8x128xf32>
    %612 = arith.addf %611, %32 : vector<8x128xf32>
    %613 = arith.negf %612 : vector<8x128xf32>
    %614 = math.exp %613 : vector<8x128xf32>
    %cst_203 = arith.constant 1.000000e+00 : f32
    %615 = vector.broadcast %cst_203 : f32 to vector<8x128xf32>
    %616 = arith.addf %615, %614 : vector<8x128xf32>
    %617 = arith.divf %615, %616 : vector<8x128xf32>
    %618 = arith.mulf %617, %603 : vector<8x128xf32>
    %cst_204 = arith.constant 1.000000e+00 : f32
    %619 = vector.broadcast %cst_204 : f32 to vector<8x128xf32>
    %620 = arith.subf %619, %617 : vector<8x128xf32>
    %621 = arith.mulf %620, %608 : vector<8x128xf32>
    %622 = arith.addf %618, %621 : vector<8x128xf32>
    %c7_205 = arith.constant 7 : index
    %c0_206 = arith.constant 0 : index
    %c0_207 = arith.constant 0 : index
    %623 = vector.load %arg13[%c7_205, %c0_206, %c0_207] : memref<8x8x128xf32, #tpu.memory_space<vmem>>, vector<1x8x128xf32>
    %624 = vector.shape_cast %623 : vector<1x8x128xf32> to vector<8x128xf32>
    %625 = vector.shape_cast %622 : vector<8x128xf32> to vector<1x8x128xf32>
    tpu.vector_store %arg13[%c7_205, %c0_206, %c0_207], %625 {strides = array<i32>} : memref<8x8x128xf32, #tpu.memory_space<vmem>>, vector<1x8x128xf32>,
    %c1_i32 = arith.constant 1 : i32
    %626 = arith.cmpi eq, %arg1, %c1_i32 : i32
    %627 = arith.extui %626 : i1 to i32
    %c0_i32_208 = arith.constant 0 : i32
    %628 = arith.cmpi ne, %627, %c0_i32_208 : i32
    scf.if %628 {
      %c0_211 = arith.constant 0 : index
      %c0_212 = arith.constant 0 : index
      %630 = vector.load %arg14[%c0_211, %c0_212] : memref<8x128xf32, #tpu.memory_space<vmem>>, vector<8x128xf32>
      tpu.vector_store %arg14[%c0_211, %c0_212], %622 {strides = array<i32>} : memref<8x128xf32, #tpu.memory_space<vmem>>, vector<8x128xf32>,
    } else {
    }
    %c0_209 = arith.constant 0 : index
    %c0_210 = arith.constant 0 : index
    %629 = vector.load %arg15[%c0_209, %c0_210] : memref<8x128xf32, #tpu.memory_space<vmem>>, vector<8x128xf32>
    tpu.vector_store %arg15[%c0_209, %c0_210], %622 {strides = array<i32>} : memref<8x128xf32, #tpu.memory_space<vmem>>, vector<8x128xf32>,
    return
  }
  func.func @transform_0(%arg0: i32, %arg1: i32) -> (i32, i32) {
    %c0_i32 = arith.constant 0 : i32
    %c0_i32_0 = arith.constant 0 : i32
    return %arg0, %c0_i32 : i32, i32
  }
  func.func @transform_1(%arg0: i32, %arg1: i32) -> (i32, i32, i32) {
    %c0_i32 = arith.constant 0 : i32
    %c0_i32_0 = arith.constant 0 : i32
    return %arg1, %arg0, %c0_i32 : i32, i32, i32
  }
  func.func @transform_2(%arg0: i32, %arg1: i32) -> (i32, i32, i32) {
    %c0_i32 = arith.constant 0 : i32
    %c0_i32_0 = arith.constant 0 : i32
    return %arg1, %arg0, %c0_i32 : i32, i32, i32
  }
  func.func @transform_3(%arg0: i32, %arg1: i32) -> (i32, i32) {
    %c0_i32 = arith.constant 0 : i32
    %c0_i32_0 = arith.constant 0 : i32
    %c0_i32_1 = arith.constant 0 : i32
    return %c0_i32, %c0_i32_0 : i32, i32
  }
  func.func @transform_4(%arg0: i32, %arg1: i32) -> (i32, i32) {
    %c0_i32 = arith.constant 0 : i32
    %c0_i32_0 = arith.constant 0 : i32
    %c0_i32_1 = arith.constant 0 : i32
    return %c0_i32, %c0_i32_0 : i32, i32
  }
  func.func @transform_5(%arg0: i32, %arg1: i32) -> (i32, i32) {
    %c0_i32 = arith.constant 0 : i32
    %c0_i32_0 = arith.constant 0 : i32
    %c0_i32_1 = arith.constant 0 : i32
    return %c0_i32, %c0_i32_0 : i32, i32
  }
  func.func @transform_6(%arg0: i32, %arg1: i32) -> (i32, i32) {
    %c0_i32 = arith.constant 0 : i32
    %c0_i32_0 = arith.constant 0 : i32
    %c0_i32_1 = arith.constant 0 : i32
    return %c0_i32, %c0_i32_0 : i32, i32
  }
  func.func @transform_7(%arg0: i32, %arg1: i32) -> (i32, i32) {
    %c0_i32 = arith.constant 0 : i32
    %c0_i32_0 = arith.constant 0 : i32
    %c0_i32_1 = arith.constant 0 : i32
    return %c0_i32, %c0_i32_0 : i32, i32
  }
  func.func @transform_8(%arg0: i32, %arg1: i32) -> (i32, i32, i32) {
    %c0_i32 = arith.constant 0 : i32
    %c0_i32_0 = arith.constant 0 : i32
    %c0_i32_1 = arith.constant 0 : i32
    %c0_i32_2 = arith.constant 0 : i32
    return %c0_i32, %c0_i32_0, %c0_i32_1 : i32, i32, i32
  }
  func.func @transform_9(%arg0: i32, %arg1: i32) -> (i32, i32, i32) {
    %c0_i32 = arith.constant 0 : i32
    %c0_i32_0 = arith.constant 0 : i32
    %c0_i32_1 = arith.constant 0 : i32
    %c0_i32_2 = arith.constant 0 : i32
    return %c0_i32, %c0_i32_0, %c0_i32_1 : i32, i32, i32
  }
  func.func @transform_10(%arg0: i32, %arg1: i32) -> (i32, i32) {
    %c0_i32 = arith.constant 0 : i32
    %c0_i32_0 = arith.constant 0 : i32
    %c0_i32_1 = arith.constant 0 : i32
    return %c0_i32, %c0_i32_0 : i32, i32
  }
  func.func @transform_11(%arg0: i32, %arg1: i32) -> (i32, i32, i32) {
    %c0_i32 = arith.constant 0 : i32
    %c0_i32_0 = arith.constant 0 : i32
    return %arg1, %arg0, %c0_i32 : i32, i32, i32
  }
  func.func @transform_12(%arg0: i32, %arg1: i32) -> (i32, i32) {
    %c0_i32 = arith.constant 0 : i32
    %c0_i32_0 = arith.constant 0 : i32
    return %arg0, %c0_i32 : i32, i32
  }
}

</mosaic_0001>

<llo_original>
// kernel: ggru_forward.1
$region0: #{ggru_forward.1}
  #allocation0 [shape = 'u32[]', space=smem, size = 0x4, offset = 0x4, fixed_abs, tag = 'smem constant byte address 0x4 - core index']
  #allocation1 [shape = 'u32[144,128]{1,0:T(1,128)}', space=vmem, size = 0x12000, scoped, tag = 'internal scratch']
  #allocation2 [shape = 'f32[8,128]{1,0:T(8,128)}', space=vmem, size = 0x1000, scoped, tag = 'scratch operand']
  #allocation3 [shape = 'f32[8,8,384]{2,1,0:T(8,128)}', space=vmem, size = 0x18000, scoped, tag = 'scratch operand']
  #allocation4 [shape = 'f32[8,8,384]{2,1,0:T(8,128)}', space=vmem, size = 0x18000, scoped, tag = 'scratch operand']
  %s0 = inlined_call_operand.vmem [shape: f32[8,128], index: 0, kind: input, shape index: {}]
  %s1 = inlined_call_operand.vmem [shape: f32[16,8,4], index: 1, kind: input, shape index: {}]
  %s2 = inlined_call_operand.vmem [shape: f32[16,8,4], index: 2, kind: input, shape index: {}]
  %s3 = inlined_call_operand.vmem [shape: f32[4,384], index: 3, kind: input, shape index: {}]
  %s4 = inlined_call_operand.vmem [shape: f32[4,384], index: 4, kind: input, shape index: {}]
  %s5 = inlined_call_operand.vmem [shape: f32[1,384], index: 5, kind: input, shape index: {}]
  %s6 = inlined_call_operand.vmem [shape: f32[1,384], index: 6, kind: input, shape index: {}]
  %s7 = inlined_call_operand.vmem [shape: f32[128,512], index: 7, kind: input, shape index: {}]
  %s8 = inlined_call_operand.vmem [shape: f32[2,128,128], index: 8, kind: input, shape index: {}]
  %s9 = inlined_call_operand.vmem [shape: f32[2,128,128], index: 9, kind: input, shape index: {}]
  %s10 = inlined_call_operand.vmem [shape: f32[1,128], index: 10, kind: input, shape index: {}]
  %s11 = inlined_call_operand.vmem [shape: f32[16,8,128], index: 11, kind: output, shape index: {0}]
  %s12 = inlined_call_operand.vmem [shape: f32[8,128], index: 12, kind: output, shape index: {1}]
  %13 = xla_tuple %s11, %s12
  %s14 = sld [smem:[#allocation0]]
  $region93: #{ggru_forward.1} parent=0
    _
  %s16 = ssub.s32 1, %s14
  %s17 = scalar_select 0, %s16, %s14
  loop: start=0, step=1, limit=4
  $region2: #{ggru_forward.1} parent=0 // loop_pre_header
    _
  $region3: #{ggru_forward.1} parent=0 // loop_header
    %s19 = sphi 0, %s23
    %p20 = scmp.ge.s32.totalorder %s19, 4
    %s26 = sphi 0, %s38
    %s27 = sphi 0, %s34
    %s28 = sphi 0, %s26
    %s29 = sphi 0, %s27
    %s30 = sphi 0, %s28
    %s31 = sphi 0, %s29
    %s41 = sphi 0, %s43
    %s44 = sphi 0, %s41
    %s45 = sphi 0, %s44
    %s61 = sphi 0, %s45
    %s69 = sphi 0, %s71
    %s72 = sphi 0, %s69
    %s73 = sphi 0, %s72
    %s89 = sphi 0, %s73
    %s97 = sphi 0, %s99
    %s100 = sphi 0, %s97
    %s101 = sphi 0, %s100
    %s117 = sphi 0, %s101
    %s121 = sphi 0, %s121
    %s123 = sphi 0, %s121
    %s124 = sphi 0, %s123
    %s138 = sphi 0, %s124
    %s142 = sphi 0, %s142
    %s144 = sphi 0, %s142
    %s145 = sphi 0, %s144
    %s159 = sphi 0, %s145
    %s163 = sphi 0, %s163
    %s165 = sphi 0, %s163
    %s166 = sphi 0, %s165
    %s180 = sphi 0, %s166
    %s184 = sphi 0, %s184
    %s186 = sphi 0, %s184
    %s187 = sphi 0, %s186
    %s201 = sphi 0, %s187
    %s205 = sphi 0, %s205
    %s207 = sphi 0, %s205
    %s208 = sphi 0, %s207
    %s222 = sphi 0, %s208
    %s226 = sphi 0, %s226
    %s228 = sphi 0, %s226
    %s229 = sphi 0, %s228
    %s243 = sphi 0, %s229
    %s247 = sphi 0, %s247
    %s249 = sphi 0, %s247
    %s250 = sphi 0, %s249
    %s264 = sphi 0, %s250
    %s268 = sphi 0, %s268
    %s270 = sphi 0, %s268
    %s271 = sphi 0, %s270
    %s285 = sphi 0, %s271
    %s293 = sphi 0, %s295
    %s296 = sphi 0, %s293
    %s297 = sphi 0, %s296
    %s313 = sphi 0, %s297
    %s319 = sphi 0, %s321
    %s322 = sphi 0, %s319
    %s323 = sphi 0, %s322
    %s339 = sphi 0, %s323
  $region4: #{ggru_forward.1} parent=0 // loop_header_branch
    %22 = sbr.rel (%p20) target = $region8
  $region5: #{ggru_forward.1} parent=0 // loop_body
    %s24 = ssub.s32 %s19, 1
    %s25 = ssub.s32 %s19, 2
    %s32 = sadd.s32 1, %s27
    %p33 = scmp.ge.s32.totalorder %s32, 2
    %s34 = scalar_select %p33, 0, %s32
    %s35 = sadd.s32 1, %s26
    %s36 = scalar_select %p33, %s35, %s26
    %p37 = scmp.ge.s32.totalorder %s36, 1
    %s38 = scalar_select %p37, 0, %s36
    %s39 = ssub.s32 %s26, %s38
    %p40 = scmp.eq.s32.totalorder %s39, 0
    %s42 = sadd.s32 %s41, 1
    %s43 = scalar_select %p40, %s41, %s42
    %p46 = pneg %p40
    %p47 = scmp.eq.s32.totalorder %s19, 1
    %p48 = por %p46, %p47
    %p49 = scmp.ne.s32.totalorder %s41, %s44
    %p50 = scmp.eq.s32.totalorder %s19, 0
    %p51 = por %p49, %p50
    %p52 = scmp.ne.s32.totalorder %s41, %s44
    %p53 = scmp.eq.s32.totalorder %s24, 1
    %p54 = por %p52, %p53
    %p55 = scmp.ne.s32.totalorder %s44, %s45
    %p56 = scmp.eq.s32.totalorder %s24, 0
    %p57 = por %p55, %p56
    %p58 = scmp.ne.s32.totalorder %s44, %s45
    %p59 = scmp.eq.s32.totalorder %s25, 1
    %p60 = por %p58, %p59
    %p62 = scmp.ne.s32.totalorder %s45, %s61
    %p63 = scmp.eq.s32.totalorder %s25, 0
    %p64 = por %p62, %p63
    %s65 = ssub.s32 %s27, %s34
    %s66 = ssub.s32 %s26, %s38
    %s67 = sor.u32 %s65, %s66
    %p68 = scmp.eq.s32.totalorder %s67, 0
    %s70 = sadd.s32 %s69, 1
    %s71 = scalar_select %p68, %s69, %s70
    %p74 = pneg %p68
    %p75 = scmp.eq.s32.totalorder %s19, 1
    %p76 = por %p74, %p75
    %p77 = scmp.ne.s32.totalorder %s69, %s72
    %p78 = scmp.eq.s32.totalorder %s19, 0
    %p79 = por %p77, %p78
    %p80 = scmp.ne.s32.totalorder %s69, %s72
    %p81 = scmp.eq.s32.totalorder %s24, 1
    %p82 = por %p80, %p81
    %p83 = scmp.ne.s32.totalorder %s72, %s73
    %p84 = scmp.eq.s32.totalorder %s24, 0
    %p85 = por %p83, %p84
    %p86 = scmp.ne.s32.totalorder %s72, %s73
    %p87 = scmp.eq.s32.totalorder %s25, 1
    %p88 = por %p86, %p87
    %p90 = scmp.ne.s32.totalorder %s73, %s89
    %p91 = scmp.eq.s32.totalorder %s25, 0
    %p92 = por %p90, %p91
    %s93 = ssub.s32 %s27, %s34
    %s94 = ssub.s32 %s26, %s38
    %s95 = sor.u32 %s93, %s94
    %p96 = scmp.eq.s32.totalorder %s95, 0
    %s98 = sadd.s32 %s97, 1
    %s99 = scalar_select %p96, %s97, %s98
    %p102 = pneg %p96
    %p103 = scmp.eq.s32.totalorder %s19, 1
    %p104 = por %p102, %p103
    %p105 = scmp.ne.s32.totalorder %s97, %s100
    %p106 = scmp.eq.s32.totalorder %s19, 0
    %p107 = por %p105, %p106
    %p108 = scmp.ne.s32.totalorder %s97, %s100
    %p109 = scmp.eq.s32.totalorder %s24, 1
    %p110 = por %p108, %p109
    %p111 = scmp.ne.s32.totalorder %s100, %s101
    %p112 = scmp.eq.s32.totalorder %s24, 0
    %p113 = por %p111, %p112
    %p114 = scmp.ne.s32.totalorder %s100, %s101
    %p115 = scmp.eq.s32.totalorder %s25, 1
    %p116 = por %p114, %p115
    %p118 = scmp.ne.s32.totalorder %s101, %s117
    %p119 = scmp.eq.s32.totalorder %s25, 0
    %p120 = por %p118, %p119
    %s122 = sadd.s32 %s121, 1
    %p125 = scmp.eq.s32.totalorder %s19, 1
    %p126 = scmp.ne.s32.totalorder %s121, %s123
    %p127 = scmp.eq.s32.totalorder %s19, 0
    %p128 = por %p126, %p127
    %p129 = scmp.ne.s32.totalorder %s121, %s123
    %p130 = scmp.eq.s32.totalorder %s24, 1
    %p131 = por %p129, %p130
    %p132 = scmp.ne.s32.totalorder %s123, %s124
    %p133 = scmp.eq.s32.totalorder %s24, 0
    %p134 = por %p132, %p133
    %p135 = scmp.ne.s32.totalorder %s123, %s124
    %p136 = scmp.eq.s32.totalorder %s25, 1
    %p137 = por %p135, %p136
    %p139 = scmp.ne.s32.totalorder %s124, %s138
    %p140 = scmp.eq.s32.totalorder %s25, 0
    %p141 = por %p139, %p140
    %s143 = sadd.s32 %s142, 1
    %p146 = scmp.eq.s32.totalorder %s19, 1
    %p147 = scmp.ne.s32.totalorder %s142, %s144
    %p148 = scmp.eq.s32.totalorder %s19, 0
    %p149 = por %p147, %p148
    %p150 = scmp.ne.s32.totalorder %s142, %s144
    %p151 = scmp.eq.s32.totalorder %s24, 1
    %p152 = por %p150, %p151
    %p153 = scmp.ne.s32.totalorder %s144, %s145
    %p154 = scmp.eq.s32.totalorder %s24, 0
    %p155 = por %p153, %p154
    %p156 = scmp.ne.s32.totalorder %s144, %s145
    %p157 = scmp.eq.s32.totalorder %s25, 1
    %p158 = por %p156, %p157
    %p160 = scmp.ne.s32.totalorder %s145, %s159
    %p161 = scmp.eq.s32.totalorder %s25, 0
    %p162 = por %p160, %p161
    %s164 = sadd.s32 %s163, 1
    %p167 = scmp.eq.s32.totalorder %s19, 1
    %p168 = scmp.ne.s32.totalorder %s163, %s165
    %p169 = scmp.eq.s32.totalorder %s19, 0
    %p170 = por %p168, %p169
    %p171 = scmp.ne.s32.totalorder %s163, %s165
    %p172 = scmp.eq.s32.totalorder %s24, 1
    %p173 = por %p171, %p172
    %p174 = scmp.ne.s32.totalorder %s165, %s166
    %p175 = scmp.eq.s32.totalorder %s24, 0
    %p176 = por %p174, %p175
    %p177 = scmp.ne.s32.totalorder %s165, %s166
    %p178 = scmp.eq.s32.totalorder %s25, 1
    %p179 = por %p177, %p178
    %p181 = scmp.ne.s32.totalorder %s166, %s180
    %p182 = scmp.eq.s32.totalorder %s25, 0
    %p183 = por %p181, %p182
    %s185 = sadd.s32 %s184, 1
    %p188 = scmp.eq.s32.totalorder %s19, 1
    %p189 = scmp.ne.s32.totalorder %s184, %s186
    %p190 = scmp.eq.s32.totalorder %s19, 0
    %p191 = por %p189, %p190
    %p192 = scmp.ne.s32.totalorder %s184, %s186
    %p193 = scmp.eq.s32.totalorder %s24, 1
    %p194 = por %p192, %p193
    %p195 = scmp.ne.s32.totalorder %s186, %s187
    %p196 = scmp.eq.s32.totalorder %s24, 0
    %p197 = por %p195, %p196
    %p198 = scmp.ne.s32.totalorder %s186, %s187
    %p199 = scmp.eq.s32.totalorder %s25, 1
    %p200 = por %p198, %p199
    %p202 = scmp.ne.s32.totalorder %s187, %s201
    %p203 = scmp.eq.s32.totalorder %s25, 0
    %p204 = por %p202, %p203
    %s206 = sadd.s32 %s205, 1
    %p209 = scmp.eq.s32.totalorder %s19, 1
    %p210 = scmp.ne.s32.totalorder %s205, %s207
    %p211 = scmp.eq.s32.totalorder %s19, 0
    %p212 = por %p210, %p211
    %p213 = scmp.ne.s32.totalorder %s205, %s207
    %p214 = scmp.eq.s32.totalorder %s24, 1
    %p215 = por %p213, %p214
    %p216 = scmp.ne.s32.totalorder %s207, %s208
    %p217 = scmp.eq.s32.totalorder %s24, 0
    %p218 = por %p216, %p217
    %p219 = scmp.ne.s32.totalorder %s207, %s208
    %p220 = scmp.eq.s32.totalorder %s25, 1
    %p221 = por %p219, %p220
    %p223 = scmp.ne.s32.totalorder %s208, %s222
    %p224 = scmp.eq.s32.totalorder %s25, 0
    %p225 = por %p223, %p224
    %s227 = sadd.s32 %s226, 1
    %p230 = scmp.eq.s32.totalorder %s19, 1
    %p231 = scmp.ne.s32.totalorder %s226, %s228
    %p232 = scmp.eq.s32.totalorder %s19, 0
    %p233 = por %p231, %p232
    %p234 = scmp.ne.s32.totalorder %s226, %s228
    %p235 = scmp.eq.s32.totalorder %s24, 1
    %p236 = por %p234, %p235
    %p237 = scmp.ne.s32.totalorder %s228, %s229
    %p238 = scmp.eq.s32.totalorder %s24, 0
    %p239 = por %p237, %p238
    %p240 = scmp.ne.s32.totalorder %s228, %s229
    %p241 = scmp.eq.s32.totalorder %s25, 1
    %p242 = por %p240, %p241
    %p244 = scmp.ne.s32.totalorder %s229, %s243
    %p245 = scmp.eq.s32.totalorder %s25, 0
    %p246 = por %p244, %p245
    %s248 = sadd.s32 %s247, 1
    %p251 = scmp.eq.s32.totalorder %s19, 1
    %p252 = scmp.ne.s32.totalorder %s247, %s249
    %p253 = scmp.eq.s32.totalorder %s19, 0
    %p254 = por %p252, %p253
    %p255 = scmp.ne.s32.totalorder %s247, %s249
    %p256 = scmp.eq.s32.totalorder %s24, 1
    %p257 = por %p255, %p256
    %p258 = scmp.ne.s32.totalorder %s249, %s250
    %p259 = scmp.eq.s32.totalorder %s24, 0
    %p260 = por %p258, %p259
    %p261 = scmp.ne.s32.totalorder %s249, %s250
    %p262 = scmp.eq.s32.totalorder %s25, 1
    %p263 = por %p261, %p262
    %p265 = scmp.ne.s32.totalorder %s250, %s264
    %p266 = scmp.eq.s32.totalorder %s25, 0
    %p267 = por %p265, %p266
    %s269 = sadd.s32 %s268, 1
    %p272 = scmp.eq.s32.totalorder %s19, 1
    %p273 = scmp.ne.s32.totalorder %s268, %s270
    %p274 = scmp.eq.s32.totalorder %s19, 0
    %p275 = por %p273, %p274
    %p276 = scmp.ne.s32.totalorder %s268, %s270
    %p277 = scmp.eq.s32.totalorder %s24, 1
    %p278 = por %p276, %p277
    %p279 = scmp.ne.s32.totalorder %s270, %s271
    %p280 = scmp.eq.s32.totalorder %s24, 0
    %p281 = por %p279, %p280
    %p282 = scmp.ne.s32.totalorder %s270, %s271
    %p283 = scmp.eq.s32.totalorder %s25, 1
    %p284 = por %p282, %p283
    %p286 = scmp.ne.s32.totalorder %s271, %s285
    %p287 = scmp.eq.s32.totalorder %s25, 0
    %p288 = por %p286, %p287
    %s289 = ssub.s32 %s27, %s34
    %s290 = ssub.s32 %s26, %s38
    %s291 = sor.u32 %s289, %s290
    %p292 = scmp.eq.s32.totalorder %s291, 0
    %s294 = sadd.s32 %s293, 1
    %s295 = scalar_select %p292, %s293, %s294
    %p298 = pneg %p292
    %p299 = scmp.eq.s32.totalorder %s19, 1
    %p300 = por %p298, %p299
    %p301 = scmp.ne.s32.totalorder %s293, %s296
    %p302 = scmp.eq.s32.totalorder %s19, 0
    %p303 = por %p301, %p302
    %p304 = scmp.ne.s32.totalorder %s293, %s296
    %p305 = scmp.eq.s32.totalorder %s24, 1
    %p306 = por %p304, %p305
    %p307 = scmp.ne.s32.totalorder %s296, %s297
    %p308 = scmp.eq.s32.totalorder %s24, 0
    %p309 = por %p307, %p308
    %p310 = scmp.ne.s32.totalorder %s296, %s297
    %p311 = scmp.eq.s32.totalorder %s25, 1
    %p312 = por %p310, %p311
    %p314 = scmp.ne.s32.totalorder %s297, %s313
    %p315 = scmp.eq.s32.totalorder %s25, 0
    %p316 = por %p314, %p315
    %s317 = ssub.s32 %s26, %s38
    %p318 = scmp.eq.s32.totalorder %s317, 0
    %s320 = sadd.s32 %s319, 1
    %s321 = scalar_select %p318, %s319, %s320
    %p324 = pneg %p318
    %p325 = scmp.eq.s32.totalorder %s19, 1
    %p326 = por %p324, %p325
    %p327 = scmp.ne.s32.totalorder %s319, %s322
    %p328 = scmp.eq.s32.totalorder %s19, 0
    %p329 = por %p327, %p328
    %p330 = scmp.ne.s32.totalorder %s319, %s322
    %p331 = scmp.eq.s32.totalorder %s24, 1
    %p332 = por %p330, %p331
    %p333 = scmp.ne.s32.totalorder %s322, %s323
    %p334 = scmp.eq.s32.totalorder %s24, 0
    %p335 = por %p333, %p334
    %p336 = scmp.ne.s32.totalorder %s322, %s323
    %p337 = scmp.eq.s32.totalorder %s25, 1
    %p338 = por %p336, %p337
    %p340 = scmp.ne.s32.totalorder %s323, %s339
    %p341 = scmp.eq.s32.totalorder %s25, 0
    %p342 = por %p340, %p341
    %p343 = scmp.le.s32.totalorder 1, %s19
    %p344 = scmp.lt.s32.totalorder %s19, 3
    %p345 = pnand %p343, %p344
    %p346 = pneg %p345
    // Predicated region
    $region9: #{ggru_forward.1} parent=5 // pred_check
      _
    $region10: #{ggru_forward.1} parent=5 // pred_check_branch
      %348 = sbr.rel (%p345) target = $region12
    $region11: #{ggru_forward.1} parent=5 // pred_region
      %s349 = ssub.s32 %s19, 1
      // Predicated region
      $region13: #{ggru_forward.1} parent=11 // pred_check
        %p350 = pneg %p57
      $region14: #{ggru_forward.1} parent=11 // pred_check_branch
        %352 = sbr.rel (%p350) target = $region16
      $region15: #{ggru_forward.1} parent=11 // pred_region
        %p353 = scmp.lt.s32.totalorder %s28, 0
        %s354 = scalar_select %p353, %s28, 0
        %s355 = smul.addr %s354, 8
        %s356 = scalar_lea.vmem %s0, %s355
      $region16: #{ggru_forward.1} parent=11 // pred_fallthru
        _
      // Predicated region
      $region17: #{ggru_forward.1} parent=11 // pred_check
        %p357 = pneg %p134
      $region18: #{ggru_forward.1} parent=11 // pred_check_branch
        %359 = sbr.rel (%p357) target = $region20
      $region19: #{ggru_forward.1} parent=11 // pred_region
        _
      $region20: #{ggru_forward.1} parent=11 // pred_fallthru
        _
      // Predicated region
      $region21: #{ggru_forward.1} parent=11 // pred_check
        %p360 = pneg %p155
      $region22: #{ggru_forward.1} parent=11 // pred_check_branch
        %362 = sbr.rel (%p360) target = $region24
      $region23: #{ggru_forward.1} parent=11 // pred_region
        _
      $region24: #{ggru_forward.1} parent=11 // pred_fallthru
        _
      // Predicated region
      $region25: #{ggru_forward.1} parent=11 // pred_check
        %p363 = pneg %p176
      $region26: #{ggru_forward.1} parent=11 // pred_check_branch
        %365 = sbr.rel (%p363) target = $region28
      $region27: #{ggru_forward.1} parent=11 // pred_region
        _
      $region28: #{ggru_forward.1} parent=11 // pred_fallthru
        _
      // Predicated region
      $region29: #{ggru_forward.1} parent=11 // pred_check
        %p366 = pneg %p197
      $region30: #{ggru_forward.1} parent=11 // pred_check_branch
        %368 = sbr.rel (%p366) target = $region32
      $region31: #{ggru_forward.1} parent=11 // pred_region
        _
      $region32: #{ggru_forward.1} parent=11 // pred_fallthru
        _
      // Predicated region
      $region33: #{ggru_forward.1} parent=11 // pred_check
        %p369 = pneg %p218
      $region34: #{ggru_forward.1} parent=11 // pred_check_branch
        %371 = sbr.rel (%p369) target = $region36
      $region35: #{ggru_forward.1} parent=11 // pred_region
        _
      $region36: #{ggru_forward.1} parent=11 // pred_fallthru
        _
      // Predicated region
      $region37: #{ggru_forward.1} parent=11 // pred_check
        %p372 = pneg %p239
      $region38: #{ggru_forward.1} parent=11 // pred_check_branch
        %374 = sbr.rel (%p372) target = $region40
      $region39: #{ggru_forward.1} parent=11 // pred_region
        _
      $region40: #{ggru_forward.1} parent=11 // pred_fallthru
        _
      // Predicated region
      $region41: #{ggru_forward.1} parent=11 // pred_check
        %p375 = pneg %p260
      $region42: #{ggru_forward.1} parent=11 // pred_check_branch
        %377 = sbr.rel (%p375) target = $region44
      $region43: #{ggru_forward.1} parent=11 // pred_region
        _
      $region44: #{ggru_forward.1} parent=11 // pred_fallthru
        _
      // Predicated region
      $region45: #{ggru_forward.1} parent=11 // pred_check
        %p378 = pneg %p281
      $region46: #{ggru_forward.1} parent=11 // pred_check_branch
        %380 = sbr.rel (%p378) target = $region48
      $region47: #{ggru_forward.1} parent=11 // pred_region
        _
      $region48: #{ggru_forward.1} parent=11 // pred_fallthru
        _
    $region12: #{ggru_forward.1} parent=5 // pred_fallthru
      _
    %p381 = scmp.lt.s32.totalorder %s19, 2
    // Predicated region
    $region49: #{ggru_forward.1} parent=5 // pred_check
      %p382 = pneg %p381
    $region50: #{ggru_forward.1} parent=5 // pred_check_branch
      %384 = sbr.rel (%p382) target = $region52
    $region51: #{ggru_forward.1} parent=5 // pred_region
      // Predicated region
      $region53: #{ggru_forward.1} parent=51 // pred_check
        %p385 = pneg %p79
      $region54: #{ggru_forward.1} parent=51 // pred_check_branch
        %387 = sbr.rel (%p385) target = $region56
      $region55: #{ggru_forward.1} parent=51 // pred_region
        %s388 = smul.u32 8, %s27
        %p389 = scmp.lt.s32.totalorder %s388, 15
        %s390 = scalar_select %p389, %s388, 15
        %p391 = scmp.lt.s32.totalorder %s26, 0
        %s392 = scalar_select %p391, %s26, 0
        %s393 = sadd.s32 %s392, %s390
        %s394 = smul.addr %s393, 8
        %s395 = scalar_lea.vmem %s1, %s394
        %s396 = smul.u32 8, %s27
      $region56: #{ggru_forward.1} parent=51 // pred_fallthru
        _
      // Predicated region
      $region57: #{ggru_forward.1} parent=51 // pred_check
        %p397 = pneg %p107
      $region58: #{ggru_forward.1} parent=51 // pred_check_branch
        %399 = sbr.rel (%p397) target = $region60
      $region59: #{ggru_forward.1} parent=51 // pred_region
        %s400 = smul.u32 8, %s27
        %p401 = scmp.lt.s32.totalorder %s400, 15
        %s402 = scalar_select %p401, %s400, 15
        %p403 = scmp.lt.s32.totalorder %s26, 0
        %s404 = scalar_select %p403, %s26, 0
        %s405 = sadd.s32 %s404, %s402
        %s406 = smul.addr %s405, 8
        %s407 = scalar_lea.vmem %s2, %s406
        %s408 = smul.u32 8, %s27
      $region60: #{ggru_forward.1} parent=51 // pred_fallthru
        _
    $region52: #{ggru_forward.1} parent=5 // pred_fallthru
      _
    %p409 = scmp.le.s32.totalorder 1, %s19
    %p410 = scmp.lt.s32.totalorder %s19, 3
    %p411 = pnand %p409, %p410
    %p412 = pneg %p411
    // Predicated region
    $region61: #{ggru_forward.1} parent=5 // pred_check
      _
    $region62: #{ggru_forward.1} parent=5 // pred_check_branch
      %414 = sbr.rel (%p411) target = $region64
    $region63: #{ggru_forward.1} parent=5 // pred_region
      %s415 = ssub.s32 %s19, 1
      %p416 = scmp.lt.s32.totalorder %s28, 0
      %s417 = scalar_select %p416, %s28, 0
      %s418 = smul.addr %s417, 8
      %s419 = scalar_lea.vmem %s0, %s418
      %p420 = pneg %p57
      %p421 = pneg %p54
      %s422 = smul.u32 8, %s29
      %p423 = scmp.lt.s32.totalorder %s422, 15
      %s424 = scalar_select %p423, %s422, 15
      %p425 = scmp.lt.s32.totalorder %s28, 0
      %s426 = scalar_select %p425, %s28, 0
      %s427 = sadd.s32 %s426, %s424
      %s428 = smul.addr %s427, 8
      %s429 = scalar_lea.vmem %s1, %s428
      %p430 = pneg %p85
      %p431 = pneg %p82
      %s432 = smul.u32 8, %s29
      %p433 = scmp.lt.s32.totalorder %s432, 15
      %s434 = scalar_select %p433, %s432, 15
      %p435 = scmp.lt.s32.totalorder %s28, 0
      %s436 = scalar_select %p435, %s28, 0
      %s437 = sadd.s32 %s436, %s434
      %s438 = smul.addr %s437, 8
      %s439 = scalar_lea.vmem %s2, %s438
      %p440 = pneg %p113
      %p441 = pneg %p110
      %p442 = pneg %p134
      %p443 = pneg %p131
      %p444 = pneg %p155
      %p445 = pneg %p152
      %p446 = pneg %p176
      %p447 = pneg %p173
      %p448 = pneg %p197
      %p449 = pneg %p194
      %p450 = pneg %p218
      %p451 = pneg %p215
      %p452 = pneg %p239
      %p453 = pneg %p236
      %p454 = pneg %p260
      %p455 = pneg %p257
      %p456 = pneg %p281
      %p457 = pneg %p278
      %p458 = pneg %p309
      %p459 = pneg %p306
      %s460 = smul.u32 8, %s29
      %p461 = scmp.lt.s32.totalorder %s460, 15
      %s462 = scalar_select %p461, %s460, 15
      %p463 = scmp.lt.s32.totalorder %s28, 0
      %s464 = scalar_select %p463, %s28, 0
      %s465 = sadd.s32 %s464, %s462
      %s466 = smul.addr %s465, 8
      %s467 = scalar_lea.vmem %s11, %s466
      %p468 = pneg %p335
      %p469 = pneg %p332
      %p470 = scmp.lt.s32.totalorder %s28, 0
      %s471 = scalar_select %p470, %s28, 0
      %s472 = smul.addr %s471, 8
      %s473 = scalar_lea.vmem %s12, %s472
      %p474 = scmp.lt.s32.totalorder %s28, 0
      %s475 = scalar_select %p474, %s28, 0
      %s476 = smul.addr %s475, 8
      %s477 = scalar_lea.vmem %s0, %s476
      %s478 = smul.u32 8, %s29
      %p479 = scmp.lt.s32.totalorder %s478, 15
      %s480 = scalar_select %p479, %s478, 15
      %p481 = scmp.lt.s32.totalorder %s28, 0
      %s482 = scalar_select %p481, %s28, 0
      %s483 = sadd.s32 %s482, %s480
      %s484 = smul.addr %s483, 8
      %s485 = scalar_lea.vmem %s1, %s484
      %s486 = smul.u32 8, %s29
      %s487 = smul.u32 8, %s29
      %p488 = scmp.lt.s32.totalorder %s487, 15
      %s489 = scalar_select %p488, %s487, 15
      %p490 = scmp.lt.s32.totalorder %s28, 0
      %s491 = scalar_select %p490, %s28, 0
      %s492 = sadd.s32 %s491, %s489
      %s493 = smul.addr %s492, 8
      %s494 = scalar_lea.vmem %s2, %s493
      %s495 = smul.u32 8, %s29
      %s496 = smul.u32 8, %s29
      %p497 = scmp.lt.s32.totalorder %s496, 15
      %s498 = scalar_select %p497, %s496, 15
      %p499 = scmp.lt.s32.totalorder %s28, 0
      %s500 = scalar_select %p499, %s28, 0
      %s501 = sadd.s32 %s500, %s498
      %s502 = smul.addr %s501, 8
      %s503 = scalar_lea.vmem %s11, %s502
      %s504 = smul.u32 8, %s29
      %p505 = scmp.lt.s32.totalorder %s28, 0
      %s506 = scalar_select %p505, %s28, 0
      %s507 = smul.addr %s506, 8
      %s508 = scalar_lea.vmem %s12, %s507
      %p509 = scmp.eq.s32.totalorder %s29, 0
      // Predicated region
      $region65: #{ggru_forward.1} parent=63 // pred_check
        %p510 = pneg %p509
      $region66: #{ggru_forward.1} parent=63 // pred_check_branch
        %512 = sbr.rel (%p510) target = $region68
      $region67: #{ggru_forward.1} parent=63 // pred_region
        %v513 = vld [vmem:[%s477] sm:$0xff]
        %514 = vst [vmem:[#allocation2] sm:$0xff] %v513
      $region68: #{ggru_forward.1} parent=63 // pred_fallthru
        _
      %v515 = vld [vmem:[%s485] sm:$0xff]
      %v516 = vld [vmem:[%s485 + $0x8] sm:$0xff]
      %v517 = vld [vmem:[%s485 + $0x10] sm:$0xff]
      %v518 = vld [vmem:[%s485 + $0x18] sm:$0xff]
      %v519 = vld [vmem:[%s485 + $0x20] sm:$0xff]
      %v520 = vld [vmem:[%s485 + $0x28] sm:$0xff]
      %v521 = vld [vmem:[%s485 + $0x30] sm:$0xff]
      %v522 = vld [vmem:[%s485 + $0x38] sm:$0xff]
      %v523 = vld [vmem:[%s3] sm:$0xff]
      %v524 = vld [vmem:[%s3 + $0x8] sm:$0xf]
      %v525 = vld [vmem:[%s5] sm:$0x7]
      %v527 = vlaneseq
      %v528 = vshrl.u32 %v527, 7
      %v529 = vsub.s32 0, %v528
      %v530 = vrot.slane %v525, %v529
      %v531 = vlaneseq
      %v532 = vshrl.u32 %v531, 7
      %v533 = vsub.s32 1, %v532
      %v534 = vrot.slane %v525, %v533
      %v535 = vlaneseq
      %v536 = vshrl.u32 %v535, 7
      %v537 = vsub.s32 2, %v536
      %v538 = vrot.slane %v525, %v537
      %v544 = vcombine.high %v523, %v523
      %vm545 = vcmask 31744
      %v547 = vsel %vm545, %v515, 0
      %v550 = vsel %vm545, %v516, 0
      %v553 = vsel %vm545, %v517, 0
      %v556 = vsel %vm545, %v518, 0
      %v559 = vsel %vm545, %v519, 0
      %v562 = vsel %vm545, %v520, 0
      %v565 = vsel %vm545, %v521, 0
      %v568 = vsel %vm545, %v522, 0
      %vm570 = vcmask 1043456
      %v571 = vsel %vm570, %v523, 0
      %v573 = vsel %vm570, %v544, 0
      %v575 = vsel %vm570, %v524, 0
      %577 = vmatprep.subr.mxu0 %v573
      %578 = vmatpush1.msra.mxu0 %v571
      %579 = vmatprep.subr.mxu0 0.0
      %580 = vmatpush1.msra.mxu0 0.0
      %581 = vmatprep.subr.mxu0 0.0
      %582 = vmatpush1.msra.mxu0 0.0
      %583 = vmatprep.subr.mxu0 0.0
      %584 = vmatpush1.msra.mxu0 0.0
      %585 = vmatprep.subr.mxu0 0.0
      %586 = vmatpush1.msra.mxu0 0.0
      %587 = vmatprep.subr.mxu0 0.0
      %588 = vmatpush1.msra.mxu0 0.0
      %589 = vmatprep.subr.mxu0 0.0
      %590 = vmatpush1.msra.mxu0 0.0
      %591 = vmatprep.subr.mxu0 0.0
      %592 = vmatpush1.msra.mxu0 0.0
      %593 = vmatprep.subr.mxu0 0.0
      %594 = vmatpush1.msra.mxu0 0.0
      %595 = vmatprep.subr.mxu0 0.0
      %596 = vmatpush1.msra.mxu0 0.0
      %597 = vmatprep.subr.mxu0 0.0
      %598 = vmatpush1.msra.mxu0 0.0
      %599 = vmatprep.subr.mxu0 0.0
      %600 = vmatpush1.msra.mxu0 0.0
      %601 = vmatprep.subr.mxu0 0.0
      %602 = vmatpush1.msra.mxu0 0.0
      %603 = vmatprep.subr.mxu0 0.0
      %604 = vmatpush1.msra.mxu0 0.0
      %605 = vmatprep.subr.mxu0 0.0
      %606 = vmatpush1.msra.mxu0 0.0
      %607 = vmatprep.subr.mxu0 0.0
      %608 = vmatpush1.msra.mxu0 0.0
      %609 = vmatprep.subr.mxu0 0.0
      %610 = vmatpush1.msra.mxu0 0.0
      %611 = vmatprep.subr.mxu0 0.0
      %612 = vmatpush1.msra.mxu0 0.0
      %613 = vmatprep.subr.mxu0 0.0
      %614 = vmatpush1.msra.mxu0 0.0
      %615 = vmatprep.subr.mxu0 0.0
      %616 = vmatpush1.msra.mxu0 0.0
      %617 = vmatprep.subr.mxu0 0.0
      %618 = vmatpush1.msra.mxu0 0.0
      %619 = vmatprep.subr.mxu0 0.0
      %620 = vmatpush1.msra.mxu0 0.0
      %621 = vmatprep.subr.mxu0 0.0
      %622 = vmatpush1.msra.mxu0 0.0
      %623 = vmatprep.subr.mxu0 0.0
      %624 = vmatpush1.msra.mxu0 0.0
      %625 = vmatprep.subr.mxu0 0.0
      %626 = vmatpush1.msra.mxu0 0.0
      %627 = vmatprep.subr.mxu0 0.0
      %628 = vmatpush1.msra.mxu0 0.0
      %629 = vmatprep.subr.mxu0 0.0
      %630 = vmatpush1.msra.mxu0 0.0
      %631 = vmatprep.subr.mxu0 0.0
      %632 = vmatpush1.msra.mxu0 0.0
      %633 = vmatprep.subr.mxu0 0.0
      %634 = vmatpush1.msra.mxu0 0.0
      %635 = vmatprep.subr.mxu0 0.0
      %636 = vmatpush1.msra.mxu0 0.0
      %637 = vmatprep.subr.mxu0 0.0
      %638 = vmatpush1.msra.mxu0 0.0
      %639 = vmatprep.subr.mxu0 0.0
      %640 = vmatpush1.msra.mxu0 0.0
      %641 = vmatprep.mubr.f32.mxu0 0.0
      %642 = vmatmul.mubr.f32.gmra.mrb[0].mxu0 %v547
      %v643 = vpop.f32.mrb[0].mxu0
      %v644 = vadd.f32 %v530, %v643
      %v645 = vpop.f32.mrb[0].mxu0
      %v646 = vadd.f32 %v534, %v645
      %647 = vmatprep.mubr.f32.mxu0 0.0
      %648 = vmatmul.mubr.f32.gmra.mrb[0].mxu0 %v550
      %v649 = vpop.f32.mrb[0].mxu0
      %v650 = vadd.f32 %v530, %v649
      %v651 = vpop.f32.mrb[0].mxu0
      %v652 = vadd.f32 %v534, %v651
      %653 = vmatprep.mubr.f32.mxu0 0.0
      %654 = vmatmul.mubr.f32.gmra.mrb[0].mxu0 %v553
      %v655 = vpop.f32.mrb[0].mxu0
      %v656 = vadd.f32 %v530, %v655
      %v657 = vpop.f32.mrb[0].mxu0
      %v658 = vadd.f32 %v534, %v657
      %659 = vmatprep.mubr.f32.mxu0 0.0
      %660 = vmatmul.mubr.f32.gmra.mrb[0].mxu0 %v556
      %v661 = vpop.f32.mrb[0].mxu0
      %v662 = vadd.f32 %v530, %v661
      %v663 = vpop.f32.mrb[0].mxu0
      %v664 = vadd.f32 %v534, %v663
      %665 = vmatprep.mubr.f32.mxu0 0.0
      %666 = vmatmul.mubr.f32.gmra.mrb[0].mxu0 %v559
      %v667 = vpop.f32.mrb[0].mxu0
      %v668 = vadd.f32 %v530, %v667
      %v669 = vpop.f32.mrb[0].mxu0
      %v670 = vadd.f32 %v534, %v669
      %671 = vmatprep.mubr.f32.mxu0 0.0
      %672 = vmatmul.mubr.f32.gmra.mrb[0].mxu0 %v562
      %v673 = vpop.f32.mrb[0].mxu0
      %v674 = vadd.f32 %v530, %v673
      %v675 = vpop.f32.mrb[0].mxu0
      %v676 = vadd.f32 %v534, %v675
      %677 = vmatprep.mubr.f32.mxu0 0.0
      %678 = vmatmul.mubr.f32.gmra.mrb[0].mxu0 %v565
      %v679 = vpop.f32.mrb[0].mxu0
      %v680 = vadd.f32 %v530, %v679
      %v681 = vpop.f32.mrb[0].mxu0
      %v682 = vadd.f32 %v534, %v681
      %683 = vmatprep.mubr.f32.mxu0 0.0
      %684 = vmatmul.mubr.f32.gmra.mrb[0].mxu0 %v568
      %v685 = vpop.f32.mrb[0].mxu0
      %v686 = vadd.f32 %v530, %v685
      %v687 = vpop.f32.mrb[0].mxu0
      %v688 = vadd.f32 %v534, %v687
      %689 = vdwg.mxu0
      %690 = vmatprep.subr.mxu0 0.0
      %691 = vmatpush1.msra.mxu0 %v575
      %692 = vmatprep.subr.mxu0 0.0
      %693 = vmatpush1.msra.mxu0 0.0
      %694 = vmatprep.subr.mxu0 0.0
      %695 = vmatpush1.msra.mxu0 0.0
      %696 = vmatprep.subr.mxu0 0.0
      %697 = vmatpush1.msra.mxu0 0.0
      %698 = vmatprep.subr.mxu0 0.0
      %699 = vmatpush1.msra.mxu0 0.0
      %700 = vmatprep.subr.mxu0 0.0
      %701 = vmatpush1.msra.mxu0 0.0
      %702 = vmatprep.subr.mxu0 0.0
      %703 = vmatpush1.msra.mxu0 0.0
      %704 = vmatprep.subr.mxu0 0.0
      %705 = vmatpush1.msra.mxu0 0.0
      %706 = vmatprep.subr.mxu0 0.0
      %707 = vmatpush1.msra.mxu0 0.0
      %708 = vmatprep.subr.mxu0 0.0
      %709 = vmatpush1.msra.mxu0 0.0
      %710 = vmatprep.subr.mxu0 0.0
      %711 = vmatpush1.msra.mxu0 0.0
      %712 = vmatprep.subr.mxu0 0.0
      %713 = vmatpush1.msra.mxu0 0.0
      %714 = vmatprep.subr.mxu0 0.0
      %715 = vmatpush1.msra.mxu0 0.0
      %716 = vmatprep.subr.mxu0 0.0
      %717 = vmatpush1.msra.mxu0 0.0
      %718 = vmatprep.subr.mxu0 0.0
      %719 = vmatpush1.msra.mxu0 0.0
      %720 = vmatprep.subr.mxu0 0.0
      %721 = vmatpush1.msra.mxu0 0.0
      %722 = vmatprep.subr.mxu0 0.0
      %723 = vmatpush1.msra.mxu0 0.0
      %724 = vmatprep.subr.mxu0 0.0
      %725 = vmatpush1.msra.mxu0 0.0
      %726 = vmatprep.subr.mxu0 0.0
      %727 = vmatpush1.msra.mxu0 0.0
      %728 = vmatprep.subr.mxu0 0.0
      %729 = vmatpush1.msra.mxu0 0.0
      %730 = vmatprep.subr.mxu0 0.0
      %731 = vmatpush1.msra.mxu0 0.0
      %732 = vmatprep.subr.mxu0 0.0
      %733 = vmatpush1.msra.mxu0 0.0
      %734 = vmatprep.subr.mxu0 0.0
      %735 = vmatpush1.msra.mxu0 0.0
      %736 = vmatprep.subr.mxu0 0.0
      %737 = vmatpush1.msra.mxu0 0.0
      %738 = vmatprep.subr.mxu0 0.0
      %739 = vmatpush1.msra.mxu0 0.0
      %740 = vmatprep.subr.mxu0 0.0
      %741 = vmatpush1.msra.mxu0 0.0
      %742 = vmatprep.subr.mxu0 0.0
      %743 = vmatpush1.msra.mxu0 0.0
      %744 = vmatprep.subr.mxu0 0.0
      %745 = vmatpush1.msra.mxu0 0.0
      %746 = vmatprep.subr.mxu0 0.0
      %747 = vmatpush1.msra.mxu0 0.0
      %748 = vmatprep.subr.mxu0 0.0
      %749 = vmatpush1.msra.mxu0 0.0
      %750 = vmatprep.subr.mxu0 0.0
      %751 = vmatpush1.msra.mxu0 0.0
      %752 = vmatprep.subr.mxu0 0.0
      %753 = vmatpush1.msra.mxu0 0.0
      %754 = vmatprep.mubr.f32.mxu0 0.0
      %755 = vmatmul.mubr.f32.gmra.mrb[0].mxu0 %v547
      %v756 = vpop.f32.mrb[0].mxu0
      %v757 = vadd.f32 %v538, %v756
      %v758 = vpop.f32.mrb[0].mxu0
      %759 = vmatprep.mubr.f32.mxu0 0.0
      %760 = vmatmul.mubr.f32.gmra.mrb[0].mxu0 %v550
      %v761 = vpop.f32.mrb[0].mxu0
      %v762 = vadd.f32 %v538, %v761
      %v763 = vpop.f32.mrb[0].mxu0
      %764 = vmatprep.mubr.f32.mxu0 0.0
      %765 = vmatmul.mubr.f32.gmra.mrb[0].mxu0 %v553
      %v766 = vpop.f32.mrb[0].mxu0
      %v767 = vadd.f32 %v538, %v766
      %v768 = vpop.f32.mrb[0].mxu0
      %769 = vmatprep.mubr.f32.mxu0 0.0
      %770 = vmatmul.mubr.f32.gmra.mrb[0].mxu0 %v556
      %v771 = vpop.f32.mrb[0].mxu0
      %v772 = vadd.f32 %v538, %v771
      %v773 = vpop.f32.mrb[0].mxu0
      %774 = vmatprep.mubr.f32.mxu0 0.0
      %775 = vmatmul.mubr.f32.gmra.mrb[0].mxu0 %v559
      %v776 = vpop.f32.mrb[0].mxu0
      %v777 = vadd.f32 %v538, %v776
      %v778 = vpop.f32.mrb[0].mxu0
      %779 = vmatprep.mubr.f32.mxu0 0.0
      %780 = vmatmul.mubr.f32.gmra.mrb[0].mxu0 %v562
      %v781 = vpop.f32.mrb[0].mxu0
      %v782 = vadd.f32 %v538, %v781
      %v783 = vpop.f32.mrb[0].mxu0
      %784 = vmatprep.mubr.f32.mxu0 0.0
      %785 = vmatmul.mubr.f32.gmra.mrb[0].mxu0 %v565
      %v786 = vpop.f32.mrb[0].mxu0
      %v787 = vadd.f32 %v538, %v786
      %v788 = vpop.f32.mrb[0].mxu0
      %789 = vmatprep.mubr.f32.mxu0 0.0
      %790 = vmatmul.mubr.f32.gmra.mrb[0].mxu0 %v568
      %v791 = vpop.f32.mrb[0].mxu0
      %v792 = vadd.f32 %v538, %v791
      %v793 = vpop.f32.mrb[0].mxu0
      %794 = vdwg.mxu0
      %795 = vst [vmem:[#allocation3] sm:$0xff] %v644
      %796 = vst [vmem:[#allocation3 + $0x8] sm:$0xff] %v646
      %797 = vst [vmem:[#allocation3 + $0x10] sm:$0xff] %v757
      %798 = vst [vmem:[#allocation3 + $0x18] sm:$0xff] %v650
      %799 = vst [vmem:[#allocation3 + $0x20] sm:$0xff] %v652
      %800 = vst [vmem:[#allocation3 + $0x28] sm:$0xff] %v762
      %801 = vst [vmem:[#allocation3 + $0x30] sm:$0xff] %v656
      %802 = vst [vmem:[#allocation3 + $0x38] sm:$0xff] %v658
      %803 = vst [vmem:[#allocation3 + $0x40] sm:$0xff] %v767
      %804 = vst [vmem:[#allocation3 + $0x48] sm:$0xff] %v662
      %805 = vst [vmem:[#allocation3 + $0x50] sm:$0xff] %v664
      %806 = vst [vmem:[#allocation3 + $0x58] sm:$0xff] %v772
      %807 = vst [vmem:[#allocation3 + $0x60] sm:$0xff] %v668
      %808 = vst [vmem:[#allocation3 + $0x68] sm:$0xff] %v670
      %809 = vst [vmem:[#allocation3 + $0x70] sm:$0xff] %v777
      %810 = vst [vmem:[#allocation3 + $0x78] sm:$0xff] %v674
      %811 = vst [vmem:[#allocation3 + $0x80] sm:$0xff] %v676
      %812 = vst [vmem:[#allocation3 + $0x88] sm:$0xff] %v782
      %813 = vst [vmem:[#allocation3 + $0x90] sm:$0xff] %v680
      %814 = vst [vmem:[#allocation3 + $0x98] sm:$0xff] %v682
      %815 = vst [vmem:[#allocation3 + $0xa0] sm:$0xff] %v787
      %816 = vst [vmem:[#allocation3 + $0xa8] sm:$0xff] %v686
      %817 = vst [vmem:[#allocation3 + $0xb0] sm:$0xff] %v688
      %818 = vst [vmem:[#allocation3 + $0xb8] sm:$0xff] %v792
      %v819 = vld [vmem:[%s494] sm:$0xff]
      %v820 = vld [vmem:[%s494 + $0x8] sm:$0xff]
      %v821 = vld [vmem:[%s494 + $0x10] sm:$0xff]
      %v822 = vld [vmem:[%s494 + $0x18] sm:$0xff]
      %v823 = vld [vmem:[%s494 + $0x20] sm:$0xff]
      %v824 = vld [vmem:[%s494 + $0x28] sm:$0xff]
      %v825 = vld [vmem:[%s494 + $0x30] sm:$0xff]
      %v826 = vld [vmem:[%s494 + $0x38] sm:$0xff]
      %v827 = vld [vmem:[%s4] sm:$0xff]
      %v828 = vld [vmem:[%s4 + $0x8] sm:$0xf]
      %v829 = vld [vmem:[%s6] sm:$0x7]
      %v831 = vlaneseq
      %v832 = vshrl.u32 %v831, 7
      %v833 = vsub.s32 0, %v832
      %v834 = vrot.slane %v829, %v833
      %v835 = vlaneseq
      %v836 = vshrl.u32 %v835, 7
      %v837 = vsub.s32 1, %v836
      %v838 = vrot.slane %v829, %v837
      %v839 = vlaneseq
      %v840 = vshrl.u32 %v839, 7
      %v841 = vsub.s32 2, %v840
      %v842 = vrot.slane %v829, %v841
      %v848 = vcombine.high %v827, %v827
      %v850 = vsel %vm545, %v819, 0
      %v853 = vsel %vm545, %v820, 0
      %v856 = vsel %vm545, %v821, 0
      %v859 = vsel %vm545, %v822, 0
      %v862 = vsel %vm545, %v823, 0
      %v865 = vsel %vm545, %v824, 0
      %v868 = vsel %vm545, %v825, 0
      %v871 = vsel %vm545, %v826, 0
      %v873 = vsel %vm570, %v827, 0
      %v875 = vsel %vm570, %v848, 0
      %v877 = vsel %vm570, %v828, 0
      %879 = vmatprep.subr.mxu0 %v875
      %880 = vmatpush1.msra.mxu0 %v873
      %881 = vmatprep.subr.mxu0 0.0
      %882 = vmatpush1.msra.mxu0 0.0
      %883 = vmatprep.subr.mxu0 0.0
      %884 = vmatpush1.msra.mxu0 0.0
      %885 = vmatprep.subr.mxu0 0.0
      %886 = vmatpush1.msra.mxu0 0.0
      %887 = vmatprep.subr.mxu0 0.0
      %888 = vmatpush1.msra.mxu0 0.0
      %889 = vmatprep.subr.mxu0 0.0
      %890 = vmatpush1.msra.mxu0 0.0
      %891 = vmatprep.subr.mxu0 0.0
      %892 = vmatpush1.msra.mxu0 0.0
      %893 = vmatprep.subr.mxu0 0.0
      %894 = vmatpush1.msra.mxu0 0.0
      %895 = vmatprep.subr.mxu0 0.0
      %896 = vmatpush1.msra.mxu0 0.0
      %897 = vmatprep.subr.mxu0 0.0
      %898 = vmatpush1.msra.mxu0 0.0
      %899 = vmatprep.subr.mxu0 0.0
      %900 = vmatpush1.msra.mxu0 0.0
      %901 = vmatprep.subr.mxu0 0.0
      %902 = vmatpush1.msra.mxu0 0.0
      %903 = vmatprep.subr.mxu0 0.0
      %904 = vmatpush1.msra.mxu0 0.0
      %905 = vmatprep.subr.mxu0 0.0
      %906 = vmatpush1.msra.mxu0 0.0
      %907 = vmatprep.subr.mxu0 0.0
      %908 = vmatpush1.msra.mxu0 0.0
      %909 = vmatprep.subr.mxu0 0.0
      %910 = vmatpush1.msra.mxu0 0.0
      %911 = vmatprep.subr.mxu0 0.0
      %912 = vmatpush1.msra.mxu0 0.0
      %913 = vmatprep.subr.mxu0 0.0
      %914 = vmatpush1.msra.mxu0 0.0
      %915 = vmatprep.subr.mxu0 0.0
      %916 = vmatpush1.msra.mxu0 0.0
      %917 = vmatprep.subr.mxu0 0.0
      %918 = vmatpush1.msra.mxu0 0.0
      %919 = vmatprep.subr.mxu0 0.0
      %920 = vmatpush1.msra.mxu0 0.0
      %921 = vmatprep.subr.mxu0 0.0
      %922 = vmatpush1.msra.mxu0 0.0
      %923 = vmatprep.subr.mxu0 0.0
      %924 = vmatpush1.msra.mxu0 0.0
      %925 = vmatprep.subr.mxu0 0.0
      %926 = vmatpush1.msra.mxu0 0.0
      %927 = vmatprep.subr.mxu0 0.0
      %928 = vmatpush1.msra.mxu0 0.0
      %929 = vmatprep.subr.mxu0 0.0
      %930 = vmatpush1.msra.mxu0 0.0
      %931 = vmatprep.subr.mxu0 0.0
      %932 = vmatpush1.msra.mxu0 0.0
      %933 = vmatprep.subr.mxu0 0.0
      %934 = vmatpush1.msra.mxu0 0.0
      %935 = vmatprep.subr.mxu0 0.0
      %936 = vmatpush1.msra.mxu0 0.0
      %937 = vmatprep.subr.mxu0 0.0
      %938 = vmatpush1.msra.mxu0 0.0
      %939 = vmatprep.subr.mxu0 0.0
      %940 = vmatpush1.msra.mxu0 0.0
      %941 = vmatprep.subr.mxu0 0.0
      %942 = vmatpush1.msra.mxu0 0.0
      %943 = vmatprep.mubr.f32.mxu0 0.0
      %944 = vmatmul.mubr.f32.gmra.mrb[0].mxu0 %v850
      %v945 = vpop.f32.mrb[0].mxu0
      %v946 = vadd.f32 %v834, %v945
      %v947 = vpop.f32.mrb[0].mxu0
      %v948 = vadd.f32 %v838, %v947
      %949 = vmatprep.mubr.f32.mxu0 0.0
      %950 = vmatmul.mubr.f32.gmra.mrb[0].mxu0 %v853
      %v951 = vpop.f32.mrb[0].mxu0
      %v952 = vadd.f32 %v834, %v951
      %v953 = vpop.f32.mrb[0].mxu0
      %v954 = vadd.f32 %v838, %v953
      %955 = vmatprep.mubr.f32.mxu0 0.0
      %956 = vmatmul.mubr.f32.gmra.mrb[0].mxu0 %v856
      %v957 = vpop.f32.mrb[0].mxu0
      %v958 = vadd.f32 %v834, %v957
      %v959 = vpop.f32.mrb[0].mxu0
      %v960 = vadd.f32 %v838, %v959
      %961 = vmatprep.mubr.f32.mxu0 0.0
      %962 = vmatmul.mubr.f32.gmra.mrb[0].mxu0 %v859
      %v963 = vpop.f32.mrb[0].mxu0
      %v964 = vadd.f32 %v834, %v963
      %v965 = vpop.f32.mrb[0].mxu0
      %v966 = vadd.f32 %v838, %v965
      %967 = vmatprep.mubr.f32.mxu0 0.0
      %968 = vmatmul.mubr.f32.gmra.mrb[0].mxu0 %v862
      %v969 = vpop.f32.mrb[0].mxu0
      %v970 = vadd.f32 %v834, %v969
      %v971 = vpop.f32.mrb[0].mxu0
      %v972 = vadd.f32 %v838, %v971
      %973 = vmatprep.mubr.f32.mxu0 0.0
      %974 = vmatmul.mubr.f32.gmra.mrb[0].mxu0 %v865
      %v975 = vpop.f32.mrb[0].mxu0
      %v976 = vadd.f32 %v834, %v975
      %v977 = vpop.f32.mrb[0].mxu0
      %v978 = vadd.f32 %v838, %v977
      %979 = vmatprep.mubr.f32.mxu0 0.0
      %980 = vmatmul.mubr.f32.gmra.mrb[0].mxu0 %v868
      %v981 = vpop.f32.mrb[0].mxu0
      %v982 = vadd.f32 %v834, %v981
      %v983 = vpop.f32.mrb[0].mxu0
      %v984 = vadd.f32 %v838, %v983
      %985 = vmatprep.mubr.f32.mxu0 0.0
      %986 = vmatmul.mubr.f32.gmra.mrb[0].mxu0 %v871
      %v987 = vpop.f32.mrb[0].mxu0
      %v988 = vadd.f32 %v834, %v987
      %v989 = vpop.f32.mrb[0].mxu0
      %v990 = vadd.f32 %v838, %v989
      %991 = vdwg.mxu0
      %992 = vmatprep.subr.mxu0 0.0
      %993 = vmatpush1.msra.mxu0 %v877
      %994 = vmatprep.subr.mxu0 0.0
      %995 = vmatpush1.msra.mxu0 0.0
      %996 = vmatprep.subr.mxu0 0.0
      %997 = vmatpush1.msra.mxu0 0.0
      %998 = vmatprep.subr.mxu0 0.0
      %999 = vmatpush1.msra.mxu0 0.0
      %1000 = vmatprep.subr.mxu0 0.0
      %1001 = vmatpush1.msra.mxu0 0.0
      %1002 = vmatprep.subr.mxu0 0.0
      %1003 = vmatpush1.msra.mxu0 0.0
      %1004 = vmatprep.subr.mxu0 0.0
      %1005 = vmatpush1.msra.mxu0 0.0
      %1006 = vmatprep.subr.mxu0 0.0
      %1007 = vmatpush1.msra.mxu0 0.0
      %1008 = vmatprep.subr.mxu0 0.0
      %1009 = vmatpush1.msra.mxu0 0.0
      %1010 = vmatprep.subr.mxu0 0.0
      %1011 = vmatpush1.msra.mxu0 0.0
      %1012 = vmatprep.subr.mxu0 0.0
      %1013 = vmatpush1.msra.mxu0 0.0
      %1014 = vmatprep.subr.mxu0 0.0
      %1015 = vmatpush1.msra.mxu0 0.0
      %1016 = vmatprep.subr.mxu0 0.0
      %1017 = vmatpush1.msra.mxu0 0.0
      %1018 = vmatprep.subr.mxu0 0.0
      %1019 = vmatpush1.msra.mxu0 0.0
      %1020 = vmatprep.subr.mxu0 0.0
      %1021 = vmatpush1.msra.mxu0 0.0
      %1022 = vmatprep.subr.mxu0 0.0
      %1023 = vmatpush1.msra.mxu0 0.0
      %1024 = vmatprep.subr.mxu0 0.0
      %1025 = vmatpush1.msra.mxu0 0.0
      %1026 = vmatprep.subr.mxu0 0.0
      %1027 = vmatpush1.msra.mxu0 0.0
      %1028 = vmatprep.subr.mxu0 0.0
      %1029 = vmatpush1.msra.mxu0 0.0
      %1030 = vmatprep.subr.mxu0 0.0
      %1031 = vmatpush1.msra.mxu0 0.0
      %1032 = vmatprep.subr.mxu0 0.0
      %1033 = vmatpush1.msra.mxu0 0.0
      %1034 = vmatprep.subr.mxu0 0.0
      %1035 = vmatpush1.msra.mxu0 0.0
      %1036 = vmatprep.subr.mxu0 0.0
      %1037 = vmatpush1.msra.mxu0 0.0
      %1038 = vmatprep.subr.mxu0 0.0
      %1039 = vmatpush1.msra.mxu0 0.0
      %1040 = vmatprep.subr.mxu0 0.0
      %1041 = vmatpush1.msra.mxu0 0.0
      %1042 = vmatprep.subr.mxu0 0.0
      %1043 = vmatpush1.msra.mxu0 0.0
      %1044 = vmatprep.subr.mxu0 0.0
      %1045 = vmatpush1.msra.mxu0 0.0
      %1046 = vmatprep.subr.mxu0 0.0
      %1047 = vmatpush1.msra.mxu0 0.0
      %1048 = vmatprep.subr.mxu0 0.0
      %1049 = vmatpush1.msra.mxu0 0.0
      %1050 = vmatprep.subr.mxu0 0.0
      %1051 = vmatpush1.msra.mxu0 0.0
      %1052 = vmatprep.subr.mxu0 0.0
      %1053 = vmatpush1.msra.mxu0 0.0
      %1054 = vmatprep.subr.mxu0 0.0
      %1055 = vmatpush1.msra.mxu0 0.0
      %1056 = vmatprep.mubr.f32.mxu0 0.0
      %1057 = vmatmul.mubr.f32.gmra.mrb[0].mxu0 %v850
      %v1058 = vpop.f32.mrb[0].mxu0
      %v1059 = vadd.f32 %v842, %v1058
      %v1060 = vpop.f32.mrb[0].mxu0
      %1061 = vmatprep.mubr.f32.mxu0 0.0
      %1062 = vmatmul.mubr.f32.gmra.mrb[0].mxu0 %v853
      %v1063 = vpop.f32.mrb[0].mxu0
      %v1064 = vadd.f32 %v842, %v1063
      %v1065 = vpop.f32.mrb[0].mxu0
      %1066 = vmatprep.mubr.f32.mxu0 0.0
      %1067 = vmatmul.mubr.f32.gmra.mrb[0].mxu0 %v856
      %v1068 = vpop.f32.mrb[0].mxu0
      %v1069 = vadd.f32 %v842, %v1068
      %v1070 = vpop.f32.mrb[0].mxu0
      %1071 = vmatprep.mubr.f32.mxu0 0.0
      %1072 = vmatmul.mubr.f32.gmra.mrb[0].mxu0 %v859
      %v1073 = vpop.f32.mrb[0].mxu0
      %v1074 = vadd.f32 %v842, %v1073
      %v1075 = vpop.f32.mrb[0].mxu0
      %1076 = vmatprep.mubr.f32.mxu0 0.0
      %1077 = vmatmul.mubr.f32.gmra.mrb[0].mxu0 %v862
      %v1078 = vpop.f32.mrb[0].mxu0
      %v1079 = vadd.f32 %v842, %v1078
      %v1080 = vpop.f32.mrb[0].mxu0
      %1081 = vmatprep.mubr.f32.mxu0 0.0
      %1082 = vmatmul.mubr.f32.gmra.mrb[0].mxu0 %v865
      %v1083 = vpop.f32.mrb[0].mxu0
      %v1084 = vadd.f32 %v842, %v1083
      %v1085 = vpop.f32.mrb[0].mxu0
      %1086 = vmatprep.mubr.f32.mxu0 0.0
      %1087 = vmatmul.mubr.f32.gmra.mrb[0].mxu0 %v868
      %v1088 = vpop.f32.mrb[0].mxu0
      %v1089 = vadd.f32 %v842, %v1088
      %v1090 = vpop.f32.mrb[0].mxu0
      %1091 = vmatprep.mubr.f32.mxu0 0.0
      %1092 = vmatmul.mubr.f32.gmra.mrb[0].mxu0 %v871
      %v1093 = vpop.f32.mrb[0].mxu0
      %v1094 = vadd.f32 %v842, %v1093
      %v1095 = vpop.f32.mrb[0].mxu0
      %1096 = vdwg.mxu0
      %1097 = vst [vmem:[#allocation4] sm:$0xff] %v946
      %1098 = vst [vmem:[#allocation4 + $0x8] sm:$0xff] %v948
      %1099 = vst [vmem:[#allocation4 + $0x10] sm:$0xff] %v1059
      %1100 = vst [vmem:[#allocation4 + $0x18] sm:$0xff] %v952
      %1101 = vst [vmem:[#allocation4 + $0x20] sm:$0xff] %v954
      %1102 = vst [vmem:[#allocation4 + $0x28] sm:$0xff] %v1064
      %1103 = vst [vmem:[#allocation4 + $0x30] sm:$0xff] %v958
      %1104 = vst [vmem:[#allocation4 + $0x38] sm:$0xff] %v960
      %1105 = vst [vmem:[#allocation4 + $0x40] sm:$0xff] %v1069
      %1106 = vst [vmem:[#allocation4 + $0x48] sm:$0xff] %v964
      %1107 = vst [vmem:[#allocation4 + $0x50] sm:$0xff] %v966
      %1108 = vst [vmem:[#allocation4 + $0x58] sm:$0xff] %v1074
      %1109 = vst [vmem:[#allocation4 + $0x60] sm:$0xff] %v970
      %1110 = vst [vmem:[#allocation4 + $0x68] sm:$0xff] %v972
      %1111 = vst [vmem:[#allocation4 + $0x70] sm:$0xff] %v1079
      %1112 = vst [vmem:[#allocation4 + $0x78] sm:$0xff] %v976
      %1113 = vst [vmem:[#allocation4 + $0x80] sm:$0xff] %v978
      %1114 = vst [vmem:[#allocation4 + $0x88] sm:$0xff] %v1084
      %1115 = vst [vmem:[#allocation4 + $0x90] sm:$0xff] %v982
      %1116 = vst [vmem:[#allocation4 + $0x98] sm:$0xff] %v984
      %1117 = vst [vmem:[#allocation4 + $0xa0] sm:$0xff] %v1089
      %1118 = vst [vmem:[#allocation4 + $0xa8] sm:$0xff] %v988
      %1119 = vst [vmem:[#allocation4 + $0xb0] sm:$0xff] %v990
      %1120 = vst [vmem:[#allocation4 + $0xb8] sm:$0xff] %v1094
      %v1121 = vld [vmem:[%s7] sm:$0xff]
      %v1122 = vld [vmem:[%s7 + $0x8] sm:$0xff]
      %v1123 = vld [vmem:[%s7 + $0x10] sm:$0xff]
      %v1124 = vld [vmem:[%s7 + $0x18] sm:$0xff]
      %v1125 = vld [vmem:[%s7 + $0x20] sm:$0xff]
      %v1126 = vld [vmem:[%s7 + $0x28] sm:$0xff]
      %v1127 = vld [vmem:[%s7 + $0x30] sm:$0xff]
      %v1128 = vld [vmem:[%s7 + $0x38] sm:$0xff]
      %v1129 = vld [vmem:[%s7 + $0x40] sm:$0xff]
      %v1130 = vld [vmem:[%s7 + $0x48] sm:$0xff]
      %v1131 = vld [vmem:[%s7 + $0x50] sm:$0xff]
      %v1132 = vld [vmem:[%s7 + $0x58] sm:$0xff]
      %v1133 = vld [vmem:[%s7 + $0x60] sm:$0xff]
      %v1134 = vld [vmem:[%s7 + $0x68] sm:$0xff]
      %v1135 = vld [vmem:[%s7 + $0x70] sm:$0xff]
      %v1136 = vld [vmem:[%s7 + $0x78] sm:$0xff]
      %v1137 = vld [vmem:[%s7 + $0x80] sm:$0xff]
      %v1138 = vld [vmem:[%s7 + $0x88] sm:$0xff]
      %v1139 = vld [vmem:[%s7 + $0x90] sm:$0xff]
      %v1140 = vld [vmem:[%s7 + $0x98] sm:$0xff]
      %v1141 = vld [vmem:[%s7 + $0xa0] sm:$0xff]
      %v1142 = vld [vmem:[%s7 + $0xa8] sm:$0xff]
      %v1143 = vld [vmem:[%s7 + $0xb0] sm:$0xff]
      %v1144 = vld [vmem:[%s7 + $0xb8] sm:$0xff]
      %v1145 = vld [vmem:[%s7 + $0xc0] sm:$0xff]
      %v1146 = vld [vmem:[%s7 + $0xc8] sm:$0xff]
      %v1147 = vld [vmem:[%s7 + $0xd0] sm:$0xff]
      %v1148 = vld [vmem:[%s7 + $0xd8] sm:$0xff]
      %v1149 = vld [vmem:[%s7 + $0xe0] sm:$0xff]
      %v1150 = vld [vmem:[%s7 + $0xe8] sm:$0xff]
      %v1151 = vld [vmem:[%s7 + $0xf0] sm:$0xff]
      %v1152 = vld [vmem:[%s7 + $0xf8] sm:$0xff]
      %v1153 = vld [vmem:[%s7 + $0x100] sm:$0xff]
      %v1154 = vld [vmem:[%s7 + $0x108] sm:$0xff]
      %v1155 = vld [vmem:[%s7 + $0x110] sm:$0xff]
      %v1156 = vld [vmem:[%s7 + $0x118] sm:$0xff]
      %v1157 = vld [vmem:[%s7 + $0x120] sm:$0xff]
      %v1158 = vld [vmem:[%s7 + $0x128] sm:$0xff]
      %v1159 = vld [vmem:[%s7 + $0x130] sm:$0xff]
      %v1160 = vld [vmem:[%s7 + $0x138] sm:$0xff]
      %v1161 = vld [vmem:[%s7 + $0x140] sm:$0xff]
      %v1162 = vld [vmem:[%s7 + $0x148] sm:$0xff]
      %v1163 = vld [vmem:[%s7 + $0x150] sm:$0xff]
      %v1164 = vld [vmem:[%s7 + $0x158] sm:$0xff]
      %v1165 = vld [vmem:[%s7 + $0x160] sm:$0xff]
      %v1166 = vld [vmem:[%s7 + $0x168] sm:$0xff]
      %v1167 = vld [vmem:[%s7 + $0x170] sm:$0xff]
      %v1168 = vld [vmem:[%s7 + $0x178] sm:$0xff]
      %v1169 = vld [vmem:[%s7 + $0x180] sm:$0xff]
      %v1170 = vld [vmem:[%s7 + $0x188] sm:$0xff]
      %v1171 = vld [vmem:[%s7 + $0x190] sm:$0xff]
      %v1172 = vld [vmem:[%s7 + $0x198] sm:$0xff]
      %v1173 = vld [vmem:[%s7 + $0x1a0] sm:$0xff]
      %v1174 = vld [vmem:[%s7 + $0x1a8] sm:$0xff]
      %v1175 = vld [vmem:[%s7 + $0x1b0] sm:$0xff]
      %v1176 = vld [vmem:[%s7 + $0x1b8] sm:$0xff]
      %v1177 = vld [vmem:[%s7 + $0x1c0] sm:$0xff]
      %v1178 = vld [vmem:[%s7 + $0x1c8] sm:$0xff]
      %v1179 = vld [vmem:[%s7 + $0x1d0] sm:$0xff]
      %v1180 = vld [vmem:[%s7 + $0x1d8] sm:$0xff]
      %v1181 = vld [vmem:[%s7 + $0x1e0] sm:$0xff]
      %v1182 = vld [vmem:[%s7 + $0x1e8] sm:$0xff]
      %v1183 = vld [vmem:[%s7 + $0x1f0] sm:$0xff]
      %v1184 = vld [vmem:[%s7 + $0x1f8] sm:$0xff]
      %v1185 = vld [vmem:[%s8] sm:$0xff]
      %v1186 = vld [vmem:[%s8 + $0x8] sm:$0xff]
      %v1187 = vld [vmem:[%s8 + $0x10] sm:$0xff]
      %v1188 = vld [vmem:[%s8 + $0x18] sm:$0xff]
      %v1189 = vld [vmem:[%s8 + $0x20] sm:$0xff]
      %v1190 = vld [vmem:[%s8 + $0x28] sm:$0xff]
      %v1191 = vld [vmem:[%s8 + $0x30] sm:$0xff]
      %v1192 = vld [vmem:[%s8 + $0x38] sm:$0xff]
      %v1193 = vld [vmem:[%s8 + $0x40] sm:$0xff]
      %v1194 = vld [vmem:[%s8 + $0x48] sm:$0xff]
      %v1195 = vld [vmem:[%s8 + $0x50] sm:$0xff]
      %v1196 = vld [vmem:[%s8 + $0x58] sm:$0xff]
      %v1197 = vld [vmem:[%s8 + $0x60] sm:$0xff]
      %v1198 = vld [vmem:[%s8 + $0x68] sm:$0xff]
      %v1199 = vld [vmem:[%s8 + $0x70] sm:$0xff]
      %v1200 = vld [vmem:[%s8 + $0x78] sm:$0xff]
      %s1201 = scalar_lea.vmem %s8, 128
      %v1202 = vld [vmem:[%s1201] sm:$0xff]
      %v1203 = vld [vmem:[%s1201 + $0x8] sm:$0xff]
      %v1204 = vld [vmem:[%s1201 + $0x10] sm:$0xff]
      %v1205 = vld [vmem:[%s1201 + $0x18] sm:$0xff]
      %v1206 = vld [vmem:[%s1201 + $0x20] sm:$0xff]
      %v1207 = vld [vmem:[%s1201 + $0x28] sm:$0xff]
      %v1208 = vld [vmem:[%s1201 + $0x30] sm:$0xff]
      %v1209 = vld [vmem:[%s1201 + $0x38] sm:$0xff]
      %v1210 = vld [vmem:[%s1201 + $0x40] sm:$0xff]
      %v1211 = vld [vmem:[%s1201 + $0x48] sm:$0xff]
      %v1212 = vld [vmem:[%s1201 + $0x50] sm:$0xff]
      %v1213 = vld [vmem:[%s1201 + $0x58] sm:$0xff]
      %v1214 = vld [vmem:[%s1201 + $0x60] sm:$0xff]
      %v1215 = vld [vmem:[%s1201 + $0x68] sm:$0xff]
      %v1216 = vld [vmem:[%s1201 + $0x70] sm:$0xff]
      %v1217 = vld [vmem:[%s1201 + $0x78] sm:$0xff]
      %v1218 = vld [vmem:[%s9] sm:$0xff]
      %v1219 = vld [vmem:[%s9 + $0x8] sm:$0xff]
      %v1220 = vld [vmem:[%s9 + $0x10] sm:$0xff]
      %v1221 = vld [vmem:[%s9 + $0x18] sm:$0xff]
      %v1222 = vld [vmem:[%s9 + $0x20] sm:$0xff]
      %v1223 = vld [vmem:[%s9 + $0x28] sm:$0xff]
      %v1224 = vld [vmem:[%s9 + $0x30] sm:$0xff]
      %v1225 = vld [vmem:[%s9 + $0x38] sm:$0xff]
      %v1226 = vld [vmem:[%s9 + $0x40] sm:$0xff]
      %v1227 = vld [vmem:[%s9 + $0x48] sm:$0xff]
      %v1228 = vld [vmem:[%s9 + $0x50] sm:$0xff]
      %v1229 = vld [vmem:[%s9 + $0x58] sm:$0xff]
      %v1230 = vld [vmem:[%s9 + $0x60] sm:$0xff]
      %v1231 = vld [vmem:[%s9 + $0x68] sm:$0xff]
      %v1232 = vld [vmem:[%s9 + $0x70] sm:$0xff]
      %v1233 = vld [vmem:[%s9 + $0x78] sm:$0xff]
      %s1234 = scalar_lea.vmem %s9, 128
      %v1235 = vld [vmem:[%s1234] sm:$0xff]
      %v1236 = vld [vmem:[%s1234 + $0x8] sm:$0xff]
      %v1237 = vld [vmem:[%s1234 + $0x10] sm:$0xff]
      %v1238 = vld [vmem:[%s1234 + $0x18] sm:$0xff]
      %v1239 = vld [vmem:[%s1234 + $0x20] sm:$0xff]
      %v1240 = vld [vmem:[%s1234 + $0x28] sm:$0xff]
      %v1241 = vld [vmem:[%s1234 + $0x30] sm:$0xff]
      %v1242 = vld [vmem:[%s1234 + $0x38] sm:$0xff]
      %v1243 = vld [vmem:[%s1234 + $0x40] sm:$0xff]
      %v1244 = vld [vmem:[%s1234 + $0x48] sm:$0xff]
      %v1245 = vld [vmem:[%s1234 + $0x50] sm:$0xff]
      %v1246 = vld [vmem:[%s1234 + $0x58] sm:$0xff]
      %v1247 = vld [vmem:[%s1234 + $0x60] sm:$0xff]
      %v1248 = vld [vmem:[%s1234 + $0x68] sm:$0xff]
      %v1249 = vld [vmem:[%s1234 + $0x70] sm:$0xff]
      %v1250 = vld [vmem:[%s1234 + $0x78] sm:$0xff]
      %v1251 = vld [vmem:[%s10] sm:$0x1]
      %v1253 = vlaneseq
      %v1254 = vshrl.u32 %v1253, 7
      %v1255 = vsub.s32 0, %v1254
      %v1256 = vrot.slane %v1251, %v1255
      %v1258 = vld [vmem:[#allocation2] sm:$0xff]
      %v1259 = vld [vmem:[#allocation3] sm:$0xff]
      %v1260 = vld [vmem:[#allocation3 + $0x8] sm:$0xff]
      %v1261 = vld [vmem:[#allocation3 + $0x10] sm:$0xff]
      %v1262 = vld [vmem:[#allocation4] sm:$0xff]
      %v1263 = vld [vmem:[#allocation4 + $0x8] sm:$0xff]
      %v1264 = vld [vmem:[#allocation4 + $0x10] sm:$0xff]
      %1265 = vmatprep.subr.mxu0 %v1122
      %1266 = vmatpush1.msra.mxu0 %v1121
      %1267 = vmatprep.subr.mxu0 %v1126
      %1268 = vmatpush1.msra.mxu0 %v1125
      %1269 = vmatprep.subr.mxu0 %v1130
      %1270 = vmatpush1.msra.mxu0 %v1129
      %1271 = vmatprep.subr.mxu0 %v1134
      %1272 = vmatpush1.msra.mxu0 %v1133
      %1273 = vmatprep.subr.mxu0 %v1138
      %1274 = vmatpush1.msra.mxu0 %v1137
      %1275 = vmatprep.subr.mxu0 %v1142
      %1276 = vmatpush1.msra.mxu0 %v1141
      %1277 = vmatprep.subr.mxu0 %v1146
      %1278 = vmatpush1.msra.mxu0 %v1145
      %1279 = vmatprep.subr.mxu0 %v1150
      %1280 = vmatpush1.msra.mxu0 %v1149
      %1281 = vmatprep.subr.mxu0 %v1154
      %1282 = vmatpush1.msra.mxu0 %v1153
      %1283 = vmatprep.subr.mxu0 %v1158
      %1284 = vmatpush1.msra.mxu0 %v1157
      %1285 = vmatprep.subr.mxu0 %v1162
      %1286 = vmatpush1.msra.mxu0 %v1161
      %1287 = vmatprep.subr.mxu0 %v1166
      %1288 = vmatpush1.msra.mxu0 %v1165
      %1289 = vmatprep.subr.mxu0 %v1170
      %1290 = vmatpush1.msra.mxu0 %v1169
      %1291 = vmatprep.subr.mxu0 %v1174
      %1292 = vmatpush1.msra.mxu0 %v1173
      %1293 = vmatprep.subr.mxu0 %v1178
      %1294 = vmatpush1.msra.mxu0 %v1177
      %1295 = vmatprep.subr.mxu0 %v1182
      %1296 = vmatpush1.msra.mxu0 %v1181
      %1297 = vmatprep.subr.mxu0 0.0
      %1298 = vmatpush1.msra.mxu0 0.0
      %1299 = vmatprep.subr.mxu0 0.0
      %1300 = vmatpush1.msra.mxu0 0.0
      %1301 = vmatprep.subr.mxu0 0.0
      %1302 = vmatpush1.msra.mxu0 0.0
      %1303 = vmatprep.subr.mxu0 0.0
      %1304 = vmatpush1.msra.mxu0 0.0
      %1305 = vmatprep.subr.mxu0 0.0
      %1306 = vmatpush1.msra.mxu0 0.0
      %1307 = vmatprep.subr.mxu0 0.0
      %1308 = vmatpush1.msra.mxu0 0.0
      %1309 = vmatprep.subr.mxu0 0.0
      %1310 = vmatpush1.msra.mxu0 0.0
      %1311 = vmatprep.subr.mxu0 0.0
      %1312 = vmatpush1.msra.mxu0 0.0
      %1313 = vmatprep.subr.mxu0 0.0
      %1314 = vmatpush1.msra.mxu0 0.0
      %1315 = vmatprep.subr.mxu0 0.0
      %1316 = vmatpush1.msra.mxu0 0.0
      %1317 = vmatprep.subr.mxu0 0.0
      %1318 = vmatpush1.msra.mxu0 0.0
      %1319 = vmatprep.subr.mxu0 0.0
      %1320 = vmatpush1.msra.mxu0 0.0
      %1321 = vmatprep.subr.mxu0 0.0
      %1322 = vmatpush1.msra.mxu0 0.0
      %1323 = vmatprep.subr.mxu0 0.0
      %1324 = vmatpush1.msra.mxu0 0.0
      %1325 = vmatprep.subr.mxu0 0.0
      %1326 = vmatpush1.msra.mxu0 0.0
      %1327 = vmatprep.subr.mxu0 0.0
      %1328 = vmatpush1.msra.mxu0 0.0
      %1329 = vmatprep.mubr.f32.mxu0 0.0
      %1330 = vmatmul.mubr.f32.gmra.mrb[0].mxu0 %v1258
      %v1331 = vpop.f32.mrb[0].mxu0
      %v1332 = vadd.f32 0.0, %v1331
      %v1333 = vpop.f32.mrb[0].mxu0
      %v1334 = vadd.f32 0.0, %v1333
      %1335 = vdwg.mxu0
      %1336 = vmatprep.subr.mxu0 %v1124
      %1337 = vmatpush1.msra.mxu0 %v1123
      %1338 = vmatprep.subr.mxu0 %v1128
      %1339 = vmatpush1.msra.mxu0 %v1127
      %1340 = vmatprep.subr.mxu0 %v1132
      %1341 = vmatpush1.msra.mxu0 %v1131
      %1342 = vmatprep.subr.mxu0 %v1136
      %1343 = vmatpush1.msra.mxu0 %v1135
      %1344 = vmatprep.subr.mxu0 %v1140
      %1345 = vmatpush1.msra.mxu0 %v1139
      %1346 = vmatprep.subr.mxu0 %v1144
      %1347 = vmatpush1.msra.mxu0 %v1143
      %1348 = vmatprep.subr.mxu0 %v1148
      %1349 = vmatpush1.msra.mxu0 %v1147
      %1350 = vmatprep.subr.mxu0 %v1152
      %1351 = vmatpush1.msra.mxu0 %v1151
      %1352 = vmatprep.subr.mxu0 %v1156
      %1353 = vmatpush1.msra.mxu0 %v1155
      %1354 = vmatprep.subr.mxu0 %v1160
      %1355 = vmatpush1.msra.mxu0 %v1159
      %1356 = vmatprep.subr.mxu0 %v1164
      %1357 = vmatpush1.msra.mxu0 %v1163
      %1358 = vmatprep.subr.mxu0 %v1168
      %1359 = vmatpush1.msra.mxu0 %v1167
      %1360 = vmatprep.subr.mxu0 %v1172
      %1361 = vmatpush1.msra.mxu0 %v1171
      %1362 = vmatprep.subr.mxu0 %v1176
      %1363 = vmatpush1.msra.mxu0 %v1175
      %1364 = vmatprep.subr.mxu0 %v1180
      %1365 = vmatpush1.msra.mxu0 %v1179
      %1366 = vmatprep.subr.mxu0 %v1184
      %1367 = vmatpush1.msra.mxu0 %v1183
      %1368 = vmatprep.subr.mxu0 0.0
      %1369 = vmatpush1.msra.mxu0 0.0
      %1370 = vmatprep.subr.mxu0 0.0
      %1371 = vmatpush1.msra.mxu0 0.0
      %1372 = vmatprep.subr.mxu0 0.0
      %1373 = vmatpush1.msra.mxu0 0.0
      %1374 = vmatprep.subr.mxu0 0.0
      %1375 = vmatpush1.msra.mxu0 0.0
      %1376 = vmatprep.subr.mxu0 0.0
      %1377 = vmatpush1.msra.mxu0 0.0
      %1378 = vmatprep.subr.mxu0 0.0
      %1379 = vmatpush1.msra.mxu0 0.0
      %1380 = vmatprep.subr.mxu0 0.0
      %1381 = vmatpush1.msra.mxu0 0.0
      %1382 = vmatprep.subr.mxu0 0.0
      %1383 = vmatpush1.msra.mxu0 0.0
      %1384 = vmatprep.subr.mxu0 0.0
      %1385 = vmatpush1.msra.mxu0 0.0
      %1386 = vmatprep.subr.mxu0 0.0
      %1387 = vmatpush1.msra.mxu0 0.0
      %1388 = vmatprep.subr.mxu0 0.0
      %1389 = vmatpush1.msra.mxu0 0.0
      %1390 = vmatprep.subr.mxu0 0.0
      %1391 = vmatpush1.msra.mxu0 0.0
      %1392 = vmatprep.subr.mxu0 0.0
      %1393 = vmatpush1.msra.mxu0 0.0
      %1394 = vmatprep.subr.mxu0 0.0
      %1395 = vmatpush1.msra.mxu0 0.0
      %1396 = vmatprep.subr.mxu0 0.0
      %1397 = vmatpush1.msra.mxu0 0.0
      %1398 = vmatprep.subr.mxu0 0.0
      %1399 = vmatpush1.msra.mxu0 0.0
      %1400 = vmatprep.mubr.f32.mxu0 0.0
      %1401 = vmatmul.mubr.f32.gmra.mrb[0].mxu0 %v1258
      %v1402 = vpop.f32.mrb[0].mxu0
      %v1403 = vadd.f32 0.0, %v1402
      %v1404 = vpop.f32.mrb[0].mxu0
      %v1405 = vadd.f32 0.0, %v1404
      %1406 = vdwg.mxu0
      %v1407 = vadd.f32 %v1259, %v1332
      %v1408 = vxor.u32 %v1407, 2147483648
      %v1409 = vmul.f32 %v1408, 1.442695
      %v1410 = vpow.pop %v1409
      %v1411 = vadd.f32 %v1410, 1.0
      %v1412 = vrcp.pop %v1411
      %v1413 = vmul.f32 1.0, %v1412
      %v1414 = vadd.f32 %v1260, %v1334
      %v1415 = vxor.u32 %v1414, 2147483648
      %v1416 = vmul.f32 %v1415, 1.442695
      %v1417 = vpow.pop %v1416
      %v1418 = vadd.f32 %v1417, 1.0
      %v1419 = vrcp.pop %v1418
      %v1420 = vmul.f32 1.0, %v1419
      %v1421 = vadd.f32 %v1262, %v1403
      %v1422 = vxor.u32 %v1421, 2147483648
      %v1423 = vmul.f32 %v1422, 1.442695
      %v1424 = vpow.pop %v1423
      %v1425 = vadd.f32 %v1424, 1.0
      %v1426 = vrcp.pop %v1425
      %v1427 = vmul.f32 1.0, %v1426
      %v1428 = vadd.f32 %v1263, %v1405
      %v1429 = vxor.u32 %v1428, 2147483648
      %v1430 = vmul.f32 %v1429, 1.442695
      %v1431 = vpow.pop %v1430
      %v1432 = vadd.f32 %v1431, 1.0
      %v1433 = vrcp.pop %v1432
      %v1434 = vmul.f32 1.0, %v1433
      %v1435 = vmul.f32 %v1420, %v1258
      %1436 = vmatprep.subr.mxu0 0.0
      %1437 = vmatpush1.msra.mxu0 %v1185
      %1438 = vmatprep.subr.mxu0 0.0
      %1439 = vmatpush1.msra.mxu0 %v1186
      %1440 = vmatprep.subr.mxu0 0.0
      %1441 = vmatpush1.msra.mxu0 %v1187
      %1442 = vmatprep.subr.mxu0 0.0
      %1443 = vmatpush1.msra.mxu0 %v1188
      %1444 = vmatprep.subr.mxu0 0.0
      %1445 = vmatpush1.msra.mxu0 %v1189
      %1446 = vmatprep.subr.mxu0 0.0
      %1447 = vmatpush1.msra.mxu0 %v1190
      %1448 = vmatprep.subr.mxu0 0.0
      %1449 = vmatpush1.msra.mxu0 %v1191
      %1450 = vmatprep.subr.mxu0 0.0
      %1451 = vmatpush1.msra.mxu0 %v1192
      %1452 = vmatprep.subr.mxu0 0.0
      %1453 = vmatpush1.msra.mxu0 %v1193
      %1454 = vmatprep.subr.mxu0 0.0
      %1455 = vmatpush1.msra.mxu0 %v1194
      %1456 = vmatprep.subr.mxu0 0.0
      %1457 = vmatpush1.msra.mxu0 %v1195
      %1458 = vmatprep.subr.mxu0 0.0
      %1459 = vmatpush1.msra.mxu0 %v1196
      %1460 = vmatprep.subr.mxu0 0.0
      %1461 = vmatpush1.msra.mxu0 %v1197
      %1462 = vmatprep.subr.mxu0 0.0
      %1463 = vmatpush1.msra.mxu0 %v1198
      %1464 = vmatprep.subr.mxu0 0.0
      %1465 = vmatpush1.msra.mxu0 %v1199
      %1466 = vmatprep.subr.mxu0 0.0
      %1467 = vmatpush1.msra.mxu0 %v1200
      %1468 = vmatprep.subr.mxu0 0.0
      %1469 = vmatpush1.msra.mxu0 0.0
      %1470 = vmatprep.subr.mxu0 0.0
      %1471 = vmatpush1.msra.mxu0 0.0
      %1472 = vmatprep.subr.mxu0 0.0
      %1473 = vmatpush1.msra.mxu0 0.0
      %1474 = vmatprep.subr.mxu0 0.0
      %1475 = vmatpush1.msra.mxu0 0.0
      %1476 = vmatprep.subr.mxu0 0.0
      %1477 = vmatpush1.msra.mxu0 0.0
      %1478 = vmatprep.subr.mxu0 0.0
      %1479 = vmatpush1.msra.mxu0 0.0
      %1480 = vmatprep.subr.mxu0 0.0
      %1481 = vmatpush1.msra.mxu0 0.0
      %1482 = vmatprep.subr.mxu0 0.0
      %1483 = vmatpush1.msra.mxu0 0.0
      %1484 = vmatprep.subr.mxu0 0.0
      %1485 = vmatpush1.msra.mxu0 0.0
      %1486 = vmatprep.subr.mxu0 0.0
      %1487 = vmatpush1.msra.mxu0 0.0
      %1488 = vmatprep.subr.mxu0 0.0
      %1489 = vmatpush1.msra.mxu0 0.0
      %1490 = vmatprep.subr.mxu0 0.0
      %1491 = vmatpush1.msra.mxu0 0.0
      %1492 = vmatprep.subr.mxu0 0.0
      %1493 = vmatpush1.msra.mxu0 0.0
      %1494 = vmatprep.subr.mxu0 0.0
      %1495 = vmatpush1.msra.mxu0 0.0
      %1496 = vmatprep.subr.mxu0 0.0
      %1497 = vmatpush1.msra.mxu0 0.0
      %1498 = vmatprep.subr.mxu0 0.0
      %1499 = vmatpush1.msra.mxu0 0.0
      %1500 = vmatprep.mubr.f32.mxu0 0.0
      %1501 = vmatmul.mubr.f32.gmra.mrb[0].mxu0 %v1435
      %v1502 = vpop.f32.mrb[0].mxu0
      %v1503 = vadd.f32 0.0, %v1502
      %v1504 = vpop.f32.mrb[0].mxu0
      %1505 = vdwg.mxu0
      %v1506 = vadd.f32 %v1261, %v1503
      %v1507 = vtanh.pop %v1506
      %v1508 = vmul.f32 %v1434, %v1258
      %1509 = vmatprep.subr.mxu0 0.0
      %1510 = vmatpush1.msra.mxu0 %v1202
      %1511 = vmatprep.subr.mxu0 0.0
      %1512 = vmatpush1.msra.mxu0 %v1203
      %1513 = vmatprep.subr.mxu0 0.0
      %1514 = vmatpush1.msra.mxu0 %v1204
      %1515 = vmatprep.subr.mxu0 0.0
      %1516 = vmatpush1.msra.mxu0 %v1205
      %1517 = vmatprep.subr.mxu0 0.0
      %1518 = vmatpush1.msra.mxu0 %v1206
      %1519 = vmatprep.subr.mxu0 0.0
      %1520 = vmatpush1.msra.mxu0 %v1207
      %1521 = vmatprep.subr.mxu0 0.0
      %1522 = vmatpush1.msra.mxu0 %v1208
      %1523 = vmatprep.subr.mxu0 0.0
      %1524 = vmatpush1.msra.mxu0 %v1209
      %1525 = vmatprep.subr.mxu0 0.0
      %1526 = vmatpush1.msra.mxu0 %v1210
      %1527 = vmatprep.subr.mxu0 0.0
      %1528 = vmatpush1.msra.mxu0 %v1211
      %1529 = vmatprep.subr.mxu0 0.0
      %1530 = vmatpush1.msra.mxu0 %v1212
      %1531 = vmatprep.subr.mxu0 0.0
      %1532 = vmatpush1.msra.mxu0 %v1213
      %1533 = vmatprep.subr.mxu0 0.0
      %1534 = vmatpush1.msra.mxu0 %v1214
      %1535 = vmatprep.subr.mxu0 0.0
      %1536 = vmatpush1.msra.mxu0 %v1215
      %1537 = vmatprep.subr.mxu0 0.0
      %1538 = vmatpush1.msra.mxu0 %v1216
      %1539 = vmatprep.subr.mxu0 0.0
      %1540 = vmatpush1.msra.mxu0 %v1217
      %1541 = vmatprep.subr.mxu0 0.0
      %1542 = vmatpush1.msra.mxu0 0.0
      %1543 = vmatprep.subr.mxu0 0.0
      %1544 = vmatpush1.msra.mxu0 0.0
      %1545 = vmatprep.subr.mxu0 0.0
      %1546 = vmatpush1.msra.mxu0 0.0
      %1547 = vmatprep.subr.mxu0 0.0
      %1548 = vmatpush1.msra.mxu0 0.0
      %1549 = vmatprep.subr.mxu0 0.0
      %1550 = vmatpush1.msra.mxu0 0.0
      %1551 = vmatprep.subr.mxu0 0.0
      %1552 = vmatpush1.msra.mxu0 0.0
      %1553 = vmatprep.subr.mxu0 0.0
      %1554 = vmatpush1.msra.mxu0 0.0
      %1555 = vmatprep.subr.mxu0 0.0
      %1556 = vmatpush1.msra.mxu0 0.0
      %1557 = vmatprep.subr.mxu0 0.0
      %1558 = vmatpush1.msra.mxu0 0.0
      %1559 = vmatprep.subr.mxu0 0.0
      %1560 = vmatpush1.msra.mxu0 0.0
      %1561 = vmatprep.subr.mxu0 0.0
      %1562 = vmatpush1.msra.mxu0 0.0
      %1563 = vmatprep.subr.mxu0 0.0
      %1564 = vmatpush1.msra.mxu0 0.0
      %1565 = vmatprep.subr.mxu0 0.0
      %1566 = vmatpush1.msra.mxu0 0.0
      %1567 = vmatprep.subr.mxu0 0.0
      %1568 = vmatpush1.msra.mxu0 0.0
      %1569 = vmatprep.subr.mxu0 0.0
      %1570 = vmatpush1.msra.mxu0 0.0
      %1571 = vmatprep.subr.mxu0 0.0
      %1572 = vmatpush1.msra.mxu0 0.0
      %1573 = vmatprep.mubr.f32.mxu0 0.0
      %1574 = vmatmul.mubr.f32.gmra.mrb[0].mxu0 %v1508
      %v1575 = vpop.f32.mrb[0].mxu0
      %v1576 = vadd.f32 0.0, %v1575
      %v1577 = vpop.f32.mrb[0].mxu0
      %1578 = vdwg.mxu0
      %v1579 = vadd.f32 %v1264, %v1576
      %v1580 = vtanh.pop %v1579
      %v1581 = vmul.f32 %v1413, %v1258
      %v1582 = vsub.f32 1.0, %v1413
      %v1583 = vmul.f32 %v1582, %v1507
      %v1584 = vadd.f32 %v1581, %v1583
      %v1585 = vmul.f32 %v1427, %v1258
      %v1586 = vsub.f32 1.0, %v1427
      %v1587 = vmul.f32 %v1586, %v1580
      %v1588 = vadd.f32 %v1585, %v1587
      %1589 = vmatprep.subr.mxu0 0.0
      %1590 = vmatpush1.msra.mxu0 %v1235
      %1591 = vmatprep.subr.mxu0 0.0
      %1592 = vmatpush1.msra.mxu0 %v1236
      %1593 = vmatprep.subr.mxu0 0.0
      %1594 = vmatpush1.msra.mxu0 %v1237
      %1595 = vmatprep.subr.mxu0 0.0
      %1596 = vmatpush1.msra.mxu0 %v1238
      %1597 = vmatprep.subr.mxu0 0.0
      %1598 = vmatpush1.msra.mxu0 %v1239
      %1599 = vmatprep.subr.mxu0 0.0
      %1600 = vmatpush1.msra.mxu0 %v1240
      %1601 = vmatprep.subr.mxu0 0.0
      %1602 = vmatpush1.msra.mxu0 %v1241
      %1603 = vmatprep.subr.mxu0 0.0
      %1604 = vmatpush1.msra.mxu0 %v1242
      %1605 = vmatprep.subr.mxu0 0.0
      %1606 = vmatpush1.msra.mxu0 %v1243
      %1607 = vmatprep.subr.mxu0 0.0
      %1608 = vmatpush1.msra.mxu0 %v1244
      %1609 = vmatprep.subr.mxu0 0.0
      %1610 = vmatpush1.msra.mxu0 %v1245
      %1611 = vmatprep.subr.mxu0 0.0
      %1612 = vmatpush1.msra.mxu0 %v1246
      %1613 = vmatprep.subr.mxu0 0.0
      %1614 = vmatpush1.msra.mxu0 %v1247
      %1615 = vmatprep.subr.mxu0 0.0
      %1616 = vmatpush1.msra.mxu0 %v1248
      %1617 = vmatprep.subr.mxu0 0.0
      %1618 = vmatpush1.msra.mxu0 %v1249
      %1619 = vmatprep.subr.mxu0 0.0
      %1620 = vmatpush1.msra.mxu0 %v1250
      %1621 = vmatprep.subr.mxu0 0.0
      %1622 = vmatpush1.msra.mxu0 0.0
      %1623 = vmatprep.subr.mxu0 0.0
      %1624 = vmatpush1.msra.mxu0 0.0
      %1625 = vmatprep.subr.mxu0 0.0
      %1626 = vmatpush1.msra.mxu0 0.0
      %1627 = vmatprep.subr.mxu0 0.0
      %1628 = vmatpush1.msra.mxu0 0.0
      %1629 = vmatprep.subr.mxu0 0.0
      %1630 = vmatpush1.msra.mxu0 0.0
      %1631 = vmatprep.subr.mxu0 0.0
      %1632 = vmatpush1.msra.mxu0 0.0
      %1633 = vmatprep.subr.mxu0 0.0
      %1634 = vmatpush1.msra.mxu0 0.0
      %1635 = vmatprep.subr.mxu0 0.0
      %1636 = vmatpush1.msra.mxu0 0.0
      %1637 = vmatprep.subr.mxu0 0.0
      %1638 = vmatpush1.msra.mxu0 0.0
      %1639 = vmatprep.subr.mxu0 0.0
      %1640 = vmatpush1.msra.mxu0 0.0
      %1641 = vmatprep.subr.mxu0 0.0
      %1642 = vmatpush1.msra.mxu0 0.0
      %1643 = vmatprep.subr.mxu0 0.0
      %1644 = vmatpush1.msra.mxu0 0.0
      %1645 = vmatprep.subr.mxu0 0.0
      %1646 = vmatpush1.msra.mxu0 0.0
      %1647 = vmatprep.subr.mxu0 0.0
      %1648 = vmatpush1.msra.mxu0 0.0
      %1649 = vmatprep.subr.mxu0 0.0
      %1650 = vmatpush1.msra.mxu0 0.0
      %1651 = vmatprep.subr.mxu0 0.0
      %1652 = vmatpush1.msra.mxu0 0.0
      %1653 = vmatprep.mubr.f32.mxu0 0.0
      %1654 = vmatmul.mubr.f32.gmra.mrb[0].mxu0 %v1588
      %v1655 = vpop.f32.mrb[0].mxu0
      %v1656 = vadd.f32 0.0, %v1655
      %v1657 = vpop.f32.mrb[0].mxu0
      %1658 = vdwg.mxu0
      %1659 = vmatprep.subr.mxu0 0.0
      %1660 = vmatpush1.msra.mxu0 %v1218
      %1661 = vmatprep.subr.mxu0 0.0
      %1662 = vmatpush1.msra.mxu0 %v1219
      %1663 = vmatprep.subr.mxu0 0.0
      %1664 = vmatpush1.msra.mxu0 %v1220
      %1665 = vmatprep.subr.mxu0 0.0
      %1666 = vmatpush1.msra.mxu0 %v1221
      %1667 = vmatprep.subr.mxu0 0.0
      %1668 = vmatpush1.msra.mxu0 %v1222
      %1669 = vmatprep.subr.mxu0 0.0
      %1670 = vmatpush1.msra.mxu0 %v1223
      %1671 = vmatprep.subr.mxu0 0.0
      %1672 = vmatpush1.msra.mxu0 %v1224
      %1673 = vmatprep.subr.mxu0 0.0
      %1674 = vmatpush1.msra.mxu0 %v1225
      %1675 = vmatprep.subr.mxu0 0.0
      %1676 = vmatpush1.msra.mxu0 %v1226
      %1677 = vmatprep.subr.mxu0 0.0
      %1678 = vmatpush1.msra.mxu0 %v1227
      %1679 = vmatprep.subr.mxu0 0.0
      %1680 = vmatpush1.msra.mxu0 %v1228
      %1681 = vmatprep.subr.mxu0 0.0
      %1682 = vmatpush1.msra.mxu0 %v1229
      %1683 = vmatprep.subr.mxu0 0.0
      %1684 = vmatpush1.msra.mxu0 %v1230
      %1685 = vmatprep.subr.mxu0 0.0
      %1686 = vmatpush1.msra.mxu0 %v1231
      %1687 = vmatprep.subr.mxu0 0.0
      %1688 = vmatpush1.msra.mxu0 %v1232
      %1689 = vmatprep.subr.mxu0 0.0
      %1690 = vmatpush1.msra.mxu0 %v1233
      %1691 = vmatprep.subr.mxu0 0.0
      %1692 = vmatpush1.msra.mxu0 0.0
      %1693 = vmatprep.subr.mxu0 0.0
      %1694 = vmatpush1.msra.mxu0 0.0
      %1695 = vmatprep.subr.mxu0 0.0
      %1696 = vmatpush1.msra.mxu0 0.0
      %1697 = vmatprep.subr.mxu0 0.0
      %1698 = vmatpush1.msra.mxu0 0.0
      %1699 = vmatprep.subr.mxu0 0.0
      %1700 = vmatpush1.msra.mxu0 0.0
      %1701 = vmatprep.subr.mxu0 0.0
      %1702 = vmatpush1.msra.mxu0 0.0
      %1703 = vmatprep.subr.mxu0 0.0
      %1704 = vmatpush1.msra.mxu0 0.0
      %1705 = vmatprep.subr.mxu0 0.0
      %1706 = vmatpush1.msra.mxu0 0.0
      %1707 = vmatprep.subr.mxu0 0.0
      %1708 = vmatpush1.msra.mxu0 0.0
      %1709 = vmatprep.subr.mxu0 0.0
      %1710 = vmatpush1.msra.mxu0 0.0
      %1711 = vmatprep.subr.mxu0 0.0
      %1712 = vmatpush1.msra.mxu0 0.0
      %1713 = vmatprep.subr.mxu0 0.0
      %1714 = vmatpush1.msra.mxu0 0.0
      %1715 = vmatprep.subr.mxu0 0.0
      %1716 = vmatpush1.msra.mxu0 0.0
      %1717 = vmatprep.subr.mxu0 0.0
      %1718 = vmatpush1.msra.mxu0 0.0
      %1719 = vmatprep.subr.mxu0 0.0
      %1720 = vmatpush1.msra.mxu0 0.0
      %1721 = vmatprep.subr.mxu0 0.0
      %1722 = vmatpush1.msra.mxu0 0.0
      %1723 = vmatprep.mubr.f32.mxu0 0.0
      %1724 = vmatmul.mubr.f32.gmra.mrb[0].mxu0 %v1584
      %v1725 = vpop.f32.mrb[0].mxu0
      %v1726 = vadd.f32 %v1656, %v1725
      %v1727 = vpop.f32.mrb[0].mxu0
      %1728 = vdwg.mxu0
      %v1729 = vadd.f32 %v1726, %v1256
      %v1730 = vxor.u32 %v1729, 2147483648
      %v1731 = vmul.f32 %v1730, 1.442695
      %v1732 = vpow.pop %v1731
      %v1733 = vadd.f32 %v1732, 1.0
      %v1734 = vrcp.pop %v1733
      %v1735 = vmul.f32 1.0, %v1734
      %v1736 = vmul.f32 %v1735, %v1584
      %v1737 = vsub.f32 1.0, %v1735
      %v1738 = vmul.f32 %v1737, %v1588
      %v1739 = vadd.f32 %v1736, %v1738
      %1740 = vst [vmem:[%s503] sm:$0xff] %v1739
      %s1741 = scalar_lea.vmem [#allocation3], 24
      %v1742 = vld [vmem:[%s1741] sm:$0xff]
      %v1743 = vld [vmem:[%s1741 + $0x8] sm:$0xff]
      %v1744 = vld [vmem:[%s1741 + $0x10] sm:$0xff]
      %s1745 = scalar_lea.vmem [#allocation4], 24
      %v1746 = vld [vmem:[%s1745] sm:$0xff]
      %v1747 = vld [vmem:[%s1745 + $0x8] sm:$0xff]
      %v1748 = vld [vmem:[%s1745 + $0x10] sm:$0xff]
      %1749 = vmatprep.subr.mxu0 %v1122
      %1750 = vmatpush1.msra.mxu0 %v1121
      %1751 = vmatprep.subr.mxu0 %v1126
      %1752 = vmatpush1.msra.mxu0 %v1125
      %1753 = vmatprep.subr.mxu0 %v1130
      %1754 = vmatpush1.msra.mxu0 %v1129
      %1755 = vmatprep.subr.mxu0 %v1134
      %1756 = vmatpush1.msra.mxu0 %v1133
      %1757 = vmatprep.subr.mxu0 %v1138
      %1758 = vmatpush1.msra.mxu0 %v1137
      %1759 = vmatprep.subr.mxu0 %v1142
      %1760 = vmatpush1.msra.mxu0 %v1141
      %1761 = vmatprep.subr.mxu0 %v1146
      %1762 = vmatpush1.msra.mxu0 %v1145
      %1763 = vmatprep.subr.mxu0 %v1150
      %1764 = vmatpush1.msra.mxu0 %v1149
      %1765 = vmatprep.subr.mxu0 %v1154
      %1766 = vmatpush1.msra.mxu0 %v1153
      %1767 = vmatprep.subr.mxu0 %v1158
      %1768 = vmatpush1.msra.mxu0 %v1157
      %1769 = vmatprep.subr.mxu0 %v1162
      %1770 = vmatpush1.msra.mxu0 %v1161
      %1771 = vmatprep.subr.mxu0 %v1166
      %1772 = vmatpush1.msra.mxu0 %v1165
      %1773 = vmatprep.subr.mxu0 %v1170
      %1774 = vmatpush1.msra.mxu0 %v1169
      %1775 = vmatprep.subr.mxu0 %v1174
      %1776 = vmatpush1.msra.mxu0 %v1173
      %1777 = vmatprep.subr.mxu0 %v1178
      %1778 = vmatpush1.msra.mxu0 %v1177
      %1779 = vmatprep.subr.mxu0 %v1182
      %1780 = vmatpush1.msra.mxu0 %v1181
      %1781 = vmatprep.subr.mxu0 0.0
      %1782 = vmatpush1.msra.mxu0 0.0
      %1783 = vmatprep.subr.mxu0 0.0
      %1784 = vmatpush1.msra.mxu0 0.0
      %1785 = vmatprep.subr.mxu0 0.0
      %1786 = vmatpush1.msra.mxu0 0.0
      %1787 = vmatprep.subr.mxu0 0.0
      %1788 = vmatpush1.msra.mxu0 0.0
      %1789 = vmatprep.subr.mxu0 0.0
      %1790 = vmatpush1.msra.mxu0 0.0
      %1791 = vmatprep.subr.mxu0 0.0
      %1792 = vmatpush1.msra.mxu0 0.0
      %1793 = vmatprep.subr.mxu0 0.0
      %1794 = vmatpush1.msra.mxu0 0.0
      %1795 = vmatprep.subr.mxu0 0.0
      %1796 = vmatpush1.msra.mxu0 0.0
      %1797 = vmatprep.subr.mxu0 0.0
      %1798 = vmatpush1.msra.mxu0 0.0
      %1799 = vmatprep.subr.mxu0 0.0
      %1800 = vmatpush1.msra.mxu0 0.0
      %1801 = vmatprep.subr.mxu0 0.0
      %1802 = vmatpush1.msra.mxu0 0.0
      %1803 = vmatprep.subr.mxu0 0.0
      %1804 = vmatpush1.msra.mxu0 0.0
      %1805 = vmatprep.subr.mxu0 0.0
      %1806 = vmatpush1.msra.mxu0 0.0
      %1807 = vmatprep.subr.mxu0 0.0
      %1808 = vmatpush1.msra.mxu0 0.0
      %1809 = vmatprep.subr.mxu0 0.0
      %1810 = vmatpush1.msra.mxu0 0.0
      %1811 = vmatprep.subr.mxu0 0.0
      %1812 = vmatpush1.msra.mxu0 0.0
      %1813 = vmatprep.mubr.f32.mxu0 0.0
      %1814 = vmatmul.mubr.f32.gmra.mrb[0].mxu0 %v1739
      %v1815 = vpop.f32.mrb[0].mxu0
      %v1816 = vadd.f32 0.0, %v1815
      %v1817 = vpop.f32.mrb[0].mxu0
      %v1818 = vadd.f32 0.0, %v1817
      %1819 = vdwg.mxu0
      %1820 = vmatprep.subr.mxu0 %v1124
      %1821 = vmatpush1.msra.mxu0 %v1123
      %1822 = vmatprep.subr.mxu0 %v1128
      %1823 = vmatpush1.msra.mxu0 %v1127
      %1824 = vmatprep.subr.mxu0 %v1132
      %1825 = vmatpush1.msra.mxu0 %v1131
      %1826 = vmatprep.subr.mxu0 %v1136
      %1827 = vmatpush1.msra.mxu0 %v1135
      %1828 = vmatprep.subr.mxu0 %v1140
      %1829 = vmatpush1.msra.mxu0 %v1139
      %1830 = vmatprep.subr.mxu0 %v1144
      %1831 = vmatpush1.msra.mxu0 %v1143
      %1832 = vmatprep.subr.mxu0 %v1148
      %1833 = vmatpush1.msra.mxu0 %v1147
      %1834 = vmatprep.subr.mxu0 %v1152
      %1835 = vmatpush1.msra.mxu0 %v1151
      %1836 = vmatprep.subr.mxu0 %v1156
      %1837 = vmatpush1.msra.mxu0 %v1155
      %1838 = vmatprep.subr.mxu0 %v1160
      %1839 = vmatpush1.msra.mxu0 %v1159
      %1840 = vmatprep.subr.mxu0 %v1164
      %1841 = vmatpush1.msra.mxu0 %v1163
      %1842 = vmatprep.subr.mxu0 %v1168
      %1843 = vmatpush1.msra.mxu0 %v1167
      %1844 = vmatprep.subr.mxu0 %v1172
      %1845 = vmatpush1.msra.mxu0 %v1171
      %1846 = vmatprep.subr.mxu0 %v1176
      %1847 = vmatpush1.msra.mxu0 %v1175
      %1848 = vmatprep.subr.mxu0 %v1180
      %1849 = vmatpush1.msra.mxu0 %v1179
      %1850 = vmatprep.subr.mxu0 %v1184
      %1851 = vmatpush1.msra.mxu0 %v1183
      %1852 = vmatprep.subr.mxu0 0.0
      %1853 = vmatpush1.msra.mxu0 0.0
      %1854 = vmatprep.subr.mxu0 0.0
      %1855 = vmatpush1.msra.mxu0 0.0
      %1856 = vmatprep.subr.mxu0 0.0
      %1857 = vmatpush1.msra.mxu0 0.0
      %1858 = vmatprep.subr.mxu0 0.0
      %1859 = vmatpush1.msra.mxu0 0.0
      %1860 = vmatprep.subr.mxu0 0.0
      %1861 = vmatpush1.msra.mxu0 0.0
      %1862 = vmatprep.subr.mxu0 0.0
      %1863 = vmatpush1.msra.mxu0 0.0
      %1864 = vmatprep.subr.mxu0 0.0
      %1865 = vmatpush1.msra.mxu0 0.0
      %1866 = vmatprep.subr.mxu0 0.0
      %1867 = vmatpush1.msra.mxu0 0.0
      %1868 = vmatprep.subr.mxu0 0.0
      %1869 = vmatpush1.msra.mxu0 0.0
      %1870 = vmatprep.subr.mxu0 0.0
      %1871 = vmatpush1.msra.mxu0 0.0
      %1872 = vmatprep.subr.mxu0 0.0
      %1873 = vmatpush1.msra.mxu0 0.0
      %1874 = vmatprep.subr.mxu0 0.0
      %1875 = vmatpush1.msra.mxu0 0.0
      %1876 = vmatprep.subr.mxu0 0.0
      %1877 = vmatpush1.msra.mxu0 0.0
      %1878 = vmatprep.subr.mxu0 0.0
      %1879 = vmatpush1.msra.mxu0 0.0
      %1880 = vmatprep.subr.mxu0 0.0
      %1881 = vmatpush1.msra.mxu0 0.0
      %1882 = vmatprep.subr.mxu0 0.0
      %1883 = vmatpush1.msra.mxu0 0.0
      %1884 = vmatprep.mubr.f32.mxu0 0.0
      %1885 = vmatmul.mubr.f32.gmra.mrb[0].mxu0 %v1739
      %v1886 = vpop.f32.mrb[0].mxu0
      %v1887 = vadd.f32 0.0, %v1886
      %v1888 = vpop.f32.mrb[0].mxu0
      %v1889 = vadd.f32 0.0, %v1888
      %1890 = vdwg.mxu0
      %v1891 = vadd.f32 %v1742, %v1816
      %v1892 = vxor.u32 %v1891, 2147483648
      %v1893 = vmul.f32 %v1892, 1.442695
      %v1894 = vpow.pop %v1893
      %v1895 = vadd.f32 %v1894, 1.0
      %v1896 = vrcp.pop %v1895
      %v1897 = vmul.f32 1.0, %v1896
      %v1898 = vadd.f32 %v1743, %v1818
      %v1899 = vxor.u32 %v1898, 2147483648
      %v1900 = vmul.f32 %v1899, 1.442695
      %v1901 = vpow.pop %v1900
      %v1902 = vadd.f32 %v1901, 1.0
      %v1903 = vrcp.pop %v1902
      %v1904 = vmul.f32 1.0, %v1903
      %v1905 = vadd.f32 %v1746, %v1887
      %v1906 = vxor.u32 %v1905, 2147483648
      %v1907 = vmul.f32 %v1906, 1.442695
      %v1908 = vpow.pop %v1907
      %v1909 = vadd.f32 %v1908, 1.0
      %v1910 = vrcp.pop %v1909
      %v1911 = vmul.f32 1.0, %v1910
      %v1912 = vadd.f32 %v1747, %v1889
      %v1913 = vxor.u32 %v1912, 2147483648
      %v1914 = vmul.f32 %v1913, 1.442695
      %v1915 = vpow.pop %v1914
      %v1916 = vadd.f32 %v1915, 1.0
      %v1917 = vrcp.pop %v1916
      %v1918 = vmul.f32 1.0, %v1917
      %v1919 = vmul.f32 %v1904, %v1739
      %1920 = vmatprep.subr.mxu0 0.0
      %1921 = vmatpush1.msra.mxu0 %v1185
      %1922 = vmatprep.subr.mxu0 0.0
      %1923 = vmatpush1.msra.mxu0 %v1186
      %1924 = vmatprep.subr.mxu0 0.0
      %1925 = vmatpush1.msra.mxu0 %v1187
      %1926 = vmatprep.subr.mxu0 0.0
      %1927 = vmatpush1.msra.mxu0 %v1188
      %1928 = vmatprep.subr.mxu0 0.0
      %1929 = vmatpush1.msra.mxu0 %v1189
      %1930 = vmatprep.subr.mxu0 0.0
      %1931 = vmatpush1.msra.mxu0 %v1190
      %1932 = vmatprep.subr.mxu0 0.0
      %1933 = vmatpush1.msra.mxu0 %v1191
      %1934 = vmatprep.subr.mxu0 0.0
      %1935 = vmatpush1.msra.mxu0 %v1192
      %1936 = vmatprep.subr.mxu0 0.0
      %1937 = vmatpush1.msra.mxu0 %v1193
      %1938 = vmatprep.subr.mxu0 0.0
      %1939 = vmatpush1.msra.mxu0 %v1194
      %1940 = vmatprep.subr.mxu0 0.0
      %1941 = vmatpush1.msra.mxu0 %v1195
      %1942 = vmatprep.subr.mxu0 0.0
      %1943 = vmatpush1.msra.mxu0 %v1196
      %1944 = vmatprep.subr.mxu0 0.0
      %1945 = vmatpush1.msra.mxu0 %v1197
      %1946 = vmatprep.subr.mxu0 0.0
      %1947 = vmatpush1.msra.mxu0 %v1198
      %1948 = vmatprep.subr.mxu0 0.0
      %1949 = vmatpush1.msra.mxu0 %v1199
      %1950 = vmatprep.subr.mxu0 0.0
      %1951 = vmatpush1.msra.mxu0 %v1200
      %1952 = vmatprep.subr.mxu0 0.0
      %1953 = vmatpush1.msra.mxu0 0.0
      %1954 = vmatprep.subr.mxu0 0.0
      %1955 = vmatpush1.msra.mxu0 0.0
      %1956 = vmatprep.subr.mxu0 0.0
      %1957 = vmatpush1.msra.mxu0 0.0
      %1958 = vmatprep.subr.mxu0 0.0
      %1959 = vmatpush1.msra.mxu0 0.0
      %1960 = vmatprep.subr.mxu0 0.0
      %1961 = vmatpush1.msra.mxu0 0.0
      %1962 = vmatprep.subr.mxu0 0.0
      %1963 = vmatpush1.msra.mxu0 0.0
      %1964 = vmatprep.subr.mxu0 0.0
      %1965 = vmatpush1.msra.mxu0 0.0
      %1966 = vmatprep.subr.mxu0 0.0
      %1967 = vmatpush1.msra.mxu0 0.0
      %1968 = vmatprep.subr.mxu0 0.0
      %1969 = vmatpush1.msra.mxu0 0.0
      %1970 = vmatprep.subr.mxu0 0.0
      %1971 = vmatpush1.msra.mxu0 0.0
      %1972 = vmatprep.subr.mxu0 0.0
      %1973 = vmatpush1.msra.mxu0 0.0
      %1974 = vmatprep.subr.mxu0 0.0
      %1975 = vmatpush1.msra.mxu0 0.0
      %1976 = vmatprep.subr.mxu0 0.0
      %1977 = vmatpush1.msra.mxu0 0.0
      %1978 = vmatprep.subr.mxu0 0.0
      %1979 = vmatpush1.msra.mxu0 0.0
      %1980 = vmatprep.subr.mxu0 0.0
      %1981 = vmatpush1.msra.mxu0 0.0
      %1982 = vmatprep.subr.mxu0 0.0
      %1983 = vmatpush1.msra.mxu0 0.0
      %1984 = vmatprep.mubr.f32.mxu0 0.0
      %1985 = vmatmul.mubr.f32.gmra.mrb[0].mxu0 %v1919
      %v1986 = vpop.f32.mrb[0].mxu0
      %v1987 = vadd.f32 0.0, %v1986
      %v1988 = vpop.f32.mrb[0].mxu0
      %1989 = vdwg.mxu0
      %v1990 = vadd.f32 %v1744, %v1987
      %v1991 = vtanh.pop %v1990
      %v1992 = vmul.f32 %v1918, %v1739
      %1993 = vmatprep.subr.mxu0 0.0
      %1994 = vmatpush1.msra.mxu0 %v1202
      %1995 = vmatprep.subr.mxu0 0.0
      %1996 = vmatpush1.msra.mxu0 %v1203
      %1997 = vmatprep.subr.mxu0 0.0
      %1998 = vmatpush1.msra.mxu0 %v1204
      %1999 = vmatprep.subr.mxu0 0.0
      %2000 = vmatpush1.msra.mxu0 %v1205
      %2001 = vmatprep.subr.mxu0 0.0
      %2002 = vmatpush1.msra.mxu0 %v1206
      %2003 = vmatprep.subr.mxu0 0.0
      %2004 = vmatpush1.msra.mxu0 %v1207
      %2005 = vmatprep.subr.mxu0 0.0
      %2006 = vmatpush1.msra.mxu0 %v1208
      %2007 = vmatprep.subr.mxu0 0.0
      %2008 = vmatpush1.msra.mxu0 %v1209
      %2009 = vmatprep.subr.mxu0 0.0
      %2010 = vmatpush1.msra.mxu0 %v1210
      %2011 = vmatprep.subr.mxu0 0.0
      %2012 = vmatpush1.msra.mxu0 %v1211
      %2013 = vmatprep.subr.mxu0 0.0
      %2014 = vmatpush1.msra.mxu0 %v1212
      %2015 = vmatprep.subr.mxu0 0.0
      %2016 = vmatpush1.msra.mxu0 %v1213
      %2017 = vmatprep.subr.mxu0 0.0
      %2018 = vmatpush1.msra.mxu0 %v1214
      %2019 = vmatprep.subr.mxu0 0.0
      %2020 = vmatpush1.msra.mxu0 %v1215
      %2021 = vmatprep.subr.mxu0 0.0
      %2022 = vmatpush1.msra.mxu0 %v1216
      %2023 = vmatprep.subr.mxu0 0.0
      %2024 = vmatpush1.msra.mxu0 %v1217
      %2025 = vmatprep.subr.mxu0 0.0
      %2026 = vmatpush1.msra.mxu0 0.0
      %2027 = vmatprep.subr.mxu0 0.0
      %2028 = vmatpush1.msra.mxu0 0.0
      %2029 = vmatprep.subr.mxu0 0.0
      %2030 = vmatpush1.msra.mxu0 0.0
      %2031 = vmatprep.subr.mxu0 0.0
      %2032 = vmatpush1.msra.mxu0 0.0
      %2033 = vmatprep.subr.mxu0 0.0
      %2034 = vmatpush1.msra.mxu0 0.0
      %2035 = vmatprep.subr.mxu0 0.0
      %2036 = vmatpush1.msra.mxu0 0.0
      %2037 = vmatprep.subr.mxu0 0.0
      %2038 = vmatpush1.msra.mxu0 0.0
      %2039 = vmatprep.subr.mxu0 0.0
      %2040 = vmatpush1.msra.mxu0 0.0
      %2041 = vmatprep.subr.mxu0 0.0
      %2042 = vmatpush1.msra.mxu0 0.0
      %2043 = vmatprep.subr.mxu0 0.0
      %2044 = vmatpush1.msra.mxu0 0.0
      %2045 = vmatprep.subr.mxu0 0.0
      %2046 = vmatpush1.msra.mxu0 0.0
      %2047 = vmatprep.subr.mxu0 0.0
      %2048 = vmatpush1.msra.mxu0 0.0
      %2049 = vmatprep.subr.mxu0 0.0
      %2050 = vmatpush1.msra.mxu0 0.0
      %2051 = vmatprep.subr.mxu0 0.0
      %2052 = vmatpush1.msra.mxu0 0.0
      %2053 = vmatprep.subr.mxu0 0.0
      %2054 = vmatpush1.msra.mxu0 0.0
      %2055 = vmatprep.subr.mxu0 0.0
      %2056 = vmatpush1.msra.mxu0 0.0
      %2057 = vmatprep.mubr.f32.mxu0 0.0
      %2058 = vmatmul.mubr.f32.gmra.mrb[0].mxu0 %v1992
      %v2059 = vpop.f32.mrb[0].mxu0
      %v2060 = vadd.f32 0.0, %v2059
      %v2061 = vpop.f32.mrb[0].mxu0
      %2062 = vdwg.mxu0
      %v2063 = vadd.f32 %v1748, %v2060
      %v2064 = vtanh.pop %v2063
      %v2065 = vmul.f32 %v1897, %v1739
      %v2066 = vsub.f32 1.0, %v1897
      %v2067 = vmul.f32 %v2066, %v1991
      %v2068 = vadd.f32 %v2065, %v2067
      %v2069 = vmul.f32 %v1911, %v1739
      %v2070 = vsub.f32 1.0, %v1911
      %v2071 = vmul.f32 %v2070, %v2064
      %v2072 = vadd.f32 %v2069, %v2071
      %2073 = vmatprep.subr.mxu0 0.0
      %2074 = vmatpush1.msra.mxu0 %v1235
      %2075 = vmatprep.subr.mxu0 0.0
      %2076 = vmatpush1.msra.mxu0 %v1236
      %2077 = vmatprep.subr.mxu0 0.0
      %2078 = vmatpush1.msra.mxu0 %v1237
      %2079 = vmatprep.subr.mxu0 0.0
      %2080 = vmatpush1.msra.mxu0 %v1238
      %2081 = vmatprep.subr.mxu0 0.0
      %2082 = vmatpush1.msra.mxu0 %v1239
      %2083 = vmatprep.subr.mxu0 0.0
      %2084 = vmatpush1.msra.mxu0 %v1240
      %2085 = vmatprep.subr.mxu0 0.0
      %2086 = vmatpush1.msra.mxu0 %v1241
      %2087 = vmatprep.subr.mxu0 0.0
      %2088 = vmatpush1.msra.mxu0 %v1242
      %2089 = vmatprep.subr.mxu0 0.0
      %2090 = vmatpush1.msra.mxu0 %v1243
      %2091 = vmatprep.subr.mxu0 0.0
      %2092 = vmatpush1.msra.mxu0 %v1244
      %2093 = vmatprep.subr.mxu0 0.0
      %2094 = vmatpush1.msra.mxu0 %v1245
      %2095 = vmatprep.subr.mxu0 0.0
      %2096 = vmatpush1.msra.mxu0 %v1246
      %2097 = vmatprep.subr.mxu0 0.0
      %2098 = vmatpush1.msra.mxu0 %v1247
      %2099 = vmatprep.subr.mxu0 0.0
      %2100 = vmatpush1.msra.mxu0 %v1248
      %2101 = vmatprep.subr.mxu0 0.0
      %2102 = vmatpush1.msra.mxu0 %v1249
      %2103 = vmatprep.subr.mxu0 0.0
      %2104 = vmatpush1.msra.mxu0 %v1250
      %2105 = vmatprep.subr.mxu0 0.0
      %2106 = vmatpush1.msra.mxu0 0.0
      %2107 = vmatprep.subr.mxu0 0.0
      %2108 = vmatpush1.msra.mxu0 0.0
      %2109 = vmatprep.subr.mxu0 0.0
      %2110 = vmatpush1.msra.mxu0 0.0
      %2111 = vmatprep.subr.mxu0 0.0
      %2112 = vmatpush1.msra.mxu0 0.0
      %2113 = vmatprep.subr.mxu0 0.0
      %2114 = vmatpush1.msra.mxu0 0.0
      %2115 = vmatprep.subr.mxu0 0.0
      %2116 = vmatpush1.msra.mxu0 0.0
      %2117 = vmatprep.subr.mxu0 0.0
      %2118 = vmatpush1.msra.mxu0 0.0
      %2119 = vmatprep.subr.mxu0 0.0
      %2120 = vmatpush1.msra.mxu0 0.0
      %2121 = vmatprep.subr.mxu0 0.0
      %2122 = vmatpush1.msra.mxu0 0.0
      %2123 = vmatprep.subr.mxu0 0.0
      %2124 = vmatpush1.msra.mxu0 0.0
      %2125 = vmatprep.subr.mxu0 0.0
      %2126 = vmatpush1.msra.mxu0 0.0
      %2127 = vmatprep.subr.mxu0 0.0
      %2128 = vmatpush1.msra.mxu0 0.0
      %2129 = vmatprep.subr.mxu0 0.0
      %2130 = vmatpush1.msra.mxu0 0.0
      %2131 = vmatprep.subr.mxu0 0.0
      %2132 = vmatpush1.msra.mxu0 0.0
      %2133 = vmatprep.subr.mxu0 0.0
      %2134 = vmatpush1.msra.mxu0 0.0
      %2135 = vmatprep.subr.mxu0 0.0
      %2136 = vmatpush1.msra.mxu0 0.0
      %2137 = vmatprep.mubr.f32.mxu0 0.0
      %2138 = vmatmul.mubr.f32.gmra.mrb[0].mxu0 %v2072
      %v2139 = vpop.f32.mrb[0].mxu0
      %v2140 = vadd.f32 0.0, %v2139
      %v2141 = vpop.f32.mrb[0].mxu0
      %2142 = vdwg.mxu0
      %2143 = vmatprep.subr.mxu0 0.0
      %2144 = vmatpush1.msra.mxu0 %v1218
      %2145 = vmatprep.subr.mxu0 0.0
      %2146 = vmatpush1.msra.mxu0 %v1219
      %2147 = vmatprep.subr.mxu0 0.0
      %2148 = vmatpush1.msra.mxu0 %v1220
      %2149 = vmatprep.subr.mxu0 0.0
      %2150 = vmatpush1.msra.mxu0 %v1221
      %2151 = vmatprep.subr.mxu0 0.0
      %2152 = vmatpush1.msra.mxu0 %v1222
      %2153 = vmatprep.subr.mxu0 0.0
      %2154 = vmatpush1.msra.mxu0 %v1223
      %2155 = vmatprep.subr.mxu0 0.0
      %2156 = vmatpush1.msra.mxu0 %v1224
      %2157 = vmatprep.subr.mxu0 0.0
      %2158 = vmatpush1.msra.mxu0 %v1225
      %2159 = vmatprep.subr.mxu0 0.0
      %2160 = vmatpush1.msra.mxu0 %v1226
      %2161 = vmatprep.subr.mxu0 0.0
      %2162 = vmatpush1.msra.mxu0 %v1227
      %2163 = vmatprep.subr.mxu0 0.0
      %2164 = vmatpush1.msra.mxu0 %v1228
      %2165 = vmatprep.subr.mxu0 0.0
      %2166 = vmatpush1.msra.mxu0 %v1229
      %2167 = vmatprep.subr.mxu0 0.0
      %2168 = vmatpush1.msra.mxu0 %v1230
      %2169 = vmatprep.subr.mxu0 0.0
      %2170 = vmatpush1.msra.mxu0 %v1231
      %2171 = vmatprep.subr.mxu0 0.0
      %2172 = vmatpush1.msra.mxu0 %v1232
      %2173 = vmatprep.subr.mxu0 0.0
      %2174 = vmatpush1.msra.mxu0 %v1233
      %2175 = vmatprep.subr.mxu0 0.0
      %2176 = vmatpush1.msra.mxu0 0.0
      %2177 = vmatprep.subr.mxu0 0.0
      %2178 = vmatpush1.msra.mxu0 0.0
      %2179 = vmatprep.subr.mxu0 0.0
      %2180 = vmatpush1.msra.mxu0 0.0
      %2181 = vmatprep.subr.mxu0 0.0
      %2182 = vmatpush1.msra.mxu0 0.0
      %2183 = vmatprep.subr.mxu0 0.0
      %2184 = vmatpush1.msra.mxu0 0.0
      %2185 = vmatprep.subr.mxu0 0.0
      %2186 = vmatpush1.msra.mxu0 0.0
      %2187 = vmatprep.subr.mxu0 0.0
      %2188 = vmatpush1.msra.mxu0 0.0
      %2189 = vmatprep.subr.mxu0 0.0
      %2190 = vmatpush1.msra.mxu0 0.0
      %2191 = vmatprep.subr.mxu0 0.0
      %2192 = vmatpush1.msra.mxu0 0.0
      %2193 = vmatprep.subr.mxu0 0.0
      %2194 = vmatpush1.msra.mxu0 0.0
      %2195 = vmatprep.subr.mxu0 0.0
      %2196 = vmatpush1.msra.mxu0 0.0
      %2197 = vmatprep.subr.mxu0 0.0
      %2198 = vmatpush1.msra.mxu0 0.0
      %2199 = vmatprep.subr.mxu0 0.0
      %2200 = vmatpush1.msra.mxu0 0.0
      %2201 = vmatprep.subr.mxu0 0.0
      %2202 = vmatpush1.msra.mxu0 0.0
      %2203 = vmatprep.subr.mxu0 0.0
      %2204 = vmatpush1.msra.mxu0 0.0
      %2205 = vmatprep.subr.mxu0 0.0
      %2206 = vmatpush1.msra.mxu0 0.0
      %2207 = vmatprep.mubr.f32.mxu0 0.0
      %2208 = vmatmul.mubr.f32.gmra.mrb[0].mxu0 %v2068
      %v2209 = vpop.f32.mrb[0].mxu0
      %v2210 = vadd.f32 %v2140, %v2209
      %v2211 = vpop.f32.mrb[0].mxu0
      %2212 = vdwg.mxu0
      %v2213 = vadd.f32 %v2210, %v1256
      %v2214 = vxor.u32 %v2213, 2147483648
      %v2215 = vmul.f32 %v2214, 1.442695
      %v2216 = vpow.pop %v2215
      %v2217 = vadd.f32 %v2216, 1.0
      %v2218 = vrcp.pop %v2217
      %v2219 = vmul.f32 1.0, %v2218
      %v2220 = vmul.f32 %v2219, %v2068
      %v2221 = vsub.f32 1.0, %v2219
      %v2222 = vmul.f32 %v2221, %v2072
      %v2223 = vadd.f32 %v2220, %v2222
      %s2224 = scalar_lea.vmem %s503, 8
      %2225 = vst [vmem:[%s2224] sm:$0xff] %v2223
      %s2226 = scalar_lea.vmem [#allocation3], 48
      %v2227 = vld [vmem:[%s2226] sm:$0xff]
      %v2228 = vld [vmem:[%s2226 + $0x8] sm:$0xff]
      %v2229 = vld [vmem:[%s2226 + $0x10] sm:$0xff]
      %s2230 = scalar_lea.vmem [#allocation4], 48
      %v2231 = vld [vmem:[%s2230] sm:$0xff]
      %v2232 = vld [vmem:[%s2230 + $0x8] sm:$0xff]
      %v2233 = vld [vmem:[%s2230 + $0x10] sm:$0xff]
      %2234 = vmatprep.subr.mxu0 %v1122
      %2235 = vmatpush1.msra.mxu0 %v1121
      %2236 = vmatprep.subr.mxu0 %v1126
      %2237 = vmatpush1.msra.mxu0 %v1125
      %2238 = vmatprep.subr.mxu0 %v1130
      %2239 = vmatpush1.msra.mxu0 %v1129
      %2240 = vmatprep.subr.mxu0 %v1134
      %2241 = vmatpush1.msra.mxu0 %v1133
      %2242 = vmatprep.subr.mxu0 %v1138
      %2243 = vmatpush1.msra.mxu0 %v1137
      %2244 = vmatprep.subr.mxu0 %v1142
      %2245 = vmatpush1.msra.mxu0 %v1141
      %2246 = vmatprep.subr.mxu0 %v1146
      %2247 = vmatpush1.msra.mxu0 %v1145
      %2248 = vmatprep.subr.mxu0 %v1150
      %2249 = vmatpush1.msra.mxu0 %v1149
      %2250 = vmatprep.subr.mxu0 %v1154
      %2251 = vmatpush1.msra.mxu0 %v1153
      %2252 = vmatprep.subr.mxu0 %v1158
      %2253 = vmatpush1.msra.mxu0 %v1157
      %2254 = vmatprep.subr.mxu0 %v1162
      %2255 = vmatpush1.msra.mxu0 %v1161
      %2256 = vmatprep.subr.mxu0 %v1166
      %2257 = vmatpush1.msra.mxu0 %v1165
      %2258 = vmatprep.subr.mxu0 %v1170
      %2259 = vmatpush1.msra.mxu0 %v1169
      %2260 = vmatprep.subr.mxu0 %v1174
      %2261 = vmatpush1.msra.mxu0 %v1173
      %2262 = vmatprep.subr.mxu0 %v1178
      %2263 = vmatpush1.msra.mxu0 %v1177
      %2264 = vmatprep.subr.mxu0 %v1182
      %2265 = vmatpush1.msra.mxu0 %v1181
      %2266 = vmatprep.subr.mxu0 0.0
      %2267 = vmatpush1.msra.mxu0 0.0
      %2268 = vmatprep.subr.mxu0 0.0
      %2269 = vmatpush1.msra.mxu0 0.0
      %2270 = vmatprep.subr.mxu0 0.0
      %2271 = vmatpush1.msra.mxu0 0.0
      %2272 = vmatprep.subr.mxu0 0.0
      %2273 = vmatpush1.msra.mxu0 0.0
      %2274 = vmatprep.subr.mxu0 0.0
      %2275 = vmatpush1.msra.mxu0 0.0
      %2276 = vmatprep.subr.mxu0 0.0
      %2277 = vmatpush1.msra.mxu0 0.0
      %2278 = vmatprep.subr.mxu0 0.0
      %2279 = vmatpush1.msra.mxu0 0.0
      %2280 = vmatprep.subr.mxu0 0.0
      %2281 = vmatpush1.msra.mxu0 0.0
      %2282 = vmatprep.subr.mxu0 0.0
      %2283 = vmatpush1.msra.mxu0 0.0
      %2284 = vmatprep.subr.mxu0 0.0
      %2285 = vmatpush1.msra.mxu0 0.0
      %2286 = vmatprep.subr.mxu0 0.0
      %2287 = vmatpush1.msra.mxu0 0.0
      %2288 = vmatprep.subr.mxu0 0.0
      %2289 = vmatpush1.msra.mxu0 0.0
      %2290 = vmatprep.subr.mxu0 0.0
      %2291 = vmatpush1.msra.mxu0 0.0
      %2292 = vmatprep.subr.mxu0 0.0
      %2293 = vmatpush1.msra.mxu0 0.0
      %2294 = vmatprep.subr.mxu0 0.0
      %2295 = vmatpush1.msra.mxu0 0.0
      %2296 = vmatprep.subr.mxu0 0.0
      %2297 = vmatpush1.msra.mxu0 0.0
      %2298 = vmatprep.mubr.f32.mxu0 0.0
      %2299 = vmatmul.mubr.f32.gmra.mrb[0].mxu0 %v2223
      %v2300 = vpop.f32.mrb[0].mxu0
      %v2301 = vadd.f32 0.0, %v2300
      %v2302 = vpop.f32.mrb[0].mxu0
      %v2303 = vadd.f32 0.0, %v2302
      %2304 = vdwg.mxu0
      %2305 = vmatprep.subr.mxu0 %v1124
      %2306 = vmatpush1.msra.mxu0 %v1123
      %2307 = vmatprep.subr.mxu0 %v1128
      %2308 = vmatpush1.msra.mxu0 %v1127
      %2309 = vmatprep.subr.mxu0 %v1132
      %2310 = vmatpush1.msra.mxu0 %v1131
      %2311 = vmatprep.subr.mxu0 %v1136
      %2312 = vmatpush1.msra.mxu0 %v1135
      %2313 = vmatprep.subr.mxu0 %v1140
      %2314 = vmatpush1.msra.mxu0 %v1139
      %2315 = vmatprep.subr.mxu0 %v1144
      %2316 = vmatpush1.msra.mxu0 %v1143
      %2317 = vmatprep.subr.mxu0 %v1148
      %2318 = vmatpush1.msra.mxu0 %v1147
      %2319 = vmatprep.subr.mxu0 %v1152
      %2320 = vmatpush1.msra.mxu0 %v1151
      %2321 = vmatprep.subr.mxu0 %v1156
      %2322 = vmatpush1.msra.mxu0 %v1155
      %2323 = vmatprep.subr.mxu0 %v1160
      %2324 = vmatpush1.msra.mxu0 %v1159
      %2325 = vmatprep.subr.mxu0 %v1164
      %2326 = vmatpush1.msra.mxu0 %v1163
      %2327 = vmatprep.subr.mxu0 %v1168
      %2328 = vmatpush1.msra.mxu0 %v1167
      %2329 = vmatprep.subr.mxu0 %v1172
      %2330 = vmatpush1.msra.mxu0 %v1171
      %2331 = vmatprep.subr.mxu0 %v1176
      %2332 = vmatpush1.msra.mxu0 %v1175
      %2333 = vmatprep.subr.mxu0 %v1180
      %2334 = vmatpush1.msra.mxu0 %v1179
      %2335 = vmatprep.subr.mxu0 %v1184
      %2336 = vmatpush1.msra.mxu0 %v1183
      %2337 = vmatprep.subr.mxu0 0.0
      %2338 = vmatpush1.msra.mxu0 0.0
      %2339 = vmatprep.subr.mxu0 0.0
      %2340 = vmatpush1.msra.mxu0 0.0
      %2341 = vmatprep.subr.mxu0 0.0
      %2342 = vmatpush1.msra.mxu0 0.0
      %2343 = vmatprep.subr.mxu0 0.0
      %2344 = vmatpush1.msra.mxu0 0.0
      %2345 = vmatprep.subr.mxu0 0.0
      %2346 = vmatpush1.msra.mxu0 0.0
      %2347 = vmatprep.subr.mxu0 0.0
      %2348 = vmatpush1.msra.mxu0 0.0
      %2349 = vmatprep.subr.mxu0 0.0
      %2350 = vmatpush1.msra.mxu0 0.0
      %2351 = vmatprep.subr.mxu0 0.0
      %2352 = vmatpush1.msra.mxu0 0.0
      %2353 = vmatprep.subr.mxu0 0.0
      %2354 = vmatpush1.msra.mxu0 0.0
      %2355 = vmatprep.subr.mxu0 0.0
      %2356 = vmatpush1.msra.mxu0 0.0
      %2357 = vmatprep.subr.mxu0 0.0
      %2358 = vmatpush1.msra.mxu0 0.0
      %2359 = vmatprep.subr.mxu0 0.0
      %2360 = vmatpush1.msra.mxu0 0.0
      %2361 = vmatprep.subr.mxu0 0.0
      %2362 = vmatpush1.msra.mxu0 0.0
      %2363 = vmatprep.subr.mxu0 0.0
      %2364 = vmatpush1.msra.mxu0 0.0
      %2365 = vmatprep.subr.mxu0 0.0
      %2366 = vmatpush1.msra.mxu0 0.0
      %2367 = vmatprep.subr.mxu0 0.0
      %2368 = vmatpush1.msra.mxu0 0.0
      %2369 = vmatprep.mubr.f32.mxu0 0.0
      %2370 = vmatmul.mubr.f32.gmra.mrb[0].mxu0 %v2223
      %v2371 = vpop.f32.mrb[0].mxu0
      %v2372 = vadd.f32 0.0, %v2371
      %v2373 = vpop.f32.mrb[0].mxu0
      %v2374 = vadd.f32 0.0, %v2373
      %2375 = vdwg.mxu0
      %v2376 = vadd.f32 %v2227, %v2301
      %v2377 = vxor.u32 %v2376, 2147483648
      %v2378 = vmul.f32 %v2377, 1.442695
      %v2379 = vpow.pop %v2378
      %v2380 = vadd.f32 %v2379, 1.0
      %v2381 = vrcp.pop %v2380
      %v2382 = vmul.f32 1.0, %v2381
      %v2383 = vadd.f32 %v2228, %v2303
      %v2384 = vxor.u32 %v2383, 2147483648
      %v2385 = vmul.f32 %v2384, 1.442695
      %v2386 = vpow.pop %v2385
      %v2387 = vadd.f32 %v2386, 1.0
      %v2388 = vrcp.pop %v2387
      %v2389 = vmul.f32 1.0, %v2388
      %v2390 = vadd.f32 %v2231, %v2372
      %v2391 = vxor.u32 %v2390, 2147483648
      %v2392 = vmul.f32 %v2391, 1.442695
      %v2393 = vpow.pop %v2392
      %v2394 = vadd.f32 %v2393, 1.0
      %v2395 = vrcp.pop %v2394
      %v2396 = vmul.f32 1.0, %v2395
      %v2397 = vadd.f32 %v2232, %v2374
      %v2398 = vxor.u32 %v2397, 2147483648
      %v2399 = vmul.f32 %v2398, 1.442695
      %v2400 = vpow.pop %v2399
      %v2401 = vadd.f32 %v2400, 1.0
      %v2402 = vrcp.pop %v2401
      %v2403 = vmul.f32 1.0, %v2402
      %v2404 = vmul.f32 %v2389, %v2223
      %2405 = vmatprep.subr.mxu0 0.0
      %2406 = vmatpush1.msra.mxu0 %v1185
      %2407 = vmatprep.subr.mxu0 0.0
      %2408 = vmatpush1.msra.mxu0 %v1186
      %2409 = vmatprep.subr.mxu0 0.0
      %2410 = vmatpush1.msra.mxu0 %v1187
      %2411 = vmatprep.subr.mxu0 0.0
      %2412 = vmatpush1.msra.mxu0 %v1188
      %2413 = vmatprep.subr.mxu0 0.0
      %2414 = vmatpush1.msra.mxu0 %v1189
      %2415 = vmatprep.subr.mxu0 0.0
      %2416 = vmatpush1.msra.mxu0 %v1190
      %2417 = vmatprep.subr.mxu0 0.0
      %2418 = vmatpush1.msra.mxu0 %v1191
      %2419 = vmatprep.subr.mxu0 0.0
      %2420 = vmatpush1.msra.mxu0 %v1192
      %2421 = vmatprep.subr.mxu0 0.0
      %2422 = vmatpush1.msra.mxu0 %v1193
      %2423 = vmatprep.subr.mxu0 0.0
      %2424 = vmatpush1.msra.mxu0 %v1194
      %2425 = vmatprep.subr.mxu0 0.0
      %2426 = vmatpush1.msra.mxu0 %v1195
      %2427 = vmatprep.subr.mxu0 0.0
      %2428 = vmatpush1.msra.mxu0 %v1196
      %2429 = vmatprep.subr.mxu0 0.0
      %2430 = vmatpush1.msra.mxu0 %v1197
      %2431 = vmatprep.subr.mxu0 0.0
      %2432 = vmatpush1.msra.mxu0 %v1198
      %2433 = vmatprep.subr.mxu0 0.0
      %2434 = vmatpush1.msra.mxu0 %v1199
      %2435 = vmatprep.subr.mxu0 0.0
      %2436 = vmatpush1.msra.mxu0 %v1200
      %2437 = vmatprep.subr.mxu0 0.0
      %2438 = vmatpush1.msra.mxu0 0.0
      %2439 = vmatprep.subr.mxu0 0.0
      %2440 = vmatpush1.msra.mxu0 0.0
      %2441 = vmatprep.subr.mxu0 0.0
      %2442 = vmatpush1.msra.mxu0 0.0
      %2443 = vmatprep.subr.mxu0 0.0
      %2444 = vmatpush1.msra.mxu0 0.0
      %2445 = vmatprep.subr.mxu0 0.0
      %2446 = vmatpush1.msra.mxu0 0.0
      %2447 = vmatprep.subr.mxu0 0.0
      %2448 = vmatpush1.msra.mxu0 0.0
      %2449 = vmatprep.subr.mxu0 0.0
      %2450 = vmatpush1.msra.mxu0 0.0
      %2451 = vmatprep.subr.mxu0 0.0
      %2452 = vmatpush1.msra.mxu0 0.0
      %2453 = vmatprep.subr.mxu0 0.0
      %2454 = vmatpush1.msra.mxu0 0.0
      %2455 = vmatprep.subr.mxu0 0.0
      %2456 = vmatpush1.msra.mxu0 0.0
      %2457 = vmatprep.subr.mxu0 0.0
      %2458 = vmatpush1.msra.mxu0 0.0
      %2459 = vmatprep.subr.mxu0 0.0
      %2460 = vmatpush1.msra.mxu0 0.0
      %2461 = vmatprep.subr.mxu0 0.0
      %2462 = vmatpush1.msra.mxu0 0.0
      %2463 = vmatprep.subr.mxu0 0.0
      %2464 = vmatpush1.msra.mxu0 0.0
      %2465 = vmatprep.subr.mxu0 0.0
      %2466 = vmatpush1.msra.mxu0 0.0
      %2467 = vmatprep.subr.mxu0 0.0
      %2468 = vmatpush1.msra.mxu0 0.0
      %2469 = vmatprep.mubr.f32.mxu0 0.0
      %2470 = vmatmul.mubr.f32.gmra.mrb[0].mxu0 %v2404
      %v2471 = vpop.f32.mrb[0].mxu0
      %v2472 = vadd.f32 0.0, %v2471
      %v2473 = vpop.f32.mrb[0].mxu0
      %2474 = vdwg.mxu0
      %v2475 = vadd.f32 %v2229, %v2472
      %v2476 = vtanh.pop %v2475
      %v2477 = vmul.f32 %v2403, %v2223
      %2478 = vmatprep.subr.mxu0 0.0
      %2479 = vmatpush1.msra.mxu0 %v1202
      %2480 = vmatprep.subr.mxu0 0.0
      %2481 = vmatpush1.msra.mxu0 %v1203
      %2482 = vmatprep.subr.mxu0 0.0
      %2483 = vmatpush1.msra.mxu0 %v1204
      %2484 = vmatprep.subr.mxu0 0.0
      %2485 = vmatpush1.msra.mxu0 %v1205
      %2486 = vmatprep.subr.mxu0 0.0
      %2487 = vmatpush1.msra.mxu0 %v1206
      %2488 = vmatprep.subr.mxu0 0.0
      %2489 = vmatpush1.msra.mxu0 %v1207
      %2490 = vmatprep.subr.mxu0 0.0
      %2491 = vmatpush1.msra.mxu0 %v1208
      %2492 = vmatprep.subr.mxu0 0.0
      %2493 = vmatpush1.msra.mxu0 %v1209
      %2494 = vmatprep.subr.mxu0 0.0
      %2495 = vmatpush1.msra.mxu0 %v1210
      %2496 = vmatprep.subr.mxu0 0.0
      %2497 = vmatpush1.msra.mxu0 %v1211
      %2498 = vmatprep.subr.mxu0 0.0
      %2499 = vmatpush1.msra.mxu0 %v1212
      %2500 = vmatprep.subr.mxu0 0.0
      %2501 = vmatpush1.msra.mxu0 %v1213
      %2502 = vmatprep.subr.mxu0 0.0
      %2503 = vmatpush1.msra.mxu0 %v1214
      %2504 = vmatprep.subr.mxu0 0.0
      %2505 = vmatpush1.msra.mxu0 %v1215
      %2506 = vmatprep.subr.mxu0 0.0
      %2507 = vmatpush1.msra.mxu0 %v1216
      %2508 = vmatprep.subr.mxu0 0.0
      %2509 = vmatpush1.msra.mxu0 %v1217
      %2510 = vmatprep.subr.mxu0 0.0
      %2511 = vmatpush1.msra.mxu0 0.0
      %2512 = vmatprep.subr.mxu0 0.0
      %2513 = vmatpush1.msra.mxu0 0.0
      %2514 = vmatprep.subr.mxu0 0.0
      %2515 = vmatpush1.msra.mxu0 0.0
      %2516 = vmatprep.subr.mxu0 0.0
      %2517 = vmatpush1.msra.mxu0 0.0
      %2518 = vmatprep.subr.mxu0 0.0
      %2519 = vmatpush1.msra.mxu0 0.0
      %2520 = vmatprep.subr.mxu0 0.0
      %2521 = vmatpush1.msra.mxu0 0.0
      %2522 = vmatprep.subr.mxu0 0.0
      %2523 = vmatpush1.msra.mxu0 0.0
      %2524 = vmatprep.subr.mxu0 0.0
      %2525 = vmatpush1.msra.mxu0 0.0
      %2526 = vmatprep.subr.mxu0 0.0
      %2527 = vmatpush1.msra.mxu0 0.0
      %2528 = vmatprep.subr.mxu0 0.0
      %2529 = vmatpush1.msra.mxu0 0.0
      %2530 = vmatprep.subr.mxu0 0.0
      %2531 = vmatpush1.msra.mxu0 0.0
      %2532 = vmatprep.subr.mxu0 0.0
      %2533 = vmatpush1.msra.mxu0 0.0
      %2534 = vmatprep.subr.mxu0 0.0
      %2535 = vmatpush1.msra.mxu0 0.0
      %2536 = vmatprep.subr.mxu0 0.0
      %2537 = vmatpush1.msra.mxu0 0.0
      %2538 = vmatprep.subr.mxu0 0.0
      %2539 = vmatpush1.msra.mxu0 0.0
      %2540 = vmatprep.subr.mxu0 0.0
      %2541 = vmatpush1.msra.mxu0 0.0
      %2542 = vmatprep.mubr.f32.mxu0 0.0
      %2543 = vmatmul.mubr.f32.gmra.mrb[0].mxu0 %v2477
      %v2544 = vpop.f32.mrb[0].mxu0
      %v2545 = vadd.f32 0.0, %v2544
      %v2546 = vpop.f32.mrb[0].mxu0
      %2547 = vdwg.mxu0
      %v2548 = vadd.f32 %v2233, %v2545
      %v2549 = vtanh.pop %v2548
      %v2550 = vmul.f32 %v2382, %v2223
      %v2551 = vsub.f32 1.0, %v2382
      %v2552 = vmul.f32 %v2551, %v2476
      %v2553 = vadd.f32 %v2550, %v2552
      %v2554 = vmul.f32 %v2396, %v2223
      %v2555 = vsub.f32 1.0, %v2396
      %v2556 = vmul.f32 %v2555, %v2549
      %v2557 = vadd.f32 %v2554, %v2556
      %2558 = vmatprep.subr.mxu0 0.0
      %2559 = vmatpush1.msra.mxu0 %v1235
      %2560 = vmatprep.subr.mxu0 0.0
      %2561 = vmatpush1.msra.mxu0 %v1236
      %2562 = vmatprep.subr.mxu0 0.0
      %2563 = vmatpush1.msra.mxu0 %v1237
      %2564 = vmatprep.subr.mxu0 0.0
      %2565 = vmatpush1.msra.mxu0 %v1238
      %2566 = vmatprep.subr.mxu0 0.0
      %2567 = vmatpush1.msra.mxu0 %v1239
      %2568 = vmatprep.subr.mxu0 0.0
      %2569 = vmatpush1.msra.mxu0 %v1240
      %2570 = vmatprep.subr.mxu0 0.0
      %2571 = vmatpush1.msra.mxu0 %v1241
      %2572 = vmatprep.subr.mxu0 0.0
      %2573 = vmatpush1.msra.mxu0 %v1242
      %2574 = vmatprep.subr.mxu0 0.0
      %2575 = vmatpush1.msra.mxu0 %v1243
      %2576 = vmatprep.subr.mxu0 0.0
      %2577 = vmatpush1.msra.mxu0 %v1244
      %2578 = vmatprep.subr.mxu0 0.0
      %2579 = vmatpush1.msra.mxu0 %v1245
      %2580 = vmatprep.subr.mxu0 0.0
      %2581 = vmatpush1.msra.mxu0 %v1246
      %2582 = vmatprep.subr.mxu0 0.0
      %2583 = vmatpush1.msra.mxu0 %v1247
      %2584 = vmatprep.subr.mxu0 0.0
      %2585 = vmatpush1.msra.mxu0 %v1248
      %2586 = vmatprep.subr.mxu0 0.0
      %2587 = vmatpush1.msra.mxu0 %v1249
      %2588 = vmatprep.subr.mxu0 0.0
      %2589 = vmatpush1.msra.mxu0 %v1250
      %2590 = vmatprep.subr.mxu0 0.0
      %2591 = vmatpush1.msra.mxu0 0.0
      %2592 = vmatprep.subr.mxu0 0.0
      %2593 = vmatpush1.msra.mxu0 0.0
      %2594 = vmatprep.subr.mxu0 0.0
      %2595 = vmatpush1.msra.mxu0 0.0
      %2596 = vmatprep.subr.mxu0 0.0
      %2597 = vmatpush1.msra.mxu0 0.0
      %2598 = vmatprep.subr.mxu0 0.0
      %2599 = vmatpush1.msra.mxu0 0.0
      %2600 = vmatprep.subr.mxu0 0.0
      %2601 = vmatpush1.msra.mxu0 0.0
      %2602 = vmatprep.subr.mxu0 0.0
      %2603 = vmatpush1.msra.mxu0 0.0
      %2604 = vmatprep.subr.mxu0 0.0
      %2605 = vmatpush1.msra.mxu0 0.0
      %2606 = vmatprep.subr.mxu0 0.0
      %2607 = vmatpush1.msra.mxu0 0.0
      %2608 = vmatprep.subr.mxu0 0.0
      %2609 = vmatpush1.msra.mxu0 0.0
      %2610 = vmatprep.subr.mxu0 0.0
      %2611 = vmatpush1.msra.mxu0 0.0
      %2612 = vmatprep.subr.mxu0 0.0
      %2613 = vmatpush1.msra.mxu0 0.0
      %2614 = vmatprep.subr.mxu0 0.0
      %2615 = vmatpush1.msra.mxu0 0.0
      %2616 = vmatprep.subr.mxu0 0.0
      %2617 = vmatpush1.msra.mxu0 0.0
      %2618 = vmatprep.subr.mxu0 0.0
      %2619 = vmatpush1.msra.mxu0 0.0
      %2620 = vmatprep.subr.mxu0 0.0
      %2621 = vmatpush1.msra.mxu0 0.0
      %2622 = vmatprep.mubr.f32.mxu0 0.0
      %2623 = vmatmul.mubr.f32.gmra.mrb[0].mxu0 %v2557
      %v2624 = vpop.f32.mrb[0].mxu0
      %v2625 = vadd.f32 0.0, %v2624
      %v2626 = vpop.f32.mrb[0].mxu0
      %2627 = vdwg.mxu0
      %2628 = vmatprep.subr.mxu0 0.0
      %2629 = vmatpush1.msra.mxu0 %v1218
      %2630 = vmatprep.subr.mxu0 0.0
      %2631 = vmatpush1.msra.mxu0 %v1219
      %2632 = vmatprep.subr.mxu0 0.0
      %2633 = vmatpush1.msra.mxu0 %v1220
      %2634 = vmatprep.subr.mxu0 0.0
      %2635 = vmatpush1.msra.mxu0 %v1221
      %2636 = vmatprep.subr.mxu0 0.0
      %2637 = vmatpush1.msra.mxu0 %v1222
      %2638 = vmatprep.subr.mxu0 0.0
      %2639 = vmatpush1.msra.mxu0 %v1223
      %2640 = vmatprep.subr.mxu0 0.0
      %2641 = vmatpush1.msra.mxu0 %v1224
      %2642 = vmatprep.subr.mxu0 0.0
      %2643 = vmatpush1.msra.mxu0 %v1225
      %2644 = vmatprep.subr.mxu0 0.0
      %2645 = vmatpush1.msra.mxu0 %v1226
      %2646 = vmatprep.subr.mxu0 0.0
      %2647 = vmatpush1.msra.mxu0 %v1227
      %2648 = vmatprep.subr.mxu0 0.0
      %2649 = vmatpush1.msra.mxu0 %v1228
      %2650 = vmatprep.subr.mxu0 0.0
      %2651 = vmatpush1.msra.mxu0 %v1229
      %2652 = vmatprep.subr.mxu0 0.0
      %2653 = vmatpush1.msra.mxu0 %v1230
      %2654 = vmatprep.subr.mxu0 0.0
      %2655 = vmatpush1.msra.mxu0 %v1231
      %2656 = vmatprep.subr.mxu0 0.0
      %2657 = vmatpush1.msra.mxu0 %v1232
      %2658 = vmatprep.subr.mxu0 0.0
      %2659 = vmatpush1.msra.mxu0 %v1233
      %2660 = vmatprep.subr.mxu0 0.0
      %2661 = vmatpush1.msra.mxu0 0.0
      %2662 = vmatprep.subr.mxu0 0.0
      %2663 = vmatpush1.msra.mxu0 0.0
      %2664 = vmatprep.subr.mxu0 0.0
      %2665 = vmatpush1.msra.mxu0 0.0
      %2666 = vmatprep.subr.mxu0 0.0
      %2667 = vmatpush1.msra.mxu0 0.0
      %2668 = vmatprep.subr.mxu0 0.0
      %2669 = vmatpush1.msra.mxu0 0.0
      %2670 = vmatprep.subr.mxu0 0.0
      %2671 = vmatpush1.msra.mxu0 0.0
      %2672 = vmatprep.subr.mxu0 0.0
      %2673 = vmatpush1.msra.mxu0 0.0
      %2674 = vmatprep.subr.mxu0 0.0
      %2675 = vmatpush1.msra.mxu0 0.0
      %2676 = vmatprep.subr.mxu0 0.0
      %2677 = vmatpush1.msra.mxu0 0.0
      %2678 = vmatprep.subr.mxu0 0.0
      %2679 = vmatpush1.msra.mxu0 0.0
      %2680 = vmatprep.subr.mxu0 0.0
      %2681 = vmatpush1.msra.mxu0 0.0
      %2682 = vmatprep.subr.mxu0 0.0
      %2683 = vmatpush1.msra.mxu0 0.0
      %2684 = vmatprep.subr.mxu0 0.0
      %2685 = vmatpush1.msra.mxu0 0.0
      %2686 = vmatprep.subr.mxu0 0.0
      %2687 = vmatpush1.msra.mxu0 0.0
      %2688 = vmatprep.subr.mxu0 0.0
      %2689 = vmatpush1.msra.mxu0 0.0
      %2690 = vmatprep.subr.mxu0 0.0
      %2691 = vmatpush1.msra.mxu0 0.0
      %2692 = vmatprep.mubr.f32.mxu0 0.0
      %2693 = vmatmul.mubr.f32.gmra.mrb[0].mxu0 %v2553
      %v2694 = vpop.f32.mrb[0].mxu0
      %v2695 = vadd.f32 %v2625, %v2694
      %v2696 = vpop.f32.mrb[0].mxu0
      %2697 = vdwg.mxu0
      %v2698 = vadd.f32 %v2695, %v1256
      %v2699 = vxor.u32 %v2698, 2147483648
      %v2700 = vmul.f32 %v2699, 1.442695
      %v2701 = vpow.pop %v2700
      %v2702 = vadd.f32 %v2701, 1.0
      %v2703 = vrcp.pop %v2702
      %v2704 = vmul.f32 1.0, %v2703
      %v2705 = vmul.f32 %v2704, %v2553
      %v2706 = vsub.f32 1.0, %v2704
      %v2707 = vmul.f32 %v2706, %v2557
      %v2708 = vadd.f32 %v2705, %v2707
      %s2709 = scalar_lea.vmem %s503, 16
      %2710 = vst [vmem:[%s2709] sm:$0xff] %v2708
      %s2711 = scalar_lea.vmem [#allocation3], 72
      %v2712 = vld [vmem:[%s2711] sm:$0xff]
      %v2713 = vld [vmem:[%s2711 + $0x8] sm:$0xff]
      %v2714 = vld [vmem:[%s2711 + $0x10] sm:$0xff]
      %s2715 = scalar_lea.vmem [#allocation4], 72
      %v2716 = vld [vmem:[%s2715] sm:$0xff]
      %v2717 = vld [vmem:[%s2715 + $0x8] sm:$0xff]
      %v2718 = vld [vmem:[%s2715 + $0x10] sm:$0xff]
      %2719 = vmatprep.subr.mxu0 %v1122
      %2720 = vmatpush1.msra.mxu0 %v1121
      %2721 = vmatprep.subr.mxu0 %v1126
      %2722 = vmatpush1.msra.mxu0 %v1125
      %2723 = vmatprep.subr.mxu0 %v1130
      %2724 = vmatpush1.msra.mxu0 %v1129
      %2725 = vmatprep.subr.mxu0 %v1134
      %2726 = vmatpush1.msra.mxu0 %v1133
      %2727 = vmatprep.subr.mxu0 %v1138
      %2728 = vmatpush1.msra.mxu0 %v1137
      %2729 = vmatprep.subr.mxu0 %v1142
      %2730 = vmatpush1.msra.mxu0 %v1141
      %2731 = vmatprep.subr.mxu0 %v1146
      %2732 = vmatpush1.msra.mxu0 %v1145
      %2733 = vmatprep.subr.mxu0 %v1150
      %2734 = vmatpush1.msra.mxu0 %v1149
      %2735 = vmatprep.subr.mxu0 %v1154
      %2736 = vmatpush1.msra.mxu0 %v1153
      %2737 = vmatprep.subr.mxu0 %v1158
      %2738 = vmatpush1.msra.mxu0 %v1157
      %2739 = vmatprep.subr.mxu0 %v1162
      %2740 = vmatpush1.msra.mxu0 %v1161
      %2741 = vmatprep.subr.mxu0 %v1166
      %2742 = vmatpush1.msra.mxu0 %v1165
      %2743 = vmatprep.subr.mxu0 %v1170
      %2744 = vmatpush1.msra.mxu0 %v1169
      %2745 = vmatprep.subr.mxu0 %v1174
      %2746 = vmatpush1.msra.mxu0 %v1173
      %2747 = vmatprep.subr.mxu0 %v1178
      %2748 = vmatpush1.msra.mxu0 %v1177
      %2749 = vmatprep.subr.mxu0 %v1182
      %2750 = vmatpush1.msra.mxu0 %v1181
      %2751 = vmatprep.subr.mxu0 0.0
      %2752 = vmatpush1.msra.mxu0 0.0
      %2753 = vmatprep.subr.mxu0 0.0
      %2754 = vmatpush1.msra.mxu0 0.0
      %2755 = vmatprep.subr.mxu0 0.0
      %2756 = vmatpush1.msra.mxu0 0.0
      %2757 = vmatprep.subr.mxu0 0.0
      %2758 = vmatpush1.msra.mxu0 0.0
      %2759 = vmatprep.subr.mxu0 0.0
      %2760 = vmatpush1.msra.mxu0 0.0
      %2761 = vmatprep.subr.mxu0 0.0
      %2762 = vmatpush1.msra.mxu0 0.0
      %2763 = vmatprep.subr.mxu0 0.0
      %2764 = vmatpush1.msra.mxu0 0.0
      %2765 = vmatprep.subr.mxu0 0.0
      %2766 = vmatpush1.msra.mxu0 0.0
      %2767 = vmatprep.subr.mxu0 0.0
      %2768 = vmatpush1.msra.mxu0 0.0
      %2769 = vmatprep.subr.mxu0 0.0
      %2770 = vmatpush1.msra.mxu0 0.0
      %2771 = vmatprep.subr.mxu0 0.0
      %2772 = vmatpush1.msra.mxu0 0.0
      %2773 = vmatprep.subr.mxu0 0.0
      %2774 = vmatpush1.msra.mxu0 0.0
      %2775 = vmatprep.subr.mxu0 0.0
      %2776 = vmatpush1.msra.mxu0 0.0
      %2777 = vmatprep.subr.mxu0 0.0
      %2778 = vmatpush1.msra.mxu0 0.0
      %2779 = vmatprep.subr.mxu0 0.0
      %2780 = vmatpush1.msra.mxu0 0.0
      %2781 = vmatprep.subr.mxu0 0.0
      %2782 = vmatpush1.msra.mxu0 0.0
      %2783 = vmatprep.mubr.f32.mxu0 0.0
      %2784 = vmatmul.mubr.f32.gmra.mrb[0].mxu0 %v2708
      %v2785 = vpop.f32.mrb[0].mxu0
      %v2786 = vadd.f32 0.0, %v2785
      %v2787 = vpop.f32.mrb[0].mxu0
      %v2788 = vadd.f32 0.0, %v2787
      %2789 = vdwg.mxu0
      %2790 = vmatprep.subr.mxu0 %v1124
      %2791 = vmatpush1.msra.mxu0 %v1123
      %2792 = vmatprep.subr.mxu0 %v1128
      %2793 = vmatpush1.msra.mxu0 %v1127
      %2794 = vmatprep.subr.mxu0 %v1132
      %2795 = vmatpush1.msra.mxu0 %v1131
      %2796 = vmatprep.subr.mxu0 %v1136
      %2797 = vmatpush1.msra.mxu0 %v1135
      %2798 = vmatprep.subr.mxu0 %v1140
      %2799 = vmatpush1.msra.mxu0 %v1139
      %2800 = vmatprep.subr.mxu0 %v1144
      %2801 = vmatpush1.msra.mxu0 %v1143
      %2802 = vmatprep.subr.mxu0 %v1148
      %2803 = vmatpush1.msra.mxu0 %v1147
      %2804 = vmatprep.subr.mxu0 %v1152
      %2805 = vmatpush1.msra.mxu0 %v1151
      %2806 = vmatprep.subr.mxu0 %v1156
      %2807 = vmatpush1.msra.mxu0 %v1155
      %2808 = vmatprep.subr.mxu0 %v1160
      %2809 = vmatpush1.msra.mxu0 %v1159
      %2810 = vmatprep.subr.mxu0 %v1164
      %2811 = vmatpush1.msra.mxu0 %v1163
      %2812 = vmatprep.subr.mxu0 %v1168
      %2813 = vmatpush1.msra.mxu0 %v1167
      %2814 = vmatprep.subr.mxu0 %v1172
      %2815 = vmatpush1.msra.mxu0 %v1171
      %2816 = vmatprep.subr.mxu0 %v1176
      %2817 = vmatpush1.msra.mxu0 %v1175
      %2818 = vmatprep.subr.mxu0 %v1180
      %2819 = vmatpush1.msra.mxu0 %v1179
      %2820 = vmatprep.subr.mxu0 %v1184
      %2821 = vmatpush1.msra.mxu0 %v1183
      %2822 = vmatprep.subr.mxu0 0.0
      %2823 = vmatpush1.msra.mxu0 0.0
      %2824 = vmatprep.subr.mxu0 0.0
      %2825 = vmatpush1.msra.mxu0 0.0
      %2826 = vmatprep.subr.mxu0 0.0
      %2827 = vmatpush1.msra.mxu0 0.0
      %2828 = vmatprep.subr.mxu0 0.0
      %2829 = vmatpush1.msra.mxu0 0.0
      %2830 = vmatprep.subr.mxu0 0.0
      %2831 = vmatpush1.msra.mxu0 0.0
      %2832 = vmatprep.subr.mxu0 0.0
      %2833 = vmatpush1.msra.mxu0 0.0
      %2834 = vmatprep.subr.mxu0 0.0
      %2835 = vmatpush1.msra.mxu0 0.0
      %2836 = vmatprep.subr.mxu0 0.0
      %2837 = vmatpush1.msra.mxu0 0.0
      %2838 = vmatprep.subr.mxu0 0.0
      %2839 = vmatpush1.msra.mxu0 0.0
      %2840 = vmatprep.subr.mxu0 0.0
      %2841 = vmatpush1.msra.mxu0 0.0
      %2842 = vmatprep.subr.mxu0 0.0
      %2843 = vmatpush1.msra.mxu0 0.0
      %2844 = vmatprep.subr.mxu0 0.0
      %2845 = vmatpush1.msra.mxu0 0.0
      %2846 = vmatprep.subr.mxu0 0.0
      %2847 = vmatpush1.msra.mxu0 0.0
      %2848 = vmatprep.subr.mxu0 0.0
      %2849 = vmatpush1.msra.mxu0 0.0
      %2850 = vmatprep.subr.mxu0 0.0
      %2851 = vmatpush1.msra.mxu0 0.0
      %2852 = vmatprep.subr.mxu0 0.0
      %2853 = vmatpush1.msra.mxu0 0.0
      %2854 = vmatprep.mubr.f32.mxu0 0.0
      %2855 = vmatmul.mubr.f32.gmra.mrb[0].mxu0 %v2708
      %v2856 = vpop.f32.mrb[0].mxu0
      %v2857 = vadd.f32 0.0, %v2856
      %v2858 = vpop.f32.mrb[0].mxu0
      %v2859 = vadd.f32 0.0, %v2858
      %2860 = vdwg.mxu0
      %v2861 = vadd.f32 %v2712, %v2786
      %v2862 = vxor.u32 %v2861, 2147483648
      %v2863 = vmul.f32 %v2862, 1.442695
      %v2864 = vpow.pop %v2863
      %v2865 = vadd.f32 %v2864, 1.0
      %v2866 = vrcp.pop %v2865
      %v2867 = vmul.f32 1.0, %v2866
      %v2868 = vadd.f32 %v2713, %v2788
      %v2869 = vxor.u32 %v2868, 2147483648
      %v2870 = vmul.f32 %v2869, 1.442695
      %v2871 = vpow.pop %v2870
      %v2872 = vadd.f32 %v2871, 1.0
      %v2873 = vrcp.pop %v2872
      %v2874 = vmul.f32 1.0, %v2873
      %v2875 = vadd.f32 %v2716, %v2857
      %v2876 = vxor.u32 %v2875, 2147483648
      %v2877 = vmul.f32 %v2876, 1.442695
      %v2878 = vpow.pop %v2877
      %v2879 = vadd.f32 %v2878, 1.0
      %v2880 = vrcp.pop %v2879
      %v2881 = vmul.f32 1.0, %v2880
      %v2882 = vadd.f32 %v2717, %v2859
      %v2883 = vxor.u32 %v2882, 2147483648
      %v2884 = vmul.f32 %v2883, 1.442695
      %v2885 = vpow.pop %v2884
      %v2886 = vadd.f32 %v2885, 1.0
      %v2887 = vrcp.pop %v2886
      %v2888 = vmul.f32 1.0, %v2887
      %v2889 = vmul.f32 %v2874, %v2708
      %2890 = vmatprep.subr.mxu0 0.0
      %2891 = vmatpush1.msra.mxu0 %v1185
      %2892 = vmatprep.subr.mxu0 0.0
      %2893 = vmatpush1.msra.mxu0 %v1186
      %2894 = vmatprep.subr.mxu0 0.0
      %2895 = vmatpush1.msra.mxu0 %v1187
      %2896 = vmatprep.subr.mxu0 0.0
      %2897 = vmatpush1.msra.mxu0 %v1188
      %2898 = vmatprep.subr.mxu0 0.0
      %2899 = vmatpush1.msra.mxu0 %v1189
      %2900 = vmatprep.subr.mxu0 0.0
      %2901 = vmatpush1.msra.mxu0 %v1190
      %2902 = vmatprep.subr.mxu0 0.0
      %2903 = vmatpush1.msra.mxu0 %v1191
      %2904 = vmatprep.subr.mxu0 0.0
      %2905 = vmatpush1.msra.mxu0 %v1192
      %2906 = vmatprep.subr.mxu0 0.0
      %2907 = vmatpush1.msra.mxu0 %v1193
      %2908 = vmatprep.subr.mxu0 0.0
      %2909 = vmatpush1.msra.mxu0 %v1194
      %2910 = vmatprep.subr.mxu0 0.0
      %2911 = vmatpush1.msra.mxu0 %v1195
      %2912 = vmatprep.subr.mxu0 0.0
      %2913 = vmatpush1.msra.mxu0 %v1196
      %2914 = vmatprep.subr.mxu0 0.0
      %2915 = vmatpush1.msra.mxu0 %v1197
      %2916 = vmatprep.subr.mxu0 0.0
      %2917 = vmatpush1.msra.mxu0 %v1198
      %2918 = vmatprep.subr.mxu0 0.0
      %2919 = vmatpush1.msra.mxu0 %v1199
      %2920 = vmatprep.subr.mxu0 0.0
      %2921 = vmatpush1.msra.mxu0 %v1200
      %2922 = vmatprep.subr.mxu0 0.0
      %2923 = vmatpush1.msra.mxu0 0.0
      %2924 = vmatprep.subr.mxu0 0.0
      %2925 = vmatpush1.msra.mxu0 0.0
      %2926 = vmatprep.subr.mxu0 0.0
      %2927 = vmatpush1.msra.mxu0 0.0
      %2928 = vmatprep.subr.mxu0 0.0
      %2929 = vmatpush1.msra.mxu0 0.0
      %2930 = vmatprep.subr.mxu0 0.0
      %2931 = vmatpush1.msra.mxu0 0.0
      %2932 = vmatprep.subr.mxu0 0.0
      %2933 = vmatpush1.msra.mxu0 0.0
      %2934 = vmatprep.subr.mxu0 0.0
      %2935 = vmatpush1.msra.mxu0 0.0
      %2936 = vmatprep.subr.mxu0 0.0
      %2937 = vmatpush1.msra.mxu0 0.0
      %2938 = vmatprep.subr.mxu0 0.0
      %2939 = vmatpush1.msra.mxu0 0.0
      %2940 = vmatprep.subr.mxu0 0.0
      %2941 = vmatpush1.msra.mxu0 0.0
      %2942 = vmatprep.subr.mxu0 0.0
      %2943 = vmatpush1.msra.mxu0 0.0
      %2944 = vmatprep.subr.mxu0 0.0
      %2945 = vmatpush1.msra.mxu0 0.0
      %2946 = vmatprep.subr.mxu0 0.0
      %2947 = vmatpush1.msra.mxu0 0.0
      %2948 = vmatprep.subr.mxu0 0.0
      %2949 = vmatpush1.msra.mxu0 0.0
      %2950 = vmatprep.subr.mxu0 0.0
      %2951 = vmatpush1.msra.mxu0 0.0
      %2952 = vmatprep.subr.mxu0 0.0
      %2953 = vmatpush1.msra.mxu0 0.0
      %2954 = vmatprep.mubr.f32.mxu0 0.0
      %2955 = vmatmul.mubr.f32.gmra.mrb[0].mxu0 %v2889
      %v2956 = vpop.f32.mrb[0].mxu0
      %v2957 = vadd.f32 0.0, %v2956
      %v2958 = vpop.f32.mrb[0].mxu0
      %2959 = vdwg.mxu0
      %v2960 = vadd.f32 %v2714, %v2957
      %v2961 = vtanh.pop %v2960
      %v2962 = vmul.f32 %v2888, %v2708
      %2963 = vmatprep.subr.mxu0 0.0
      %2964 = vmatpush1.msra.mxu0 %v1202
      %2965 = vmatprep.subr.mxu0 0.0
      %2966 = vmatpush1.msra.mxu0 %v1203
      %2967 = vmatprep.subr.mxu0 0.0
      %2968 = vmatpush1.msra.mxu0 %v1204
      %2969 = vmatprep.subr.mxu0 0.0
      %2970 = vmatpush1.msra.mxu0 %v1205
      %2971 = vmatprep.subr.mxu0 0.0
      %2972 = vmatpush1.msra.mxu0 %v1206
      %2973 = vmatprep.subr.mxu0 0.0
      %2974 = vmatpush1.msra.mxu0 %v1207
      %2975 = vmatprep.subr.mxu0 0.0
      %2976 = vmatpush1.msra.mxu0 %v1208
      %2977 = vmatprep.subr.mxu0 0.0
      %2978 = vmatpush1.msra.mxu0 %v1209
      %2979 = vmatprep.subr.mxu0 0.0
      %2980 = vmatpush1.msra.mxu0 %v1210
      %2981 = vmatprep.subr.mxu0 0.0
      %2982 = vmatpush1.msra.mxu0 %v1211
      %2983 = vmatprep.subr.mxu0 0.0
      %2984 = vmatpush1.msra.mxu0 %v1212
      %2985 = vmatprep.subr.mxu0 0.0
      %2986 = vmatpush1.msra.mxu0 %v1213
      %2987 = vmatprep.subr.mxu0 0.0
      %2988 = vmatpush1.msra.mxu0 %v1214
      %2989 = vmatprep.subr.mxu0 0.0
      %2990 = vmatpush1.msra.mxu0 %v1215
      %2991 = vmatprep.subr.mxu0 0.0
      %2992 = vmatpush1.msra.mxu0 %v1216
      %2993 = vmatprep.subr.mxu0 0.0
      %2994 = vmatpush1.msra.mxu0 %v1217
      %2995 = vmatprep.subr.mxu0 0.0
      %2996 = vmatpush1.msra.mxu0 0.0
      %2997 = vmatprep.subr.mxu0 0.0
      %2998 = vmatpush1.msra.mxu0 0.0
      %2999 = vmatprep.subr.mxu0 0.0
      %3000 = vmatpush1.msra.mxu0 0.0
      %3001 = vmatprep.subr.mxu0 0.0
      %3002 = vmatpush1.msra.mxu0 0.0
      %3003 = vmatprep.subr.mxu0 0.0
      %3004 = vmatpush1.msra.mxu0 0.0
      %3005 = vmatprep.subr.mxu0 0.0
      %3006 = vmatpush1.msra.mxu0 0.0
      %3007 = vmatprep.subr.mxu0 0.0
      %3008 = vmatpush1.msra.mxu0 0.0
      %3009 = vmatprep.subr.mxu0 0.0
      %3010 = vmatpush1.msra.mxu0 0.0
      %3011 = vmatprep.subr.mxu0 0.0
      %3012 = vmatpush1.msra.mxu0 0.0
      %3013 = vmatprep.subr.mxu0 0.0
      %3014 = vmatpush1.msra.mxu0 0.0
      %3015 = vmatprep.subr.mxu0 0.0
      %3016 = vmatpush1.msra.mxu0 0.0
      %3017 = vmatprep.subr.mxu0 0.0
      %3018 = vmatpush1.msra.mxu0 0.0
      %3019 = vmatprep.subr.mxu0 0.0
      %3020 = vmatpush1.msra.mxu0 0.0
      %3021 = vmatprep.subr.mxu0 0.0
      %3022 = vmatpush1.msra.mxu0 0.0
      %3023 = vmatprep.subr.mxu0 0.0
      %3024 = vmatpush1.msra.mxu0 0.0
      %3025 = vmatprep.subr.mxu0 0.0
      %3026 = vmatpush1.msra.mxu0 0.0
      %3027 = vmatprep.mubr.f32.mxu0 0.0
      %3028 = vmatmul.mubr.f32.gmra.mrb[0].mxu0 %v2962
      %v3029 = vpop.f32.mrb[0].mxu0
      %v3030 = vadd.f32 0.0, %v3029
      %v3031 = vpop.f32.mrb[0].mxu0
      %3032 = vdwg.mxu0
      %v3033 = vadd.f32 %v2718, %v3030
      %v3034 = vtanh.pop %v3033
      %v3035 = vmul.f32 %v2867, %v2708
      %v3036 = vsub.f32 1.0, %v2867
      %v3037 = vmul.f32 %v3036, %v2961
      %v3038 = vadd.f32 %v3035, %v3037
      %v3039 = vmul.f32 %v2881, %v2708
      %v3040 = vsub.f32 1.0, %v2881
      %v3041 = vmul.f32 %v3040, %v3034
      %v3042 = vadd.f32 %v3039, %v3041
      %3043 = vmatprep.subr.mxu0 0.0
      %3044 = vmatpush1.msra.mxu0 %v1235
      %3045 = vmatprep.subr.mxu0 0.0
      %3046 = vmatpush1.msra.mxu0 %v1236
      %3047 = vmatprep.subr.mxu0 0.0
      %3048 = vmatpush1.msra.mxu0 %v1237
      %3049 = vmatprep.subr.mxu0 0.0
      %3050 = vmatpush1.msra.mxu0 %v1238
      %3051 = vmatprep.subr.mxu0 0.0
      %3052 = vmatpush1.msra.mxu0 %v1239
      %3053 = vmatprep.subr.mxu0 0.0
      %3054 = vmatpush1.msra.mxu0 %v1240
      %3055 = vmatprep.subr.mxu0 0.0
      %3056 = vmatpush1.msra.mxu0 %v1241
      %3057 = vmatprep.subr.mxu0 0.0
      %3058 = vmatpush1.msra.mxu0 %v1242
      %3059 = vmatprep.subr.mxu0 0.0
      %3060 = vmatpush1.msra.mxu0 %v1243
      %3061 = vmatprep.subr.mxu0 0.0
      %3062 = vmatpush1.msra.mxu0 %v1244
      %3063 = vmatprep.subr.mxu0 0.0
      %3064 = vmatpush1.msra.mxu0 %v1245
      %3065 = vmatprep.subr.mxu0 0.0
      %3066 = vmatpush1.msra.mxu0 %v1246
      %3067 = vmatprep.subr.mxu0 0.0
      %3068 = vmatpush1.msra.mxu0 %v1247
      %3069 = vmatprep.subr.mxu0 0.0
      %3070 = vmatpush1.msra.mxu0 %v1248
      %3071 = vmatprep.subr.mxu0 0.0
      %3072 = vmatpush1.msra.mxu0 %v1249
      %3073 = vmatprep.subr.mxu0 0.0
      %3074 = vmatpush1.msra.mxu0 %v1250
      %3075 = vmatprep.subr.mxu0 0.0
      %3076 = vmatpush1.msra.mxu0 0.0
      %3077 = vmatprep.subr.mxu0 0.0
      %3078 = vmatpush1.msra.mxu0 0.0
      %3079 = vmatprep.subr.mxu0 0.0
      %3080 = vmatpush1.msra.mxu0 0.0
      %3081 = vmatprep.subr.mxu0 0.0
      %3082 = vmatpush1.msra.mxu0 0.0
      %3083 = vmatprep.subr.mxu0 0.0
      %3084 = vmatpush1.msra.mxu0 0.0
      %3085 = vmatprep.subr.mxu0 0.0
      %3086 = vmatpush1.msra.mxu0 0.0
      %3087 = vmatprep.subr.mxu0 0.0
      %3088 = vmatpush1.msra.mxu0 0.0
      %3089 = vmatprep.subr.mxu0 0.0
      %3090 = vmatpush1.msra.mxu0 0.0
      %3091 = vmatprep.subr.mxu0 0.0
      %3092 = vmatpush1.msra.mxu0 0.0
      %3093 = vmatprep.subr.mxu0 0.0
      %3094 = vmatpush1.msra.mxu0 0.0
      %3095 = vmatprep.subr.mxu0 0.0
      %3096 = vmatpush1.msra.mxu0 0.0
      %3097 = vmatprep.subr.mxu0 0.0
      %3098 = vmatpush1.msra.mxu0 0.0
      %3099 = vmatprep.subr.mxu0 0.0
      %3100 = vmatpush1.msra.mxu0 0.0
      %3101 = vmatprep.subr.mxu0 0.0
      %3102 = vmatpush1.msra.mxu0 0.0
      %3103 = vmatprep.subr.mxu0 0.0
      %3104 = vmatpush1.msra.mxu0 0.0
      %3105 = vmatprep.subr.mxu0 0.0
      %3106 = vmatpush1.msra.mxu0 0.0
      %3107 = vmatprep.mubr.f32.mxu0 0.0
      %3108 = vmatmul.mubr.f32.gmra.mrb[0].mxu0 %v3042
      %v3109 = vpop.f32.mrb[0].mxu0
      %v3110 = vadd.f32 0.0, %v3109
      %v3111 = vpop.f32.mrb[0].mxu0
      %3112 = vdwg.mxu0
      %3113 = vmatprep.subr.mxu0 0.0
      %3114 = vmatpush1.msra.mxu0 %v1218
      %3115 = vmatprep.subr.mxu0 0.0
      %3116 = vmatpush1.msra.mxu0 %v1219
      %3117 = vmatprep.subr.mxu0 0.0
      %3118 = vmatpush1.msra.mxu0 %v1220
      %3119 = vmatprep.subr.mxu0 0.0
      %3120 = vmatpush1.msra.mxu0 %v1221
      %3121 = vmatprep.subr.mxu0 0.0
      %3122 = vmatpush1.msra.mxu0 %v1222
      %3123 = vmatprep.subr.mxu0 0.0
      %3124 = vmatpush1.msra.mxu0 %v1223
      %3125 = vmatprep.subr.mxu0 0.0
      %3126 = vmatpush1.msra.mxu0 %v1224
      %3127 = vmatprep.subr.mxu0 0.0
      %3128 = vmatpush1.msra.mxu0 %v1225
      %3129 = vmatprep.subr.mxu0 0.0
      %3130 = vmatpush1.msra.mxu0 %v1226
      %3131 = vmatprep.subr.mxu0 0.0
      %3132 = vmatpush1.msra.mxu0 %v1227
      %3133 = vmatprep.subr.mxu0 0.0
      %3134 = vmatpush1.msra.mxu0 %v1228
      %3135 = vmatprep.subr.mxu0 0.0
      %3136 = vmatpush1.msra.mxu0 %v1229
      %3137 = vmatprep.subr.mxu0 0.0
      %3138 = vmatpush1.msra.mxu0 %v1230
      %3139 = vmatprep.subr.mxu0 0.0
      %3140 = vmatpush1.msra.mxu0 %v1231
      %3141 = vmatprep.subr.mxu0 0.0
      %3142 = vmatpush1.msra.mxu0 %v1232
      %3143 = vmatprep.subr.mxu0 0.0
      %3144 = vmatpush1.msra.mxu0 %v1233
      %3145 = vmatprep.subr.mxu0 0.0
      %3146 = vmatpush1.msra.mxu0 0.0
      %3147 = vmatprep.subr.mxu0 0.0
      %3148 = vmatpush1.msra.mxu0 0.0
      %3149 = vmatprep.subr.mxu0 0.0
      %3150 = vmatpush1.msra.mxu0 0.0
      %3151 = vmatprep.subr.mxu0 0.0
      %3152 = vmatpush1.msra.mxu0 0.0
      %3153 = vmatprep.subr.mxu0 0.0
      %3154 = vmatpush1.msra.mxu0 0.0
      %3155 = vmatprep.subr.mxu0 0.0
      %3156 = vmatpush1.msra.mxu0 0.0
      %3157 = vmatprep.subr.mxu0 0.0
      %3158 = vmatpush1.msra.mxu0 0.0
      %3159 = vmatprep.subr.mxu0 0.0
      %3160 = vmatpush1.msra.mxu0 0.0
      %3161 = vmatprep.subr.mxu0 0.0
      %3162 = vmatpush1.msra.mxu0 0.0
      %3163 = vmatprep.subr.mxu0 0.0
      %3164 = vmatpush1.msra.mxu0 0.0
      %3165 = vmatprep.subr.mxu0 0.0
      %3166 = vmatpush1.msra.mxu0 0.0
      %3167 = vmatprep.subr.mxu0 0.0
      %3168 = vmatpush1.msra.mxu0 0.0
      %3169 = vmatprep.subr.mxu0 0.0
      %3170 = vmatpush1.msra.mxu0 0.0
      %3171 = vmatprep.subr.mxu0 0.0
      %3172 = vmatpush1.msra.mxu0 0.0
      %3173 = vmatprep.subr.mxu0 0.0
      %3174 = vmatpush1.msra.mxu0 0.0
      %3175 = vmatprep.subr.mxu0 0.0
      %3176 = vmatpush1.msra.mxu0 0.0
      %3177 = vmatprep.mubr.f32.mxu0 0.0
      %3178 = vmatmul.mubr.f32.gmra.mrb[0].mxu0 %v3038
      %v3179 = vpop.f32.mrb[0].mxu0
      %v3180 = vadd.f32 %v3110, %v3179
      %v3181 = vpop.f32.mrb[0].mxu0
      %3182 = vdwg.mxu0
      %v3183 = vadd.f32 %v3180, %v1256
      %v3184 = vxor.u32 %v3183, 2147483648
      %v3185 = vmul.f32 %v3184, 1.442695
      %v3186 = vpow.pop %v3185
      %v3187 = vadd.f32 %v3186, 1.0
      %v3188 = vrcp.pop %v3187
      %v3189 = vmul.f32 1.0, %v3188
      %v3190 = vmul.f32 %v3189, %v3038
      %v3191 = vsub.f32 1.0, %v3189
      %v3192 = vmul.f32 %v3191, %v3042
      %v3193 = vadd.f32 %v3190, %v3192
      %s3194 = scalar_lea.vmem %s503, 24
      %3195 = vst [vmem:[%s3194] sm:$0xff] %v3193
      %s3196 = scalar_lea.vmem [#allocation3], 96
      %v3197 = vld [vmem:[%s3196] sm:$0xff]
      %v3198 = vld [vmem:[%s3196 + $0x8] sm:$0xff]
      %v3199 = vld [vmem:[%s3196 + $0x10] sm:$0xff]
      %s3200 = scalar_lea.vmem [#allocation4], 96
      %v3201 = vld [vmem:[%s3200] sm:$0xff]
      %v3202 = vld [vmem:[%s3200 + $0x8] sm:$0xff]
      %v3203 = vld [vmem:[%s3200 + $0x10] sm:$0xff]
      %3204 = vmatprep.subr.mxu0 %v1122
      %3205 = vmatpush1.msra.mxu0 %v1121
      %3206 = vmatprep.subr.mxu0 %v1126
      %3207 = vmatpush1.msra.mxu0 %v1125
      %3208 = vmatprep.subr.mxu0 %v1130
      %3209 = vmatpush1.msra.mxu0 %v1129
      %3210 = vmatprep.subr.mxu0 %v1134
      %3211 = vmatpush1.msra.mxu0 %v1133
      %3212 = vmatprep.subr.mxu0 %v1138
      %3213 = vmatpush1.msra.mxu0 %v1137
      %3214 = vmatprep.subr.mxu0 %v1142
      %3215 = vmatpush1.msra.mxu0 %v1141
      %3216 = vmatprep.subr.mxu0 %v1146
      %3217 = vmatpush1.msra.mxu0 %v1145
      %3218 = vmatprep.subr.mxu0 %v1150
      %3219 = vmatpush1.msra.mxu0 %v1149
      %3220 = vmatprep.subr.mxu0 %v1154
      %3221 = vmatpush1.msra.mxu0 %v1153
      %3222 = vmatprep.subr.mxu0 %v1158
      %3223 = vmatpush1.msra.mxu0 %v1157
      %3224 = vmatprep.subr.mxu0 %v1162
      %3225 = vmatpush1.msra.mxu0 %v1161
      %3226 = vmatprep.subr.mxu0 %v1166
      %3227 = vmatpush1.msra.mxu0 %v1165
      %3228 = vmatprep.subr.mxu0 %v1170
      %3229 = vmatpush1.msra.mxu0 %v1169
      %3230 = vmatprep.subr.mxu0 %v1174
      %3231 = vmatpush1.msra.mxu0 %v1173
      %3232 = vmatprep.subr.mxu0 %v1178
      %3233 = vmatpush1.msra.mxu0 %v1177
      %3234 = vmatprep.subr.mxu0 %v1182
      %3235 = vmatpush1.msra.mxu0 %v1181
      %3236 = vmatprep.subr.mxu0 0.0
      %3237 = vmatpush1.msra.mxu0 0.0
      %3238 = vmatprep.subr.mxu0 0.0
      %3239 = vmatpush1.msra.mxu0 0.0
      %3240 = vmatprep.subr.mxu0 0.0
      %3241 = vmatpush1.msra.mxu0 0.0
      %3242 = vmatprep.subr.mxu0 0.0
      %3243 = vmatpush1.msra.mxu0 0.0
      %3244 = vmatprep.subr.mxu0 0.0
      %3245 = vmatpush1.msra.mxu0 0.0
      %3246 = vmatprep.subr.mxu0 0.0
      %3247 = vmatpush1.msra.mxu0 0.0
      %3248 = vmatprep.subr.mxu0 0.0
      %3249 = vmatpush1.msra.mxu0 0.0
      %3250 = vmatprep.subr.mxu0 0.0
      %3251 = vmatpush1.msra.mxu0 0.0
      %3252 = vmatprep.subr.mxu0 0.0
      %3253 = vmatpush1.msra.mxu0 0.0
      %3254 = vmatprep.subr.mxu0 0.0
      %3255 = vmatpush1.msra.mxu0 0.0
      %3256 = vmatprep.subr.mxu0 0.0
      %3257 = vmatpush1.msra.mxu0 0.0
      %3258 = vmatprep.subr.mxu0 0.0
      %3259 = vmatpush1.msra.mxu0 0.0
      %3260 = vmatprep.subr.mxu0 0.0
      %3261 = vmatpush1.msra.mxu0 0.0
      %3262 = vmatprep.subr.mxu0 0.0
      %3263 = vmatpush1.msra.mxu0 0.0
      %3264 = vmatprep.subr.mxu0 0.0
      %3265 = vmatpush1.msra.mxu0 0.0
      %3266 = vmatprep.subr.mxu0 0.0
      %3267 = vmatpush1.msra.mxu0 0.0
      %3268 = vmatprep.mubr.f32.mxu0 0.0
      %3269 = vmatmul.mubr.f32.gmra.mrb[0].mxu0 %v3193
      %v3270 = vpop.f32.mrb[0].mxu0
      %v3271 = vadd.f32 0.0, %v3270
      %v3272 = vpop.f32.mrb[0].mxu0
      %v3273 = vadd.f32 0.0, %v3272
      %3274 = vdwg.mxu0
      %3275 = vmatprep.subr.mxu0 %v1124
      %3276 = vmatpush1.msra.mxu0 %v1123
      %3277 = vmatprep.subr.mxu0 %v1128
      %3278 = vmatpush1.msra.mxu0 %v1127
      %3279 = vmatprep.subr.mxu0 %v1132
      %3280 = vmatpush1.msra.mxu0 %v1131
      %3281 = vmatprep.subr.mxu0 %v1136
      %3282 = vmatpush1.msra.mxu0 %v1135
      %3283 = vmatprep.subr.mxu0 %v1140
      %3284 = vmatpush1.msra.mxu0 %v1139
      %3285 = vmatprep.subr.mxu0 %v1144
      %3286 = vmatpush1.msra.mxu0 %v1143
      %3287 = vmatprep.subr.mxu0 %v1148
      %3288 = vmatpush1.msra.mxu0 %v1147
      %3289 = vmatprep.subr.mxu0 %v1152
      %3290 = vmatpush1.msra.mxu0 %v1151
      %3291 = vmatprep.subr.mxu0 %v1156
      %3292 = vmatpush1.msra.mxu0 %v1155
      %3293 = vmatprep.subr.mxu0 %v1160
      %3294 = vmatpush1.msra.mxu0 %v1159
      %3295 = vmatprep.subr.mxu0 %v1164
      %3296 = vmatpush1.msra.mxu0 %v1163
      %3297 = vmatprep.subr.mxu0 %v1168
      %3298 = vmatpush1.msra.mxu0 %v1167
      %3299 = vmatprep.subr.mxu0 %v1172
      %3300 = vmatpush1.msra.mxu0 %v1171
      %3301 = vmatprep.subr.mxu0 %v1176
      %3302 = vmatpush1.msra.mxu0 %v1175
      %3303 = vmatprep.subr.mxu0 %v1180
      %3304 = vmatpush1.msra.mxu0 %v1179
      %3305 = vmatprep.subr.mxu0 %v1184
      %3306 = vmatpush1.msra.mxu0 %v1183
      %3307 = vmatprep.subr.mxu0 0.0
      %3308 = vmatpush1.msra.mxu0 0.0
      %3309 = vmatprep.subr.mxu0 0.0
      %3310 = vmatpush1.msra.mxu0 0.0
      %3311 = vmatprep.subr.mxu0 0.0
      %3312 = vmatpush1.msra.mxu0 0.0
      %3313 = vmatprep.subr.mxu0 0.0
      %3314 = vmatpush1.msra.mxu0 0.0
      %3315 = vmatprep.subr.mxu0 0.0
      %3316 = vmatpush1.msra.mxu0 0.0
      %3317 = vmatprep.subr.mxu0 0.0
      %3318 = vmatpush1.msra.mxu0 0.0
      %3319 = vmatprep.subr.mxu0 0.0
      %3320 = vmatpush1.msra.mxu0 0.0
      %3321 = vmatprep.subr.mxu0 0.0
      %3322 = vmatpush1.msra.mxu0 0.0
      %3323 = vmatprep.subr.mxu0 0.0
      %3324 = vmatpush1.msra.mxu0 0.0
      %3325 = vmatprep.subr.mxu0 0.0
      %3326 = vmatpush1.msra.mxu0 0.0
      %3327 = vmatprep.subr.mxu0 0.0
      %3328 = vmatpush1.msra.mxu0 0.0
      %3329 = vmatprep.subr.mxu0 0.0
      %3330 = vmatpush1.msra.mxu0 0.0
      %3331 = vmatprep.subr.mxu0 0.0
      %3332 = vmatpush1.msra.mxu0 0.0
      %3333 = vmatprep.subr.mxu0 0.0
      %3334 = vmatpush1.msra.mxu0 0.0
      %3335 = vmatprep.subr.mxu0 0.0
      %3336 = vmatpush1.msra.mxu0 0.0
      %3337 = vmatprep.subr.mxu0 0.0
      %3338 = vmatpush1.msra.mxu0 0.0
      %3339 = vmatprep.mubr.f32.mxu0 0.0
      %3340 = vmatmul.mubr.f32.gmra.mrb[0].mxu0 %v3193
      %v3341 = vpop.f32.mrb[0].mxu0
      %v3342 = vadd.f32 0.0, %v3341
      %v3343 = vpop.f32.mrb[0].mxu0
      %v3344 = vadd.f32 0.0, %v3343
      %3345 = vdwg.mxu0
      %v3346 = vadd.f32 %v3197, %v3271
      %v3347 = vxor.u32 %v3346, 2147483648
      %v3348 = vmul.f32 %v3347, 1.442695
      %v3349 = vpow.pop %v3348
      %v3350 = vadd.f32 %v3349, 1.0
      %v3351 = vrcp.pop %v3350
      %v3352 = vmul.f32 1.0, %v3351
      %v3353 = vadd.f32 %v3198, %v3273
      %v3354 = vxor.u32 %v3353, 2147483648
      %v3355 = vmul.f32 %v3354, 1.442695
      %v3356 = vpow.pop %v3355
      %v3357 = vadd.f32 %v3356, 1.0
      %v3358 = vrcp.pop %v3357
      %v3359 = vmul.f32 1.0, %v3358
      %v3360 = vadd.f32 %v3201, %v3342
      %v3361 = vxor.u32 %v3360, 2147483648
      %v3362 = vmul.f32 %v3361, 1.442695
      %v3363 = vpow.pop %v3362
      %v3364 = vadd.f32 %v3363, 1.0
      %v3365 = vrcp.pop %v3364
      %v3366 = vmul.f32 1.0, %v3365
      %v3367 = vadd.f32 %v3202, %v3344
      %v3368 = vxor.u32 %v3367, 2147483648
      %v3369 = vmul.f32 %v3368, 1.442695
      %v3370 = vpow.pop %v3369
      %v3371 = vadd.f32 %v3370, 1.0
      %v3372 = vrcp.pop %v3371
      %v3373 = vmul.f32 1.0, %v3372
      %v3374 = vmul.f32 %v3359, %v3193
      %3375 = vmatprep.subr.mxu0 0.0
      %3376 = vmatpush1.msra.mxu0 %v1185
      %3377 = vmatprep.subr.mxu0 0.0
      %3378 = vmatpush1.msra.mxu0 %v1186
      %3379 = vmatprep.subr.mxu0 0.0
      %3380 = vmatpush1.msra.mxu0 %v1187
      %3381 = vmatprep.subr.mxu0 0.0
      %3382 = vmatpush1.msra.mxu0 %v1188
      %3383 = vmatprep.subr.mxu0 0.0
      %3384 = vmatpush1.msra.mxu0 %v1189
      %3385 = vmatprep.subr.mxu0 0.0
      %3386 = vmatpush1.msra.mxu0 %v1190
      %3387 = vmatprep.subr.mxu0 0.0
      %3388 = vmatpush1.msra.mxu0 %v1191
      %3389 = vmatprep.subr.mxu0 0.0
      %3390 = vmatpush1.msra.mxu0 %v1192
      %3391 = vmatprep.subr.mxu0 0.0
      %3392 = vmatpush1.msra.mxu0 %v1193
      %3393 = vmatprep.subr.mxu0 0.0
      %3394 = vmatpush1.msra.mxu0 %v1194
      %3395 = vmatprep.subr.mxu0 0.0
      %3396 = vmatpush1.msra.mxu0 %v1195
      %3397 = vmatprep.subr.mxu0 0.0
      %3398 = vmatpush1.msra.mxu0 %v1196
      %3399 = vmatprep.subr.mxu0 0.0
      %3400 = vmatpush1.msra.mxu0 %v1197
      %3401 = vmatprep.subr.mxu0 0.0
      %3402 = vmatpush1.msra.mxu0 %v1198
      %3403 = vmatprep.subr.mxu0 0.0
      %3404 = vmatpush1.msra.mxu0 %v1199
      %3405 = vmatprep.subr.mxu0 0.0
      %3406 = vmatpush1.msra.mxu0 %v1200
      %3407 = vmatprep.subr.mxu0 0.0
      %3408 = vmatpush1.msra.mxu0 0.0
      %3409 = vmatprep.subr.mxu0 0.0
      %3410 = vmatpush1.msra.mxu0 0.0
      %3411 = vmatprep.subr.mxu0 0.0
      %3412 = vmatpush1.msra.mxu0 0.0
      %3413 = vmatprep.subr.mxu0 0.0
      %3414 = vmatpush1.msra.mxu0 0.0
      %3415 = vmatprep.subr.mxu0 0.0
      %3416 = vmatpush1.msra.mxu0 0.0
      %3417 = vmatprep.subr.mxu0 0.0
      %3418 = vmatpush1.msra.mxu0 0.0
      %3419 = vmatprep.subr.mxu0 0.0
      %3420 = vmatpush1.msra.mxu0 0.0
      %3421 = vmatprep.subr.mxu0 0.0
      %3422 = vmatpush1.msra.mxu0 0.0
      %3423 = vmatprep.subr.mxu0 0.0
      %3424 = vmatpush1.msra.mxu0 0.0
      %3425 = vmatprep.subr.mxu0 0.0
      %3426 = vmatpush1.msra.mxu0 0.0
      %3427 = vmatprep.subr.mxu0 0.0
      %3428 = vmatpush1.msra.mxu0 0.0
      %3429 = vmatprep.subr.mxu0 0.0
      %3430 = vmatpush1.msra.mxu0 0.0
      %3431 = vmatprep.subr.mxu0 0.0
      %3432 = vmatpush1.msra.mxu0 0.0
      %3433 = vmatprep.subr.mxu0 0.0
      %3434 = vmatpush1.msra.mxu0 0.0
      %3435 = vmatprep.subr.mxu0 0.0
      %3436 = vmatpush1.msra.mxu0 0.0
      %3437 = vmatprep.subr.mxu0 0.0
      %3438 = vmatpush1.msra.mxu0 0.0
      %3439 = vmatprep.mubr.f32.mxu0 0.0
      %3440 = vmatmul.mubr.f32.gmra.mrb[0].mxu0 %v3374
      %v3441 = vpop.f32.mrb[0].mxu0
      %v3442 = vadd.f32 0.0, %v3441
      %v3443 = vpop.f32.mrb[0].mxu0
      %3444 = vdwg.mxu0
      %v3445 = vadd.f32 %v3199, %v3442
      %v3446 = vtanh.pop %v3445
      %v3447 = vmul.f32 %v3373, %v3193
      %3448 = vmatprep.subr.mxu0 0.0
      %3449 = vmatpush1.msra.mxu0 %v1202
      %3450 = vmatprep.subr.mxu0 0.0
      %3451 = vmatpush1.msra.mxu0 %v1203
      %3452 = vmatprep.subr.mxu0 0.0
      %3453 = vmatpush1.msra.mxu0 %v1204
      %3454 = vmatprep.subr.mxu0 0.0
      %3455 = vmatpush1.msra.mxu0 %v1205
      %3456 = vmatprep.subr.mxu0 0.0
      %3457 = vmatpush1.msra.mxu0 %v1206
      %3458 = vmatprep.subr.mxu0 0.0
      %3459 = vmatpush1.msra.mxu0 %v1207
      %3460 = vmatprep.subr.mxu0 0.0
      %3461 = vmatpush1.msra.mxu0 %v1208
      %3462 = vmatprep.subr.mxu0 0.0
      %3463 = vmatpush1.msra.mxu0 %v1209
      %3464 = vmatprep.subr.mxu0 0.0
      %3465 = vmatpush1.msra.mxu0 %v1210
      %3466 = vmatprep.subr.mxu0 0.0
      %3467 = vmatpush1.msra.mxu0 %v1211
      %3468 = vmatprep.subr.mxu0 0.0
      %3469 = vmatpush1.msra.mxu0 %v1212
      %3470 = vmatprep.subr.mxu0 0.0
      %3471 = vmatpush1.msra.mxu0 %v1213
      %3472 = vmatprep.subr.mxu0 0.0
      %3473 = vmatpush1.msra.mxu0 %v1214
      %3474 = vmatprep.subr.mxu0 0.0
      %3475 = vmatpush1.msra.mxu0 %v1215
      %3476 = vmatprep.subr.mxu0 0.0
      %3477 = vmatpush1.msra.mxu0 %v1216
      %3478 = vmatprep.subr.mxu0 0.0
      %3479 = vmatpush1.msra.mxu0 %v1217
      %3480 = vmatprep.subr.mxu0 0.0
      %3481 = vmatpush1.msra.mxu0 0.0
      %3482 = vmatprep.subr.mxu0 0.0
      %3483 = vmatpush1.msra.mxu0 0.0
      %3484 = vmatprep.subr.mxu0 0.0
      %3485 = vmatpush1.msra.mxu0 0.0
      %3486 = vmatprep.subr.mxu0 0.0
      %3487 = vmatpush1.msra.mxu0 0.0
      %3488 = vmatprep.subr.mxu0 0.0
      %3489 = vmatpush1.msra.mxu0 0.0
      %3490 = vmatprep.subr.mxu0 0.0
      %3491 = vmatpush1.msra.mxu0 0.0
      %3492 = vmatprep.subr.mxu0 0.0
      %3493 = vmatpush1.msra.mxu0 0.0
      %3494 = vmatprep.subr.mxu0 0.0
      %3495 = vmatpush1.msra.mxu0 0.0
      %3496 = vmatprep.subr.mxu0 0.0
      %3497 = vmatpush1.msra.mxu0 0.0
      %3498 = vmatprep.subr.mxu0 0.0
      %3499 = vmatpush1.msra.mxu0 0.0
      %3500 = vmatprep.subr.mxu0 0.0
      %3501 = vmatpush1.msra.mxu0 0.0
      %3502 = vmatprep.subr.mxu0 0.0
      %3503 = vmatpush1.msra.mxu0 0.0
      %3504 = vmatprep.subr.mxu0 0.0
      %3505 = vmatpush1.msra.mxu0 0.0
      %3506 = vmatprep.subr.mxu0 0.0
      %3507 = vmatpush1.msra.mxu0 0.0
      %3508 = vmatprep.subr.mxu0 0.0
      %3509 = vmatpush1.msra.mxu0 0.0
      %3510 = vmatprep.subr.mxu0 0.0
      %3511 = vmatpush1.msra.mxu0 0.0
      %3512 = vmatprep.mubr.f32.mxu0 0.0
      %3513 = vmatmul.mubr.f32.gmra.mrb[0].mxu0 %v3447
      %v3514 = vpop.f32.mrb[0].mxu0
      %v3515 = vadd.f32 0.0, %v3514
      %v3516 = vpop.f32.mrb[0].mxu0
      %3517 = vdwg.mxu0
      %v3518 = vadd.f32 %v3203, %v3515
      %v3519 = vtanh.pop %v3518
      %v3520 = vmul.f32 %v3352, %v3193
      %v3521 = vsub.f32 1.0, %v3352
      %v3522 = vmul.f32 %v3521, %v3446
      %v3523 = vadd.f32 %v3520, %v3522
      %v3524 = vmul.f32 %v3366, %v3193
      %v3525 = vsub.f32 1.0, %v3366
      %v3526 = vmul.f32 %v3525, %v3519
      %v3527 = vadd.f32 %v3524, %v3526
      %3528 = vmatprep.subr.mxu0 0.0
      %3529 = vmatpush1.msra.mxu0 %v1235
      %3530 = vmatprep.subr.mxu0 0.0
      %3531 = vmatpush1.msra.mxu0 %v1236
      %3532 = vmatprep.subr.mxu0 0.0
      %3533 = vmatpush1.msra.mxu0 %v1237
      %3534 = vmatprep.subr.mxu0 0.0
      %3535 = vmatpush1.msra.mxu0 %v1238
      %3536 = vmatprep.subr.mxu0 0.0
      %3537 = vmatpush1.msra.mxu0 %v1239
      %3538 = vmatprep.subr.mxu0 0.0
      %3539 = vmatpush1.msra.mxu0 %v1240
      %3540 = vmatprep.subr.mxu0 0.0
      %3541 = vmatpush1.msra.mxu0 %v1241
      %3542 = vmatprep.subr.mxu0 0.0
      %3543 = vmatpush1.msra.mxu0 %v1242
      %3544 = vmatprep.subr.mxu0 0.0
      %3545 = vmatpush1.msra.mxu0 %v1243
      %3546 = vmatprep.subr.mxu0 0.0
      %3547 = vmatpush1.msra.mxu0 %v1244
      %3548 = vmatprep.subr.mxu0 0.0
      %3549 = vmatpush1.msra.mxu0 %v1245
      %3550 = vmatprep.subr.mxu0 0.0
      %3551 = vmatpush1.msra.mxu0 %v1246
      %3552 = vmatprep.subr.mxu0 0.0
      %3553 = vmatpush1.msra.mxu0 %v1247
      %3554 = vmatprep.subr.mxu0 0.0
      %3555 = vmatpush1.msra.mxu0 %v1248
      %3556 = vmatprep.subr.mxu0 0.0
      %3557 = vmatpush1.msra.mxu0 %v1249
      %3558 = vmatprep.subr.mxu0 0.0
      %3559 = vmatpush1.msra.mxu0 %v1250
      %3560 = vmatprep.subr.mxu0 0.0
      %3561 = vmatpush1.msra.mxu0 0.0
      %3562 = vmatprep.subr.mxu0 0.0
      %3563 = vmatpush1.msra.mxu0 0.0
      %3564 = vmatprep.subr.mxu0 0.0
      %3565 = vmatpush1.msra.mxu0 0.0
      %3566 = vmatprep.subr.mxu0 0.0
      %3567 = vmatpush1.msra.mxu0 0.0
      %3568 = vmatprep.subr.mxu0 0.0
      %3569 = vmatpush1.msra.mxu0 0.0
      %3570 = vmatprep.subr.mxu0 0.0
      %3571 = vmatpush1.msra.mxu0 0.0
      %3572 = vmatprep.subr.mxu0 0.0
      %3573 = vmatpush1.msra.mxu0 0.0
      %3574 = vmatprep.subr.mxu0 0.0
      %3575 = vmatpush1.msra.mxu0 0.0
      %3576 = vmatprep.subr.mxu0 0.0
      %3577 = vmatpush1.msra.mxu0 0.0
      %3578 = vmatprep.subr.mxu0 0.0
      %3579 = vmatpush1.msra.mxu0 0.0
      %3580 = vmatprep.subr.mxu0 0.0
      %3581 = vmatpush1.msra.mxu0 0.0
      %3582 = vmatprep.subr.mxu0 0.0
      %3583 = vmatpush1.msra.mxu0 0.0
      %3584 = vmatprep.subr.mxu0 0.0
      %3585 = vmatpush1.msra.mxu0 0.0
      %3586 = vmatprep.subr.mxu0 0.0
      %3587 = vmatpush1.msra.mxu0 0.0
      %3588 = vmatprep.subr.mxu0 0.0
      %3589 = vmatpush1.msra.mxu0 0.0
      %3590 = vmatprep.subr.mxu0 0.0
      %3591 = vmatpush1.msra.mxu0 0.0
      %3592 = vmatprep.mubr.f32.mxu0 0.0
      %3593 = vmatmul.mubr.f32.gmra.mrb[0].mxu0 %v3527
      %v3594 = vpop.f32.mrb[0].mxu0
      %v3595 = vadd.f32 0.0, %v3594
      %v3596 = vpop.f32.mrb[0].mxu0
      %3597 = vdwg.mxu0
      %3598 = vmatprep.subr.mxu0 0.0
      %3599 = vmatpush1.msra.mxu0 %v1218
      %3600 = vmatprep.subr.mxu0 0.0
      %3601 = vmatpush1.msra.mxu0 %v1219
      %3602 = vmatprep.subr.mxu0 0.0
      %3603 = vmatpush1.msra.mxu0 %v1220
      %3604 = vmatprep.subr.mxu0 0.0
      %3605 = vmatpush1.msra.mxu0 %v1221
      %3606 = vmatprep.subr.mxu0 0.0
      %3607 = vmatpush1.msra.mxu0 %v1222
      %3608 = vmatprep.subr.mxu0 0.0
      %3609 = vmatpush1.msra.mxu0 %v1223
      %3610 = vmatprep.subr.mxu0 0.0
      %3611 = vmatpush1.msra.mxu0 %v1224
      %3612 = vmatprep.subr.mxu0 0.0
      %3613 = vmatpush1.msra.mxu0 %v1225
      %3614 = vmatprep.subr.mxu0 0.0
      %3615 = vmatpush1.msra.mxu0 %v1226
      %3616 = vmatprep.subr.mxu0 0.0
      %3617 = vmatpush1.msra.mxu0 %v1227
      %3618 = vmatprep.subr.mxu0 0.0
      %3619 = vmatpush1.msra.mxu0 %v1228
      %3620 = vmatprep.subr.mxu0 0.0
      %3621 = vmatpush1.msra.mxu0 %v1229
      %3622 = vmatprep.subr.mxu0 0.0
      %3623 = vmatpush1.msra.mxu0 %v1230
      %3624 = vmatprep.subr.mxu0 0.0
      %3625 = vmatpush1.msra.mxu0 %v1231
      %3626 = vmatprep.subr.mxu0 0.0
      %3627 = vmatpush1.msra.mxu0 %v1232
      %3628 = vmatprep.subr.mxu0 0.0
      %3629 = vmatpush1.msra.mxu0 %v1233
      %3630 = vmatprep.subr.mxu0 0.0
      %3631 = vmatpush1.msra.mxu0 0.0
      %3632 = vmatprep.subr.mxu0 0.0
      %3633 = vmatpush1.msra.mxu0 0.0
      %3634 = vmatprep.subr.mxu0 0.0
      %3635 = vmatpush1.msra.mxu0 0.0
      %3636 = vmatprep.subr.mxu0 0.0
      %3637 = vmatpush1.msra.mxu0 0.0
      %3638 = vmatprep.subr.mxu0 0.0
      %3639 = vmatpush1.msra.mxu0 0.0
      %3640 = vmatprep.subr.mxu0 0.0
      %3641 = vmatpush1.msra.mxu0 0.0
      %3642 = vmatprep.subr.mxu0 0.0
      %3643 = vmatpush1.msra.mxu0 0.0
      %3644 = vmatprep.subr.mxu0 0.0
      %3645 = vmatpush1.msra.mxu0 0.0
      %3646 = vmatprep.subr.mxu0 0.0
      %3647 = vmatpush1.msra.mxu0 0.0
      %3648 = vmatprep.subr.mxu0 0.0
      %3649 = vmatpush1.msra.mxu0 0.0
      %3650 = vmatprep.subr.mxu0 0.0
      %3651 = vmatpush1.msra.mxu0 0.0
      %3652 = vmatprep.subr.mxu0 0.0
      %3653 = vmatpush1.msra.mxu0 0.0
      %3654 = vmatprep.subr.mxu0 0.0
      %3655 = vmatpush1.msra.mxu0 0.0
      %3656 = vmatprep.subr.mxu0 0.0
      %3657 = vmatpush1.msra.mxu0 0.0
      %3658 = vmatprep.subr.mxu0 0.0
      %3659 = vmatpush1.msra.mxu0 0.0
      %3660 = vmatprep.subr.mxu0 0.0
      %3661 = vmatpush1.msra.mxu0 0.0
      %3662 = vmatprep.mubr.f32.mxu0 0.0
      %3663 = vmatmul.mubr.f32.gmra.mrb[0].mxu0 %v3523
      %v3664 = vpop.f32.mrb[0].mxu0
      %v3665 = vadd.f32 %v3595, %v3664
      %v3666 = vpop.f32.mrb[0].mxu0
      %3667 = vdwg.mxu0
      %v3668 = vadd.f32 %v3665, %v1256
      %v3669 = vxor.u32 %v3668, 2147483648
      %v3670 = vmul.f32 %v3669, 1.442695
      %v3671 = vpow.pop %v3670
      %v3672 = vadd.f32 %v3671, 1.0
      %v3673 = vrcp.pop %v3672
      %v3674 = vmul.f32 1.0, %v3673
      %v3675 = vmul.f32 %v3674, %v3523
      %v3676 = vsub.f32 1.0, %v3674
      %v3677 = vmul.f32 %v3676, %v3527
      %v3678 = vadd.f32 %v3675, %v3677
      %s3679 = scalar_lea.vmem %s503, 32
      %3680 = vst [vmem:[%s3679] sm:$0xff] %v3678
      %s3681 = scalar_lea.vmem [#allocation3], 120
      %v3682 = vld [vmem:[%s3681] sm:$0xff]
      %v3683 = vld [vmem:[%s3681 + $0x8] sm:$0xff]
      %v3684 = vld [vmem:[%s3681 + $0x10] sm:$0xff]
      %s3685 = scalar_lea.vmem [#allocation4], 120
      %v3686 = vld [vmem:[%s3685] sm:$0xff]
      %v3687 = vld [vmem:[%s3685 + $0x8] sm:$0xff]
      %v3688 = vld [vmem:[%s3685 + $0x10] sm:$0xff]
      %3689 = vmatprep.subr.mxu0 %v1122
      %3690 = vmatpush1.msra.mxu0 %v1121
      %3691 = vmatprep.subr.mxu0 %v1126
      %3692 = vmatpush1.msra.mxu0 %v1125
      %3693 = vmatprep.subr.mxu0 %v1130
      %3694 = vmatpush1.msra.mxu0 %v1129
      %3695 = vmatprep.subr.mxu0 %v1134
      %3696 = vmatpush1.msra.mxu0 %v1133
      %3697 = vmatprep.subr.mxu0 %v1138
      %3698 = vmatpush1.msra.mxu0 %v1137
      %3699 = vmatprep.subr.mxu0 %v1142
      %3700 = vmatpush1.msra.mxu0 %v1141
      %3701 = vmatprep.subr.mxu0 %v1146
      %3702 = vmatpush1.msra.mxu0 %v1145
      %3703 = vmatprep.subr.mxu0 %v1150
      %3704 = vmatpush1.msra.mxu0 %v1149
      %3705 = vmatprep.subr.mxu0 %v1154
      %3706 = vmatpush1.msra.mxu0 %v1153
      %3707 = vmatprep.subr.mxu0 %v1158
      %3708 = vmatpush1.msra.mxu0 %v1157
      %3709 = vmatprep.subr.mxu0 %v1162
      %3710 = vmatpush1.msra.mxu0 %v1161
      %3711 = vmatprep.subr.mxu0 %v1166
      %3712 = vmatpush1.msra.mxu0 %v1165
      %3713 = vmatprep.subr.mxu0 %v1170
      %3714 = vmatpush1.msra.mxu0 %v1169
      %3715 = vmatprep.subr.mxu0 %v1174
      %3716 = vmatpush1.msra.mxu0 %v1173
      %3717 = vmatprep.subr.mxu0 %v1178
      %3718 = vmatpush1.msra.mxu0 %v1177
      %3719 = vmatprep.subr.mxu0 %v1182
      %3720 = vmatpush1.msra.mxu0 %v1181
      %3721 = vmatprep.subr.mxu0 0.0
      %3722 = vmatpush1.msra.mxu0 0.0
      %3723 = vmatprep.subr.mxu0 0.0
      %3724 = vmatpush1.msra.mxu0 0.0
      %3725 = vmatprep.subr.mxu0 0.0
      %3726 = vmatpush1.msra.mxu0 0.0
      %3727 = vmatprep.subr.mxu0 0.0
      %3728 = vmatpush1.msra.mxu0 0.0
      %3729 = vmatprep.subr.mxu0 0.0
      %3730 = vmatpush1.msra.mxu0 0.0
      %3731 = vmatprep.subr.mxu0 0.0
      %3732 = vmatpush1.msra.mxu0 0.0
      %3733 = vmatprep.subr.mxu0 0.0
      %3734 = vmatpush1.msra.mxu0 0.0
      %3735 = vmatprep.subr.mxu0 0.0
      %3736 = vmatpush1.msra.mxu0 0.0
      %3737 = vmatprep.subr.mxu0 0.0
      %3738 = vmatpush1.msra.mxu0 0.0
      %3739 = vmatprep.subr.mxu0 0.0
      %3740 = vmatpush1.msra.mxu0 0.0
      %3741 = vmatprep.subr.mxu0 0.0
      %3742 = vmatpush1.msra.mxu0 0.0
      %3743 = vmatprep.subr.mxu0 0.0
      %3744 = vmatpush1.msra.mxu0 0.0
      %3745 = vmatprep.subr.mxu0 0.0
      %3746 = vmatpush1.msra.mxu0 0.0
      %3747 = vmatprep.subr.mxu0 0.0
      %3748 = vmatpush1.msra.mxu0 0.0
      %3749 = vmatprep.subr.mxu0 0.0
      %3750 = vmatpush1.msra.mxu0 0.0
      %3751 = vmatprep.subr.mxu0 0.0
      %3752 = vmatpush1.msra.mxu0 0.0
      %3753 = vmatprep.mubr.f32.mxu0 0.0
      %3754 = vmatmul.mubr.f32.gmra.mrb[0].mxu0 %v3678
      %v3755 = vpop.f32.mrb[0].mxu0
      %v3756 = vadd.f32 0.0, %v3755
      %v3757 = vpop.f32.mrb[0].mxu0
      %v3758 = vadd.f32 0.0, %v3757
      %3759 = vdwg.mxu0
      %3760 = vmatprep.subr.mxu0 %v1124
      %3761 = vmatpush1.msra.mxu0 %v1123
      %3762 = vmatprep.subr.mxu0 %v1128
      %3763 = vmatpush1.msra.mxu0 %v1127
      %3764 = vmatprep.subr.mxu0 %v1132
      %3765 = vmatpush1.msra.mxu0 %v1131
      %3766 = vmatprep.subr.mxu0 %v1136
      %3767 = vmatpush1.msra.mxu0 %v1135
      %3768 = vmatprep.subr.mxu0 %v1140
      %3769 = vmatpush1.msra.mxu0 %v1139
      %3770 = vmatprep.subr.mxu0 %v1144
      %3771 = vmatpush1.msra.mxu0 %v1143
      %3772 = vmatprep.subr.mxu0 %v1148
      %3773 = vmatpush1.msra.mxu0 %v1147
      %3774 = vmatprep.subr.mxu0 %v1152
      %3775 = vmatpush1.msra.mxu0 %v1151
      %3776 = vmatprep.subr.mxu0 %v1156
      %3777 = vmatpush1.msra.mxu0 %v1155
      %3778 = vmatprep.subr.mxu0 %v1160
      %3779 = vmatpush1.msra.mxu0 %v1159
      %3780 = vmatprep.subr.mxu0 %v1164
      %3781 = vmatpush1.msra.mxu0 %v1163
      %3782 = vmatprep.subr.mxu0 %v1168
      %3783 = vmatpush1.msra.mxu0 %v1167
      %3784 = vmatprep.subr.mxu0 %v1172
      %3785 = vmatpush1.msra.mxu0 %v1171
      %3786 = vmatprep.subr.mxu0 %v1176
      %3787 = vmatpush1.msra.mxu0 %v1175
      %3788 = vmatprep.subr.mxu0 %v1180
      %3789 = vmatpush1.msra.mxu0 %v1179
      %3790 = vmatprep.subr.mxu0 %v1184
      %3791 = vmatpush1.msra.mxu0 %v1183
      %3792 = vmatprep.subr.mxu0 0.0
      %3793 = vmatpush1.msra.mxu0 0.0
      %3794 = vmatprep.subr.mxu0 0.0
      %3795 = vmatpush1.msra.mxu0 0.0
      %3796 = vmatprep.subr.mxu0 0.0
      %3797 = vmatpush1.msra.mxu0 0.0
      %3798 = vmatprep.subr.mxu0 0.0
      %3799 = vmatpush1.msra.mxu0 0.0
      %3800 = vmatprep.subr.mxu0 0.0
      %3801 = vmatpush1.msra.mxu0 0.0
      %3802 = vmatprep.subr.mxu0 0.0
      %3803 = vmatpush1.msra.mxu0 0.0
      %3804 = vmatprep.subr.mxu0 0.0
      %3805 = vmatpush1.msra.mxu0 0.0
      %3806 = vmatprep.subr.mxu0 0.0
      %3807 = vmatpush1.msra.mxu0 0.0
      %3808 = vmatprep.subr.mxu0 0.0
      %3809 = vmatpush1.msra.mxu0 0.0
      %3810 = vmatprep.subr.mxu0 0.0
      %3811 = vmatpush1.msra.mxu0 0.0
      %3812 = vmatprep.subr.mxu0 0.0
      %3813 = vmatpush1.msra.mxu0 0.0
      %3814 = vmatprep.subr.mxu0 0.0
      %3815 = vmatpush1.msra.mxu0 0.0
      %3816 = vmatprep.subr.mxu0 0.0
      %3817 = vmatpush1.msra.mxu0 0.0
      %3818 = vmatprep.subr.mxu0 0.0
      %3819 = vmatpush1.msra.mxu0 0.0
      %3820 = vmatprep.subr.mxu0 0.0
      %3821 = vmatpush1.msra.mxu0 0.0
      %3822 = vmatprep.subr.mxu0 0.0
      %3823 = vmatpush1.msra.mxu0 0.0
      %3824 = vmatprep.mubr.f32.mxu0 0.0
      %3825 = vmatmul.mubr.f32.gmra.mrb[0].mxu0 %v3678
      %v3826 = vpop.f32.mrb[0].mxu0
      %v3827 = vadd.f32 0.0, %v3826
      %v3828 = vpop.f32.mrb[0].mxu0
      %v3829 = vadd.f32 0.0, %v3828
      %3830 = vdwg.mxu0
      %v3831 = vadd.f32 %v3682, %v3756
      %v3832 = vxor.u32 %v3831, 2147483648
      %v3833 = vmul.f32 %v3832, 1.442695
      %v3834 = vpow.pop %v3833
      %v3835 = vadd.f32 %v3834, 1.0
      %v3836 = vrcp.pop %v3835
      %v3837 = vmul.f32 1.0, %v3836
      %v3838 = vadd.f32 %v3683, %v3758
      %v3839 = vxor.u32 %v3838, 2147483648
      %v3840 = vmul.f32 %v3839, 1.442695
      %v3841 = vpow.pop %v3840
      %v3842 = vadd.f32 %v3841, 1.0
      %v3843 = vrcp.pop %v3842
      %v3844 = vmul.f32 1.0, %v3843
      %v3845 = vadd.f32 %v3686, %v3827
      %v3846 = vxor.u32 %v3845, 2147483648
      %v3847 = vmul.f32 %v3846, 1.442695
      %v3848 = vpow.pop %v3847
      %v3849 = vadd.f32 %v3848, 1.0
      %v3850 = vrcp.pop %v3849
      %v3851 = vmul.f32 1.0, %v3850
      %v3852 = vadd.f32 %v3687, %v3829
      %v3853 = vxor.u32 %v3852, 2147483648
      %v3854 = vmul.f32 %v3853, 1.442695
      %v3855 = vpow.pop %v3854
      %v3856 = vadd.f32 %v3855, 1.0
      %v3857 = vrcp.pop %v3856
      %v3858 = vmul.f32 1.0, %v3857
      %v3859 = vmul.f32 %v3844, %v3678
      %3860 = vmatprep.subr.mxu0 0.0
      %3861 = vmatpush1.msra.mxu0 %v1185
      %3862 = vmatprep.subr.mxu0 0.0
      %3863 = vmatpush1.msra.mxu0 %v1186
      %3864 = vmatprep.subr.mxu0 0.0
      %3865 = vmatpush1.msra.mxu0 %v1187
      %3866 = vmatprep.subr.mxu0 0.0
      %3867 = vmatpush1.msra.mxu0 %v1188
      %3868 = vmatprep.subr.mxu0 0.0
      %3869 = vmatpush1.msra.mxu0 %v1189
      %3870 = vmatprep.subr.mxu0 0.0
      %3871 = vmatpush1.msra.mxu0 %v1190
      %3872 = vmatprep.subr.mxu0 0.0
      %3873 = vmatpush1.msra.mxu0 %v1191
      %3874 = vmatprep.subr.mxu0 0.0
      %3875 = vmatpush1.msra.mxu0 %v1192
      %3876 = vmatprep.subr.mxu0 0.0
      %3877 = vmatpush1.msra.mxu0 %v1193
      %3878 = vmatprep.subr.mxu0 0.0
      %3879 = vmatpush1.msra.mxu0 %v1194
      %3880 = vmatprep.subr.mxu0 0.0
      %3881 = vmatpush1.msra.mxu0 %v1195
      %3882 = vmatprep.subr.mxu0 0.0
      %3883 = vmatpush1.msra.mxu0 %v1196
      %3884 = vmatprep.subr.mxu0 0.0
      %3885 = vmatpush1.msra.mxu0 %v1197
      %3886 = vmatprep.subr.mxu0 0.0
      %3887 = vmatpush1.msra.mxu0 %v1198
      %3888 = vmatprep.subr.mxu0 0.0
      %3889 = vmatpush1.msra.mxu0 %v1199
      %3890 = vmatprep.subr.mxu0 0.0
      %3891 = vmatpush1.msra.mxu0 %v1200
      %3892 = vmatprep.subr.mxu0 0.0
      %3893 = vmatpush1.msra.mxu0 0.0
      %3894 = vmatprep.subr.mxu0 0.0
      %3895 = vmatpush1.msra.mxu0 0.0
      %3896 = vmatprep.subr.mxu0 0.0
      %3897 = vmatpush1.msra.mxu0 0.0
      %3898 = vmatprep.subr.mxu0 0.0
      %3899 = vmatpush1.msra.mxu0 0.0
      %3900 = vmatprep.subr.mxu0 0.0
      %3901 = vmatpush1.msra.mxu0 0.0
      %3902 = vmatprep.subr.mxu0 0.0
      %3903 = vmatpush1.msra.mxu0 0.0
      %3904 = vmatprep.subr.mxu0 0.0
      %3905 = vmatpush1.msra.mxu0 0.0
      %3906 = vmatprep.subr.mxu0 0.0
      %3907 = vmatpush1.msra.mxu0 0.0
      %3908 = vmatprep.subr.mxu0 0.0
      %3909 = vmatpush1.msra.mxu0 0.0
      %3910 = vmatprep.subr.mxu0 0.0
      %3911 = vmatpush1.msra.mxu0 0.0
      %3912 = vmatprep.subr.mxu0 0.0
      %3913 = vmatpush1.msra.mxu0 0.0
      %3914 = vmatprep.subr.mxu0 0.0
      %3915 = vmatpush1.msra.mxu0 0.0
      %3916 = vmatprep.subr.mxu0 0.0
      %3917 = vmatpush1.msra.mxu0 0.0
      %3918 = vmatprep.subr.mxu0 0.0
      %3919 = vmatpush1.msra.mxu0 0.0
      %3920 = vmatprep.subr.mxu0 0.0
      %3921 = vmatpush1.msra.mxu0 0.0
      %3922 = vmatprep.subr.mxu0 0.0
      %3923 = vmatpush1.msra.mxu0 0.0
      %3924 = vmatprep.mubr.f32.mxu0 0.0
      %3925 = vmatmul.mubr.f32.gmra.mrb[0].mxu0 %v3859
      %v3926 = vpop.f32.mrb[0].mxu0
      %v3927 = vadd.f32 0.0, %v3926
      %v3928 = vpop.f32.mrb[0].mxu0
      %3929 = vdwg.mxu0
      %v3930 = vadd.f32 %v3684, %v3927
      %v3931 = vtanh.pop %v3930
      %v3932 = vmul.f32 %v3858, %v3678
      %3933 = vmatprep.subr.mxu0 0.0
      %3934 = vmatpush1.msra.mxu0 %v1202
      %3935 = vmatprep.subr.mxu0 0.0
      %3936 = vmatpush1.msra.mxu0 %v1203
      %3937 = vmatprep.subr.mxu0 0.0
      %3938 = vmatpush1.msra.mxu0 %v1204
      %3939 = vmatprep.subr.mxu0 0.0
      %3940 = vmatpush1.msra.mxu0 %v1205
      %3941 = vmatprep.subr.mxu0 0.0
      %3942 = vmatpush1.msra.mxu0 %v1206
      %3943 = vmatprep.subr.mxu0 0.0
      %3944 = vmatpush1.msra.mxu0 %v1207
      %3945 = vmatprep.subr.mxu0 0.0
      %3946 = vmatpush1.msra.mxu0 %v1208
      %3947 = vmatprep.subr.mxu0 0.0
      %3948 = vmatpush1.msra.mxu0 %v1209
      %3949 = vmatprep.subr.mxu0 0.0
      %3950 = vmatpush1.msra.mxu0 %v1210
      %3951 = vmatprep.subr.mxu0 0.0
      %3952 = vmatpush1.msra.mxu0 %v1211
      %3953 = vmatprep.subr.mxu0 0.0
      %3954 = vmatpush1.msra.mxu0 %v1212
      %3955 = vmatprep.subr.mxu0 0.0
      %3956 = vmatpush1.msra.mxu0 %v1213
      %3957 = vmatprep.subr.mxu0 0.0
      %3958 = vmatpush1.msra.mxu0 %v1214
      %3959 = vmatprep.subr.mxu0 0.0
      %3960 = vmatpush1.msra.mxu0 %v1215
      %3961 = vmatprep.subr.mxu0 0.0
      %3962 = vmatpush1.msra.mxu0 %v1216
      %3963 = vmatprep.subr.mxu0 0.0
      %3964 = vmatpush1.msra.mxu0 %v1217
      %3965 = vmatprep.subr.mxu0 0.0
      %3966 = vmatpush1.msra.mxu0 0.0
      %3967 = vmatprep.subr.mxu0 0.0
      %3968 = vmatpush1.msra.mxu0 0.0
      %3969 = vmatprep.subr.mxu0 0.0
      %3970 = vmatpush1.msra.mxu0 0.0
      %3971 = vmatprep.subr.mxu0 0.0
      %3972 = vmatpush1.msra.mxu0 0.0
      %3973 = vmatprep.subr.mxu0 0.0
      %3974 = vmatpush1.msra.mxu0 0.0
      %3975 = vmatprep.subr.mxu0 0.0
      %3976 = vmatpush1.msra.mxu0 0.0
      %3977 = vmatprep.subr.mxu0 0.0
      %3978 = vmatpush1.msra.mxu0 0.0
      %3979 = vmatprep.subr.mxu0 0.0
      %3980 = vmatpush1.msra.mxu0 0.0
      %3981 = vmatprep.subr.mxu0 0.0
      %3982 = vmatpush1.msra.mxu0 0.0
      %3983 = vmatprep.subr.mxu0 0.0
      %3984 = vmatpush1.msra.mxu0 0.0
      %3985 = vmatprep.subr.mxu0 0.0
      %3986 = vmatpush1.msra.mxu0 0.0
      %3987 = vmatprep.subr.mxu0 0.0
      %3988 = vmatpush1.msra.mxu0 0.0
      %3989 = vmatprep.subr.mxu0 0.0
      %3990 = vmatpush1.msra.mxu0 0.0
      %3991 = vmatprep.subr.mxu0 0.0
      %3992 = vmatpush1.msra.mxu0 0.0
      %3993 = vmatprep.subr.mxu0 0.0
      %3994 = vmatpush1.msra.mxu0 0.0
      %3995 = vmatprep.subr.mxu0 0.0
      %3996 = vmatpush1.msra.mxu0 0.0
      %3997 = vmatprep.mubr.f32.mxu0 0.0
      %3998 = vmatmul.mubr.f32.gmra.mrb[0].mxu0 %v3932
      %v3999 = vpop.f32.mrb[0].mxu0
      %v4000 = vadd.f32 0.0, %v3999
      %v4001 = vpop.f32.mrb[0].mxu0
      %4002 = vdwg.mxu0
      %v4003 = vadd.f32 %v3688, %v4000
      %v4004 = vtanh.pop %v4003
      %v4005 = vmul.f32 %v3837, %v3678
      %v4006 = vsub.f32 1.0, %v3837
      %v4007 = vmul.f32 %v4006, %v3931
      %v4008 = vadd.f32 %v4005, %v4007
      %v4009 = vmul.f32 %v3851, %v3678
      %v4010 = vsub.f32 1.0, %v3851
      %v4011 = vmul.f32 %v4010, %v4004
      %v4012 = vadd.f32 %v4009, %v4011
      %4013 = vmatprep.subr.mxu0 0.0
      %4014 = vmatpush1.msra.mxu0 %v1235
      %4015 = vmatprep.subr.mxu0 0.0
      %4016 = vmatpush1.msra.mxu0 %v1236
      %4017 = vmatprep.subr.mxu0 0.0
      %4018 = vmatpush1.msra.mxu0 %v1237
      %4019 = vmatprep.subr.mxu0 0.0
      %4020 = vmatpush1.msra.mxu0 %v1238
      %4021 = vmatprep.subr.mxu0 0.0
      %4022 = vmatpush1.msra.mxu0 %v1239
      %4023 = vmatprep.subr.mxu0 0.0
      %4024 = vmatpush1.msra.mxu0 %v1240
      %4025 = vmatprep.subr.mxu0 0.0
      %4026 = vmatpush1.msra.mxu0 %v1241
      %4027 = vmatprep.subr.mxu0 0.0
      %4028 = vmatpush1.msra.mxu0 %v1242
      %4029 = vmatprep.subr.mxu0 0.0
      %4030 = vmatpush1.msra.mxu0 %v1243
      %4031 = vmatprep.subr.mxu0 0.0
      %4032 = vmatpush1.msra.mxu0 %v1244
      %4033 = vmatprep.subr.mxu0 0.0
      %4034 = vmatpush1.msra.mxu0 %v1245
      %4035 = vmatprep.subr.mxu0 0.0
      %4036 = vmatpush1.msra.mxu0 %v1246
      %4037 = vmatprep.subr.mxu0 0.0
      %4038 = vmatpush1.msra.mxu0 %v1247
      %4039 = vmatprep.subr.mxu0 0.0
      %4040 = vmatpush1.msra.mxu0 %v1248
      %4041 = vmatprep.subr.mxu0 0.0
      %4042 = vmatpush1.msra.mxu0 %v1249
      %4043 = vmatprep.subr.mxu0 0.0
      %4044 = vmatpush1.msra.mxu0 %v1250
      %4045 = vmatprep.subr.mxu0 0.0
      %4046 = vmatpush1.msra.mxu0 0.0
      %4047 = vmatprep.subr.mxu0 0.0
      %4048 = vmatpush1.msra.mxu0 0.0
      %4049 = vmatprep.subr.mxu0 0.0
      %4050 = vmatpush1.msra.mxu0 0.0
      %4051 = vmatprep.subr.mxu0 0.0
      %4052 = vmatpush1.msra.mxu0 0.0
      %4053 = vmatprep.subr.mxu0 0.0
      %4054 = vmatpush1.msra.mxu0 0.0
      %4055 = vmatprep.subr.mxu0 0.0
      %4056 = vmatpush1.msra.mxu0 0.0
      %4057 = vmatprep.subr.mxu0 0.0
      %4058 = vmatpush1.msra.mxu0 0.0
      %4059 = vmatprep.subr.mxu0 0.0
      %4060 = vmatpush1.msra.mxu0 0.0
      %4061 = vmatprep.subr.mxu0 0.0
      %4062 = vmatpush1.msra.mxu0 0.0
      %4063 = vmatprep.subr.mxu0 0.0
      %4064 = vmatpush1.msra.mxu0 0.0
      %4065 = vmatprep.subr.mxu0 0.0
      %4066 = vmatpush1.msra.mxu0 0.0
      %4067 = vmatprep.subr.mxu0 0.0
      %4068 = vmatpush1.msra.mxu0 0.0
      %4069 = vmatprep.subr.mxu0 0.0
      %4070 = vmatpush1.msra.mxu0 0.0
      %4071 = vmatprep.subr.mxu0 0.0
      %4072 = vmatpush1.msra.mxu0 0.0
      %4073 = vmatprep.subr.mxu0 0.0
      %4074 = vmatpush1.msra.mxu0 0.0
      %4075 = vmatprep.subr.mxu0 0.0
      %4076 = vmatpush1.msra.mxu0 0.0
      %4077 = vmatprep.mubr.f32.mxu0 0.0
      %4078 = vmatmul.mubr.f32.gmra.mrb[0].mxu0 %v4012
      %v4079 = vpop.f32.mrb[0].mxu0
      %v4080 = vadd.f32 0.0, %v4079
      %v4081 = vpop.f32.mrb[0].mxu0
      %4082 = vdwg.mxu0
      %4083 = vmatprep.subr.mxu0 0.0
      %4084 = vmatpush1.msra.mxu0 %v1218
      %4085 = vmatprep.subr.mxu0 0.0
      %4086 = vmatpush1.msra.mxu0 %v1219
      %4087 = vmatprep.subr.mxu0 0.0
      %4088 = vmatpush1.msra.mxu0 %v1220
      %4089 = vmatprep.subr.mxu0 0.0
      %4090 = vmatpush1.msra.mxu0 %v1221
      %4091 = vmatprep.subr.mxu0 0.0
      %4092 = vmatpush1.msra.mxu0 %v1222
      %4093 = vmatprep.subr.mxu0 0.0
      %4094 = vmatpush1.msra.mxu0 %v1223
      %4095 = vmatprep.subr.mxu0 0.0
      %4096 = vmatpush1.msra.mxu0 %v1224
      %4097 = vmatprep.subr.mxu0 0.0
      %4098 = vmatpush1.msra.mxu0 %v1225
      %4099 = vmatprep.subr.mxu0 0.0
      %4100 = vmatpush1.msra.mxu0 %v1226
      %4101 = vmatprep.subr.mxu0 0.0
      %4102 = vmatpush1.msra.mxu0 %v1227
      %4103 = vmatprep.subr.mxu0 0.0
      %4104 = vmatpush1.msra.mxu0 %v1228
      %4105 = vmatprep.subr.mxu0 0.0
      %4106 = vmatpush1.msra.mxu0 %v1229
      %4107 = vmatprep.subr.mxu0 0.0
      %4108 = vmatpush1.msra.mxu0 %v1230
      %4109 = vmatprep.subr.mxu0 0.0
      %4110 = vmatpush1.msra.mxu0 %v1231
      %4111 = vmatprep.subr.mxu0 0.0
      %4112 = vmatpush1.msra.mxu0 %v1232
      %4113 = vmatprep.subr.mxu0 0.0
      %4114 = vmatpush1.msra.mxu0 %v1233
      %4115 = vmatprep.subr.mxu0 0.0
      %4116 = vmatpush1.msra.mxu0 0.0
      %4117 = vmatprep.subr.mxu0 0.0
      %4118 = vmatpush1.msra.mxu0 0.0
      %4119 = vmatprep.subr.mxu0 0.0
      %4120 = vmatpush1.msra.mxu0 0.0
      %4121 = vmatprep.subr.mxu0 0.0
      %4122 = vmatpush1.msra.mxu0 0.0
      %4123 = vmatprep.subr.mxu0 0.0
      %4124 = vmatpush1.msra.mxu0 0.0
      %4125 = vmatprep.subr.mxu0 0.0
      %4126 = vmatpush1.msra.mxu0 0.0
      %4127 = vmatprep.subr.mxu0 0.0
      %4128 = vmatpush1.msra.mxu0 0.0
      %4129 = vmatprep.subr.mxu0 0.0
      %4130 = vmatpush1.msra.mxu0 0.0
      %4131 = vmatprep.subr.mxu0 0.0
      %4132 = vmatpush1.msra.mxu0 0.0
      %4133 = vmatprep.subr.mxu0 0.0
      %4134 = vmatpush1.msra.mxu0 0.0
      %4135 = vmatprep.subr.mxu0 0.0
      %4136 = vmatpush1.msra.mxu0 0.0
      %4137 = vmatprep.subr.mxu0 0.0
      %4138 = vmatpush1.msra.mxu0 0.0
      %4139 = vmatprep.subr.mxu0 0.0
      %4140 = vmatpush1.msra.mxu0 0.0
      %4141 = vmatprep.subr.mxu0 0.0
      %4142 = vmatpush1.msra.mxu0 0.0
      %4143 = vmatprep.subr.mxu0 0.0
      %4144 = vmatpush1.msra.mxu0 0.0
      %4145 = vmatprep.subr.mxu0 0.0
      %4146 = vmatpush1.msra.mxu0 0.0
      %4147 = vmatprep.mubr.f32.mxu0 0.0
      %4148 = vmatmul.mubr.f32.gmra.mrb[0].mxu0 %v4008
      %v4149 = vpop.f32.mrb[0].mxu0
      %v4150 = vadd.f32 %v4080, %v4149
      %v4151 = vpop.f32.mrb[0].mxu0
      %4152 = vdwg.mxu0
      %v4153 = vadd.f32 %v4150, %v1256
      %v4154 = vxor.u32 %v4153, 2147483648
      %v4155 = vmul.f32 %v4154, 1.442695
      %v4156 = vpow.pop %v4155
      %v4157 = vadd.f32 %v4156, 1.0
      %v4158 = vrcp.pop %v4157
      %v4159 = vmul.f32 1.0, %v4158
      %v4160 = vmul.f32 %v4159, %v4008
      %v4161 = vsub.f32 1.0, %v4159
      %v4162 = vmul.f32 %v4161, %v4012
      %v4163 = vadd.f32 %v4160, %v4162
      %s4164 = scalar_lea.vmem %s503, 40
      %4165 = vst [vmem:[%s4164] sm:$0xff] %v4163
      %s4166 = scalar_lea.vmem [#allocation3], 144
      %v4167 = vld [vmem:[%s4166] sm:$0xff]
      %v4168 = vld [vmem:[%s4166 + $0x8] sm:$0xff]
      %v4169 = vld [vmem:[%s4166 + $0x10] sm:$0xff]
      %s4170 = scalar_lea.vmem [#allocation4], 144
      %v4171 = vld [vmem:[%s4170] sm:$0xff]
      %v4172 = vld [vmem:[%s4170 + $0x8] sm:$0xff]
      %v4173 = vld [vmem:[%s4170 + $0x10] sm:$0xff]
      %4174 = vmatprep.subr.mxu0 %v1122
      %4175 = vmatpush1.msra.mxu0 %v1121
      %4176 = vmatprep.subr.mxu0 %v1126
      %4177 = vmatpush1.msra.mxu0 %v1125
      %4178 = vmatprep.subr.mxu0 %v1130
      %4179 = vmatpush1.msra.mxu0 %v1129
      %4180 = vmatprep.subr.mxu0 %v1134
      %4181 = vmatpush1.msra.mxu0 %v1133
      %4182 = vmatprep.subr.mxu0 %v1138
      %4183 = vmatpush1.msra.mxu0 %v1137
      %4184 = vmatprep.subr.mxu0 %v1142
      %4185 = vmatpush1.msra.mxu0 %v1141
      %4186 = vmatprep.subr.mxu0 %v1146
      %4187 = vmatpush1.msra.mxu0 %v1145
      %4188 = vmatprep.subr.mxu0 %v1150
      %4189 = vmatpush1.msra.mxu0 %v1149
      %4190 = vmatprep.subr.mxu0 %v1154
      %4191 = vmatpush1.msra.mxu0 %v1153
      %4192 = vmatprep.subr.mxu0 %v1158
      %4193 = vmatpush1.msra.mxu0 %v1157
      %4194 = vmatprep.subr.mxu0 %v1162
      %4195 = vmatpush1.msra.mxu0 %v1161
      %4196 = vmatprep.subr.mxu0 %v1166
      %4197 = vmatpush1.msra.mxu0 %v1165
      %4198 = vmatprep.subr.mxu0 %v1170
      %4199 = vmatpush1.msra.mxu0 %v1169
      %4200 = vmatprep.subr.mxu0 %v1174
      %4201 = vmatpush1.msra.mxu0 %v1173
      %4202 = vmatprep.subr.mxu0 %v1178
      %4203 = vmatpush1.msra.mxu0 %v1177
      %4204 = vmatprep.subr.mxu0 %v1182
      %4205 = vmatpush1.msra.mxu0 %v1181
      %4206 = vmatprep.subr.mxu0 0.0
      %4207 = vmatpush1.msra.mxu0 0.0
      %4208 = vmatprep.subr.mxu0 0.0
      %4209 = vmatpush1.msra.mxu0 0.0
      %4210 = vmatprep.subr.mxu0 0.0
      %4211 = vmatpush1.msra.mxu0 0.0
      %4212 = vmatprep.subr.mxu0 0.0
      %4213 = vmatpush1.msra.mxu0 0.0
      %4214 = vmatprep.subr.mxu0 0.0
      %4215 = vmatpush1.msra.mxu0 0.0
      %4216 = vmatprep.subr.mxu0 0.0
      %4217 = vmatpush1.msra.mxu0 0.0
      %4218 = vmatprep.subr.mxu0 0.0
      %4219 = vmatpush1.msra.mxu0 0.0
      %4220 = vmatprep.subr.mxu0 0.0
      %4221 = vmatpush1.msra.mxu0 0.0
      %4222 = vmatprep.subr.mxu0 0.0
      %4223 = vmatpush1.msra.mxu0 0.0
      %4224 = vmatprep.subr.mxu0 0.0
      %4225 = vmatpush1.msra.mxu0 0.0
      %4226 = vmatprep.subr.mxu0 0.0
      %4227 = vmatpush1.msra.mxu0 0.0
      %4228 = vmatprep.subr.mxu0 0.0
      %4229 = vmatpush1.msra.mxu0 0.0
      %4230 = vmatprep.subr.mxu0 0.0
      %4231 = vmatpush1.msra.mxu0 0.0
      %4232 = vmatprep.subr.mxu0 0.0
      %4233 = vmatpush1.msra.mxu0 0.0
      %4234 = vmatprep.subr.mxu0 0.0
      %4235 = vmatpush1.msra.mxu0 0.0
      %4236 = vmatprep.subr.mxu0 0.0
      %4237 = vmatpush1.msra.mxu0 0.0
      %4238 = vmatprep.mubr.f32.mxu0 0.0
      %4239 = vmatmul.mubr.f32.gmra.mrb[0].mxu0 %v4163
      %v4240 = vpop.f32.mrb[0].mxu0
      %v4241 = vadd.f32 0.0, %v4240
      %v4242 = vpop.f32.mrb[0].mxu0
      %v4243 = vadd.f32 0.0, %v4242
      %4244 = vdwg.mxu0
      %4245 = vmatprep.subr.mxu0 %v1124
      %4246 = vmatpush1.msra.mxu0 %v1123
      %4247 = vmatprep.subr.mxu0 %v1128
      %4248 = vmatpush1.msra.mxu0 %v1127
      %4249 = vmatprep.subr.mxu0 %v1132
      %4250 = vmatpush1.msra.mxu0 %v1131
      %4251 = vmatprep.subr.mxu0 %v1136
      %4252 = vmatpush1.msra.mxu0 %v1135
      %4253 = vmatprep.subr.mxu0 %v1140
      %4254 = vmatpush1.msra.mxu0 %v1139
      %4255 = vmatprep.subr.mxu0 %v1144
      %4256 = vmatpush1.msra.mxu0 %v1143
      %4257 = vmatprep.subr.mxu0 %v1148
      %4258 = vmatpush1.msra.mxu0 %v1147
      %4259 = vmatprep.subr.mxu0 %v1152
      %4260 = vmatpush1.msra.mxu0 %v1151
      %4261 = vmatprep.subr.mxu0 %v1156
      %4262 = vmatpush1.msra.mxu0 %v1155
      %4263 = vmatprep.subr.mxu0 %v1160
      %4264 = vmatpush1.msra.mxu0 %v1159
      %4265 = vmatprep.subr.mxu0 %v1164
      %4266 = vmatpush1.msra.mxu0 %v1163
      %4267 = vmatprep.subr.mxu0 %v1168
      %4268 = vmatpush1.msra.mxu0 %v1167
      %4269 = vmatprep.subr.mxu0 %v1172
      %4270 = vmatpush1.msra.mxu0 %v1171
      %4271 = vmatprep.subr.mxu0 %v1176
      %4272 = vmatpush1.msra.mxu0 %v1175
      %4273 = vmatprep.subr.mxu0 %v1180
      %4274 = vmatpush1.msra.mxu0 %v1179
      %4275 = vmatprep.subr.mxu0 %v1184
      %4276 = vmatpush1.msra.mxu0 %v1183
      %4277 = vmatprep.subr.mxu0 0.0
      %4278 = vmatpush1.msra.mxu0 0.0
      %4279 = vmatprep.subr.mxu0 0.0
      %4280 = vmatpush1.msra.mxu0 0.0
      %4281 = vmatprep.subr.mxu0 0.0
      %4282 = vmatpush1.msra.mxu0 0.0
      %4283 = vmatprep.subr.mxu0 0.0
      %4284 = vmatpush1.msra.mxu0 0.0
      %4285 = vmatprep.subr.mxu0 0.0
      %4286 = vmatpush1.msra.mxu0 0.0
      %4287 = vmatprep.subr.mxu0 0.0
      %4288 = vmatpush1.msra.mxu0 0.0
      %4289 = vmatprep.subr.mxu0 0.0
      %4290 = vmatpush1.msra.mxu0 0.0
      %4291 = vmatprep.subr.mxu0 0.0
      %4292 = vmatpush1.msra.mxu0 0.0
      %4293 = vmatprep.subr.mxu0 0.0
      %4294 = vmatpush1.msra.mxu0 0.0
      %4295 = vmatprep.subr.mxu0 0.0
      %4296 = vmatpush1.msra.mxu0 0.0
      %4297 = vmatprep.subr.mxu0 0.0
      %4298 = vmatpush1.msra.mxu0 0.0
      %4299 = vmatprep.subr.mxu0 0.0
      %4300 = vmatpush1.msra.mxu0 0.0
      %4301 = vmatprep.subr.mxu0 0.0
      %4302 = vmatpush1.msra.mxu0 0.0
      %4303 = vmatprep.subr.mxu0 0.0
      %4304 = vmatpush1.msra.mxu0 0.0
      %4305 = vmatprep.subr.mxu0 0.0
      %4306 = vmatpush1.msra.mxu0 0.0
      %4307 = vmatprep.subr.mxu0 0.0
      %4308 = vmatpush1.msra.mxu0 0.0
      %4309 = vmatprep.mubr.f32.mxu0 0.0
      %4310 = vmatmul.mubr.f32.gmra.mrb[0].mxu0 %v4163
      %v4311 = vpop.f32.mrb[0].mxu0
      %v4312 = vadd.f32 0.0, %v4311
      %v4313 = vpop.f32.mrb[0].mxu0
      %v4314 = vadd.f32 0.0, %v4313
      %4315 = vdwg.mxu0
      %v4316 = vadd.f32 %v4167, %v4241
      %v4317 = vxor.u32 %v4316, 2147483648
      %v4318 = vmul.f32 %v4317, 1.442695
      %v4319 = vpow.pop %v4318
      %v4320 = vadd.f32 %v4319, 1.0
      %v4321 = vrcp.pop %v4320
      %v4322 = vmul.f32 1.0, %v4321
      %v4323 = vadd.f32 %v4168, %v4243
      %v4324 = vxor.u32 %v4323, 2147483648
      %v4325 = vmul.f32 %v4324, 1.442695
      %v4326 = vpow.pop %v4325
      %v4327 = vadd.f32 %v4326, 1.0
      %v4328 = vrcp.pop %v4327
      %v4329 = vmul.f32 1.0, %v4328
      %v4330 = vadd.f32 %v4171, %v4312
      %v4331 = vxor.u32 %v4330, 2147483648
      %v4332 = vmul.f32 %v4331, 1.442695
      %v4333 = vpow.pop %v4332
      %v4334 = vadd.f32 %v4333, 1.0
      %v4335 = vrcp.pop %v4334
      %v4336 = vmul.f32 1.0, %v4335
      %v4337 = vadd.f32 %v4172, %v4314
      %v4338 = vxor.u32 %v4337, 2147483648
      %v4339 = vmul.f32 %v4338, 1.442695
      %v4340 = vpow.pop %v4339
      %v4341 = vadd.f32 %v4340, 1.0
      %v4342 = vrcp.pop %v4341
      %v4343 = vmul.f32 1.0, %v4342
      %v4344 = vmul.f32 %v4329, %v4163
      %4345 = vmatprep.subr.mxu0 0.0
      %4346 = vmatpush1.msra.mxu0 %v1185
      %4347 = vmatprep.subr.mxu0 0.0
      %4348 = vmatpush1.msra.mxu0 %v1186
      %4349 = vmatprep.subr.mxu0 0.0
      %4350 = vmatpush1.msra.mxu0 %v1187
      %4351 = vmatprep.subr.mxu0 0.0
      %4352 = vmatpush1.msra.mxu0 %v1188
      %4353 = vmatprep.subr.mxu0 0.0
      %4354 = vmatpush1.msra.mxu0 %v1189
      %4355 = vmatprep.subr.mxu0 0.0
      %4356 = vmatpush1.msra.mxu0 %v1190
      %4357 = vmatprep.subr.mxu0 0.0
      %4358 = vmatpush1.msra.mxu0 %v1191
      %4359 = vmatprep.subr.mxu0 0.0
      %4360 = vmatpush1.msra.mxu0 %v1192
      %4361 = vmatprep.subr.mxu0 0.0
      %4362 = vmatpush1.msra.mxu0 %v1193
      %4363 = vmatprep.subr.mxu0 0.0
      %4364 = vmatpush1.msra.mxu0 %v1194
      %4365 = vmatprep.subr.mxu0 0.0
      %4366 = vmatpush1.msra.mxu0 %v1195
      %4367 = vmatprep.subr.mxu0 0.0
      %4368 = vmatpush1.msra.mxu0 %v1196
      %4369 = vmatprep.subr.mxu0 0.0
      %4370 = vmatpush1.msra.mxu0 %v1197
      %4371 = vmatprep.subr.mxu0 0.0
      %4372 = vmatpush1.msra.mxu0 %v1198
      %4373 = vmatprep.subr.mxu0 0.0
      %4374 = vmatpush1.msra.mxu0 %v1199
      %4375 = vmatprep.subr.mxu0 0.0
      %4376 = vmatpush1.msra.mxu0 %v1200
      %4377 = vmatprep.subr.mxu0 0.0
      %4378 = vmatpush1.msra.mxu0 0.0
      %4379 = vmatprep.subr.mxu0 0.0
      %4380 = vmatpush1.msra.mxu0 0.0
      %4381 = vmatprep.subr.mxu0 0.0
      %4382 = vmatpush1.msra.mxu0 0.0
      %4383 = vmatprep.subr.mxu0 0.0
      %4384 = vmatpush1.msra.mxu0 0.0
      %4385 = vmatprep.subr.mxu0 0.0
      %4386 = vmatpush1.msra.mxu0 0.0
      %4387 = vmatprep.subr.mxu0 0.0
      %4388 = vmatpush1.msra.mxu0 0.0
      %4389 = vmatprep.subr.mxu0 0.0
      %4390 = vmatpush1.msra.mxu0 0.0
      %4391 = vmatprep.subr.mxu0 0.0
      %4392 = vmatpush1.msra.mxu0 0.0
      %4393 = vmatprep.subr.mxu0 0.0
      %4394 = vmatpush1.msra.mxu0 0.0
      %4395 = vmatprep.subr.mxu0 0.0
      %4396 = vmatpush1.msra.mxu0 0.0
      %4397 = vmatprep.subr.mxu0 0.0
      %4398 = vmatpush1.msra.mxu0 0.0
      %4399 = vmatprep.subr.mxu0 0.0
      %4400 = vmatpush1.msra.mxu0 0.0
      %4401 = vmatprep.subr.mxu0 0.0
      %4402 = vmatpush1.msra.mxu0 0.0
      %4403 = vmatprep.subr.mxu0 0.0
      %4404 = vmatpush1.msra.mxu0 0.0
      %4405 = vmatprep.subr.mxu0 0.0
      %4406 = vmatpush1.msra.mxu0 0.0
      %4407 = vmatprep.subr.mxu0 0.0
      %4408 = vmatpush1.msra.mxu0 0.0
      %4409 = vmatprep.mubr.f32.mxu0 0.0
      %4410 = vmatmul.mubr.f32.gmra.mrb[0].mxu0 %v4344
      %v4411 = vpop.f32.mrb[0].mxu0
      %v4412 = vadd.f32 0.0, %v4411
      %v4413 = vpop.f32.mrb[0].mxu0
      %4414 = vdwg.mxu0
      %v4415 = vadd.f32 %v4169, %v4412
      %v4416 = vtanh.pop %v4415
      %v4417 = vmul.f32 %v4343, %v4163
      %4418 = vmatprep.subr.mxu0 0.0
      %4419 = vmatpush1.msra.mxu0 %v1202
      %4420 = vmatprep.subr.mxu0 0.0
      %4421 = vmatpush1.msra.mxu0 %v1203
      %4422 = vmatprep.subr.mxu0 0.0
      %4423 = vmatpush1.msra.mxu0 %v1204
      %4424 = vmatprep.subr.mxu0 0.0
      %4425 = vmatpush1.msra.mxu0 %v1205
      %4426 = vmatprep.subr.mxu0 0.0
      %4427 = vmatpush1.msra.mxu0 %v1206
      %4428 = vmatprep.subr.mxu0 0.0
      %4429 = vmatpush1.msra.mxu0 %v1207
      %4430 = vmatprep.subr.mxu0 0.0
      %4431 = vmatpush1.msra.mxu0 %v1208
      %4432 = vmatprep.subr.mxu0 0.0
      %4433 = vmatpush1.msra.mxu0 %v1209
      %4434 = vmatprep.subr.mxu0 0.0
      %4435 = vmatpush1.msra.mxu0 %v1210
      %4436 = vmatprep.subr.mxu0 0.0
      %4437 = vmatpush1.msra.mxu0 %v1211
      %4438 = vmatprep.subr.mxu0 0.0
      %4439 = vmatpush1.msra.mxu0 %v1212
      %4440 = vmatprep.subr.mxu0 0.0
      %4441 = vmatpush1.msra.mxu0 %v1213
      %4442 = vmatprep.subr.mxu0 0.0
      %4443 = vmatpush1.msra.mxu0 %v1214
      %4444 = vmatprep.subr.mxu0 0.0
      %4445 = vmatpush1.msra.mxu0 %v1215
      %4446 = vmatprep.subr.mxu0 0.0
      %4447 = vmatpush1.msra.mxu0 %v1216
      %4448 = vmatprep.subr.mxu0 0.0
      %4449 = vmatpush1.msra.mxu0 %v1217
      %4450 = vmatprep.subr.mxu0 0.0
      %4451 = vmatpush1.msra.mxu0 0.0
      %4452 = vmatprep.subr.mxu0 0.0
      %4453 = vmatpush1.msra.mxu0 0.0
      %4454 = vmatprep.subr.mxu0 0.0
      %4455 = vmatpush1.msra.mxu0 0.0
      %4456 = vmatprep.subr.mxu0 0.0
      %4457 = vmatpush1.msra.mxu0 0.0
      %4458 = vmatprep.subr.mxu0 0.0
      %4459 = vmatpush1.msra.mxu0 0.0
      %4460 = vmatprep.subr.mxu0 0.0
      %4461 = vmatpush1.msra.mxu0 0.0
      %4462 = vmatprep.subr.mxu0 0.0
      %4463 = vmatpush1.msra.mxu0 0.0
      %4464 = vmatprep.subr.mxu0 0.0
      %4465 = vmatpush1.msra.mxu0 0.0
      %4466 = vmatprep.subr.mxu0 0.0
      %4467 = vmatpush1.msra.mxu0 0.0
      %4468 = vmatprep.subr.mxu0 0.0
      %4469 = vmatpush1.msra.mxu0 0.0
      %4470 = vmatprep.subr.mxu0 0.0
      %4471 = vmatpush1.msra.mxu0 0.0
      %4472 = vmatprep.subr.mxu0 0.0
      %4473 = vmatpush1.msra.mxu0 0.0
      %4474 = vmatprep.subr.mxu0 0.0
      %4475 = vmatpush1.msra.mxu0 0.0
      %4476 = vmatprep.subr.mxu0 0.0
      %4477 = vmatpush1.msra.mxu0 0.0
      %4478 = vmatprep.subr.mxu0 0.0
      %4479 = vmatpush1.msra.mxu0 0.0
      %4480 = vmatprep.subr.mxu0 0.0
      %4481 = vmatpush1.msra.mxu0 0.0
      %4482 = vmatprep.mubr.f32.mxu0 0.0
      %4483 = vmatmul.mubr.f32.gmra.mrb[0].mxu0 %v4417
      %v4484 = vpop.f32.mrb[0].mxu0
      %v4485 = vadd.f32 0.0, %v4484
      %v4486 = vpop.f32.mrb[0].mxu0
      %4487 = vdwg.mxu0
      %v4488 = vadd.f32 %v4173, %v4485
      %v4489 = vtanh.pop %v4488
      %v4490 = vmul.f32 %v4322, %v4163
      %v4491 = vsub.f32 1.0, %v4322
      %v4492 = vmul.f32 %v4491, %v4416
      %v4493 = vadd.f32 %v4490, %v4492
      %v4494 = vmul.f32 %v4336, %v4163
      %v4495 = vsub.f32 1.0, %v4336
      %v4496 = vmul.f32 %v4495, %v4489
      %v4497 = vadd.f32 %v4494, %v4496
      %4498 = vmatprep.subr.mxu0 0.0
      %4499 = vmatpush1.msra.mxu0 %v1235
      %4500 = vmatprep.subr.mxu0 0.0
      %4501 = vmatpush1.msra.mxu0 %v1236
      %4502 = vmatprep.subr.mxu0 0.0
      %4503 = vmatpush1.msra.mxu0 %v1237
      %4504 = vmatprep.subr.mxu0 0.0
      %4505 = vmatpush1.msra.mxu0 %v1238
      %4506 = vmatprep.subr.mxu0 0.0
      %4507 = vmatpush1.msra.mxu0 %v1239
      %4508 = vmatprep.subr.mxu0 0.0
      %4509 = vmatpush1.msra.mxu0 %v1240
      %4510 = vmatprep.subr.mxu0 0.0
      %4511 = vmatpush1.msra.mxu0 %v1241
      %4512 = vmatprep.subr.mxu0 0.0
      %4513 = vmatpush1.msra.mxu0 %v1242
      %4514 = vmatprep.subr.mxu0 0.0
      %4515 = vmatpush1.msra.mxu0 %v1243
      %4516 = vmatprep.subr.mxu0 0.0
      %4517 = vmatpush1.msra.mxu0 %v1244
      %4518 = vmatprep.subr.mxu0 0.0
      %4519 = vmatpush1.msra.mxu0 %v1245
      %4520 = vmatprep.subr.mxu0 0.0
      %4521 = vmatpush1.msra.mxu0 %v1246
      %4522 = vmatprep.subr.mxu0 0.0
      %4523 = vmatpush1.msra.mxu0 %v1247
      %4524 = vmatprep.subr.mxu0 0.0
      %4525 = vmatpush1.msra.mxu0 %v1248
      %4526 = vmatprep.subr.mxu0 0.0
      %4527 = vmatpush1.msra.mxu0 %v1249
      %4528 = vmatprep.subr.mxu0 0.0
      %4529 = vmatpush1.msra.mxu0 %v1250
      %4530 = vmatprep.subr.mxu0 0.0
      %4531 = vmatpush1.msra.mxu0 0.0
      %4532 = vmatprep.subr.mxu0 0.0
      %4533 = vmatpush1.msra.mxu0 0.0
      %4534 = vmatprep.subr.mxu0 0.0
      %4535 = vmatpush1.msra.mxu0 0.0
      %4536 = vmatprep.subr.mxu0 0.0
      %4537 = vmatpush1.msra.mxu0 0.0
      %4538 = vmatprep.subr.mxu0 0.0
      %4539 = vmatpush1.msra.mxu0 0.0
      %4540 = vmatprep.subr.mxu0 0.0
      %4541 = vmatpush1.msra.mxu0 0.0
      %4542 = vmatprep.subr.mxu0 0.0
      %4543 = vmatpush1.msra.mxu0 0.0
      %4544 = vmatprep.subr.mxu0 0.0
      %4545 = vmatpush1.msra.mxu0 0.0
      %4546 = vmatprep.subr.mxu0 0.0
      %4547 = vmatpush1.msra.mxu0 0.0
      %4548 = vmatprep.subr.mxu0 0.0
      %4549 = vmatpush1.msra.mxu0 0.0
      %4550 = vmatprep.subr.mxu0 0.0
      %4551 = vmatpush1.msra.mxu0 0.0
      %4552 = vmatprep.subr.mxu0 0.0
      %4553 = vmatpush1.msra.mxu0 0.0
      %4554 = vmatprep.subr.mxu0 0.0
      %4555 = vmatpush1.msra.mxu0 0.0
      %4556 = vmatprep.subr.mxu0 0.0
      %4557 = vmatpush1.msra.mxu0 0.0
      %4558 = vmatprep.subr.mxu0 0.0
      %4559 = vmatpush1.msra.mxu0 0.0
      %4560 = vmatprep.subr.mxu0 0.0
      %4561 = vmatpush1.msra.mxu0 0.0
      %4562 = vmatprep.mubr.f32.mxu0 0.0
      %4563 = vmatmul.mubr.f32.gmra.mrb[0].mxu0 %v4497
      %v4564 = vpop.f32.mrb[0].mxu0
      %v4565 = vadd.f32 0.0, %v4564
      %v4566 = vpop.f32.mrb[0].mxu0
      %4567 = vdwg.mxu0
      %4568 = vmatprep.subr.mxu0 0.0
      %4569 = vmatpush1.msra.mxu0 %v1218
      %4570 = vmatprep.subr.mxu0 0.0
      %4571 = vmatpush1.msra.mxu0 %v1219
      %4572 = vmatprep.subr.mxu0 0.0
      %4573 = vmatpush1.msra.mxu0 %v1220
      %4574 = vmatprep.subr.mxu0 0.0
      %4575 = vmatpush1.msra.mxu0 %v1221
      %4576 = vmatprep.subr.mxu0 0.0
      %4577 = vmatpush1.msra.mxu0 %v1222
      %4578 = vmatprep.subr.mxu0 0.0
      %4579 = vmatpush1.msra.mxu0 %v1223
      %4580 = vmatprep.subr.mxu0 0.0
      %4581 = vmatpush1.msra.mxu0 %v1224
      %4582 = vmatprep.subr.mxu0 0.0
      %4583 = vmatpush1.msra.mxu0 %v1225
      %4584 = vmatprep.subr.mxu0 0.0
      %4585 = vmatpush1.msra.mxu0 %v1226
      %4586 = vmatprep.subr.mxu0 0.0
      %4587 = vmatpush1.msra.mxu0 %v1227
      %4588 = vmatprep.subr.mxu0 0.0
      %4589 = vmatpush1.msra.mxu0 %v1228
      %4590 = vmatprep.subr.mxu0 0.0
      %4591 = vmatpush1.msra.mxu0 %v1229
      %4592 = vmatprep.subr.mxu0 0.0
      %4593 = vmatpush1.msra.mxu0 %v1230
      %4594 = vmatprep.subr.mxu0 0.0
      %4595 = vmatpush1.msra.mxu0 %v1231
      %4596 = vmatprep.subr.mxu0 0.0
      %4597 = vmatpush1.msra.mxu0 %v1232
      %4598 = vmatprep.subr.mxu0 0.0
      %4599 = vmatpush1.msra.mxu0 %v1233
      %4600 = vmatprep.subr.mxu0 0.0
      %4601 = vmatpush1.msra.mxu0 0.0
      %4602 = vmatprep.subr.mxu0 0.0
      %4603 = vmatpush1.msra.mxu0 0.0
      %4604 = vmatprep.subr.mxu0 0.0
      %4605 = vmatpush1.msra.mxu0 0.0
      %4606 = vmatprep.subr.mxu0 0.0
      %4607 = vmatpush1.msra.mxu0 0.0
      %4608 = vmatprep.subr.mxu0 0.0
      %4609 = vmatpush1.msra.mxu0 0.0
      %4610 = vmatprep.subr.mxu0 0.0
      %4611 = vmatpush1.msra.mxu0 0.0
      %4612 = vmatprep.subr.mxu0 0.0
      %4613 = vmatpush1.msra.mxu0 0.0
      %4614 = vmatprep.subr.mxu0 0.0
      %4615 = vmatpush1.msra.mxu0 0.0
      %4616 = vmatprep.subr.mxu0 0.0
      %4617 = vmatpush1.msra.mxu0 0.0
      %4618 = vmatprep.subr.mxu0 0.0
      %4619 = vmatpush1.msra.mxu0 0.0
      %4620 = vmatprep.subr.mxu0 0.0
      %4621 = vmatpush1.msra.mxu0 0.0
      %4622 = vmatprep.subr.mxu0 0.0
      %4623 = vmatpush1.msra.mxu0 0.0
      %4624 = vmatprep.subr.mxu0 0.0
      %4625 = vmatpush1.msra.mxu0 0.0
      %4626 = vmatprep.subr.mxu0 0.0
      %4627 = vmatpush1.msra.mxu0 0.0
      %4628 = vmatprep.subr.mxu0 0.0
      %4629 = vmatpush1.msra.mxu0 0.0
      %4630 = vmatprep.subr.mxu0 0.0
      %4631 = vmatpush1.msra.mxu0 0.0
      %4632 = vmatprep.mubr.f32.mxu0 0.0
      %4633 = vmatmul.mubr.f32.gmra.mrb[0].mxu0 %v4493
      %v4634 = vpop.f32.mrb[0].mxu0
      %v4635 = vadd.f32 %v4565, %v4634
      %v4636 = vpop.f32.mrb[0].mxu0
      %4637 = vdwg.mxu0
      %v4638 = vadd.f32 %v4635, %v1256
      %v4639 = vxor.u32 %v4638, 2147483648
      %v4640 = vmul.f32 %v4639, 1.442695
      %v4641 = vpow.pop %v4640
      %v4642 = vadd.f32 %v4641, 1.0
      %v4643 = vrcp.pop %v4642
      %v4644 = vmul.f32 1.0, %v4643
      %v4645 = vmul.f32 %v4644, %v4493
      %v4646 = vsub.f32 1.0, %v4644
      %v4647 = vmul.f32 %v4646, %v4497
      %v4648 = vadd.f32 %v4645, %v4647
      %s4649 = scalar_lea.vmem %s503, 48
      %4650 = vst [vmem:[%s4649] sm:$0xff] %v4648
      %s4651 = scalar_lea.vmem [#allocation3], 168
      %v4652 = vld [vmem:[%s4651] sm:$0xff]
      %v4653 = vld [vmem:[%s4651 + $0x8] sm:$0xff]
      %v4654 = vld [vmem:[%s4651 + $0x10] sm:$0xff]
      %s4655 = scalar_lea.vmem [#allocation4], 168
      %v4656 = vld [vmem:[%s4655] sm:$0xff]
      %v4657 = vld [vmem:[%s4655 + $0x8] sm:$0xff]
      %v4658 = vld [vmem:[%s4655 + $0x10] sm:$0xff]
      %4659 = vmatprep.subr.mxu0 %v1122
      %4660 = vmatpush1.msra.mxu0 %v1121
      %4661 = vmatprep.subr.mxu0 %v1126
      %4662 = vmatpush1.msra.mxu0 %v1125
      %4663 = vmatprep.subr.mxu0 %v1130
      %4664 = vmatpush1.msra.mxu0 %v1129
      %4665 = vmatprep.subr.mxu0 %v1134
      %4666 = vmatpush1.msra.mxu0 %v1133
      %4667 = vmatprep.subr.mxu0 %v1138
      %4668 = vmatpush1.msra.mxu0 %v1137
      %4669 = vmatprep.subr.mxu0 %v1142
      %4670 = vmatpush1.msra.mxu0 %v1141
      %4671 = vmatprep.subr.mxu0 %v1146
      %4672 = vmatpush1.msra.mxu0 %v1145
      %4673 = vmatprep.subr.mxu0 %v1150
      %4674 = vmatpush1.msra.mxu0 %v1149
      %4675 = vmatprep.subr.mxu0 %v1154
      %4676 = vmatpush1.msra.mxu0 %v1153
      %4677 = vmatprep.subr.mxu0 %v1158
      %4678 = vmatpush1.msra.mxu0 %v1157
      %4679 = vmatprep.subr.mxu0 %v1162
      %4680 = vmatpush1.msra.mxu0 %v1161
      %4681 = vmatprep.subr.mxu0 %v1166
      %4682 = vmatpush1.msra.mxu0 %v1165
      %4683 = vmatprep.subr.mxu0 %v1170
      %4684 = vmatpush1.msra.mxu0 %v1169
      %4685 = vmatprep.subr.mxu0 %v1174
      %4686 = vmatpush1.msra.mxu0 %v1173
      %4687 = vmatprep.subr.mxu0 %v1178
      %4688 = vmatpush1.msra.mxu0 %v1177
      %4689 = vmatprep.subr.mxu0 %v1182
      %4690 = vmatpush1.msra.mxu0 %v1181
      %4691 = vmatprep.subr.mxu0 0.0
      %4692 = vmatpush1.msra.mxu0 0.0
      %4693 = vmatprep.subr.mxu0 0.0
      %4694 = vmatpush1.msra.mxu0 0.0
      %4695 = vmatprep.subr.mxu0 0.0
      %4696 = vmatpush1.msra.mxu0 0.0
      %4697 = vmatprep.subr.mxu0 0.0
      %4698 = vmatpush1.msra.mxu0 0.0
      %4699 = vmatprep.subr.mxu0 0.0
      %4700 = vmatpush1.msra.mxu0 0.0
      %4701 = vmatprep.subr.mxu0 0.0
      %4702 = vmatpush1.msra.mxu0 0.0
      %4703 = vmatprep.subr.mxu0 0.0
      %4704 = vmatpush1.msra.mxu0 0.0
      %4705 = vmatprep.subr.mxu0 0.0
      %4706 = vmatpush1.msra.mxu0 0.0
      %4707 = vmatprep.subr.mxu0 0.0
      %4708 = vmatpush1.msra.mxu0 0.0
      %4709 = vmatprep.subr.mxu0 0.0
      %4710 = vmatpush1.msra.mxu0 0.0
      %4711 = vmatprep.subr.mxu0 0.0
      %4712 = vmatpush1.msra.mxu0 0.0
      %4713 = vmatprep.subr.mxu0 0.0
      %4714 = vmatpush1.msra.mxu0 0.0
      %4715 = vmatprep.subr.mxu0 0.0
      %4716 = vmatpush1.msra.mxu0 0.0
      %4717 = vmatprep.subr.mxu0 0.0
      %4718 = vmatpush1.msra.mxu0 0.0
      %4719 = vmatprep.subr.mxu0 0.0
      %4720 = vmatpush1.msra.mxu0 0.0
      %4721 = vmatprep.subr.mxu0 0.0
      %4722 = vmatpush1.msra.mxu0 0.0
      %4723 = vmatprep.mubr.f32.mxu0 0.0
      %4724 = vmatmul.mubr.f32.gmra.mrb[0].mxu0 %v4648
      %v4725 = vpop.f32.mrb[0].mxu0
      %v4726 = vadd.f32 0.0, %v4725
      %v4727 = vpop.f32.mrb[0].mxu0
      %v4728 = vadd.f32 0.0, %v4727
      %4729 = vdwg.mxu0
      %4730 = vmatprep.subr.mxu0 %v1124
      %4731 = vmatpush1.msra.mxu0 %v1123
      %4732 = vmatprep.subr.mxu0 %v1128
      %4733 = vmatpush1.msra.mxu0 %v1127
      %4734 = vmatprep.subr.mxu0 %v1132
      %4735 = vmatpush1.msra.mxu0 %v1131
      %4736 = vmatprep.subr.mxu0 %v1136
      %4737 = vmatpush1.msra.mxu0 %v1135
      %4738 = vmatprep.subr.mxu0 %v1140
      %4739 = vmatpush1.msra.mxu0 %v1139
      %4740 = vmatprep.subr.mxu0 %v1144
      %4741 = vmatpush1.msra.mxu0 %v1143
      %4742 = vmatprep.subr.mxu0 %v1148
      %4743 = vmatpush1.msra.mxu0 %v1147
      %4744 = vmatprep.subr.mxu0 %v1152
      %4745 = vmatpush1.msra.mxu0 %v1151
      %4746 = vmatprep.subr.mxu0 %v1156
      %4747 = vmatpush1.msra.mxu0 %v1155
      %4748 = vmatprep.subr.mxu0 %v1160
      %4749 = vmatpush1.msra.mxu0 %v1159
      %4750 = vmatprep.subr.mxu0 %v1164
      %4751 = vmatpush1.msra.mxu0 %v1163
      %4752 = vmatprep.subr.mxu0 %v1168
      %4753 = vmatpush1.msra.mxu0 %v1167
      %4754 = vmatprep.subr.mxu0 %v1172
      %4755 = vmatpush1.msra.mxu0 %v1171
      %4756 = vmatprep.subr.mxu0 %v1176
      %4757 = vmatpush1.msra.mxu0 %v1175
      %4758 = vmatprep.subr.mxu0 %v1180
      %4759 = vmatpush1.msra.mxu0 %v1179
      %4760 = vmatprep.subr.mxu0 %v1184
      %4761 = vmatpush1.msra.mxu0 %v1183
      %4762 = vmatprep.subr.mxu0 0.0
      %4763 = vmatpush1.msra.mxu0 0.0
      %4764 = vmatprep.subr.mxu0 0.0
      %4765 = vmatpush1.msra.mxu0 0.0
      %4766 = vmatprep.subr.mxu0 0.0
      %4767 = vmatpush1.msra.mxu0 0.0
      %4768 = vmatprep.subr.mxu0 0.0
      %4769 = vmatpush1.msra.mxu0 0.0
      %4770 = vmatprep.subr.mxu0 0.0
      %4771 = vmatpush1.msra.mxu0 0.0
      %4772 = vmatprep.subr.mxu0 0.0
      %4773 = vmatpush1.msra.mxu0 0.0
      %4774 = vmatprep.subr.mxu0 0.0
      %4775 = vmatpush1.msra.mxu0 0.0
      %4776 = vmatprep.subr.mxu0 0.0
      %4777 = vmatpush1.msra.mxu0 0.0
      %4778 = vmatprep.subr.mxu0 0.0
      %4779 = vmatpush1.msra.mxu0 0.0
      %4780 = vmatprep.subr.mxu0 0.0
      %4781 = vmatpush1.msra.mxu0 0.0
      %4782 = vmatprep.subr.mxu0 0.0
      %4783 = vmatpush1.msra.mxu0 0.0
      %4784 = vmatprep.subr.mxu0 0.0
      %4785 = vmatpush1.msra.mxu0 0.0
      %4786 = vmatprep.subr.mxu0 0.0
      %4787 = vmatpush1.msra.mxu0 0.0
      %4788 = vmatprep.subr.mxu0 0.0
      %4789 = vmatpush1.msra.mxu0 0.0
      %4790 = vmatprep.subr.mxu0 0.0
      %4791 = vmatpush1.msra.mxu0 0.0
      %4792 = vmatprep.subr.mxu0 0.0
      %4793 = vmatpush1.msra.mxu0 0.0
      %4794 = vmatprep.mubr.f32.mxu0 0.0
      %4795 = vmatmul.mubr.f32.gmra.mrb[0].mxu0 %v4648
      %v4796 = vpop.f32.mrb[0].mxu0
      %v4797 = vadd.f32 0.0, %v4796
      %v4798 = vpop.f32.mrb[0].mxu0
      %v4799 = vadd.f32 0.0, %v4798
      %4800 = vdwg.mxu0
      %v4801 = vadd.f32 %v4652, %v4726
      %v4802 = vxor.u32 %v4801, 2147483648
      %v4803 = vmul.f32 %v4802, 1.442695
      %v4804 = vpow.pop %v4803
      %v4805 = vadd.f32 %v4804, 1.0
      %v4806 = vrcp.pop %v4805
      %v4807 = vmul.f32 1.0, %v4806
      %v4808 = vadd.f32 %v4653, %v4728
      %v4809 = vxor.u32 %v4808, 2147483648
      %v4810 = vmul.f32 %v4809, 1.442695
      %v4811 = vpow.pop %v4810
      %v4812 = vadd.f32 %v4811, 1.0
      %v4813 = vrcp.pop %v4812
      %v4814 = vmul.f32 1.0, %v4813
      %v4815 = vadd.f32 %v4656, %v4797
      %v4816 = vxor.u32 %v4815, 2147483648
      %v4817 = vmul.f32 %v4816, 1.442695
      %v4818 = vpow.pop %v4817
      %v4819 = vadd.f32 %v4818, 1.0
      %v4820 = vrcp.pop %v4819
      %v4821 = vmul.f32 1.0, %v4820
      %v4822 = vadd.f32 %v4657, %v4799
      %v4823 = vxor.u32 %v4822, 2147483648
      %v4824 = vmul.f32 %v4823, 1.442695
      %v4825 = vpow.pop %v4824
      %v4826 = vadd.f32 %v4825, 1.0
      %v4827 = vrcp.pop %v4826
      %v4828 = vmul.f32 1.0, %v4827
      %v4829 = vmul.f32 %v4814, %v4648
      %4830 = vmatprep.subr.mxu0 0.0
      %4831 = vmatpush1.msra.mxu0 %v1185
      %4832 = vmatprep.subr.mxu0 0.0
      %4833 = vmatpush1.msra.mxu0 %v1186
      %4834 = vmatprep.subr.mxu0 0.0
      %4835 = vmatpush1.msra.mxu0 %v1187
      %4836 = vmatprep.subr.mxu0 0.0
      %4837 = vmatpush1.msra.mxu0 %v1188
      %4838 = vmatprep.subr.mxu0 0.0
      %4839 = vmatpush1.msra.mxu0 %v1189
      %4840 = vmatprep.subr.mxu0 0.0
      %4841 = vmatpush1.msra.mxu0 %v1190
      %4842 = vmatprep.subr.mxu0 0.0
      %4843 = vmatpush1.msra.mxu0 %v1191
      %4844 = vmatprep.subr.mxu0 0.0
      %4845 = vmatpush1.msra.mxu0 %v1192
      %4846 = vmatprep.subr.mxu0 0.0
      %4847 = vmatpush1.msra.mxu0 %v1193
      %4848 = vmatprep.subr.mxu0 0.0
      %4849 = vmatpush1.msra.mxu0 %v1194
      %4850 = vmatprep.subr.mxu0 0.0
      %4851 = vmatpush1.msra.mxu0 %v1195
      %4852 = vmatprep.subr.mxu0 0.0
      %4853 = vmatpush1.msra.mxu0 %v1196
      %4854 = vmatprep.subr.mxu0 0.0
      %4855 = vmatpush1.msra.mxu0 %v1197
      %4856 = vmatprep.subr.mxu0 0.0
      %4857 = vmatpush1.msra.mxu0 %v1198
      %4858 = vmatprep.subr.mxu0 0.0
      %4859 = vmatpush1.msra.mxu0 %v1199
      %4860 = vmatprep.subr.mxu0 0.0
      %4861 = vmatpush1.msra.mxu0 %v1200
      %4862 = vmatprep.subr.mxu0 0.0
      %4863 = vmatpush1.msra.mxu0 0.0
      %4864 = vmatprep.subr.mxu0 0.0
      %4865 = vmatpush1.msra.mxu0 0.0
      %4866 = vmatprep.subr.mxu0 0.0
      %4867 = vmatpush1.msra.mxu0 0.0
      %4868 = vmatprep.subr.mxu0 0.0
      %4869 = vmatpush1.msra.mxu0 0.0
      %4870 = vmatprep.subr.mxu0 0.0
      %4871 = vmatpush1.msra.mxu0 0.0
      %4872 = vmatprep.subr.mxu0 0.0
      %4873 = vmatpush1.msra.mxu0 0.0
      %4874 = vmatprep.subr.mxu0 0.0
      %4875 = vmatpush1.msra.mxu0 0.0
      %4876 = vmatprep.subr.mxu0 0.0
      %4877 = vmatpush1.msra.mxu0 0.0
      %4878 = vmatprep.subr.mxu0 0.0
      %4879 = vmatpush1.msra.mxu0 0.0
      %4880 = vmatprep.subr.mxu0 0.0
      %4881 = vmatpush1.msra.mxu0 0.0
      %4882 = vmatprep.subr.mxu0 0.0
      %4883 = vmatpush1.msra.mxu0 0.0
      %4884 = vmatprep.subr.mxu0 0.0
      %4885 = vmatpush1.msra.mxu0 0.0
      %4886 = vmatprep.subr.mxu0 0.0
      %4887 = vmatpush1.msra.mxu0 0.0
      %4888 = vmatprep.subr.mxu0 0.0
      %4889 = vmatpush1.msra.mxu0 0.0
      %4890 = vmatprep.subr.mxu0 0.0
      %4891 = vmatpush1.msra.mxu0 0.0
      %4892 = vmatprep.subr.mxu0 0.0
      %4893 = vmatpush1.msra.mxu0 0.0
      %4894 = vmatprep.mubr.f32.mxu0 0.0
      %4895 = vmatmul.mubr.f32.gmra.mrb[0].mxu0 %v4829
      %v4896 = vpop.f32.mrb[0].mxu0
      %v4897 = vadd.f32 0.0, %v4896
      %v4898 = vpop.f32.mrb[0].mxu0
      %4899 = vdwg.mxu0
      %v4900 = vadd.f32 %v4654, %v4897
      %v4901 = vtanh.pop %v4900
      %v4902 = vmul.f32 %v4828, %v4648
      %4903 = vmatprep.subr.mxu0 0.0
      %4904 = vmatpush1.msra.mxu0 %v1202
      %4905 = vmatprep.subr.mxu0 0.0
      %4906 = vmatpush1.msra.mxu0 %v1203
      %4907 = vmatprep.subr.mxu0 0.0
      %4908 = vmatpush1.msra.mxu0 %v1204
      %4909 = vmatprep.subr.mxu0 0.0
      %4910 = vmatpush1.msra.mxu0 %v1205
      %4911 = vmatprep.subr.mxu0 0.0
      %4912 = vmatpush1.msra.mxu0 %v1206
      %4913 = vmatprep.subr.mxu0 0.0
      %4914 = vmatpush1.msra.mxu0 %v1207
      %4915 = vmatprep.subr.mxu0 0.0
      %4916 = vmatpush1.msra.mxu0 %v1208
      %4917 = vmatprep.subr.mxu0 0.0
      %4918 = vmatpush1.msra.mxu0 %v1209
      %4919 = vmatprep.subr.mxu0 0.0
      %4920 = vmatpush1.msra.mxu0 %v1210
      %4921 = vmatprep.subr.mxu0 0.0
      %4922 = vmatpush1.msra.mxu0 %v1211
      %4923 = vmatprep.subr.mxu0 0.0
      %4924 = vmatpush1.msra.mxu0 %v1212
      %4925 = vmatprep.subr.mxu0 0.0
      %4926 = vmatpush1.msra.mxu0 %v1213
      %4927 = vmatprep.subr.mxu0 0.0
      %4928 = vmatpush1.msra.mxu0 %v1214
      %4929 = vmatprep.subr.mxu0 0.0
      %4930 = vmatpush1.msra.mxu0 %v1215
      %4931 = vmatprep.subr.mxu0 0.0
      %4932 = vmatpush1.msra.mxu0 %v1216
      %4933 = vmatprep.subr.mxu0 0.0
      %4934 = vmatpush1.msra.mxu0 %v1217
      %4935 = vmatprep.subr.mxu0 0.0
      %4936 = vmatpush1.msra.mxu0 0.0
      %4937 = vmatprep.subr.mxu0 0.0
      %4938 = vmatpush1.msra.mxu0 0.0
      %4939 = vmatprep.subr.mxu0 0.0
      %4940 = vmatpush1.msra.mxu0 0.0
      %4941 = vmatprep.subr.mxu0 0.0
      %4942 = vmatpush1.msra.mxu0 0.0
      %4943 = vmatprep.subr.mxu0 0.0
      %4944 = vmatpush1.msra.mxu0 0.0
      %4945 = vmatprep.subr.mxu0 0.0
      %4946 = vmatpush1.msra.mxu0 0.0
      %4947 = vmatprep.subr.mxu0 0.0
      %4948 = vmatpush1.msra.mxu0 0.0
      %4949 = vmatprep.subr.mxu0 0.0
      %4950 = vmatpush1.msra.mxu0 0.0
      %4951 = vmatprep.subr.mxu0 0.0
      %4952 = vmatpush1.msra.mxu0 0.0
      %4953 = vmatprep.subr.mxu0 0.0
      %4954 = vmatpush1.msra.mxu0 0.0
      %4955 = vmatprep.subr.mxu0 0.0
      %4956 = vmatpush1.msra.mxu0 0.0
      %4957 = vmatprep.subr.mxu0 0.0
      %4958 = vmatpush1.msra.mxu0 0.0
      %4959 = vmatprep.subr.mxu0 0.0
      %4960 = vmatpush1.msra.mxu0 0.0
      %4961 = vmatprep.subr.mxu0 0.0
      %4962 = vmatpush1.msra.mxu0 0.0
      %4963 = vmatprep.subr.mxu0 0.0
      %4964 = vmatpush1.msra.mxu0 0.0
      %4965 = vmatprep.subr.mxu0 0.0
      %4966 = vmatpush1.msra.mxu0 0.0
      %4967 = vmatprep.mubr.f32.mxu0 0.0
      %4968 = vmatmul.mubr.f32.gmra.mrb[0].mxu0 %v4902
      %v4969 = vpop.f32.mrb[0].mxu0
      %v4970 = vadd.f32 0.0, %v4969
      %v4971 = vpop.f32.mrb[0].mxu0
      %4972 = vdwg.mxu0
      %v4973 = vadd.f32 %v4658, %v4970
      %v4974 = vtanh.pop %v4973
      %v4975 = vmul.f32 %v4807, %v4648
      %v4976 = vsub.f32 1.0, %v4807
      %v4977 = vmul.f32 %v4976, %v4901
      %v4978 = vadd.f32 %v4975, %v4977
      %v4979 = vmul.f32 %v4821, %v4648
      %v4980 = vsub.f32 1.0, %v4821
      %v4981 = vmul.f32 %v4980, %v4974
      %v4982 = vadd.f32 %v4979, %v4981
      %4983 = vmatprep.subr.mxu0 0.0
      %4984 = vmatpush1.msra.mxu0 %v1235
      %4985 = vmatprep.subr.mxu0 0.0
      %4986 = vmatpush1.msra.mxu0 %v1236
      %4987 = vmatprep.subr.mxu0 0.0
      %4988 = vmatpush1.msra.mxu0 %v1237
      %4989 = vmatprep.subr.mxu0 0.0
      %4990 = vmatpush1.msra.mxu0 %v1238
      %4991 = vmatprep.subr.mxu0 0.0
      %4992 = vmatpush1.msra.mxu0 %v1239
      %4993 = vmatprep.subr.mxu0 0.0
      %4994 = vmatpush1.msra.mxu0 %v1240
      %4995 = vmatprep.subr.mxu0 0.0
      %4996 = vmatpush1.msra.mxu0 %v1241
      %4997 = vmatprep.subr.mxu0 0.0
      %4998 = vmatpush1.msra.mxu0 %v1242
      %4999 = vmatprep.subr.mxu0 0.0
      %5000 = vmatpush1.msra.mxu0 %v1243
      %5001 = vmatprep.subr.mxu0 0.0
      %5002 = vmatpush1.msra.mxu0 %v1244
      %5003 = vmatprep.subr.mxu0 0.0
      %5004 = vmatpush1.msra.mxu0 %v1245
      %5005 = vmatprep.subr.mxu0 0.0
      %5006 = vmatpush1.msra.mxu0 %v1246
      %5007 = vmatprep.subr.mxu0 0.0
      %5008 = vmatpush1.msra.mxu0 %v1247
      %5009 = vmatprep.subr.mxu0 0.0
      %5010 = vmatpush1.msra.mxu0 %v1248
      %5011 = vmatprep.subr.mxu0 0.0
      %5012 = vmatpush1.msra.mxu0 %v1249
      %5013 = vmatprep.subr.mxu0 0.0
      %5014 = vmatpush1.msra.mxu0 %v1250
      %5015 = vmatprep.subr.mxu0 0.0
      %5016 = vmatpush1.msra.mxu0 0.0
      %5017 = vmatprep.subr.mxu0 0.0
      %5018 = vmatpush1.msra.mxu0 0.0
      %5019 = vmatprep.subr.mxu0 0.0
      %5020 = vmatpush1.msra.mxu0 0.0
      %5021 = vmatprep.subr.mxu0 0.0
      %5022 = vmatpush1.msra.mxu0 0.0
      %5023 = vmatprep.subr.mxu0 0.0
      %5024 = vmatpush1.msra.mxu0 0.0
      %5025 = vmatprep.subr.mxu0 0.0
      %5026 = vmatpush1.msra.mxu0 0.0
      %5027 = vmatprep.subr.mxu0 0.0
      %5028 = vmatpush1.msra.mxu0 0.0
      %5029 = vmatprep.subr.mxu0 0.0
      %5030 = vmatpush1.msra.mxu0 0.0
      %5031 = vmatprep.subr.mxu0 0.0
      %5032 = vmatpush1.msra.mxu0 0.0
      %5033 = vmatprep.subr.mxu0 0.0
      %5034 = vmatpush1.msra.mxu0 0.0
      %5035 = vmatprep.subr.mxu0 0.0
      %5036 = vmatpush1.msra.mxu0 0.0
      %5037 = vmatprep.subr.mxu0 0.0
      %5038 = vmatpush1.msra.mxu0 0.0
      %5039 = vmatprep.subr.mxu0 0.0
      %5040 = vmatpush1.msra.mxu0 0.0
      %5041 = vmatprep.subr.mxu0 0.0
      %5042 = vmatpush1.msra.mxu0 0.0
      %5043 = vmatprep.subr.mxu0 0.0
      %5044 = vmatpush1.msra.mxu0 0.0
      %5045 = vmatprep.subr.mxu0 0.0
      %5046 = vmatpush1.msra.mxu0 0.0
      %5047 = vmatprep.mubr.f32.mxu0 0.0
      %5048 = vmatmul.mubr.f32.gmra.mrb[0].mxu0 %v4982
      %v5049 = vpop.f32.mrb[0].mxu0
      %v5050 = vadd.f32 0.0, %v5049
      %v5051 = vpop.f32.mrb[0].mxu0
      %5052 = vdwg.mxu0
      %5053 = vmatprep.subr.mxu0 0.0
      %5054 = vmatpush1.msra.mxu0 %v1218
      %5055 = vmatprep.subr.mxu0 0.0
      %5056 = vmatpush1.msra.mxu0 %v1219
      %5057 = vmatprep.subr.mxu0 0.0
      %5058 = vmatpush1.msra.mxu0 %v1220
      %5059 = vmatprep.subr.mxu0 0.0
      %5060 = vmatpush1.msra.mxu0 %v1221
      %5061 = vmatprep.subr.mxu0 0.0
      %5062 = vmatpush1.msra.mxu0 %v1222
      %5063 = vmatprep.subr.mxu0 0.0
      %5064 = vmatpush1.msra.mxu0 %v1223
      %5065 = vmatprep.subr.mxu0 0.0
      %5066 = vmatpush1.msra.mxu0 %v1224
      %5067 = vmatprep.subr.mxu0 0.0
      %5068 = vmatpush1.msra.mxu0 %v1225
      %5069 = vmatprep.subr.mxu0 0.0
      %5070 = vmatpush1.msra.mxu0 %v1226
      %5071 = vmatprep.subr.mxu0 0.0
      %5072 = vmatpush1.msra.mxu0 %v1227
      %5073 = vmatprep.subr.mxu0 0.0
      %5074 = vmatpush1.msra.mxu0 %v1228
      %5075 = vmatprep.subr.mxu0 0.0
      %5076 = vmatpush1.msra.mxu0 %v1229
      %5077 = vmatprep.subr.mxu0 0.0
      %5078 = vmatpush1.msra.mxu0 %v1230
      %5079 = vmatprep.subr.mxu0 0.0
      %5080 = vmatpush1.msra.mxu0 %v1231
      %5081 = vmatprep.subr.mxu0 0.0
      %5082 = vmatpush1.msra.mxu0 %v1232
      %5083 = vmatprep.subr.mxu0 0.0
      %5084 = vmatpush1.msra.mxu0 %v1233
      %5085 = vmatprep.subr.mxu0 0.0
      %5086 = vmatpush1.msra.mxu0 0.0
      %5087 = vmatprep.subr.mxu0 0.0
      %5088 = vmatpush1.msra.mxu0 0.0
      %5089 = vmatprep.subr.mxu0 0.0
      %5090 = vmatpush1.msra.mxu0 0.0
      %5091 = vmatprep.subr.mxu0 0.0
      %5092 = vmatpush1.msra.mxu0 0.0
      %5093 = vmatprep.subr.mxu0 0.0
      %5094 = vmatpush1.msra.mxu0 0.0
      %5095 = vmatprep.subr.mxu0 0.0
      %5096 = vmatpush1.msra.mxu0 0.0
      %5097 = vmatprep.subr.mxu0 0.0
      %5098 = vmatpush1.msra.mxu0 0.0
      %5099 = vmatprep.subr.mxu0 0.0
      %5100 = vmatpush1.msra.mxu0 0.0
      %5101 = vmatprep.subr.mxu0 0.0
      %5102 = vmatpush1.msra.mxu0 0.0
      %5103 = vmatprep.subr.mxu0 0.0
      %5104 = vmatpush1.msra.mxu0 0.0
      %5105 = vmatprep.subr.mxu0 0.0
      %5106 = vmatpush1.msra.mxu0 0.0
      %5107 = vmatprep.subr.mxu0 0.0
      %5108 = vmatpush1.msra.mxu0 0.0
      %5109 = vmatprep.subr.mxu0 0.0
      %5110 = vmatpush1.msra.mxu0 0.0
      %5111 = vmatprep.subr.mxu0 0.0
      %5112 = vmatpush1.msra.mxu0 0.0
      %5113 = vmatprep.subr.mxu0 0.0
      %5114 = vmatpush1.msra.mxu0 0.0
      %5115 = vmatprep.subr.mxu0 0.0
      %5116 = vmatpush1.msra.mxu0 0.0
      %5117 = vmatprep.mubr.f32.mxu0 0.0
      %5118 = vmatmul.mubr.f32.gmra.mrb[0].mxu0 %v4978
      %v5119 = vpop.f32.mrb[0].mxu0
      %v5120 = vadd.f32 %v5050, %v5119
      %v5121 = vpop.f32.mrb[0].mxu0
      %5122 = vdwg.mxu0
      %v5123 = vadd.f32 %v5120, %v1256
      %v5124 = vxor.u32 %v5123, 2147483648
      %v5125 = vmul.f32 %v5124, 1.442695
      %v5126 = vpow.pop %v5125
      %v5127 = vadd.f32 %v5126, 1.0
      %v5128 = vrcp.pop %v5127
      %v5129 = vmul.f32 1.0, %v5128
      %v5130 = vmul.f32 %v5129, %v4978
      %v5131 = vsub.f32 1.0, %v5129
      %v5132 = vmul.f32 %v5131, %v4982
      %v5133 = vadd.f32 %v5130, %v5132
      %s5134 = scalar_lea.vmem %s503, 56
      %5135 = vst [vmem:[%s5134] sm:$0xff] %v5133
      %p5136 = scmp.eq.s32.totalorder %s29, 1
      // Predicated region
      $region69: #{ggru_forward.1} parent=63 // pred_check
        %p5137 = pneg %p5136
      $region70: #{ggru_forward.1} parent=63 // pred_check_branch
        %5139 = sbr.rel (%p5137) target = $region72
      $region71: #{ggru_forward.1} parent=63 // pred_region
        %5140 = vst [vmem:[%s508] sm:$0xff] %v5133
      $region72: #{ggru_forward.1} parent=63 // pred_fallthru
        _
      %5141 = vst [vmem:[#allocation2] sm:$0xff] %v5133
      %s5142 = smul.u32 8, %s29
      %p5143 = scmp.lt.s32.totalorder %s5142, 15
      %s5144 = scalar_select %p5143, %s5142, 15
      %p5145 = scmp.lt.s32.totalorder %s28, 0
      %s5146 = scalar_select %p5145, %s28, 0
      %s5147 = sadd.s32 %s5146, %s5144
      %s5148 = smul.addr %s5147, 8
      %s5149 = scalar_lea.vmem %s11, %s5148
      %p5150 = scmp.lt.s32.totalorder %s28, 0
      %s5151 = scalar_select %p5150, %s28, 0
      %s5152 = smul.addr %s5151, 8
      %s5153 = scalar_lea.vmem %s12, %s5152
      // Predicated region
      $region73: #{ggru_forward.1} parent=63 // pred_check
        %p5154 = pneg %p306
      $region74: #{ggru_forward.1} parent=63 // pred_check_branch
        %5156 = sbr.rel (%p5154) target = $region76
      $region75: #{ggru_forward.1} parent=63 // pred_region
        %s5157 = smul.u32 8, %s29
      $region76: #{ggru_forward.1} parent=63 // pred_fallthru
        _
      // Predicated region
      $region77: #{ggru_forward.1} parent=63 // pred_check
        %p5158 = pneg %p332
      $region78: #{ggru_forward.1} parent=63 // pred_check_branch
        %5160 = sbr.rel (%p5158) target = $region80
      $region79: #{ggru_forward.1} parent=63 // pred_region
        _
      $region80: #{ggru_forward.1} parent=63 // pred_fallthru
        _
      // Predicated region
      $region81: #{ggru_forward.1} parent=63 // pred_check
        %p5161 = pneg %p332
      $region82: #{ggru_forward.1} parent=63 // pred_check_branch
        %5163 = sbr.rel (%p5161) target = $region84
      $region83: #{ggru_forward.1} parent=63 // pred_region
        %p5164 = scmp.lt.s32.totalorder %s28, 0
        %s5165 = scalar_select %p5164, %s28, 0
        %s5166 = smul.addr %s5165, 8
        %s5167 = scalar_lea.vmem %s12, %s5166
      $region84: #{ggru_forward.1} parent=63 // pred_fallthru
        _
    $region64: #{ggru_forward.1} parent=5 // pred_fallthru
      _
    %p5168 = scmp.le.s32.totalorder 2, %s19
    // Predicated region
    $region85: #{ggru_forward.1} parent=5 // pred_check
      %p5169 = pneg %p5168
    $region86: #{ggru_forward.1} parent=5 // pred_check_branch
      %5171 = sbr.rel (%p5169) target = $region88
    $region87: #{ggru_forward.1} parent=5 // pred_region
      %s5172 = ssub.s32 %s19, 2
      // Predicated region
      $region89: #{ggru_forward.1} parent=87 // pred_check
        %p5173 = pneg %p312
      $region90: #{ggru_forward.1} parent=87 // pred_check_branch
        %5175 = sbr.rel (%p5173) target = $region92
      $region91: #{ggru_forward.1} parent=87 // pred_region
        %s5176 = smul.u32 8, %s31
        %p5177 = scmp.lt.s32.totalorder %s5176, 15
        %s5178 = scalar_select %p5177, %s5176, 15
        %p5179 = scmp.lt.s32.totalorder %s30, 0
        %s5180 = scalar_select %p5179, %s30, 0
        %s5181 = sadd.s32 %s5180, %s5178
        %s5182 = smul.addr %s5181, 8
        %s5183 = scalar_lea.vmem %s11, %s5182
      $region92: #{ggru_forward.1} parent=87 // pred_fallthru
        _
    $region88: #{ggru_forward.1} parent=5 // pred_fallthru
      _
  $region6: #{ggru_forward.1} parent=0 // loop_footer
    %s23 = sadd.s32 1, %s19
  $region7: #{ggru_forward.1} parent=0 // loop_footer_branch
    %18 = sbr.rel target = $region3
  $region8: #{ggru_forward.1} parent=0 // loop_exit
    _

</llo_original>
